<compile_context>
chip_gen: v7x
topology: tpu7x:2x2x1
jax: 0.10.0
libtpu: 0.0.40
codegen_flags: <defaults>
</compile_context>

<pallas_src>
import functools

import jax
import jax.numpy as jnp
from jax.experimental import pallas as pl
from jax.experimental.pallas import tpu as pltpu


def _round_up(x, m):
    return (x + m - 1) // m * m


# ---------------------------------------------------------------------------
# Kernel A: ConvTranspose2d(k=4, s=2, p=1) via 4 sub-pixel phases, one fused dot
# ---------------------------------------------------------------------------
def _upsample_phase_kernel(x_ref, w_ref, b_ref, o_ref, *, hw, w_sp, pad_top):
    # x_ref: (pad_top + hw + pad_bot, Cin) bf16  -- zero-row-padded flattened coarse input
    # w_ref: (9*Cin, 4*Cout) bf16               -- phase-fused, zero-structured ConvT taps
    # b_ref: (1, 4*Cout) f32
    # o_ref: (hw, 4*Cout) bf16                  -- 4 output parities, phase-major channels
    col = jax.lax.broadcasted_iota(jnp.int32, (hw, 1), 0) % w_sp
    not_left = col != 0
    not_right = col != (w_sp - 1)

    taps = []
    for dr in (-1, 0, 1):          # coarse row offset
        for dc in (-1, 0, 1):      # coarse col offset
            s = pad_top + dr * w_sp + dc
            v = x_ref[s:s + hw, :]
            if dc == -1:
                v = jnp.where(not_left, v, jnp.zeros_like(v))
            elif dc == 1:
                v = jnp.where(not_right, v, jnp.zeros_like(v))
            taps.append(v)
    lhs = jnp.concatenate(taps, axis=1)                       # (hw, 9*Cin) bf16
    acc = jnp.dot(lhs, w_ref[...], preferred_element_type=jnp.float32)
    acc = acc + b_ref[...]
    o_ref[...] = acc.astype(o_ref.dtype)


def _upsample_pallas(x_nhwc, w_fused, bias4):
    B, H, W, Cin = x_nhwc.shape
    hw = H * W
    cout4 = w_fused.shape[1]
    pad_top = _round_up(W + 1, 8)
    pad_bot = pad_top
    n_rows = pad_top + hw + pad_bot

    x_flat = x_nhwc.reshape(B, hw, Cin).astype(jnp.bfloat16)
    x_pad = jnp.pad(x_flat, ((0, 0), (pad_top, pad_bot), (0, 0)))

    kernel = functools.partial(_upsample_phase_kernel, hw=hw, w_sp=W, pad_top=pad_top)
    out = pl.pallas_call(
        kernel,
        out_shape=jax.ShapeDtypeStruct((B, hw, cout4), jnp.bfloat16),
        grid=(B,),
        in_specs=[
            pl.BlockSpec((None, n_rows, Cin), lambda b: (b, 0, 0)),
            pl.BlockSpec((9 * Cin, cout4), lambda b: (0, 0)),
            pl.BlockSpec((1, cout4), lambda b: (0, 0)),
        ],
        out_specs=pl.BlockSpec((None, hw, cout4), lambda b: (b, 0, 0)),
        compiler_params=pltpu.CompilerParams(dimension_semantics=("parallel",)),
    )(x_pad, w_fused, bias4)
    return out  # (B, hw, 4*Cout) bf16


# ---------------------------------------------------------------------------
# Kernel B: fused conv1a -> conv1b -> conv2a -> conv2b -> SELayer (all in VMEM)
# ---------------------------------------------------------------------------
def _fused_conv_se_kernel(cat_ref,
                          w1a_ref, b1a_ref, w1b_ref, b1b_ref,
                          w2a_ref, b2a_ref, w2b_ref, b2b_ref,
                          sw1_ref, sb1_ref, sw2_ref, sb2_ref,
                          o_ref, pad_sc, *, hw, w_sp, pad_top):
    # cat_ref: (hw, Cc) bf16 flattened concat([replicate-padded skip, upsample], channels)
    # wX_ref : (9*Cin, Cout) bf16 fused 3x3 weights; bX_ref: (1, Cout) f32
    # o_ref  : (hw, out_) f32
    # pad_sc : (pad_top + hw + pad_bot, Cmax) bf16 scratch (zero halo rows = conv padding)
    pad_sc[...] = jnp.zeros_like(pad_sc)

    col = jax.lax.broadcasted_iota(jnp.int32, (hw, 1), 0) % w_sp
    not_left = col != 0
    not_right = col != (w_sp - 1)

    def conv3x3_relu(x_bf16, w_ref, b_ref):
        cin = x_bf16.shape[1]
        pad_sc[pad_top:pad_top + hw, :cin] = x_bf16
        taps = []
        for kh in range(3):
            for kw in range(3):
                s = pad_top + (kh - 1) * w_sp + (kw - 1)
                v = pad_sc[s:s + hw, :cin]
                if kw == 0:
                    v = jnp.where(not_left, v, jnp.zeros_like(v))
                elif kw == 2:
                    v = jnp.where(not_right, v, jnp.zeros_like(v))
                taps.append(v)
        lhs = jnp.concatenate(taps, axis=1)                   # (hw, 9*cin) bf16
        acc = jnp.dot(lhs, w_ref[...], preferred_element_type=jnp.float32)
        return jnp.maximum(acc + b_ref[...], 0.0)             # f32 (hw, cout)

    y = conv3x3_relu(cat_ref[...], w1a_ref, b1a_ref)
    y = conv3x3_relu(y.astype(pad_sc.dtype), w1b_ref, b1b_ref)
    y = conv3x3_relu(y.astype(pad_sc.dtype), w2a_ref, b2a_ref)
    y = conv3x3_relu(y.astype(pad_sc.dtype), w2b_ref, b2b_ref)   # (hw, out_) f32

    # Squeeze-Excite, fused (pool reuses the VMEM-resident activation).
    pooled = jnp.sum(y, axis=0, keepdims=True) * (1.0 / hw)      # (1, out_)
    h = jnp.dot(pooled, sw1_ref[...], preferred_element_type=jnp.float32) + sb1_ref[...]
    h = jnp.maximum(h, 0.0)
    z = jnp.dot(h, sw2_ref[...], preferred_element_type=jnp.float32) + sb2_ref[...]
    scale = 1.0 / (1.0 + jnp.exp(-z))                            # sigmoid, (1, out_)
    o_ref[...] = (y * scale).astype(o_ref.dtype)


def _conv_chain_se_pallas(cat_flat, params, *, w_fine):
    B, hw, Cc = cat_flat.shape
    mid_ch = params["c1a_w"].shape[1]
    out_ch = params["c2b_w"].shape[1]
    cmax = max(Cc, mid_ch, out_ch)
    pad_top = _round_up(w_fine + 1, 8)
    pad_bot = pad_top
    n_rows = pad_top + hw + pad_bot

    def full(shape):
        nd = len(shape)
        return pl.BlockSpec(shape, lambda b, _n=nd: (0,) * _n)

    kernel = functools.partial(_fused_conv_se_kernel, hw=hw, w_sp=w_fine, pad_top=pad_top)
    out = pl.pallas_call(
        kernel,
        out_shape=jax.ShapeDtypeStruct((B, hw, out_ch), jnp.float32),
        grid=(B,),
        in_specs=[
            pl.BlockSpec((None, hw, Cc), lambda b: (b, 0, 0)),
            full(params["c1a_w"].shape), full(params["c1a_b"].shape),
            full(params["c1b_w"].shape), full(params["c1b_b"].shape),
            full(params["c2a_w"].shape), full(params["c2a_b"].shape),
            full(params["c2b_w"].shape), full(params["c2b_b"].shape),
            full(params["se_w1"].shape), full(params["se_b1"].shape),
            full(params["se_w2"].shape), full(params["se_b2"].shape),
        ],
        out_specs=pl.BlockSpec((None, hw, out_ch), lambda b: (b, 0, 0)),
        scratch_shapes=[pltpu.VMEM((n_rows, cmax), jnp.bfloat16)],
        compiler_params=pltpu.CompilerParams(dimension_semantics=("parallel",)),
    )(cat_flat,
      params["c1a_w"], params["c1a_b"], params["c1b_w"], params["c1b_b"],
      params["c2a_w"], params["c2a_b"], params["c2b_w"], params["c2b_b"],
      params["se_w1"], params["se_b1"], params["se_w2"], params["se_b2"])
    return out


# ---------------------------------------------------------------------------
# unetUp forward (matches PyTorch semantics)
# ---------------------------------------------------------------------------
def unet_up_forward(params, inputs_nchw, skip_nchw):
    x = jnp.transpose(inputs_nchw, (0, 2, 3, 1)).astype(jnp.float32)   # (B, H, W, in_)
    sk = jnp.transpose(skip_nchw, (0, 2, 3, 1)).astype(jnp.float32)    # (B, Hs, Ws, skip_)
    B, H, W, Cin = x.shape
    H2, W2 = 2 * H, 2 * W

    # --- self.up: ConvTranspose2d(in_, in_, 4, stride=2, padding=1) as 4 phases ---
    up_ph = _upsample_pallas(x, params["up_w"], params["up_b"])         # (B, H*W, 4*in_)
    up = (up_ph.reshape(B, H, W, 2, 2, Cin)
               .transpose(0, 1, 3, 2, 4, 5)
               .reshape(B, H2, W2, Cin))                                # (B, 2H, 2W, in_)

    # --- replicate-pad skip, concat channels (padded skip first, like torch.cat) ---
    offset = H2 - sk.shape[1]
    p = offset // 2
    sk_p = jnp.pad(sk, ((0, 0), (p, p), (p, p), (0, 0)), mode="edge")
    cat = jnp.concatenate([sk_p.astype(jnp.bfloat16), up], axis=-1)     # (B, 2H, 2W, Cc)
    cat_flat = cat.reshape(B, H2 * W2, cat.shape[-1])

    # --- fused conv1 / conv2 / SE ---
    y = _conv_chain_se_pallas(cat_flat, params, w_fine=W2)              # (B, 4HW, out_)
    y = y.reshape(B, H2, W2, -1)
    # TODO(synk): for production shapes (e.g. 256x256 spatial) add an HW tiling grid axis
    # with halo handling so blocks fit v7x 64MiB / v5e 16MiB-scoped VMEM.
    return jnp.transpose(y, (0, 3, 1, 2))                               # NCHW


# ---------------------------------------------------------------------------
# Deterministic parameter init (PyTorch layouts, then fused for the kernels)
# ---------------------------------------------------------------------------
def init_params(key, in_, skip_, middle_, out_, reduction=16):
    keys = jax.random.split(key, 14)

    def conv_w(k, cout, cin, ks):                 # PyTorch Conv2d: (Cout, Cin, K, K)
        return 0.1 * jax.random.normal(k, (cout, cin, ks, ks), jnp.float32)

    def vec(k, c):
        return 0.05 * jax.random.normal(k, (c,), jnp.float32)

    w_up = 0.1 * jax.random.normal(keys[0], (in_, in_, 4, 4), jnp.float32)  # ConvT: (Cin, Cout, K, K)
    b_up = vec(keys[1], in_)
    w_c1a = conv_w(keys[2], middle_, in_ + skip_, 3); b_c1a = vec(keys[3], middle_)
    w_c1b = conv_w(keys[4], middle_, middle_, 3);     b_c1b = vec(keys[5], middle_)
    w_c2a = conv_w(keys[6], out_, middle_, 3);        b_c2a = vec(keys[7], out_)
    w_c2b = conv_w(keys[8], out_, out_, 3);           b_c2b = vec(keys[9], out_)
    cr = out_ // reduction
    w_fc1 = 0.1 * jax.random.normal(keys[10], (cr, out_), jnp.float32)       # Linear: (out, in)
    b_fc1 = vec(keys[11], cr)
    w_fc2 = 0.1 * jax.random.normal(keys[12], (out_, cr), jnp.float32)
    b_fc2 = vec(keys[13], out_)

    def fuse_conv3x3(w):
        # (Cout, Cin, 3, 3) -> (9*Cin, Cout), tap order kh-major / kw-minor (matches kernel)
        cout, cin = w.shape[0], w.shape[1]
        return jnp.transpose(w, (2, 3, 1, 0)).reshape(9 * cin, cout)

    def fuse_convT4x4_phases(w):
        # (Cin, Cout, 4, 4) -> (9*Cin, 4*Cout): sub-pixel phase (rh, rw) at output column
        # block ph = rh*2+rw uses coarse tap (dr, dc) with kernel entry (kh, kw); unused
        # (phase, tap) combos stay zero so a single dot emits all 4 phases.
        cin, cout = w.shape[0], w.shape[1]
        rhs = jnp.zeros((9 * cin, 4 * cout), jnp.float32)
        taps = [(dr, dc) for dr in (-1, 0, 1) for dc in (-1, 0, 1)]
        for t, (dr, dc) in enumerate(taps):
            for rh in (0, 1):
                for rw in (0, 1):
                    dh, dw = dr - rh + 1, dc - rw + 1
                    if dh in (0, 1) and dw in (0, 1):
                        kh, kw = 3 - rh - 2 * dh, 3 - rw - 2 * dw
                        ph = rh * 2 + rw
                        rhs = rhs.at[t * cin:(t + 1) * cin,
                                     ph * cout:(ph + 1) * cout].set(w[:, :, kh, kw])
        return rhs

    return dict(
        up_w=fuse_convT4x4_phases(w_up).astype(jnp.bfloat16),
        up_b=jnp.tile(b_up, 4).reshape(1, 4 * in_),                       # f32, per-phase bias
        c1a_w=fuse_conv3x3(w_c1a).astype(jnp.bfloat16), c1a_b=b_c1a.reshape(1, middle_),
        c1b_w=fuse_conv3x3(w_c1b).astype(jnp.bfloat16), c1b_b=b_c1b.reshape(1, middle_),
        c2a_w=fuse_conv3x3(w_c2a).astype(jnp.bfloat16), c2a_b=b_c2a.reshape(1, out_),
        c2b_w=fuse_conv3x3(w_c2b).astype(jnp.bfloat16), c2b_b=b_c2b.reshape(1, out_),
        se_w1=jnp.transpose(w_fc1), se_b1=b_fc1.reshape(1, cr),           # (C, Cr), (1, Cr)
        se_w2=jnp.transpose(w_fc2), se_b2=b_fc2.reshape(1, out_),         # (Cr, C), (1, C)
    )


if __name__ == "__main__":
    in_, skip_, middle_, out_ = 4, 4, 8, 16      # out_ // 16 == 1 for the SE bottleneck
    B, H, W = 2, 8, 8

    key = jax.random.PRNGKey(0)
    k_in, k_skip, k_par = jax.random.split(key, 3)
    params = init_params(k_par, in_, skip_, middle_, out_)

    inputs = jax.random.normal(k_in, (B, in_, H, W), jnp.float32)                     # NCHW
    skip = jax.random.normal(k_skip, (B, skip_, 2 * H - 2, 2 * W - 2), jnp.float32)   # exercises replicate pad

    out = jax.jit(unet_up_forward)(params, inputs, skip)
    out = jax.block_until_ready(out)
    assert out.shape == (B, out_, 2 * H, 2 * W), out.shape
    print("KERNEL_OK")
</pallas_src>

<mosaic_0001>
module attributes {stable_mosaic.version = 11 : i64} {
  func.func @_upsample_phase_kernel(%arg0: i32, %arg1: memref<1x96x4xbf16, #tpu.memory_space<vmem>>, %arg2: memref<36x16xbf16, #tpu.memory_space<vmem>>, %arg3: memref<1x16xf32, #tpu.memory_space<vmem>>, %arg4: memref<1x64x16xbf16, #tpu.memory_space<vmem>>) attributes {dimension_semantics = [#tpu.dimension_semantics<parallel>], iteration_bounds = array<i64: 2>, scalar_prefetch = 0 : i64, scratch_operands = 0 : i64, tpu.core_type = #tpu.core_type<tc>, window_params = [{transform_indices = @transform_0, window_bounds = array<i64: 1, 96, 4>}, {pipeline_mode = #tpu.pipeline_mode<synchronous>, transform_indices = @transform_1, window_bounds = array<i64: 36, 16>}, {pipeline_mode = #tpu.pipeline_mode<synchronous>, transform_indices = @transform_2, window_bounds = array<i64: 1, 16>}, {transform_indices = @transform_3, window_bounds = array<i64: 1, 64, 16>}]} {
    %0 = tpu.iota {dimensions = array<i32: 0>} : vector<64x1xi32>
    %c8_i32 = arith.constant 8 : i32
    %c0_i32 = arith.constant 0 : i32
    %1 = arith.cmpi eq, %c8_i32, %c0_i32 : i32
    %c1_i32 = arith.constant 1 : i32
    %2 = arith.select %1, %c1_i32, %c8_i32 : i32
    %3 = vector.broadcast %2 : i32 to vector<64x1xi32>
    %4 = arith.remsi %0, %3 : vector<64x1xi32>
    %c0_i32_0 = arith.constant 0 : i32
    %5 = vector.broadcast %c0_i32_0 : i32 to vector<64x1xi32>
    %6 = arith.cmpi ne, %4, %5 : vector<64x1xi32>
    %c0_i32_1 = arith.constant 0 : i32
    %7 = vector.broadcast %c0_i32_1 : i32 to vector<64x1xi32>
    %8 = arith.cmpi slt, %4, %7 : vector<64x1xi32>
    %c0_i32_2 = arith.constant 0 : i32
    %9 = arith.cmpi slt, %2, %c0_i32_2 : i32
    %10 = vector.broadcast %9 : i1 to vector<64x1xi1>
    %11 = vector.broadcast %10 : vector<64x1xi1> to vector<64x1xi1>
    %12 = arith.xori %8, %11 : vector<64x1xi1>
    %13 = arith.andi %12, %6 : vector<64x1xi1>
    %14 = vector.broadcast %2 : i32 to vector<64x1xi32>
    %15 = arith.addi %4, %14 : vector<64x1xi32>
    %16 = arith.select %13, %15, %4 : vector<64x1xi1>, vector<64x1xi32>
    %c0_i32_3 = arith.constant 0 : i32
    %17 = vector.broadcast %c0_i32_3 : i32 to vector<64x1xi32>
    %18 = arith.cmpi ne, %16, %17 : vector<64x1xi32>
    %c7_i32 = arith.constant 7 : i32
    %19 = vector.broadcast %c7_i32 : i32 to vector<64x1xi32>
    %20 = arith.cmpi ne, %16, %19 : vector<64x1xi32>
    %c0 = arith.constant 0 : index
    %c7 = arith.constant 7 : index
    %c0_4 = arith.constant 0 : index
    %21 = vector.load %arg1[%c0, %c7, %c0_4] : memref<1x96x4xbf16, #tpu.memory_space<vmem>>, vector<1x64x4xbf16>
    %22 = vector.shape_cast %21 : vector<1x64x4xbf16> to vector<64x4xbf16>
    %cst = arith.constant 0.000000e+00 : bf16
    %23 = vector.broadcast %cst : bf16 to vector<64x4xbf16>
    %24 = vector.shape_cast %18 : vector<64x1xi1> to vector<64x1xi1>
    %25 = vector.broadcast %24 : vector<64x1xi1> to vector<64x4xi1>
    %26 = arith.select %25, %22, %23 : vector<64x4xi1>, vector<64x4xbf16>
    %c0_5 = arith.constant 0 : index
    %c8 = arith.constant 8 : index
    %c0_6 = arith.constant 0 : index
    %27 = vector.load %arg1[%c0_5, %c8, %c0_6] : memref<1x96x4xbf16, #tpu.memory_space<vmem>>, vector<1x64x4xbf16>
    %28 = vector.shape_cast %27 : vector<1x64x4xbf16> to vector<64x4xbf16>
    %c0_7 = arith.constant 0 : index
    %c9 = arith.constant 9 : index
    %c0_8 = arith.constant 0 : index
    %29 = vector.load %arg1[%c0_7, %c9, %c0_8] : memref<1x96x4xbf16, #tpu.memory_space<vmem>>, vector<1x64x4xbf16>
    %30 = vector.shape_cast %29 : vector<1x64x4xbf16> to vector<64x4xbf16>
    %cst_9 = arith.constant 0.000000e+00 : bf16
    %31 = vector.broadcast %cst_9 : bf16 to vector<64x4xbf16>
    %32 = vector.shape_cast %20 : vector<64x1xi1> to vector<64x1xi1>
    %33 = vector.broadcast %32 : vector<64x1xi1> to vector<64x4xi1>
    %34 = arith.select %33, %30, %31 : vector<64x4xi1>, vector<64x4xbf16>
    %c0_10 = arith.constant 0 : index
    %c15 = arith.constant 15 : index
    %c0_11 = arith.constant 0 : index
    %35 = vector.load %arg1[%c0_10, %c15, %c0_11] : memref<1x96x4xbf16, #tpu.memory_space<vmem>>, vector<1x64x4xbf16>
    %36 = vector.shape_cast %35 : vector<1x64x4xbf16> to vector<64x4xbf16>
    %cst_12 = arith.constant 0.000000e+00 : bf16
    %37 = vector.broadcast %cst_12 : bf16 to vector<64x4xbf16>
    %38 = vector.shape_cast %18 : vector<64x1xi1> to vector<64x1xi1>
    %39 = vector.broadcast %38 : vector<64x1xi1> to vector<64x4xi1>
    %40 = arith.select %39, %36, %37 : vector<64x4xi1>, vector<64x4xbf16>
    %c0_13 = arith.constant 0 : index
    %c16 = arith.constant 16 : index
    %c0_14 = arith.constant 0 : index
    %41 = vector.load %arg1[%c0_13, %c16, %c0_14] : memref<1x96x4xbf16, #tpu.memory_space<vmem>>, vector<1x64x4xbf16>
    %42 = vector.shape_cast %41 : vector<1x64x4xbf16> to vector<64x4xbf16>
    %c0_15 = arith.constant 0 : index
    %c17 = arith.constant 17 : index
    %c0_16 = arith.constant 0 : index
    %43 = vector.load %arg1[%c0_15, %c17, %c0_16] : memref<1x96x4xbf16, #tpu.memory_space<vmem>>, vector<1x64x4xbf16>
    %44 = vector.shape_cast %43 : vector<1x64x4xbf16> to vector<64x4xbf16>
    %cst_17 = arith.constant 0.000000e+00 : bf16
    %45 = vector.broadcast %cst_17 : bf16 to vector<64x4xbf16>
    %46 = vector.shape_cast %20 : vector<64x1xi1> to vector<64x1xi1>
    %47 = vector.broadcast %46 : vector<64x1xi1> to vector<64x4xi1>
    %48 = arith.select %47, %44, %45 : vector<64x4xi1>, vector<64x4xbf16>
    %c0_18 = arith.constant 0 : index
    %c23 = arith.constant 23 : index
    %c0_19 = arith.constant 0 : index
    %49 = vector.load %arg1[%c0_18, %c23, %c0_19] : memref<1x96x4xbf16, #tpu.memory_space<vmem>>, vector<1x64x4xbf16>
    %50 = vector.shape_cast %49 : vector<1x64x4xbf16> to vector<64x4xbf16>
    %cst_20 = arith.constant 0.000000e+00 : bf16
    %51 = vector.broadcast %cst_20 : bf16 to vector<64x4xbf16>
    %52 = vector.shape_cast %18 : vector<64x1xi1> to vector<64x1xi1>
    %53 = vector.broadcast %52 : vector<64x1xi1> to vector<64x4xi1>
    %54 = arith.select %53, %50, %51 : vector<64x4xi1>, vector<64x4xbf16>
    %c0_21 = arith.constant 0 : index
    %c24 = arith.constant 24 : index
    %c0_22 = arith.constant 0 : index
    %55 = vector.load %arg1[%c0_21, %c24, %c0_22] : memref<1x96x4xbf16, #tpu.memory_space<vmem>>, vector<1x64x4xbf16>
    %56 = vector.shape_cast %55 : vector<1x64x4xbf16> to vector<64x4xbf16>
    %c0_23 = arith.constant 0 : index
    %c25 = arith.constant 25 : index
    %c0_24 = arith.constant 0 : index
    %57 = vector.load %arg1[%c0_23, %c25, %c0_24] : memref<1x96x4xbf16, #tpu.memory_space<vmem>>, vector<1x64x4xbf16>
    %58 = vector.shape_cast %57 : vector<1x64x4xbf16> to vector<64x4xbf16>
    %cst_25 = arith.constant 0.000000e+00 : bf16
    %59 = vector.broadcast %cst_25 : bf16 to vector<64x4xbf16>
    %60 = vector.shape_cast %20 : vector<64x1xi1> to vector<64x1xi1>
    %61 = vector.broadcast %60 : vector<64x1xi1> to vector<64x4xi1>
    %62 = arith.select %61, %58, %59 : vector<64x4xi1>, vector<64x4xbf16>
    %63 = tpu.concatenate %26, %28, %34, %40, %42, %48, %54, %56, %62 in 1 : vector<64x4xbf16>, vector<64x4xbf16>, vector<64x4xbf16>, vector<64x4xbf16>, vector<64x4xbf16>, vector<64x4xbf16>, vector<64x4xbf16>, vector<64x4xbf16>, vector<64x4xbf16> -> vector<64x36xbf16>
    %c0_26 = arith.constant 0 : index
    %c0_27 = arith.constant 0 : index
    %64 = vector.load %arg2[%c0_26, %c0_27] : memref<36x16xbf16, #tpu.memory_space<vmem>>, vector<36x16xbf16>
    %cst_28 = arith.constant dense<0.000000e+00> : vector<64x16xf32>
    %65 = tpu.matmul %63, %64, %cst_28 {dimension_numbers = #tpu.dot_dimension_numbers<[1], [0], [0], [1], [0, 0, 1, 1], [], []>} : vector<64x36xbf16>, vector<36x16xbf16>, vector<64x16xf32> -> vector<64x16xf32>
    %c0_29 = arith.constant 0 : index
    %c0_30 = arith.constant 0 : index
    %66 = vector.load %arg3[%c0_29, %c0_30] : memref<1x16xf32, #tpu.memory_space<vmem>>, vector<1x16xf32>
    %67 = vector.broadcast %66 : vector<1x16xf32> to vector<64x16xf32>
    %68 = arith.addf %65, %67 : vector<64x16xf32>
    %69 = arith.truncf %68 : vector<64x16xf32> to vector<64x16xbf16>
    %c0_31 = arith.constant 0 : index
    %c0_32 = arith.constant 0 : index
    %c0_33 = arith.constant 0 : index
    %70 = vector.load %arg4[%c0_31, %c0_32, %c0_33] : memref<1x64x16xbf16, #tpu.memory_space<vmem>>, vector<1x64x16xbf16>
    %71 = vector.shape_cast %70 : vector<1x64x16xbf16> to vector<64x16xbf16>
    %72 = vector.shape_cast %69 : vector<64x16xbf16> to vector<1x64x16xbf16>
    tpu.vector_store %arg4[%c0_31, %c0_32, %c0_33], %72 {strides = array<i32>} : memref<1x64x16xbf16, #tpu.memory_space<vmem>>, vector<1x64x16xbf16>,
    return
  }
  func.func @transform_0(%arg0: i32) -> (i32, i32, i32) {
    %c0_i32 = arith.constant 0 : i32
    %c0_i32_0 = arith.constant 0 : i32
    %c0_i32_1 = arith.constant 0 : i32
    return %arg0, %c0_i32, %c0_i32_0 : i32, i32, i32
  }
  func.func @transform_1(%arg0: i32) -> (i32, i32) {
    %c0_i32 = arith.constant 0 : i32
    %c0_i32_0 = arith.constant 0 : i32
    %c0_i32_1 = arith.constant 0 : i32
    return %c0_i32, %c0_i32_0 : i32, i32
  }
  func.func @transform_2(%arg0: i32) -> (i32, i32) {
    %c0_i32 = arith.constant 0 : i32
    %c0_i32_0 = arith.constant 0 : i32
    %c0_i32_1 = arith.constant 0 : i32
    return %c0_i32, %c0_i32_0 : i32, i32
  }
  func.func @transform_3(%arg0: i32) -> (i32, i32, i32) {
    %c0_i32 = arith.constant 0 : i32
    %c0_i32_0 = arith.constant 0 : i32
    %c0_i32_1 = arith.constant 0 : i32
    return %arg0, %c0_i32, %c0_i32_0 : i32, i32, i32
  }
}

module attributes {stable_mosaic.version = 11 : i64} {
  func.func @_fused_conv_se_kernel(%arg0: i32, %arg1: memref<1x256x8xbf16, #tpu.memory_space<vmem>>, %arg2: memref<72x8xbf16, #tpu.memory_space<vmem>>, %arg3: memref<1x8xf32, #tpu.memory_space<vmem>>, %arg4: memref<72x8xbf16, #tpu.memory_space<vmem>>, %arg5: memref<1x8xf32, #tpu.memory_space<vmem>>, %arg6: memref<72x16xbf16, #tpu.memory_space<vmem>>, %arg7: memref<1x16xf32, #tpu.memory_space<vmem>>, %arg8: memref<144x16xbf16, #tpu.memory_space<vmem>>, %arg9: memref<1x16xf32, #tpu.memory_space<vmem>>, %arg10: memref<16x1xf32, #tpu.memory_space<vmem>>, %arg11: memref<1x1xf32, #tpu.memory_space<vmem>>, %arg12: memref<1x16xf32, #tpu.memory_space<vmem>>, %arg13: memref<1x16xf32, #tpu.memory_space<vmem>>, %arg14: memref<1x256x16xf32, #tpu.memory_space<vmem>>, %arg15: memref<304x16xbf16, #tpu.memory_space<vmem>>) attributes {dimension_semantics = [#tpu.dimension_semantics<parallel>], iteration_bounds = array<i64: 2>, scalar_prefetch = 0 : i64, scratch_operands = 1 : i64, tpu.core_type = #tpu.core_type<tc>, window_params = [{transform_indices = @transform_0, window_bounds = array<i64: 1, 256, 8>}, {pipeline_mode = #tpu.pipeline_mode<synchronous>, transform_indices = @transform_1, window_bounds = array<i64: 72, 8>}, {pipeline_mode = #tpu.pipeline_mode<synchronous>, transform_indices = @transform_2, window_bounds = array<i64: 1, 8>}, {pipeline_mode = #tpu.pipeline_mode<synchronous>, transform_indices = @transform_3, window_bounds = array<i64: 72, 8>}, {pipeline_mode = #tpu.pipeline_mode<synchronous>, transform_indices = @transform_4, window_bounds = array<i64: 1, 8>}, {pipeline_mode = #tpu.pipeline_mode<synchronous>, transform_indices = @transform_5, window_bounds = array<i64: 72, 16>}, {pipeline_mode = #tpu.pipeline_mode<synchronous>, transform_indices = @transform_6, window_bounds = array<i64: 1, 16>}, {pipeline_mode = #tpu.pipeline_mode<synchronous>, transform_indices = @transform_7, window_bounds = array<i64: 144, 16>}, {pipeline_mode = #tpu.pipeline_mode<synchronous>, transform_indices = @transform_8, window_bounds = array<i64: 1, 16>}, {pipeline_mode = #tpu.pipeline_mode<synchronous>, transform_indices = @transform_9, window_bounds = array<i64: 16, 1>}, {pipeline_mode = #tpu.pipeline_mode<synchronous>, transform_indices = @transform_10, window_bounds = array<i64: 1, 1>}, {pipeline_mode = #tpu.pipeline_mode<synchronous>, transform_indices = @transform_11, window_bounds = array<i64: 1, 16>}, {pipeline_mode = #tpu.pipeline_mode<synchronous>, transform_indices = @transform_12, window_bounds = array<i64: 1, 16>}, {transform_indices = @transform_13, window_bounds = array<i64: 1, 256, 16>}]} {
    %cst = arith.constant 0.000000e+00 : bf16
    %0 = vector.broadcast %cst : bf16 to vector<304x16xbf16>
    %c0 = arith.constant 0 : index
    %c0_0 = arith.constant 0 : index
    %1 = vector.load %arg15[%c0, %c0_0] : memref<304x16xbf16, #tpu.memory_space<vmem>>, vector<304x16xbf16>
    tpu.vector_store %arg15[%c0, %c0_0], %0 {strides = array<i32>} : memref<304x16xbf16, #tpu.memory_space<vmem>>, vector<304x16xbf16>,
    %2 = tpu.iota {dimensions = array<i32: 0>} : vector<256x1xi32>
    %c16_i32 = arith.constant 16 : i32
    %c0_i32 = arith.constant 0 : i32
    %3 = arith.cmpi eq, %c16_i32, %c0_i32 : i32
    %c1_i32 = arith.constant 1 : i32
    %4 = arith.select %3, %c1_i32, %c16_i32 : i32
    %5 = vector.broadcast %4 : i32 to vector<256x1xi32>
    %6 = arith.remsi %2, %5 : vector<256x1xi32>
    %c0_i32_1 = arith.constant 0 : i32
    %7 = vector.broadcast %c0_i32_1 : i32 to vector<256x1xi32>
    %8 = arith.cmpi ne, %6, %7 : vector<256x1xi32>
    %c0_i32_2 = arith.constant 0 : i32
    %9 = vector.broadcast %c0_i32_2 : i32 to vector<256x1xi32>
    %10 = arith.cmpi slt, %6, %9 : vector<256x1xi32>
    %c0_i32_3 = arith.constant 0 : i32
    %11 = arith.cmpi slt, %4, %c0_i32_3 : i32
    %12 = vector.broadcast %11 : i1 to vector<256x1xi1>
    %13 = vector.broadcast %12 : vector<256x1xi1> to vector<256x1xi1>
    %14 = arith.xori %10, %13 : vector<256x1xi1>
    %15 = arith.andi %14, %8 : vector<256x1xi1>
    %16 = vector.broadcast %4 : i32 to vector<256x1xi32>
    %17 = arith.addi %6, %16 : vector<256x1xi32>
    %18 = arith.select %15, %17, %6 : vector<256x1xi1>, vector<256x1xi32>
    %c0_i32_4 = arith.constant 0 : i32
    %19 = vector.broadcast %c0_i32_4 : i32 to vector<256x1xi32>
    %20 = arith.cmpi ne, %18, %19 : vector<256x1xi32>
    %c15_i32 = arith.constant 15 : i32
    %21 = vector.broadcast %c15_i32 : i32 to vector<256x1xi32>
    %22 = arith.cmpi ne, %18, %21 : vector<256x1xi32>
    %c0_5 = arith.constant 0 : index
    %c0_6 = arith.constant 0 : index
    %c0_7 = arith.constant 0 : index
    %23 = vector.load %arg1[%c0_5, %c0_6, %c0_7] : memref<1x256x8xbf16, #tpu.memory_space<vmem>>, vector<1x256x8xbf16>
    %24 = vector.shape_cast %23 : vector<1x256x8xbf16> to vector<256x8xbf16>
    %c24 = arith.constant 24 : index
    %c0_8 = arith.constant 0 : index
    %25 = vector.load %arg15[%c24, %c0_8] : memref<304x16xbf16, #tpu.memory_space<vmem>>, vector<256x8xbf16>
    tpu.vector_store %arg15[%c24, %c0_8], %24 {strides = array<i32>} : memref<304x16xbf16, #tpu.memory_space<vmem>>, vector<256x8xbf16>,
    %c7 = arith.constant 7 : index
    %c0_9 = arith.constant 0 : index
    %26 = vector.load %arg15[%c7, %c0_9] : memref<304x16xbf16, #tpu.memory_space<vmem>>, vector<256x8xbf16>
    %cst_10 = arith.constant 0.000000e+00 : bf16
    %27 = vector.broadcast %cst_10 : bf16 to vector<256x8xbf16>
    %28 = vector.shape_cast %20 : vector<256x1xi1> to vector<256x1xi1>
    %29 = vector.broadcast %28 : vector<256x1xi1> to vector<256x8xi1>
    %30 = arith.select %29, %26, %27 : vector<256x8xi1>, vector<256x8xbf16>
    %c8 = arith.constant 8 : index
    %c0_11 = arith.constant 0 : index
    %31 = vector.load %arg15[%c8, %c0_11] : memref<304x16xbf16, #tpu.memory_space<vmem>>, vector<256x8xbf16>
    %c9 = arith.constant 9 : index
    %c0_12 = arith.constant 0 : index
    %32 = vector.load %arg15[%c9, %c0_12] : memref<304x16xbf16, #tpu.memory_space<vmem>>, vector<256x8xbf16>
    %cst_13 = arith.constant 0.000000e+00 : bf16
    %33 = vector.broadcast %cst_13 : bf16 to vector<256x8xbf16>
    %34 = vector.shape_cast %22 : vector<256x1xi1> to vector<256x1xi1>
    %35 = vector.broadcast %34 : vector<256x1xi1> to vector<256x8xi1>
    %36 = arith.select %35, %32, %33 : vector<256x8xi1>, vector<256x8xbf16>
    %c23 = arith.constant 23 : index
    %c0_14 = arith.constant 0 : index
    %37 = vector.load %arg15[%c23, %c0_14] : memref<304x16xbf16, #tpu.memory_space<vmem>>, vector<256x8xbf16>
    %cst_15 = arith.constant 0.000000e+00 : bf16
    %38 = vector.broadcast %cst_15 : bf16 to vector<256x8xbf16>
    %39 = vector.shape_cast %20 : vector<256x1xi1> to vector<256x1xi1>
    %40 = vector.broadcast %39 : vector<256x1xi1> to vector<256x8xi1>
    %41 = arith.select %40, %37, %38 : vector<256x8xi1>, vector<256x8xbf16>
    %c24_16 = arith.constant 24 : index
    %c0_17 = arith.constant 0 : index
    %42 = vector.load %arg15[%c24_16, %c0_17] : memref<304x16xbf16, #tpu.memory_space<vmem>>, vector<256x8xbf16>
    %c25 = arith.constant 25 : index
    %c0_18 = arith.constant 0 : index
    %43 = vector.load %arg15[%c25, %c0_18] : memref<304x16xbf16, #tpu.memory_space<vmem>>, vector<256x8xbf16>
    %cst_19 = arith.constant 0.000000e+00 : bf16
    %44 = vector.broadcast %cst_19 : bf16 to vector<256x8xbf16>
    %45 = vector.shape_cast %22 : vector<256x1xi1> to vector<256x1xi1>
    %46 = vector.broadcast %45 : vector<256x1xi1> to vector<256x8xi1>
    %47 = arith.select %46, %43, %44 : vector<256x8xi1>, vector<256x8xbf16>
    %c39 = arith.constant 39 : index
    %c0_20 = arith.constant 0 : index
    %48 = vector.load %arg15[%c39, %c0_20] : memref<304x16xbf16, #tpu.memory_space<vmem>>, vector<256x8xbf16>
    %cst_21 = arith.constant 0.000000e+00 : bf16
    %49 = vector.broadcast %cst_21 : bf16 to vector<256x8xbf16>
    %50 = vector.shape_cast %20 : vector<256x1xi1> to vector<256x1xi1>
    %51 = vector.broadcast %50 : vector<256x1xi1> to vector<256x8xi1>
    %52 = arith.select %51, %48, %49 : vector<256x8xi1>, vector<256x8xbf16>
    %c40 = arith.constant 40 : index
    %c0_22 = arith.constant 0 : index
    %53 = vector.load %arg15[%c40, %c0_22] : memref<304x16xbf16, #tpu.memory_space<vmem>>, vector<256x8xbf16>
    %c41 = arith.constant 41 : index
    %c0_23 = arith.constant 0 : index
    %54 = vector.load %arg15[%c41, %c0_23] : memref<304x16xbf16, #tpu.memory_space<vmem>>, vector<256x8xbf16>
    %cst_24 = arith.constant 0.000000e+00 : bf16
    %55 = vector.broadcast %cst_24 : bf16 to vector<256x8xbf16>
    %56 = vector.shape_cast %22 : vector<256x1xi1> to vector<256x1xi1>
    %57 = vector.broadcast %56 : vector<256x1xi1> to vector<256x8xi1>
    %58 = arith.select %57, %54, %55 : vector<256x8xi1>, vector<256x8xbf16>
    %59 = tpu.concatenate %30, %31, %36, %41, %42, %47, %52, %53, %58 in 1 : vector<256x8xbf16>, vector<256x8xbf16>, vector<256x8xbf16>, vector<256x8xbf16>, vector<256x8xbf16>, vector<256x8xbf16>, vector<256x8xbf16>, vector<256x8xbf16>, vector<256x8xbf16> -> vector<256x72xbf16>
    %c0_25 = arith.constant 0 : index
    %c0_26 = arith.constant 0 : index
    %60 = vector.load %arg2[%c0_25, %c0_26] : memref<72x8xbf16, #tpu.memory_space<vmem>>, vector<72x8xbf16>
    %cst_27 = arith.constant dense<0.000000e+00> : vector<256x8xf32>
    %61 = tpu.matmul %59, %60, %cst_27 {dimension_numbers = #tpu.dot_dimension_numbers<[1], [0], [0], [1], [0, 0, 1, 1], [], []>} : vector<256x72xbf16>, vector<72x8xbf16>, vector<256x8xf32> -> vector<256x8xf32>
    %c0_28 = arith.constant 0 : index
    %c0_29 = arith.constant 0 : index
    %62 = vector.load %arg3[%c0_28, %c0_29] : memref<1x8xf32, #tpu.memory_space<vmem>>, vector<1x8xf32>
    %63 = vector.broadcast %62 : vector<1x8xf32> to vector<256x8xf32>
    %64 = arith.addf %61, %63 : vector<256x8xf32>
    %cst_30 = arith.constant 0.000000e+00 : f32
    %65 = vector.broadcast %cst_30 : f32 to vector<256x8xf32>
    %66 = arith.maximumf %64, %65 : vector<256x8xf32>
    %67 = arith.truncf %66 : vector<256x8xf32> to vector<256x8xbf16>
    %c24_31 = arith.constant 24 : index
    %c0_32 = arith.constant 0 : index
    %68 = vector.load %arg15[%c24_31, %c0_32] : memref<304x16xbf16, #tpu.memory_space<vmem>>, vector<256x8xbf16>
    tpu.vector_store %arg15[%c24_31, %c0_32], %67 {strides = array<i32>} : memref<304x16xbf16, #tpu.memory_space<vmem>>, vector<256x8xbf16>,
    %c7_33 = arith.constant 7 : index
    %c0_34 = arith.constant 0 : index
    %69 = vector.load %arg15[%c7_33, %c0_34] : memref<304x16xbf16, #tpu.memory_space<vmem>>, vector<256x8xbf16>
    %cst_35 = arith.constant 0.000000e+00 : bf16
    %70 = vector.broadcast %cst_35 : bf16 to vector<256x8xbf16>
    %71 = vector.shape_cast %20 : vector<256x1xi1> to vector<256x1xi1>
    %72 = vector.broadcast %71 : vector<256x1xi1> to vector<256x8xi1>
    %73 = arith.select %72, %69, %70 : vector<256x8xi1>, vector<256x8xbf16>
    %c8_36 = arith.constant 8 : index
    %c0_37 = arith.constant 0 : index
    %74 = vector.load %arg15[%c8_36, %c0_37] : memref<304x16xbf16, #tpu.memory_space<vmem>>, vector<256x8xbf16>
    %c9_38 = arith.constant 9 : index
    %c0_39 = arith.constant 0 : index
    %75 = vector.load %arg15[%c9_38, %c0_39] : memref<304x16xbf16, #tpu.memory_space<vmem>>, vector<256x8xbf16>
    %cst_40 = arith.constant 0.000000e+00 : bf16
    %76 = vector.broadcast %cst_40 : bf16 to vector<256x8xbf16>
    %77 = vector.shape_cast %22 : vector<256x1xi1> to vector<256x1xi1>
    %78 = vector.broadcast %77 : vector<256x1xi1> to vector<256x8xi1>
    %79 = arith.select %78, %75, %76 : vector<256x8xi1>, vector<256x8xbf16>
    %c23_41 = arith.constant 23 : index
    %c0_42 = arith.constant 0 : index
    %80 = vector.load %arg15[%c23_41, %c0_42] : memref<304x16xbf16, #tpu.memory_space<vmem>>, vector<256x8xbf16>
    %cst_43 = arith.constant 0.000000e+00 : bf16
    %81 = vector.broadcast %cst_43 : bf16 to vector<256x8xbf16>
    %82 = vector.shape_cast %20 : vector<256x1xi1> to vector<256x1xi1>
    %83 = vector.broadcast %82 : vector<256x1xi1> to vector<256x8xi1>
    %84 = arith.select %83, %80, %81 : vector<256x8xi1>, vector<256x8xbf16>
    %c24_44 = arith.constant 24 : index
    %c0_45 = arith.constant 0 : index
    %85 = vector.load %arg15[%c24_44, %c0_45] : memref<304x16xbf16, #tpu.memory_space<vmem>>, vector<256x8xbf16>
    %c25_46 = arith.constant 25 : index
    %c0_47 = arith.constant 0 : index
    %86 = vector.load %arg15[%c25_46, %c0_47] : memref<304x16xbf16, #tpu.memory_space<vmem>>, vector<256x8xbf16>
    %cst_48 = arith.constant 0.000000e+00 : bf16
    %87 = vector.broadcast %cst_48 : bf16 to vector<256x8xbf16>
    %88 = vector.shape_cast %22 : vector<256x1xi1> to vector<256x1xi1>
    %89 = vector.broadcast %88 : vector<256x1xi1> to vector<256x8xi1>
    %90 = arith.select %89, %86, %87 : vector<256x8xi1>, vector<256x8xbf16>
    %c39_49 = arith.constant 39 : index
    %c0_50 = arith.constant 0 : index
    %91 = vector.load %arg15[%c39_49, %c0_50] : memref<304x16xbf16, #tpu.memory_space<vmem>>, vector<256x8xbf16>
    %cst_51 = arith.constant 0.000000e+00 : bf16
    %92 = vector.broadcast %cst_51 : bf16 to vector<256x8xbf16>
    %93 = vector.shape_cast %20 : vector<256x1xi1> to vector<256x1xi1>
    %94 = vector.broadcast %93 : vector<256x1xi1> to vector<256x8xi1>
    %95 = arith.select %94, %91, %92 : vector<256x8xi1>, vector<256x8xbf16>
    %c40_52 = arith.constant 40 : index
    %c0_53 = arith.constant 0 : index
    %96 = vector.load %arg15[%c40_52, %c0_53] : memref<304x16xbf16, #tpu.memory_space<vmem>>, vector<256x8xbf16>
    %c41_54 = arith.constant 41 : index
    %c0_55 = arith.constant 0 : index
    %97 = vector.load %arg15[%c41_54, %c0_55] : memref<304x16xbf16, #tpu.memory_space<vmem>>, vector<256x8xbf16>
    %cst_56 = arith.constant 0.000000e+00 : bf16
    %98 = vector.broadcast %cst_56 : bf16 to vector<256x8xbf16>
    %99 = vector.shape_cast %22 : vector<256x1xi1> to vector<256x1xi1>
    %100 = vector.broadcast %99 : vector<256x1xi1> to vector<256x8xi1>
    %101 = arith.select %100, %97, %98 : vector<256x8xi1>, vector<256x8xbf16>
    %102 = tpu.concatenate %73, %74, %79, %84, %85, %90, %95, %96, %101 in 1 : vector<256x8xbf16>, vector<256x8xbf16>, vector<256x8xbf16>, vector<256x8xbf16>, vector<256x8xbf16>, vector<256x8xbf16>, vector<256x8xbf16>, vector<256x8xbf16>, vector<256x8xbf16> -> vector<256x72xbf16>
    %c0_57 = arith.constant 0 : index
    %c0_58 = arith.constant 0 : index
    %103 = vector.load %arg4[%c0_57, %c0_58] : memref<72x8xbf16, #tpu.memory_space<vmem>>, vector<72x8xbf16>
    %cst_59 = arith.constant dense<0.000000e+00> : vector<256x8xf32>
    %104 = tpu.matmul %102, %103, %cst_59 {dimension_numbers = #tpu.dot_dimension_numbers<[1], [0], [0], [1], [0, 0, 1, 1], [], []>} : vector<256x72xbf16>, vector<72x8xbf16>, vector<256x8xf32> -> vector<256x8xf32>
    %c0_60 = arith.constant 0 : index
    %c0_61 = arith.constant 0 : index
    %105 = vector.load %arg5[%c0_60, %c0_61] : memref<1x8xf32, #tpu.memory_space<vmem>>, vector<1x8xf32>
    %106 = vector.broadcast %105 : vector<1x8xf32> to vector<256x8xf32>
    %107 = arith.addf %104, %106 : vector<256x8xf32>
    %cst_62 = arith.constant 0.000000e+00 : f32
    %108 = vector.broadcast %cst_62 : f32 to vector<256x8xf32>
    %109 = arith.maximumf %107, %108 : vector<256x8xf32>
    %110 = arith.truncf %109 : vector<256x8xf32> to vector<256x8xbf16>
    %c24_63 = arith.constant 24 : index
    %c0_64 = arith.constant 0 : index
    %111 = vector.load %arg15[%c24_63, %c0_64] : memref<304x16xbf16, #tpu.memory_space<vmem>>, vector<256x8xbf16>
    tpu.vector_store %arg15[%c24_63, %c0_64], %110 {strides = array<i32>} : memref<304x16xbf16, #tpu.memory_space<vmem>>, vector<256x8xbf16>,
    %c7_65 = arith.constant 7 : index
    %c0_66 = arith.constant 0 : index
    %112 = vector.load %arg15[%c7_65, %c0_66] : memref<304x16xbf16, #tpu.memory_space<vmem>>, vector<256x8xbf16>
    %cst_67 = arith.constant 0.000000e+00 : bf16
    %113 = vector.broadcast %cst_67 : bf16 to vector<256x8xbf16>
    %114 = vector.shape_cast %20 : vector<256x1xi1> to vector<256x1xi1>
    %115 = vector.broadcast %114 : vector<256x1xi1> to vector<256x8xi1>
    %116 = arith.select %115, %112, %113 : vector<256x8xi1>, vector<256x8xbf16>
    %c8_68 = arith.constant 8 : index
    %c0_69 = arith.constant 0 : index
    %117 = vector.load %arg15[%c8_68, %c0_69] : memref<304x16xbf16, #tpu.memory_space<vmem>>, vector<256x8xbf16>
    %c9_70 = arith.constant 9 : index
    %c0_71 = arith.constant 0 : index
    %118 = vector.load %arg15[%c9_70, %c0_71] : memref<304x16xbf16, #tpu.memory_space<vmem>>, vector<256x8xbf16>
    %cst_72 = arith.constant 0.000000e+00 : bf16
    %119 = vector.broadcast %cst_72 : bf16 to vector<256x8xbf16>
    %120 = vector.shape_cast %22 : vector<256x1xi1> to vector<256x1xi1>
    %121 = vector.broadcast %120 : vector<256x1xi1> to vector<256x8xi1>
    %122 = arith.select %121, %118, %119 : vector<256x8xi1>, vector<256x8xbf16>
    %c23_73 = arith.constant 23 : index
    %c0_74 = arith.constant 0 : index
    %123 = vector.load %arg15[%c23_73, %c0_74] : memref<304x16xbf16, #tpu.memory_space<vmem>>, vector<256x8xbf16>
    %cst_75 = arith.constant 0.000000e+00 : bf16
    %124 = vector.broadcast %cst_75 : bf16 to vector<256x8xbf16>
    %125 = vector.shape_cast %20 : vector<256x1xi1> to vector<256x1xi1>
    %126 = vector.broadcast %125 : vector<256x1xi1> to vector<256x8xi1>
    %127 = arith.select %126, %123, %124 : vector<256x8xi1>, vector<256x8xbf16>
    %c24_76 = arith.constant 24 : index
    %c0_77 = arith.constant 0 : index
    %128 = vector.load %arg15[%c24_76, %c0_77] : memref<304x16xbf16, #tpu.memory_space<vmem>>, vector<256x8xbf16>
    %c25_78 = arith.constant 25 : index
    %c0_79 = arith.constant 0 : index
    %129 = vector.load %arg15[%c25_78, %c0_79] : memref<304x16xbf16, #tpu.memory_space<vmem>>, vector<256x8xbf16>
    %cst_80 = arith.constant 0.000000e+00 : bf16
    %130 = vector.broadcast %cst_80 : bf16 to vector<256x8xbf16>
    %131 = vector.shape_cast %22 : vector<256x1xi1> to vector<256x1xi1>
    %132 = vector.broadcast %131 : vector<256x1xi1> to vector<256x8xi1>
    %133 = arith.select %132, %129, %130 : vector<256x8xi1>, vector<256x8xbf16>
    %c39_81 = arith.constant 39 : index
    %c0_82 = arith.constant 0 : index
    %134 = vector.load %arg15[%c39_81, %c0_82] : memref<304x16xbf16, #tpu.memory_space<vmem>>, vector<256x8xbf16>
    %cst_83 = arith.constant 0.000000e+00 : bf16
    %135 = vector.broadcast %cst_83 : bf16 to vector<256x8xbf16>
    %136 = vector.shape_cast %20 : vector<256x1xi1> to vector<256x1xi1>
    %137 = vector.broadcast %136 : vector<256x1xi1> to vector<256x8xi1>
    %138 = arith.select %137, %134, %135 : vector<256x8xi1>, vector<256x8xbf16>
    %c40_84 = arith.constant 40 : index
    %c0_85 = arith.constant 0 : index
    %139 = vector.load %arg15[%c40_84, %c0_85] : memref<304x16xbf16, #tpu.memory_space<vmem>>, vector<256x8xbf16>
    %c41_86 = arith.constant 41 : index
    %c0_87 = arith.constant 0 : index
    %140 = vector.load %arg15[%c41_86, %c0_87] : memref<304x16xbf16, #tpu.memory_space<vmem>>, vector<256x8xbf16>
    %cst_88 = arith.constant 0.000000e+00 : bf16
    %141 = vector.broadcast %cst_88 : bf16 to vector<256x8xbf16>
    %142 = vector.shape_cast %22 : vector<256x1xi1> to vector<256x1xi1>
    %143 = vector.broadcast %142 : vector<256x1xi1> to vector<256x8xi1>
    %144 = arith.select %143, %140, %141 : vector<256x8xi1>, vector<256x8xbf16>
    %145 = tpu.concatenate %116, %117, %122, %127, %128, %133, %138, %139, %144 in 1 : vector<256x8xbf16>, vector<256x8xbf16>, vector<256x8xbf16>, vector<256x8xbf16>, vector<256x8xbf16>, vector<256x8xbf16>, vector<256x8xbf16>, vector<256x8xbf16>, vector<256x8xbf16> -> vector<256x72xbf16>
    %c0_89 = arith.constant 0 : index
    %c0_90 = arith.constant 0 : index
    %146 = vector.load %arg6[%c0_89, %c0_90] : memref<72x16xbf16, #tpu.memory_space<vmem>>, vector<72x16xbf16>
    %cst_91 = arith.constant dense<0.000000e+00> : vector<256x16xf32>
    %147 = tpu.matmul %145, %146, %cst_91 {dimension_numbers = #tpu.dot_dimension_numbers<[1], [0], [0], [1], [0, 0, 1, 1], [], []>} : vector<256x72xbf16>, vector<72x16xbf16>, vector<256x16xf32> -> vector<256x16xf32>
    %c0_92 = arith.constant 0 : index
    %c0_93 = arith.constant 0 : index
    %148 = vector.load %arg7[%c0_92, %c0_93] : memref<1x16xf32, #tpu.memory_space<vmem>>, vector<1x16xf32>
    %149 = vector.broadcast %148 : vector<1x16xf32> to vector<256x16xf32>
    %150 = arith.addf %147, %149 : vector<256x16xf32>
    %cst_94 = arith.constant 0.000000e+00 : f32
    %151 = vector.broadcast %cst_94 : f32 to vector<256x16xf32>
    %152 = arith.maximumf %150, %151 : vector<256x16xf32>
    %153 = arith.truncf %152 : vector<256x16xf32> to vector<256x16xbf16>
    %c24_95 = arith.constant 24 : index
    %c0_96 = arith.constant 0 : index
    %154 = vector.load %arg15[%c24_95, %c0_96] : memref<304x16xbf16, #tpu.memory_space<vmem>>, vector<256x16xbf16>
    tpu.vector_store %arg15[%c24_95, %c0_96], %153 {strides = array<i32>} : memref<304x16xbf16, #tpu.memory_space<vmem>>, vector<256x16xbf16>,
    %c7_97 = arith.constant 7 : index
    %c0_98 = arith.constant 0 : index
    %155 = vector.load %arg15[%c7_97, %c0_98] : memref<304x16xbf16, #tpu.memory_space<vmem>>, vector<256x16xbf16>
    %cst_99 = arith.constant 0.000000e+00 : bf16
    %156 = vector.broadcast %cst_99 : bf16 to vector<256x16xbf16>
    %157 = vector.shape_cast %20 : vector<256x1xi1> to vector<256x1xi1>
    %158 = vector.broadcast %157 : vector<256x1xi1> to vector<256x16xi1>
    %159 = arith.select %158, %155, %156 : vector<256x16xi1>, vector<256x16xbf16>
    %c8_100 = arith.constant 8 : index
    %c0_101 = arith.constant 0 : index
    %160 = vector.load %arg15[%c8_100, %c0_101] : memref<304x16xbf16, #tpu.memory_space<vmem>>, vector<256x16xbf16>
    %c9_102 = arith.constant 9 : index
    %c0_103 = arith.constant 0 : index
    %161 = vector.load %arg15[%c9_102, %c0_103] : memref<304x16xbf16, #tpu.memory_space<vmem>>, vector<256x16xbf16>
    %cst_104 = arith.constant 0.000000e+00 : bf16
    %162 = vector.broadcast %cst_104 : bf16 to vector<256x16xbf16>
    %163 = vector.shape_cast %22 : vector<256x1xi1> to vector<256x1xi1>
    %164 = vector.broadcast %163 : vector<256x1xi1> to vector<256x16xi1>
    %165 = arith.select %164, %161, %162 : vector<256x16xi1>, vector<256x16xbf16>
    %c23_105 = arith.constant 23 : index
    %c0_106 = arith.constant 0 : index
    %166 = vector.load %arg15[%c23_105, %c0_106] : memref<304x16xbf16, #tpu.memory_space<vmem>>, vector<256x16xbf16>
    %cst_107 = arith.constant 0.000000e+00 : bf16
    %167 = vector.broadcast %cst_107 : bf16 to vector<256x16xbf16>
    %168 = vector.shape_cast %20 : vector<256x1xi1> to vector<256x1xi1>
    %169 = vector.broadcast %168 : vector<256x1xi1> to vector<256x16xi1>
    %170 = arith.select %169, %166, %167 : vector<256x16xi1>, vector<256x16xbf16>
    %c24_108 = arith.constant 24 : index
    %c0_109 = arith.constant 0 : index
    %171 = vector.load %arg15[%c24_108, %c0_109] : memref<304x16xbf16, #tpu.memory_space<vmem>>, vector<256x16xbf16>
    %c25_110 = arith.constant 25 : index
    %c0_111 = arith.constant 0 : index
    %172 = vector.load %arg15[%c25_110, %c0_111] : memref<304x16xbf16, #tpu.memory_space<vmem>>, vector<256x16xbf16>
    %cst_112 = arith.constant 0.000000e+00 : bf16
    %173 = vector.broadcast %cst_112 : bf16 to vector<256x16xbf16>
    %174 = vector.shape_cast %22 : vector<256x1xi1> to vector<256x1xi1>
    %175 = vector.broadcast %174 : vector<256x1xi1> to vector<256x16xi1>
    %176 = arith.select %175, %172, %173 : vector<256x16xi1>, vector<256x16xbf16>
    %c39_113 = arith.constant 39 : index
    %c0_114 = arith.constant 0 : index
    %177 = vector.load %arg15[%c39_113, %c0_114] : memref<304x16xbf16, #tpu.memory_space<vmem>>, vector<256x16xbf16>
    %cst_115 = arith.constant 0.000000e+00 : bf16
    %178 = vector.broadcast %cst_115 : bf16 to vector<256x16xbf16>
    %179 = vector.shape_cast %20 : vector<256x1xi1> to vector<256x1xi1>
    %180 = vector.broadcast %179 : vector<256x1xi1> to vector<256x16xi1>
    %181 = arith.select %180, %177, %178 : vector<256x16xi1>, vector<256x16xbf16>
    %c40_116 = arith.constant 40 : index
    %c0_117 = arith.constant 0 : index
    %182 = vector.load %arg15[%c40_116, %c0_117] : memref<304x16xbf16, #tpu.memory_space<vmem>>, vector<256x16xbf16>
    %c41_118 = arith.constant 41 : index
    %c0_119 = arith.constant 0 : index
    %183 = vector.load %arg15[%c41_118, %c0_119] : memref<304x16xbf16, #tpu.memory_space<vmem>>, vector<256x16xbf16>
    %cst_120 = arith.constant 0.000000e+00 : bf16
    %184 = vector.broadcast %cst_120 : bf16 to vector<256x16xbf16>
    %185 = vector.shape_cast %22 : vector<256x1xi1> to vector<256x1xi1>
    %186 = vector.broadcast %185 : vector<256x1xi1> to vector<256x16xi1>
    %187 = arith.select %186, %183, %184 : vector<256x16xi1>, vector<256x16xbf16>
    %188 = tpu.concatenate %159, %160, %165, %170, %171, %176, %181, %182, %187 in 1 : vector<256x16xbf16>, vector<256x16xbf16>, vector<256x16xbf16>, vector<256x16xbf16>, vector<256x16xbf16>, vector<256x16xbf16>, vector<256x16xbf16>, vector<256x16xbf16>, vector<256x16xbf16> -> vector<256x144xbf16>
    %c0_121 = arith.constant 0 : index
    %c0_122 = arith.constant 0 : index
    %189 = vector.load %arg8[%c0_121, %c0_122] : memref<144x16xbf16, #tpu.memory_space<vmem>>, vector<144x16xbf16>
    %cst_123 = arith.constant dense<0.000000e+00> : vector<256x16xf32>
    %190 = tpu.matmul %188, %189, %cst_123 {dimension_numbers = #tpu.dot_dimension_numbers<[1], [0], [0], [1], [0, 0, 1, 1], [], []>} : vector<256x144xbf16>, vector<144x16xbf16>, vector<256x16xf32> -> vector<256x16xf32>
    %c0_124 = arith.constant 0 : index
    %c0_125 = arith.constant 0 : index
    %191 = vector.load %arg9[%c0_124, %c0_125] : memref<1x16xf32, #tpu.memory_space<vmem>>, vector<1x16xf32>
    %192 = vector.broadcast %191 : vector<1x16xf32> to vector<256x16xf32>
    %193 = arith.addf %190, %192 : vector<256x16xf32>
    %cst_126 = arith.constant 0.000000e+00 : f32
    %194 = vector.broadcast %cst_126 : f32 to vector<256x16xf32>
    %195 = arith.maximumf %193, %194 : vector<256x16xf32>
    %cst_127 = arith.constant dense<0.000000e+00> : vector<16xf32>
    %196 = vector.multi_reduction <add>, %195, %cst_127 [0] : vector<256x16xf32> to vector<16xf32>
    %197 = vector.shape_cast %196 : vector<16xf32> to vector<1x16xf32>
    %cst_128 = arith.constant 3.906250e-03 : f32
    %198 = vector.broadcast %cst_128 : f32 to vector<1x16xf32>
    %199 = arith.mulf %197, %198 : vector<1x16xf32>
    %c0_129 = arith.constant 0 : index
    %c0_130 = arith.constant 0 : index
    %200 = vector.load %arg10[%c0_129, %c0_130] : memref<16x1xf32, #tpu.memory_space<vmem>>, vector<16x1xf32>
    %cst_131 = arith.constant dense<0.000000e+00> : vector<1x1xf32>
    %201 = tpu.matmul %199, %200, %cst_131 {dimension_numbers = #tpu.dot_dimension_numbers<[1], [0], [0], [1], [0, 0, 1, 1], [], []>} : vector<1x16xf32>, vector<16x1xf32>, vector<1x1xf32> -> vector<1x1xf32>
    %c0_132 = arith.constant 0 : index
    %c0_133 = arith.constant 0 : index
    %202 = vector.load %arg11[%c0_132, %c0_133] : memref<1x1xf32, #tpu.memory_space<vmem>>, vector<1x1xf32>
    %203 = arith.addf %201, %202 : vector<1x1xf32>
    %cst_134 = arith.constant 0.000000e+00 : f32
    %204 = vector.broadcast %cst_134 : f32 to vector<1x1xf32>
    %205 = arith.maximumf %203, %204 : vector<1x1xf32>
    %c0_135 = arith.constant 0 : index
    %c0_136 = arith.constant 0 : index
    %206 = vector.load %arg12[%c0_135, %c0_136] : memref<1x16xf32, #tpu.memory_space<vmem>>, vector<1x16xf32>
    %cst_137 = arith.constant dense<0.000000e+00> : vector<1x16xf32>
    %207 = tpu.matmul %205, %206, %cst_137 {dimension_numbers = #tpu.dot_dimension_numbers<[1], [0], [0], [1], [0, 0, 1, 1], [], []>} : vector<1x1xf32>, vector<1x16xf32>, vector<1x16xf32> -> vector<1x16xf32>
    %c0_138 = arith.constant 0 : index
    %c0_139 = arith.constant 0 : index
    %208 = vector.load %arg13[%c0_138, %c0_139] : memref<1x16xf32, #tpu.memory_space<vmem>>, vector<1x16xf32>
    %209 = arith.addf %207, %208 : vector<1x16xf32>
    %cst_140 = arith.constant 0.000000e+00 : f32
    %210 = vector.broadcast %cst_140 : f32 to vector<1x16xf32>
    %211 = arith.subf %210, %209 : vector<1x16xf32>
    %212 = math.exp %211 : vector<1x16xf32>
    %cst_141 = arith.constant 1.000000e+00 : f32
    %213 = vector.broadcast %cst_141 : f32 to vector<1x16xf32>
    %214 = arith.addf %213, %212 : vector<1x16xf32>
    %cst_142 = arith.constant 1.000000e+00 : f32
    %215 = vector.broadcast %cst_142 : f32 to vector<1x16xf32>
    %216 = arith.divf %215, %214 : vector<1x16xf32>
    %217 = vector.broadcast %216 : vector<1x16xf32> to vector<256x16xf32>
    %218 = arith.mulf %195, %217 : vector<256x16xf32>
    %c0_143 = arith.constant 0 : index
    %c0_144 = arith.constant 0 : index
    %c0_145 = arith.constant 0 : index
    %219 = vector.load %arg14[%c0_143, %c0_144, %c0_145] : memref<1x256x16xf32, #tpu.memory_space<vmem>>, vector<1x256x16xf32>
    %220 = vector.shape_cast %219 : vector<1x256x16xf32> to vector<256x16xf32>
    %221 = vector.shape_cast %218 : vector<256x16xf32> to vector<1x256x16xf32>
    tpu.vector_store %arg14[%c0_143, %c0_144, %c0_145], %221 {strides = array<i32>} : memref<1x256x16xf32, #tpu.memory_space<vmem>>, vector<1x256x16xf32>,
    return
  }
  func.func @transform_0(%arg0: i32) -> (i32, i32, i32) {
    %c0_i32 = arith.constant 0 : i32
    %c0_i32_0 = arith.constant 0 : i32
    %c0_i32_1 = arith.constant 0 : i32
    return %arg0, %c0_i32, %c0_i32_0 : i32, i32, i32
  }
  func.func @transform_1(%arg0: i32) -> (i32, i32) {
    %c0_i32 = arith.constant 0 : i32
    %c0_i32_0 = arith.constant 0 : i32
    %c0_i32_1 = arith.constant 0 : i32
    return %c0_i32, %c0_i32_0 : i32, i32
  }
  func.func @transform_2(%arg0: i32) -> (i32, i32) {
    %c0_i32 = arith.constant 0 : i32
    %c0_i32_0 = arith.constant 0 : i32
    %c0_i32_1 = arith.constant 0 : i32
    return %c0_i32, %c0_i32_0 : i32, i32
  }
  func.func @transform_3(%arg0: i32) -> (i32, i32) {
    %c0_i32 = arith.constant 0 : i32
    %c0_i32_0 = arith.constant 0 : i32
    %c0_i32_1 = arith.constant 0 : i32
    return %c0_i32, %c0_i32_0 : i32, i32
  }
  func.func @transform_4(%arg0: i32) -> (i32, i32) {
    %c0_i32 = arith.constant 0 : i32
    %c0_i32_0 = arith.constant 0 : i32
    %c0_i32_1 = arith.constant 0 : i32
    return %c0_i32, %c0_i32_0 : i32, i32
  }
  func.func @transform_5(%arg0: i32) -> (i32, i32) {
    %c0_i32 = arith.constant 0 : i32
    %c0_i32_0 = arith.constant 0 : i32
    %c0_i32_1 = arith.constant 0 : i32
    return %c0_i32, %c0_i32_0 : i32, i32
  }
  func.func @transform_6(%arg0: i32) -> (i32, i32) {
    %c0_i32 = arith.constant 0 : i32
    %c0_i32_0 = arith.constant 0 : i32
    %c0_i32_1 = arith.constant 0 : i32
    return %c0_i32, %c0_i32_0 : i32, i32
  }
  func.func @transform_7(%arg0: i32) -> (i32, i32) {
    %c0_i32 = arith.constant 0 : i32
    %c0_i32_0 = arith.constant 0 : i32
    %c0_i32_1 = arith.constant 0 : i32
    return %c0_i32, %c0_i32_0 : i32, i32
  }
  func.func @transform_8(%arg0: i32) -> (i32, i32) {
    %c0_i32 = arith.constant 0 : i32
    %c0_i32_0 = arith.constant 0 : i32
    %c0_i32_1 = arith.constant 0 : i32
    return %c0_i32, %c0_i32_0 : i32, i32
  }
  func.func @transform_9(%arg0: i32) -> (i32, i32) {
    %c0_i32 = arith.constant 0 : i32
    %c0_i32_0 = arith.constant 0 : i32
    %c0_i32_1 = arith.constant 0 : i32
    return %c0_i32, %c0_i32_0 : i32, i32
  }
  func.func @transform_10(%arg0: i32) -> (i32, i32) {
    %c0_i32 = arith.constant 0 : i32
    %c0_i32_0 = arith.constant 0 : i32
    %c0_i32_1 = arith.constant 0 : i32
    return %c0_i32, %c0_i32_0 : i32, i32
  }
  func.func @transform_11(%arg0: i32) -> (i32, i32) {
    %c0_i32 = arith.constant 0 : i32
    %c0_i32_0 = arith.constant 0 : i32
    %c0_i32_1 = arith.constant 0 : i32
    return %c0_i32, %c0_i32_0 : i32, i32
  }
  func.func @transform_12(%arg0: i32) -> (i32, i32) {
    %c0_i32 = arith.constant 0 : i32
    %c0_i32_0 = arith.constant 0 : i32
    %c0_i32_1 = arith.constant 0 : i32
    return %c0_i32, %c0_i32_0 : i32, i32
  }
  func.func @transform_13(%arg0: i32) -> (i32, i32, i32) {
    %c0_i32 = arith.constant 0 : i32
    %c0_i32_0 = arith.constant 0 : i32
    %c0_i32_1 = arith.constant 0 : i32
    return %arg0, %c0_i32, %c0_i32_0 : i32, i32, i32
  }
}

</mosaic_0001>

<llo_original>
// kernel: unet_up_forward.2
$region0: #{unet_up_forward.2}
  #allocation0 [shape = 'u32[]', space=smem, size = 0x4, offset = 0x4, fixed_abs, tag = 'smem constant byte address 0x4 - core index']
  #allocation1 [shape = 'u32[144,128]{1,0:T(1,128)}', space=vmem, size = 0x12000, scoped, tag = 'internal scratch']
  %s0 = inlined_call_operand.vmem [shape: bf16[2,96,4], index: 0, kind: input, shape index: {}]
  %s1 = inlined_call_operand.vmem [shape: bf16[36,16], index: 1, kind: input, shape index: {}]
  %s2 = inlined_call_operand.vmem [shape: f32[1,16], index: 2, kind: input, shape index: {}]
  %s3 = inlined_call_operand.vmem [shape: bf16[2,64,16], index: 3, kind: output, shape index: {}]
  %s4 = sld [smem:[#allocation0]]
  $region45: #{unet_up_forward.2} parent=0
    _
  %s6 = ssub.s32 1, %s4
  %s7 = scalar_select 0, %s6, %s4
  loop: start=0, step=1, limit=4
  $region2: #{unet_up_forward.2} parent=0 // loop_pre_header
    _
  $region3: #{unet_up_forward.2} parent=0 // loop_header
    %s9 = sphi 0, %s13
    %p10 = scmp.ge.s32.totalorder %s9, 4
    %s19 = sphi 0, %s21
    %s22 = sphi 0, %s19
    %s23 = sphi 0, %s22
    %s39 = sphi 0, %s23
    %s43 = sphi 0, %s43
    %s45 = sphi 0, %s43
    %s46 = sphi 0, %s45
    %s60 = sphi 0, %s46
    %s64 = sphi 0, %s64
    %s66 = sphi 0, %s64
    %s67 = sphi 0, %s66
    %s81 = sphi 0, %s67
    %s87 = sphi 0, %s89
    %s90 = sphi 0, %s87
    %s91 = sphi 0, %s90
    %s107 = sphi 0, %s91
  $region4: #{unet_up_forward.2} parent=0 // loop_header_branch
    %12 = sbr.rel (%p10) target = $region8
  $region5: #{unet_up_forward.2} parent=0 // loop_body
    %s14 = ssub.s32 %s9, 1
    %s15 = ssub.s32 %s9, 2
    %s16 = sadd.s32 %s9, 1
    %s17 = ssub.s32 %s9, %s16
    %p18 = scmp.eq.s32.totalorder %s17, 0
    %s20 = sadd.s32 %s19, 1
    %s21 = scalar_select %p18, %s19, %s20
    %p24 = pneg %p18
    %p25 = scmp.eq.s32.totalorder %s9, 1
    %p26 = por %p24, %p25
    %p27 = scmp.ne.s32.totalorder %s19, %s22
    %p28 = scmp.eq.s32.totalorder %s9, 0
    %p29 = por %p27, %p28
    %p30 = scmp.ne.s32.totalorder %s19, %s22
    %p31 = scmp.eq.s32.totalorder %s14, 1
    %p32 = por %p30, %p31
    %p33 = scmp.ne.s32.totalorder %s22, %s23
    %p34 = scmp.eq.s32.totalorder %s14, 0
    %p35 = por %p33, %p34
    %p36 = scmp.ne.s32.totalorder %s22, %s23
    %p37 = scmp.eq.s32.totalorder %s15, 1
    %p38 = por %p36, %p37
    %p40 = scmp.ne.s32.totalorder %s23, %s39
    %p41 = scmp.eq.s32.totalorder %s15, 0
    %p42 = por %p40, %p41
    %s44 = sadd.s32 %s43, 1
    %p47 = scmp.eq.s32.totalorder %s9, 1
    %p48 = scmp.ne.s32.totalorder %s43, %s45
    %p49 = scmp.eq.s32.totalorder %s9, 0
    %p50 = por %p48, %p49
    %p51 = scmp.ne.s32.totalorder %s43, %s45
    %p52 = scmp.eq.s32.totalorder %s14, 1
    %p53 = por %p51, %p52
    %p54 = scmp.ne.s32.totalorder %s45, %s46
    %p55 = scmp.eq.s32.totalorder %s14, 0
    %p56 = por %p54, %p55
    %p57 = scmp.ne.s32.totalorder %s45, %s46
    %p58 = scmp.eq.s32.totalorder %s15, 1
    %p59 = por %p57, %p58
    %p61 = scmp.ne.s32.totalorder %s46, %s60
    %p62 = scmp.eq.s32.totalorder %s15, 0
    %p63 = por %p61, %p62
    %s65 = sadd.s32 %s64, 1
    %p68 = scmp.eq.s32.totalorder %s9, 1
    %p69 = scmp.ne.s32.totalorder %s64, %s66
    %p70 = scmp.eq.s32.totalorder %s9, 0
    %p71 = por %p69, %p70
    %p72 = scmp.ne.s32.totalorder %s64, %s66
    %p73 = scmp.eq.s32.totalorder %s14, 1
    %p74 = por %p72, %p73
    %p75 = scmp.ne.s32.totalorder %s66, %s67
    %p76 = scmp.eq.s32.totalorder %s14, 0
    %p77 = por %p75, %p76
    %p78 = scmp.ne.s32.totalorder %s66, %s67
    %p79 = scmp.eq.s32.totalorder %s15, 1
    %p80 = por %p78, %p79
    %p82 = scmp.ne.s32.totalorder %s67, %s81
    %p83 = scmp.eq.s32.totalorder %s15, 0
    %p84 = por %p82, %p83
    %s85 = ssub.s32 %s9, %s16
    %p86 = scmp.eq.s32.totalorder %s85, 0
    %s88 = sadd.s32 %s87, 1
    %s89 = scalar_select %p86, %s87, %s88
    %p92 = pneg %p86
    %p93 = scmp.eq.s32.totalorder %s9, 1
    %p94 = por %p92, %p93
    %p95 = scmp.ne.s32.totalorder %s87, %s90
    %p96 = scmp.eq.s32.totalorder %s9, 0
    %p97 = por %p95, %p96
    %p98 = scmp.ne.s32.totalorder %s87, %s90
    %p99 = scmp.eq.s32.totalorder %s14, 1
    %p100 = por %p98, %p99
    %p101 = scmp.ne.s32.totalorder %s90, %s91
    %p102 = scmp.eq.s32.totalorder %s14, 0
    %p103 = por %p101, %p102
    %p104 = scmp.ne.s32.totalorder %s90, %s91
    %p105 = scmp.eq.s32.totalorder %s15, 1
    %p106 = por %p104, %p105
    %p108 = scmp.ne.s32.totalorder %s91, %s107
    %p109 = scmp.eq.s32.totalorder %s15, 0
    %p110 = por %p108, %p109
    %p111 = scmp.le.s32.totalorder 1, %s9
    %p112 = scmp.lt.s32.totalorder %s9, 3
    %p113 = pnand %p111, %p112
    %p114 = pneg %p113
    // Predicated region
    $region9: #{unet_up_forward.2} parent=5 // pred_check
      _
    $region10: #{unet_up_forward.2} parent=5 // pred_check_branch
      %116 = sbr.rel (%p113) target = $region12
    $region11: #{unet_up_forward.2} parent=5 // pred_region
      %s117 = ssub.s32 %s9, 1
      // Predicated region
      $region13: #{unet_up_forward.2} parent=11 // pred_check
        %p118 = pneg %p56
      $region14: #{unet_up_forward.2} parent=11 // pred_check_branch
        %120 = sbr.rel (%p118) target = $region16
      $region15: #{unet_up_forward.2} parent=11 // pred_region
        _
      $region16: #{unet_up_forward.2} parent=11 // pred_fallthru
        _
      // Predicated region
      $region17: #{unet_up_forward.2} parent=11 // pred_check
        %p121 = pneg %p77
      $region18: #{unet_up_forward.2} parent=11 // pred_check_branch
        %123 = sbr.rel (%p121) target = $region20
      $region19: #{unet_up_forward.2} parent=11 // pred_region
        _
      $region20: #{unet_up_forward.2} parent=11 // pred_fallthru
        _
    $region12: #{unet_up_forward.2} parent=5 // pred_fallthru
      _
    %p124 = scmp.lt.s32.totalorder %s9, 2
    // Predicated region
    $region21: #{unet_up_forward.2} parent=5 // pred_check
      %p125 = pneg %p124
    $region22: #{unet_up_forward.2} parent=5 // pred_check_branch
      %127 = sbr.rel (%p125) target = $region24
    $region23: #{unet_up_forward.2} parent=5 // pred_region
      // Predicated region
      $region25: #{unet_up_forward.2} parent=23 // pred_check
        %p128 = pneg %p29
      $region26: #{unet_up_forward.2} parent=23 // pred_check_branch
        %130 = sbr.rel (%p128) target = $region28
      $region27: #{unet_up_forward.2} parent=23 // pred_region
        %p131 = scmp.lt.s32.totalorder %s9, 1
        %s132 = scalar_select %p131, %s9, 1
        %s133 = smul.addr %s132, 12
        %s134 = smul.addr %s133, 4
        %s135 = scalar_lea.vmem %s0, %s134
      $region28: #{unet_up_forward.2} parent=23 // pred_fallthru
        _
    $region24: #{unet_up_forward.2} parent=5 // pred_fallthru
      _
    %p136 = scmp.le.s32.totalorder 1, %s9
    %p137 = scmp.lt.s32.totalorder %s9, 3
    %p138 = pnand %p136, %p137
    %p139 = pneg %p138
    // Predicated region
    $region29: #{unet_up_forward.2} parent=5 // pred_check
      _
    $region30: #{unet_up_forward.2} parent=5 // pred_check_branch
      %141 = sbr.rel (%p138) target = $region32
    $region31: #{unet_up_forward.2} parent=5 // pred_region
      %s142 = ssub.s32 %s9, 1
      %p143 = scmp.lt.s32.totalorder %s14, 1
      %s144 = scalar_select %p143, %s14, 1
      %s145 = smul.addr %s144, 12
      %s146 = smul.addr %s145, 4
      %s147 = scalar_lea.vmem %s0, %s146
      %p148 = pneg %p35
      %p149 = pneg %p32
      %p150 = pneg %p56
      %p151 = pneg %p53
      %p152 = pneg %p77
      %p153 = pneg %p74
      %p154 = pneg %p103
      %p155 = pneg %p100
      %p156 = scmp.lt.s32.totalorder %s14, 1
      %s157 = scalar_select %p156, %s14, 1
      %s158 = smul.addr %s157, 8
      %s159 = smul.addr %s158, 4
      %s160 = scalar_lea.vmem %s3, %s159
      %p161 = scmp.lt.s32.totalorder %s14, 1
      %s162 = scalar_select %p161, %s14, 1
      %s163 = smul.addr %s162, 12
      %s164 = smul.addr %s163, 4
      %s165 = scalar_lea.vmem %s0, %s164
      %p166 = scmp.lt.s32.totalorder %s14, 1
      %s167 = scalar_select %p166, %s14, 1
      %s168 = smul.addr %s167, 8
      %s169 = smul.addr %s168, 4
      %s170 = scalar_lea.vmem %s3, %s169
      %v174 = vlaneseq
      %v175 = vshrl.u32 %v174, 7
      %v176 = vadd.s32 %v175, 8
      %v177 = vadd.s32 %v175, 16
      %v178 = vadd.s32 %v175, 24
      %v179 = vadd.s32 %v175, 32
      %v180 = vadd.s32 %v175, 40
      %v181 = vadd.s32 %v175, 48
      %v182 = vadd.s32 %v175, 56
      %vm183 = vcmp.lt.s32.totalorder %v175, 0
      %v184 = vsub.s32 0, %v175
      %v185 = vsel %vm183, %v184, %v175
      %v186 = vshrl.u32 %v185, 3
      %v187 = vand.u32 %v185, 7
      %v188 = vsub.s32 0, %v187
      %v189 = vsel %vm183, %v188, %v187
      %vm190 = vcmp.lt.s32.totalorder %v176, 0
      %v191 = vsub.s32 0, %v176
      %v192 = vsel %vm190, %v191, %v176
      %v193 = vshrl.u32 %v192, 3
      %v194 = vand.u32 %v192, 7
      %v195 = vsub.s32 0, %v194
      %v196 = vsel %vm190, %v195, %v194
      %vm197 = vcmp.lt.s32.totalorder %v177, 0
      %v198 = vsub.s32 0, %v177
      %v199 = vsel %vm197, %v198, %v177
      %v200 = vshrl.u32 %v199, 3
      %v201 = vand.u32 %v199, 7
      %v202 = vsub.s32 0, %v201
      %v203 = vsel %vm197, %v202, %v201
      %vm204 = vcmp.lt.s32.totalorder %v178, 0
      %v205 = vsub.s32 0, %v178
      %v206 = vsel %vm204, %v205, %v178
      %v207 = vshrl.u32 %v206, 3
      %v208 = vand.u32 %v206, 7
      %v209 = vsub.s32 0, %v208
      %v210 = vsel %vm204, %v209, %v208
      %vm211 = vcmp.lt.s32.totalorder %v179, 0
      %v212 = vsub.s32 0, %v179
      %v213 = vsel %vm211, %v212, %v179
      %v214 = vshrl.u32 %v213, 3
      %v215 = vand.u32 %v213, 7
      %v216 = vsub.s32 0, %v215
      %v217 = vsel %vm211, %v216, %v215
      %vm218 = vcmp.lt.s32.totalorder %v180, 0
      %v219 = vsub.s32 0, %v180
      %v220 = vsel %vm218, %v219, %v180
      %v221 = vshrl.u32 %v220, 3
      %v222 = vand.u32 %v220, 7
      %v223 = vsub.s32 0, %v222
      %v224 = vsel %vm218, %v223, %v222
      %vm225 = vcmp.lt.s32.totalorder %v181, 0
      %v226 = vsub.s32 0, %v181
      %v227 = vsel %vm225, %v226, %v181
      %v228 = vshrl.u32 %v227, 3
      %v229 = vand.u32 %v227, 7
      %v230 = vsub.s32 0, %v229
      %v231 = vsel %vm225, %v230, %v229
      %vm232 = vcmp.lt.s32.totalorder %v182, 0
      %v233 = vsub.s32 0, %v182
      %v234 = vsel %vm232, %v233, %v182
      %v235 = vshrl.u32 %v234, 3
      %v236 = vand.u32 %v234, 7
      %v237 = vsub.s32 0, %v236
      %v238 = vsel %vm232, %v237, %v236
      %vm239 = vcmp.ne.s32.totalorder %v189, 0
      %vm240 = vcmp.ne.s32.totalorder %v196, 0
      %vm241 = vcmp.ne.s32.totalorder %v203, 0
      %vm242 = vcmp.ne.s32.totalorder %v210, 0
      %vm243 = vcmp.ne.s32.totalorder %v217, 0
      %vm244 = vcmp.ne.s32.totalorder %v224, 0
      %vm245 = vcmp.ne.s32.totalorder %v231, 0
      %vm246 = vcmp.ne.s32.totalorder %v238, 0
      %vm247 = vcmp.lt.s32.totalorder %v189, 0
      %vm248 = vcmp.lt.s32.totalorder %v196, 0
      %vm249 = vcmp.lt.s32.totalorder %v203, 0
      %vm250 = vcmp.lt.s32.totalorder %v210, 0
      %vm251 = vcmp.lt.s32.totalorder %v217, 0
      %vm252 = vcmp.lt.s32.totalorder %v224, 0
      %vm253 = vcmp.lt.s32.totalorder %v231, 0
      %vm254 = vcmp.lt.s32.totalorder %v238, 0
      %vm255 = vmand %vm247, %vm239
      %vm256 = vmand %vm248, %vm240
      %vm257 = vmand %vm249, %vm241
      %vm258 = vmand %vm250, %vm242
      %vm259 = vmand %vm251, %vm243
      %vm260 = vmand %vm252, %vm244
      %vm261 = vmand %vm253, %vm245
      %vm262 = vmand %vm254, %vm246
      %v263 = vadd.s32 %v189, 8
      %v264 = vadd.s32 %v196, 8
      %v265 = vadd.s32 %v203, 8
      %v266 = vadd.s32 %v210, 8
      %v267 = vadd.s32 %v217, 8
      %v268 = vadd.s32 %v224, 8
      %v269 = vadd.s32 %v231, 8
      %v270 = vadd.s32 %v238, 8
      %v271 = vsel %vm255, %v263, %v189
      %v272 = vsel %vm256, %v264, %v196
      %v273 = vsel %vm257, %v265, %v203
      %v274 = vsel %vm258, %v266, %v210
      %v275 = vsel %vm259, %v267, %v217
      %v276 = vsel %vm260, %v268, %v224
      %v277 = vsel %vm261, %v269, %v231
      %v278 = vsel %vm262, %v270, %v238
      %vm279 = vcmp.ne.s32.totalorder %v271, 0
      %vm280 = vcmp.ne.s32.totalorder %v272, 0
      %vm281 = vcmp.ne.s32.totalorder %v273, 0
      %vm282 = vcmp.ne.s32.totalorder %v274, 0
      %vm283 = vcmp.ne.s32.totalorder %v275, 0
      %vm284 = vcmp.ne.s32.totalorder %v276, 0
      %vm285 = vcmp.ne.s32.totalorder %v277, 0
      %vm286 = vcmp.ne.s32.totalorder %v278, 0
      %vm287 = vcmp.ne.s32.totalorder %v271, 7
      %vm288 = vcmp.ne.s32.totalorder %v272, 7
      %vm289 = vcmp.ne.s32.totalorder %v273, 7
      %vm290 = vcmp.ne.s32.totalorder %v274, 7
      %vm291 = vcmp.ne.s32.totalorder %v275, 7
      %vm292 = vcmp.ne.s32.totalorder %v276, 7
      %vm293 = vcmp.ne.s32.totalorder %v277, 7
      %vm294 = vcmp.ne.s32.totalorder %v278, 7
      %v295 = vld [vmem:[%s165] sm:$0x8]
      %v296 = vld [vmem:[%s165 + $0x4] sm:$0xf]
      %v297 = vld [vmem:[%s165 + $0x8] sm:$0xf]
      %v298 = vld [vmem:[%s165 + $0xc] sm:$0xf]
      %v299 = vld [vmem:[%s165 + $0x10] sm:$0xf]
      %v300 = vld [vmem:[%s165 + $0x14] sm:$0xf]
      %v301 = vld [vmem:[%s165 + $0x18] sm:$0xf]
      %v302 = vld [vmem:[%s165 + $0x1c] sm:$0xf]
      %v303 = vld [vmem:[%s165 + $0x20] sm:$0xf]
      %v304 = vsel %vm279, 1, 0
      %v305 = vsel %vm280, 1, 0
      %v306 = vsel %vm281, 1, 0
      %v307 = vsel %vm282, 1, 0
      %v308 = vsel %vm283, 1, 0
      %v309 = vsel %vm284, 1, 0
      %v310 = vsel %vm285, 1, 0
      %v311 = vsel %vm286, 1, 0
      %vm312 = vcmp.eq.s32.totalorder %v304, 1
      %vm313 = vcmp.eq.s32.totalorder %v305, 1
      %vm314 = vcmp.eq.s32.totalorder %v306, 1
      %vm315 = vcmp.eq.s32.totalorder %v307, 1
      %vm316 = vcmp.eq.s32.totalorder %v308, 1
      %vm317 = vcmp.eq.s32.totalorder %v309, 1
      %vm318 = vcmp.eq.s32.totalorder %v310, 1
      %vm319 = vcmp.eq.s32.totalorder %v311, 1
      %vm320 = vmpackc.low %vm312, %vm312
      %vm321 = vmpackc.low %vm313, %vm313
      %vm322 = vmpackc.low %vm314, %vm314
      %vm323 = vmpackc.low %vm315, %vm315
      %vm324 = vmpackc.low %vm316, %vm316
      %vm325 = vmpackc.low %vm317, %vm317
      %vm326 = vmpackc.low %vm318, %vm318
      %vm327 = vmpackc.low %vm319, %vm319
      %v328 = vsel %vm320, 65537, 0
      %v329 = vsel %vm321, 65537, 0
      %v330 = vsel %vm322, 65537, 0
      %v331 = vsel %vm323, 65537, 0
      %v332 = vsel %vm324, 65537, 0
      %v333 = vsel %vm325, 65537, 0
      %v334 = vsel %vm326, 65537, 0
      %v335 = vsel %vm327, 65537, 0
      %vm336 = vsmask.f32 3328
      %vm337 = vsmask.f32 7440
      %vm338 = vmor %vm336, %vm337
      %v340 = vshll.u32 %v328, 16
      %v342 = vrot.slane %v340, 5
      %v343 = vshrl.u32 %v328, 16
      %v345 = vrot.slane %v343, 4
      %v346 = vor.u32 %v345, %v342
      %v347 = vrot.slane %v346, 4
      %v349 = vshll.u32 %v329, 16
      %v351 = vrot.slane %v349, 5
      %v352 = vsel %vm338, %v347, %v351
      %v353 = vshrl.u32 %v329, 16
      %v355 = vrot.slane %v353, 4
      %v356 = vor.u32 %v355, %v351
      %v357 = vrot.slane %v356, 4
      %v359 = vshll.u32 %v330, 16
      %v361 = vrot.slane %v359, 5
      %v362 = vsel %vm338, %v357, %v361
      %v363 = vshrl.u32 %v330, 16
      %v365 = vrot.slane %v363, 4
      %v366 = vor.u32 %v365, %v361
      %v367 = vrot.slane %v366, 4
      %v369 = vshll.u32 %v331, 16
      %v371 = vrot.slane %v369, 5
      %v372 = vsel %vm338, %v367, %v371
      %v373 = vshrl.u32 %v331, 16
      %v375 = vrot.slane %v373, 4
      %v376 = vor.u32 %v375, %v371
      %v377 = vrot.slane %v376, 4
      %v379 = vshll.u32 %v332, 16
      %v381 = vrot.slane %v379, 5
      %v382 = vsel %vm338, %v377, %v381
      %v383 = vshrl.u32 %v332, 16
      %v385 = vrot.slane %v383, 4
      %v386 = vor.u32 %v385, %v381
      %v387 = vrot.slane %v386, 4
      %v389 = vshll.u32 %v333, 16
      %v391 = vrot.slane %v389, 5
      %v392 = vsel %vm338, %v387, %v391
      %v393 = vshrl.u32 %v333, 16
      %v395 = vrot.slane %v393, 4
      %v396 = vor.u32 %v395, %v391
      %v397 = vrot.slane %v396, 4
      %v399 = vshll.u32 %v334, 16
      %v401 = vrot.slane %v399, 5
      %v402 = vsel %vm338, %v397, %v401
      %v403 = vshrl.u32 %v334, 16
      %v405 = vrot.slane %v403, 4
      %v406 = vor.u32 %v405, %v401
      %v407 = vrot.slane %v406, 4
      %v409 = vshll.u32 %v335, 16
      %v411 = vrot.slane %v409, 5
      %v412 = vsel %vm338, %v407, %v411
      %v413 = vshrl.u32 %v335, 16
      %v415 = vrot.slane %v413, 4
      %v416 = vor.u32 %v415, %v411
      %v417 = vrot.slane %v416, 4
      %vm418 = vcmp.ne.s16.totalorder %v342, 0
      %vm419 = vcmp.ne.s16.totalorder %v352, 0
      %vm420 = vcmp.ne.s16.totalorder %v362, 0
      %vm421 = vcmp.ne.s16.totalorder %v372, 0
      %vm422 = vcmp.ne.s16.totalorder %v382, 0
      %vm423 = vcmp.ne.s16.totalorder %v392, 0
      %vm424 = vcmp.ne.s16.totalorder %v402, 0
      %vm425 = vcmp.ne.s16.totalorder %v412, 0
      %vm426 = vcmp.ne.s16.totalorder %v417, 0
      %v427 = vsel %vm418, %v295, 0
      %v428 = vsel %vm419, %v296, 0
      %v429 = vsel %vm420, %v297, 0
      %v430 = vsel %vm421, %v298, 0
      %v431 = vsel %vm422, %v299, 0
      %v432 = vsel %vm423, %v300, 0
      %v433 = vsel %vm424, %v301, 0
      %v434 = vsel %vm425, %v302, 0
      %v435 = vsel %vm426, %v303, 0
      %v436 = vld [vmem:[%s165 + $0x24] sm:$0x1]
      %v437 = vsel %vm287, 1, 0
      %v438 = vsel %vm288, 1, 0
      %v439 = vsel %vm289, 1, 0
      %v440 = vsel %vm290, 1, 0
      %v441 = vsel %vm291, 1, 0
      %v442 = vsel %vm292, 1, 0
      %v443 = vsel %vm293, 1, 0
      %v444 = vsel %vm294, 1, 0
      %vm445 = vcmp.eq.s32.totalorder %v437, 1
      %vm446 = vcmp.eq.s32.totalorder %v438, 1
      %vm447 = vcmp.eq.s32.totalorder %v439, 1
      %vm448 = vcmp.eq.s32.totalorder %v440, 1
      %vm449 = vcmp.eq.s32.totalorder %v441, 1
      %vm450 = vcmp.eq.s32.totalorder %v442, 1
      %vm451 = vcmp.eq.s32.totalorder %v443, 1
      %vm452 = vcmp.eq.s32.totalorder %v444, 1
      %vm453 = vmpackc.low %vm445, %vm445
      %vm454 = vmpackc.low %vm446, %vm446
      %vm455 = vmpackc.low %vm447, %vm447
      %vm456 = vmpackc.low %vm448, %vm448
      %vm457 = vmpackc.low %vm449, %vm449
      %vm458 = vmpackc.low %vm450, %vm450
      %vm459 = vmpackc.low %vm451, %vm451
      %vm460 = vmpackc.low %vm452, %vm452
      %v461 = vsel %vm453, 65537, 0
      %v462 = vsel %vm454, 65537, 0
      %v463 = vsel %vm455, 65537, 0
      %v464 = vsel %vm456, 65537, 0
      %v465 = vsel %vm457, 65537, 0
      %v466 = vsel %vm458, 65537, 0
      %v467 = vsel %vm459, 65537, 0
      %v468 = vsel %vm460, 65537, 0
      %vm469 = vsmask.f32 256
      %vm470 = vsmask.f32 4368
      %vm471 = vmor %vm469, %vm470
      %v473 = vshrl.u32 %v461, 16
      %v475 = vrot.slane %v473, 7
      %v476 = vshll.u32 %v461, 16
      %v478 = vor.u32 %v475, %v476
      %v479 = vrot.slane %v475, 4
      %v481 = vshrl.u32 %v462, 16
      %v483 = vrot.slane %v481, 7
      %v484 = vshll.u32 %v462, 16
      %v486 = vor.u32 %v483, %v484
      %v487 = vsel %vm471, %v479, %v486
      %v488 = vrot.slane %v483, 4
      %v490 = vshrl.u32 %v463, 16
      %v492 = vrot.slane %v490, 7
      %v493 = vshll.u32 %v463, 16
      %v495 = vor.u32 %v492, %v493
      %v496 = vsel %vm471, %v488, %v495
      %v497 = vrot.slane %v492, 4
      %v499 = vshrl.u32 %v464, 16
      %v501 = vrot.slane %v499, 7
      %v502 = vshll.u32 %v464, 16
      %v504 = vor.u32 %v501, %v502
      %v505 = vsel %vm471, %v497, %v504
      %v506 = vrot.slane %v501, 4
      %v508 = vshrl.u32 %v465, 16
      %v510 = vrot.slane %v508, 7
      %v511 = vshll.u32 %v465, 16
      %v513 = vor.u32 %v510, %v511
      %v514 = vsel %vm471, %v506, %v513
      %v515 = vrot.slane %v510, 4
      %v517 = vshrl.u32 %v466, 16
      %v519 = vrot.slane %v517, 7
      %v520 = vshll.u32 %v466, 16
      %v522 = vor.u32 %v519, %v520
      %v523 = vsel %vm471, %v515, %v522
      %v524 = vrot.slane %v519, 4
      %v526 = vshrl.u32 %v467, 16
      %v528 = vrot.slane %v526, 7
      %v529 = vshll.u32 %v467, 16
      %v531 = vor.u32 %v528, %v529
      %v532 = vsel %vm471, %v524, %v531
      %v533 = vrot.slane %v528, 4
      %v535 = vshrl.u32 %v468, 16
      %v537 = vrot.slane %v535, 7
      %v538 = vshll.u32 %v468, 16
      %v540 = vor.u32 %v537, %v538
      %v541 = vsel %vm471, %v533, %v540
      %v542 = vrot.slane %v537, 4
      %vm543 = vcmp.ne.s16.totalorder %v478, 0
      %vm544 = vcmp.ne.s16.totalorder %v487, 0
      %vm545 = vcmp.ne.s16.totalorder %v496, 0
      %vm546 = vcmp.ne.s16.totalorder %v505, 0
      %vm547 = vcmp.ne.s16.totalorder %v514, 0
      %vm548 = vcmp.ne.s16.totalorder %v523, 0
      %vm549 = vcmp.ne.s16.totalorder %v532, 0
      %vm550 = vcmp.ne.s16.totalorder %v541, 0
      %vm551 = vcmp.ne.s16.totalorder %v542, 0
      %v552 = vsel %vm543, %v296, 0
      %v553 = vsel %vm544, %v297, 0
      %v554 = vsel %vm545, %v298, 0
      %v555 = vsel %vm546, %v299, 0
      %v556 = vsel %vm547, %v300, 0
      %v557 = vsel %vm548, %v301, 0
      %v558 = vsel %vm549, %v302, 0
      %v559 = vsel %vm550, %v303, 0
      %v560 = vsel %vm551, %v436, 0
      %v561 = vld [vmem:[%s165 + $0x4] sm:$0x8]
      %v562 = vld [vmem:[%s165 + $0x24] sm:$0xf]
      %v563 = vsel %vm418, %v561, 0
      %v564 = vsel %vm419, %v297, 0
      %v565 = vsel %vm420, %v298, 0
      %v566 = vsel %vm421, %v299, 0
      %v567 = vsel %vm422, %v300, 0
      %v568 = vsel %vm423, %v301, 0
      %v569 = vsel %vm424, %v302, 0
      %v570 = vsel %vm425, %v303, 0
      %v571 = vsel %vm426, %v562, 0
      %v572 = vld [vmem:[%s165 + $0x28] sm:$0x1]
      %v573 = vsel %vm543, %v297, 0
      %v574 = vsel %vm544, %v298, 0
      %v575 = vsel %vm545, %v299, 0
      %v576 = vsel %vm546, %v300, 0
      %v577 = vsel %vm547, %v301, 0
      %v578 = vsel %vm548, %v302, 0
      %v579 = vsel %vm549, %v303, 0
      %v580 = vsel %vm550, %v562, 0
      %v581 = vsel %vm551, %v572, 0
      %v582 = vld [vmem:[%s165 + $0x8] sm:$0x8]
      %v583 = vld [vmem:[%s165 + $0x28] sm:$0xf]
      %v584 = vsel %vm418, %v582, 0
      %v585 = vsel %vm419, %v298, 0
      %v586 = vsel %vm420, %v299, 0
      %v587 = vsel %vm421, %v300, 0
      %v588 = vsel %vm422, %v301, 0
      %v589 = vsel %vm423, %v302, 0
      %v590 = vsel %vm424, %v303, 0
      %v591 = vsel %vm425, %v562, 0
      %v592 = vsel %vm426, %v583, 0
      %v593 = vld [vmem:[%s165 + $0x2c] sm:$0x1]
      %v594 = vsel %vm543, %v298, 0
      %v595 = vsel %vm544, %v299, 0
      %v596 = vsel %vm545, %v300, 0
      %v597 = vsel %vm546, %v301, 0
      %v598 = vsel %vm547, %v302, 0
      %v599 = vsel %vm548, %v303, 0
      %v600 = vsel %vm549, %v562, 0
      %v601 = vsel %vm550, %v583, 0
      %v602 = vsel %vm551, %v593, 0
      %v612 = vunpack.c.l.b16 %v427
      %v613 = vunpack.c.l.b16 %v428
      %v614 = vunpack.c.l.b16 %v429
      %v615 = vunpack.c.l.b16 %v430
      %v616 = vunpack.c.l.b16 %v431
      %v617 = vunpack.c.l.b16 %v432
      %v618 = vunpack.c.l.b16 %v433
      %v619 = vunpack.c.l.b16 %v434
      %v620 = vunpack.c.l.b16 %v435
      %v621 = vpack.c.b16 %v613, %v612
      %v622 = vpack.c.b16 %v615, %v614
      %v623 = vpack.c.b16 %v617, %v616
      %v624 = vpack.c.b16 %v619, %v618
      %v625 = vpack.c.b16 %v620, %v620
      %v634 = vunpack.c.l.b16 %v296
      %v635 = vunpack.c.l.b16 %v297
      %v636 = vunpack.c.l.b16 %v298
      %v637 = vunpack.c.l.b16 %v299
      %v638 = vunpack.c.l.b16 %v300
      %v639 = vunpack.c.l.b16 %v301
      %v640 = vunpack.c.l.b16 %v302
      %v641 = vunpack.c.l.b16 %v303
      %v642 = vpack.c.b16 %v635, %v634
      %v643 = vpack.c.b16 %v637, %v636
      %v644 = vpack.c.b16 %v639, %v638
      %v645 = vpack.c.b16 %v641, %v640
      %v647 = vshrl.u32 %v642, 16
      %v649 = vrot.slane %v647, 4
      %v650 = vshll.u32 %v642, 16
      %v652 = vrot.slane %v650, 5
      %v653 = vor.u32 %v649, %v652
      %v655 = vshrl.u32 %v643, 16
      %v657 = vrot.slane %v655, 4
      %v658 = vshll.u32 %v643, 16
      %v660 = vrot.slane %v658, 5
      %v661 = vor.u32 %v657, %v660
      %v662 = vsel %vm336, %v653, %v661
      %v664 = vshrl.u32 %v644, 16
      %v666 = vrot.slane %v664, 4
      %v667 = vshll.u32 %v644, 16
      %v669 = vrot.slane %v667, 5
      %v670 = vor.u32 %v666, %v669
      %v671 = vsel %vm336, %v661, %v670
      %v673 = vshrl.u32 %v645, 16
      %v675 = vrot.slane %v673, 4
      %v676 = vshll.u32 %v645, 16
      %v678 = vrot.slane %v676, 5
      %v679 = vor.u32 %v675, %v678
      %v680 = vsel %vm336, %v670, %v679
      %681 = vrot.lane.b32.xlu0 %v653, 4
      %v682 = vpop.permute.xlu0 %681
      %683 = vrot.lane.b32.xlu0 %v662, 4
      %v684 = vpop.permute.xlu0 %683
      %685 = vrot.lane.b32.xlu0 %v671, 4
      %v686 = vpop.permute.xlu0 %685
      %687 = vrot.lane.b32.xlu0 %v680, 4
      %v688 = vpop.permute.xlu0 %687
      %689 = vrot.lane.b32.xlu0 %v679, 4
      %v690 = vpop.permute.xlu0 %689
      %v700 = vunpack.c.l.b16 %v552
      %v701 = vunpack.c.l.b16 %v553
      %v702 = vunpack.c.l.b16 %v554
      %v703 = vunpack.c.l.b16 %v555
      %v704 = vunpack.c.l.b16 %v556
      %v705 = vunpack.c.l.b16 %v557
      %v706 = vunpack.c.l.b16 %v558
      %v707 = vunpack.c.l.b16 %v559
      %v708 = vunpack.c.l.b16 %v560
      %v709 = vpack.c.b16 %v701, %v700
      %v710 = vpack.c.b16 %v703, %v702
      %v711 = vpack.c.b16 %v705, %v704
      %v712 = vpack.c.b16 %v707, %v706
      %v713 = vpack.c.b16 %v708, %v708
      %vm714 = vcmask 1042432
      %v715 = vrot.slane %v709, 5
      %v716 = vrot.slane %v710, 5
      %v717 = vsel %vm714, %v715, %v716
      %v718 = vrot.slane %v711, 5
      %v719 = vsel %vm714, %v716, %v718
      %v720 = vrot.slane %v712, 5
      %v721 = vsel %vm714, %v718, %v720
      %v722 = vrot.slane %v713, 5
      %v723 = vsel %vm714, %v720, %v722
      %724 = vrot.lane.b32.xlu0 %v715, 8
      %v725 = vpop.permute.xlu0 %724
      %726 = vrot.lane.b32.xlu0 %v717, 8
      %v727 = vpop.permute.xlu0 %726
      %728 = vrot.lane.b32.xlu0 %v719, 8
      %v729 = vpop.permute.xlu0 %728
      %730 = vrot.lane.b32.xlu0 %v721, 8
      %v731 = vpop.permute.xlu0 %730
      %732 = vrot.lane.b32.xlu0 %v723, 8
      %v733 = vpop.permute.xlu0 %732
      %v743 = vunpack.c.l.b16 %v563
      %v744 = vunpack.c.l.b16 %v564
      %v745 = vunpack.c.l.b16 %v565
      %v746 = vunpack.c.l.b16 %v566
      %v747 = vunpack.c.l.b16 %v567
      %v748 = vunpack.c.l.b16 %v568
      %v749 = vunpack.c.l.b16 %v569
      %v750 = vunpack.c.l.b16 %v570
      %v751 = vunpack.c.l.b16 %v571
      %v752 = vpack.c.b16 %v744, %v743
      %v753 = vpack.c.b16 %v746, %v745
      %v754 = vpack.c.b16 %v748, %v747
      %v755 = vpack.c.b16 %v750, %v749
      %v756 = vpack.c.b16 %v751, %v751
      %757 = vrot.lane.b32.xlu0 %v752, 12
      %v758 = vpop.permute.xlu0 %757
      %759 = vrot.lane.b32.xlu0 %v753, 12
      %v760 = vpop.permute.xlu0 %759
      %761 = vrot.lane.b32.xlu0 %v754, 12
      %v762 = vpop.permute.xlu0 %761
      %763 = vrot.lane.b32.xlu0 %v755, 12
      %v764 = vpop.permute.xlu0 %763
      %765 = vrot.lane.b32.xlu0 %v756, 12
      %v766 = vpop.permute.xlu0 %765
      %v768 = vunpack.c.l.b16 %v562
      %v769 = vpack.c.b16 %v636, %v635
      %v770 = vpack.c.b16 %v638, %v637
      %v771 = vpack.c.b16 %v640, %v639
      %v772 = vpack.c.b16 %v768, %v641
      %v774 = vshrl.u32 %v769, 16
      %v776 = vrot.slane %v774, 4
      %v777 = vshll.u32 %v769, 16
      %v779 = vrot.slane %v777, 5
      %v780 = vor.u32 %v776, %v779
      %v782 = vshrl.u32 %v770, 16
      %v784 = vrot.slane %v782, 4
      %v785 = vshll.u32 %v770, 16
      %v787 = vrot.slane %v785, 5
      %v788 = vor.u32 %v784, %v787
      %v789 = vsel %vm336, %v780, %v788
      %v791 = vshrl.u32 %v771, 16
      %v793 = vrot.slane %v791, 4
      %v794 = vshll.u32 %v771, 16
      %v796 = vrot.slane %v794, 5
      %v797 = vor.u32 %v793, %v796
      %v798 = vsel %vm336, %v788, %v797
      %v800 = vshrl.u32 %v772, 16
      %v802 = vrot.slane %v800, 4
      %v803 = vshll.u32 %v772, 16
      %v805 = vrot.slane %v803, 5
      %v806 = vor.u32 %v802, %v805
      %v807 = vsel %vm336, %v797, %v806
      %808 = vrot.lane.b32.xlu0 %v780, 16
      %v809 = vpop.permute.xlu0 %808
      %810 = vrot.lane.b32.xlu0 %v789, 16
      %v811 = vpop.permute.xlu0 %810
      %812 = vrot.lane.b32.xlu0 %v798, 16
      %v813 = vpop.permute.xlu0 %812
      %814 = vrot.lane.b32.xlu0 %v807, 16
      %v815 = vpop.permute.xlu0 %814
      %816 = vrot.lane.b32.xlu0 %v806, 16
      %v817 = vpop.permute.xlu0 %816
      %v827 = vunpack.c.l.b16 %v573
      %v828 = vunpack.c.l.b16 %v574
      %v829 = vunpack.c.l.b16 %v575
      %v830 = vunpack.c.l.b16 %v576
      %v831 = vunpack.c.l.b16 %v577
      %v832 = vunpack.c.l.b16 %v578
      %v833 = vunpack.c.l.b16 %v579
      %v834 = vunpack.c.l.b16 %v580
      %v835 = vunpack.c.l.b16 %v581
      %v836 = vpack.c.b16 %v828, %v827
      %v837 = vpack.c.b16 %v830, %v829
      %v838 = vpack.c.b16 %v832, %v831
      %v839 = vpack.c.b16 %v834, %v833
      %v840 = vpack.c.b16 %v835, %v835
      %v841 = vrot.slane %v836, 5
      %v842 = vrot.slane %v837, 5
      %v843 = vsel %vm714, %v841, %v842
      %v844 = vrot.slane %v838, 5
      %v845 = vsel %vm714, %v842, %v844
      %v846 = vrot.slane %v839, 5
      %v847 = vsel %vm714, %v844, %v846
      %v848 = vrot.slane %v840, 5
      %v849 = vsel %vm714, %v846, %v848
      %850 = vrot.lane.b32.xlu0 %v841, 20
      %v851 = vpop.permute.xlu0 %850
      %852 = vrot.lane.b32.xlu0 %v843, 20
      %v853 = vpop.permute.xlu0 %852
      %854 = vrot.lane.b32.xlu0 %v845, 20
      %v855 = vpop.permute.xlu0 %854
      %856 = vrot.lane.b32.xlu0 %v847, 20
      %v857 = vpop.permute.xlu0 %856
      %858 = vrot.lane.b32.xlu0 %v849, 20
      %v859 = vpop.permute.xlu0 %858
      %v869 = vunpack.c.l.b16 %v584
      %v870 = vunpack.c.l.b16 %v585
      %v871 = vunpack.c.l.b16 %v586
      %v872 = vunpack.c.l.b16 %v587
      %v873 = vunpack.c.l.b16 %v588
      %v874 = vunpack.c.l.b16 %v589
      %v875 = vunpack.c.l.b16 %v590
      %v876 = vunpack.c.l.b16 %v591
      %v877 = vunpack.c.l.b16 %v592
      %v878 = vpack.c.b16 %v870, %v869
      %v879 = vpack.c.b16 %v872, %v871
      %v880 = vpack.c.b16 %v874, %v873
      %v881 = vpack.c.b16 %v876, %v875
      %v882 = vpack.c.b16 %v877, %v877
      %883 = vrot.lane.b32.xlu0 %v878, 24
      %v884 = vpop.permute.xlu0 %883
      %885 = vrot.lane.b32.xlu0 %v879, 24
      %v886 = vpop.permute.xlu0 %885
      %887 = vrot.lane.b32.xlu0 %v880, 24
      %v888 = vpop.permute.xlu0 %887
      %889 = vrot.lane.b32.xlu0 %v881, 24
      %v890 = vpop.permute.xlu0 %889
      %891 = vrot.lane.b32.xlu0 %v882, 24
      %v892 = vpop.permute.xlu0 %891
      %v894 = vunpack.c.l.b16 %v583
      %v895 = vpack.c.b16 %v894, %v768
      %v897 = vshrl.u32 %v895, 16
      %v899 = vrot.slane %v897, 4
      %v900 = vshll.u32 %v895, 16
      %v902 = vrot.slane %v900, 5
      %v903 = vor.u32 %v899, %v902
      %v904 = vsel %vm336, %v679, %v903
      %905 = vrot.lane.b32.xlu0 %v661, 28
      %v906 = vpop.permute.xlu0 %905
      %907 = vrot.lane.b32.xlu0 %v671, 28
      %v908 = vpop.permute.xlu0 %907
      %909 = vrot.lane.b32.xlu0 %v680, 28
      %v910 = vpop.permute.xlu0 %909
      %911 = vrot.lane.b32.xlu0 %v904, 28
      %v912 = vpop.permute.xlu0 %911
      %913 = vrot.lane.b32.xlu0 %v903, 28
      %v914 = vpop.permute.xlu0 %913
      %v924 = vunpack.c.l.b16 %v594
      %v925 = vunpack.c.l.b16 %v595
      %v926 = vunpack.c.l.b16 %v596
      %v927 = vunpack.c.l.b16 %v597
      %v928 = vunpack.c.l.b16 %v598
      %v929 = vunpack.c.l.b16 %v599
      %v930 = vunpack.c.l.b16 %v600
      %v931 = vunpack.c.l.b16 %v601
      %v932 = vunpack.c.l.b16 %v602
      %v933 = vpack.c.b16 %v925, %v924
      %v934 = vpack.c.b16 %v927, %v926
      %v935 = vpack.c.b16 %v929, %v928
      %v936 = vpack.c.b16 %v931, %v930
      %v937 = vpack.c.b16 %v932, %v932
      %v938 = vrot.slane %v933, 5
      %v939 = vrot.slane %v934, 5
      %v940 = vsel %vm714, %v938, %v939
      %v941 = vrot.slane %v935, 5
      %v942 = vsel %vm714, %v939, %v941
      %v943 = vrot.slane %v936, 5
      %v944 = vsel %vm714, %v941, %v943
      %v945 = vrot.slane %v937, 5
      %v946 = vsel %vm714, %v943, %v945
      %947 = vrot.lane.b32.xlu0 %v938, 32
      %v948 = vpop.permute.xlu0 %947
      %949 = vrot.lane.b32.xlu0 %v940, 32
      %v950 = vpop.permute.xlu0 %949
      %951 = vrot.lane.b32.xlu0 %v942, 32
      %v952 = vpop.permute.xlu0 %951
      %953 = vrot.lane.b32.xlu0 %v944, 32
      %v954 = vpop.permute.xlu0 %953
      %955 = vrot.lane.b32.xlu0 %v946, 32
      %v956 = vpop.permute.xlu0 %955
      %vm957 = vcmask 31744
      %v960 = vsel %vm957, %v621, %v682
      %v963 = vsel %vm957, %v622, %v684
      %v966 = vsel %vm957, %v623, %v686
      %v969 = vsel %vm957, %v624, %v688
      %v972 = vsel %vm957, %v625, %v690
      %vm973 = vcmask 64512
      %v975 = vsel %vm973, %v960, %v725
      %v977 = vsel %vm973, %v963, %v727
      %v979 = vsel %vm973, %v966, %v729
      %v981 = vsel %vm973, %v969, %v731
      %v983 = vsel %vm973, %v972, %v733
      %vm984 = vcmask 97280
      %v986 = vsel %vm984, %v975, %v758
      %v988 = vsel %vm984, %v977, %v760
      %v990 = vsel %vm984, %v979, %v762
      %v992 = vsel %vm984, %v981, %v764
      %v994 = vsel %vm984, %v983, %v766
      %vm995 = vcmask 130048
      %v997 = vsel %vm995, %v986, %v809
      %v999 = vsel %vm995, %v988, %v811
      %v1001 = vsel %vm995, %v990, %v813
      %v1003 = vsel %vm995, %v992, %v815
      %v1005 = vsel %vm995, %v994, %v817
      %vm1006 = vcmask 162816
      %v1008 = vsel %vm1006, %v997, %v851
      %v1010 = vsel %vm1006, %v999, %v853
      %v1012 = vsel %vm1006, %v1001, %v855
      %v1014 = vsel %vm1006, %v1003, %v857
      %v1016 = vsel %vm1006, %v1005, %v859
      %vm1017 = vcmask 195584
      %v1019 = vsel %vm1017, %v1008, %v884
      %v1021 = vsel %vm1017, %v1010, %v886
      %v1023 = vsel %vm1017, %v1012, %v888
      %v1025 = vsel %vm1017, %v1014, %v890
      %v1027 = vsel %vm1017, %v1016, %v892
      %vm1028 = vcmask 228352
      %v1030 = vsel %vm1028, %v1019, %v906
      %v1032 = vsel %vm1028, %v1021, %v908
      %v1034 = vsel %vm1028, %v1023, %v910
      %v1036 = vsel %vm1028, %v1025, %v912
      %v1038 = vsel %vm1028, %v1027, %v914
      %vm1039 = vcmask 261120
      %v1041 = vsel %vm1039, %v1030, %v948
      %v1043 = vsel %vm1039, %v1032, %v950
      %v1045 = vsel %vm1039, %v1034, %v952
      %v1047 = vsel %vm1039, %v1036, %v954
      %v1049 = vsel %vm1039, %v1038, %v956
      %v1050 = vld [vmem:[%s1] sm:$0xf]
      %v1051 = vld [vmem:[%s1 + $0x4] sm:$0xf]
      %v1052 = vld [vmem:[%s1 + $0x8] sm:$0xf]
      %v1053 = vld [vmem:[%s1 + $0xc] sm:$0xf]
      %v1054 = vld [vmem:[%s1 + $0x10] sm:$0x3]
      %v1055 = vld [vmem:[%s2] sm:$0x1]
      %v1057 = vlaneseq
      %v1058 = vshrl.u32 %v1057, 7
      %v1059 = vsub.s32 0, %v1058
      %v1060 = vrot.slane %v1055, %v1059
      %vm1062 = vsmask.f32 4352
      %v1063 = vshrl.u32 %v1041, 16
      %v1065 = vrot.slane %v1063, 3
      %v1066 = vshll.u32 %v1041, 16
      %v1068 = vrot.slane %v1066, 4
      %v1069 = vor.u32 %v1065, %v1068
      %v1070 = vshrl.u32 %v1043, 16
      %v1072 = vrot.slane %v1070, 3
      %v1073 = vshll.u32 %v1043, 16
      %v1075 = vrot.slane %v1073, 4
      %v1076 = vor.u32 %v1072, %v1075
      %v1077 = vsel %vm1062, %v1069, %v1076
      %v1078 = vshrl.u32 %v1045, 16
      %v1080 = vrot.slane %v1078, 3
      %v1081 = vshll.u32 %v1045, 16
      %v1083 = vrot.slane %v1081, 4
      %v1084 = vor.u32 %v1080, %v1083
      %v1085 = vsel %vm1062, %v1076, %v1084
      %v1086 = vshrl.u32 %v1047, 16
      %v1088 = vrot.slane %v1086, 3
      %v1089 = vshll.u32 %v1047, 16
      %v1091 = vrot.slane %v1089, 4
      %v1092 = vor.u32 %v1088, %v1091
      %v1093 = vsel %vm1062, %v1084, %v1092
      %v1094 = vshrl.u32 %v1049, 16
      %v1096 = vrot.slane %v1094, 3
      %v1097 = vshll.u32 %v1049, 16
      %v1099 = vrot.slane %v1097, 4
      %v1100 = vor.u32 %v1096, %v1099
      %v1101 = vsel %vm1062, %v1092, %v1100
      %v1107 = vunpack.c.l.b16 %v1050
      %v1108 = vunpack.c.l.b16 %v1051
      %v1109 = vunpack.c.l.b16 %v1052
      %v1110 = vunpack.c.l.b16 %v1053
      %v1111 = vunpack.c.l.b16 %v1054
      %v1112 = vpack.c.b16 %v1108, %v1107
      %v1113 = vpack.c.b16 %v1110, %v1109
      %v1114 = vpack.c.b16 %v1111, %v1111
      %vm1117 = vcmask 293888
      %v1119 = vsel %vm1117, %v1077, 0
      %v1122 = vsel %vm1117, %v1085, 0
      %v1125 = vsel %vm1117, %v1093, 0
      %v1128 = vsel %vm1117, %v1101, 0
      %vm1130 = vcmask 1041408
      %v1132 = vsel %vm1130, %v1114, 0
      %1134 = vmatprep.subr.bf16.mxu0 0
      %1135 = vmatpush1.bf16.msra.mxu0 %v1112
      %1136 = vmatprep.subr.bf16.mxu0 0
      %1137 = vmatpush1.bf16.msra.mxu0 %v1113
      %1138 = vmatprep.subr.bf16.mxu0 0
      %1139 = vmatpush1.bf16.msra.mxu0 %v1132
      %1140 = vmatprep.subr.bf16.mxu0 0
      %1141 = vmatpush1.bf16.msra.mxu0 0
      %1142 = vmatprep.subr.bf16.mxu0 0
      %1143 = vmatpush1.bf16.msra.mxu0 0
      %1144 = vmatprep.subr.bf16.mxu0 0
      %1145 = vmatpush1.bf16.msra.mxu0 0
      %1146 = vmatprep.subr.bf16.mxu0 0
      %1147 = vmatpush1.bf16.msra.mxu0 0
      %1148 = vmatprep.subr.bf16.mxu0 0
      %1149 = vmatpush1.bf16.msra.mxu0 0
      %1150 = vmatprep.subr.bf16.mxu0 0
      %1151 = vmatpush1.bf16.msra.mxu0 0
      %1152 = vmatprep.subr.bf16.mxu0 0
      %1153 = vmatpush1.bf16.msra.mxu0 0
      %1154 = vmatprep.subr.bf16.mxu0 0
      %1155 = vmatpush1.bf16.msra.mxu0 0
      %1156 = vmatprep.subr.bf16.mxu0 0
      %1157 = vmatpush1.bf16.msra.mxu0 0
      %1158 = vmatprep.subr.bf16.mxu0 0
      %1159 = vmatpush1.bf16.msra.mxu0 0
      %1160 = vmatprep.subr.bf16.mxu0 0
      %1161 = vmatpush1.bf16.msra.mxu0 0
      %1162 = vmatprep.subr.bf16.mxu0 0
      %1163 = vmatpush1.bf16.msra.mxu0 0
      %1164 = vmatprep.subr.bf16.mxu0 0
      %1165 = vmatpush1.bf16.msra.mxu0 0
      %1166 = vmatprep.mubr.bf16.mxu0 0
      %1167 = vmatmul.mubr.bf16.gmra.mrb[0].mxu0 %v1119
      %v1168 = vpop.f32.mrb[0].mxu0
      %v1169 = vadd.f32 %v1060, %v1168
      %v1170 = vpop.f32.mrb[0].mxu0
      %v1171 = vpop.f32.mrb[0].mxu0
      %v1172 = vadd.f32 %v1060, %v1171
      %v1173 = vpop.f32.mrb[0].mxu0
      %1174 = vmatprep.mubr.bf16.mxu0 0
      %1175 = vmatmul.mubr.bf16.gmra.mrb[0].mxu0 %v1122
      %v1176 = vpop.f32.mrb[0].mxu0
      %v1177 = vadd.f32 %v1060, %v1176
      %v1178 = vpop.f32.mrb[0].mxu0
      %v1179 = vpop.f32.mrb[0].mxu0
      %v1180 = vadd.f32 %v1060, %v1179
      %v1181 = vpop.f32.mrb[0].mxu0
      %1182 = vmatprep.mubr.bf16.mxu0 0
      %1183 = vmatmul.mubr.bf16.gmra.mrb[0].mxu0 %v1125
      %v1184 = vpop.f32.mrb[0].mxu0
      %v1185 = vadd.f32 %v1060, %v1184
      %v1186 = vpop.f32.mrb[0].mxu0
      %v1187 = vpop.f32.mrb[0].mxu0
      %v1188 = vadd.f32 %v1060, %v1187
      %v1189 = vpop.f32.mrb[0].mxu0
      %1190 = vmatprep.mubr.bf16.mxu0 0
      %1191 = vmatmul.mubr.bf16.gmra.mrb[0].mxu0 %v1128
      %v1192 = vpop.f32.mrb[0].mxu0
      %v1193 = vadd.f32 %v1060, %v1192
      %v1194 = vpop.f32.mrb[0].mxu0
      %v1195 = vpop.f32.mrb[0].mxu0
      %v1196 = vadd.f32 %v1060, %v1195
      %v1197 = vpop.f32.mrb[0].mxu0
      %1198 = vdwg.mxu0
      %v1199 = vpack.c.bf16 %v1172, %v1169
      %v1200 = vpack.c.bf16 %v1180, %v1177
      %v1201 = vpack.c.bf16 %v1188, %v1185
      %v1202 = vpack.c.bf16 %v1196, %v1193
      %v1207 = vunpack.c.l.b16 %v1199
      %v1208 = vunpack.c.h.b16 %v1199
      %v1209 = vunpack.c.l.b16 %v1200
      %v1210 = vunpack.c.h.b16 %v1200
      %v1211 = vunpack.c.l.b16 %v1201
      %v1212 = vunpack.c.h.b16 %v1201
      %v1213 = vunpack.c.l.b16 %v1202
      %v1214 = vunpack.c.h.b16 %v1202
      %v1215 = vpack.c.b16 %v1207, %v1207
      %v1216 = vpack.c.b16 %v1208, %v1208
      %v1217 = vpack.c.b16 %v1209, %v1209
      %v1218 = vpack.c.b16 %v1210, %v1210
      %v1219 = vpack.c.b16 %v1211, %v1211
      %v1220 = vpack.c.b16 %v1212, %v1212
      %v1221 = vpack.c.b16 %v1213, %v1213
      %v1222 = vpack.c.b16 %v1214, %v1214
      %vm1231 = vcmask 125952
      %1232 = vst.msk [vmem:[%s170] sm:$0xf] %vm1231, %v1215
      %1233 = vst.msk [vmem:[%s170 + $0x4] sm:$0xf] %vm1231, %v1216
      %1234 = vst.msk [vmem:[%s170 + $0x8] sm:$0xf] %vm1231, %v1217
      %1235 = vst.msk [vmem:[%s170 + $0xc] sm:$0xf] %vm1231, %v1218
      %1236 = vst.msk [vmem:[%s170 + $0x10] sm:$0xf] %vm1231, %v1219
      %1237 = vst.msk [vmem:[%s170 + $0x14] sm:$0xf] %vm1231, %v1220
      %1238 = vst.msk [vmem:[%s170 + $0x18] sm:$0xf] %vm1231, %v1221
      %1239 = vst.msk [vmem:[%s170 + $0x1c] sm:$0xf] %vm1231, %v1222
      %p1240 = scmp.lt.s32.totalorder %s14, 1
      %s1241 = scalar_select %p1240, %s14, 1
      %s1242 = smul.addr %s1241, 8
      %s1243 = smul.addr %s1242, 4
      %s1244 = scalar_lea.vmem %s3, %s1243
      // Predicated region
      $region33: #{unet_up_forward.2} parent=31 // pred_check
        %p1245 = pneg %p100
      $region34: #{unet_up_forward.2} parent=31 // pred_check_branch
        %1247 = sbr.rel (%p1245) target = $region36
      $region35: #{unet_up_forward.2} parent=31 // pred_region
        _
      $region36: #{unet_up_forward.2} parent=31 // pred_fallthru
        _
    $region32: #{unet_up_forward.2} parent=5 // pred_fallthru
      _
    %p1248 = scmp.le.s32.totalorder 2, %s9
    // Predicated region
    $region37: #{unet_up_forward.2} parent=5 // pred_check
      %p1249 = pneg %p1248
    $region38: #{unet_up_forward.2} parent=5 // pred_check_branch
      %1251 = sbr.rel (%p1249) target = $region40
    $region39: #{unet_up_forward.2} parent=5 // pred_region
      %s1252 = ssub.s32 %s9, 2
      // Predicated region
      $region41: #{unet_up_forward.2} parent=39 // pred_check
        %p1253 = pneg %p106
      $region42: #{unet_up_forward.2} parent=39 // pred_check_branch
        %1255 = sbr.rel (%p1253) target = $region44
      $region43: #{unet_up_forward.2} parent=39 // pred_region
        %p1256 = scmp.lt.s32.totalorder %s15, 1
        %s1257 = scalar_select %p1256, %s15, 1
        %s1258 = smul.addr %s1257, 8
        %s1259 = smul.addr %s1258, 4
        %s1260 = scalar_lea.vmem %s3, %s1259
      $region44: #{unet_up_forward.2} parent=39 // pred_fallthru
        _
    $region40: #{unet_up_forward.2} parent=5 // pred_fallthru
      _
  $region6: #{unet_up_forward.2} parent=0 // loop_footer
    %s13 = sadd.s32 1, %s9
  $region7: #{unet_up_forward.2} parent=0 // loop_footer_branch
    %8 = sbr.rel target = $region3
  $region8: #{unet_up_forward.2} parent=0 // loop_exit
    _

// kernel: unet_up_forward.3
$region0: #{unet_up_forward.3}
  #allocation0 [shape = 'u32[]', space=smem, size = 0x4, offset = 0x4, fixed_abs, tag = 'smem constant byte address 0x4 - core index']
  #allocation1 [shape = 'u32[144,128]{1,0:T(1,128)}', space=vmem, size = 0x12000, scoped, tag = 'internal scratch']
  #allocation2 [shape = 'bf16[304,16]{1,0:T(16,128)(2,1)}', space=vmem, size = 0x13000, scoped, tag = 'scratch operand']
  #allocation3 [shape = 'f32[1,1]{1,0:T(1,128)S(1)}', space=vmem, size = 0x200, scoped, tag = 'scoped memory for unet_up_forward.3']
  %s0 = inlined_call_operand.vmem [shape: bf16[2,256,8], index: 0, kind: input, shape index: {}]
  %s1 = inlined_call_operand.vmem [shape: bf16[72,8], index: 1, kind: input, shape index: {}]
  %s2 = inlined_call_operand.vmem [shape: f32[1,8], index: 2, kind: input, shape index: {}]
  %s3 = inlined_call_operand.vmem [shape: bf16[72,8], index: 3, kind: input, shape index: {}]
  %s4 = inlined_call_operand.vmem [shape: f32[1,8], index: 4, kind: input, shape index: {}]
  %s5 = inlined_call_operand.vmem [shape: bf16[72,16], index: 5, kind: input, shape index: {}]
  %s6 = inlined_call_operand.vmem [shape: f32[1,16], index: 6, kind: input, shape index: {}]
  %s7 = inlined_call_operand.vmem [shape: bf16[144,16], index: 7, kind: input, shape index: {}]
  %s8 = inlined_call_operand.vmem [shape: f32[1,16], index: 8, kind: input, shape index: {}]
  %s9 = inlined_call_operand.vmem [shape: f32[16,1], index: 9, kind: input, shape index: {}]
  %s10 = inlined_call_operand.<no memory space> [shape: f32[1,1], index: 10, kind: input, shape index: {}]
  %s11 = inlined_call_operand.vmem [shape: f32[1,16], index: 11, kind: input, shape index: {}]
  %s12 = inlined_call_operand.vmem [shape: f32[1,16], index: 12, kind: input, shape index: {}]
  %s13 = inlined_call_operand.vmem [shape: f32[2,256,16], index: 13, kind: output, shape index: {}]
  %s14 = sld [smem:[#allocation0]]
  $region85: #{unet_up_forward.3} parent=0
    _
  %s16 = ssub.s32 1, %s14
  %s17 = scalar_select 0, %s16, %s14
  %v18 = vstv %s10
  %19 = vst [vmem:[#allocation3] sm:$0x1] %v18
  loop: start=0, step=1, limit=4
  $region2: #{unet_up_forward.3} parent=0 // loop_pre_header
    _
  $region3: #{unet_up_forward.3} parent=0 // loop_header
    %s21 = sphi 0, %s25
    %p22 = scmp.ge.s32.totalorder %s21, 4
    %s31 = sphi 0, %s33
    %s34 = sphi 0, %s31
    %s35 = sphi 0, %s34
    %s51 = sphi 0, %s35
    %s55 = sphi 0, %s55
    %s57 = sphi 0, %s55
    %s58 = sphi 0, %s57
    %s72 = sphi 0, %s58
    %s76 = sphi 0, %s76
    %s78 = sphi 0, %s76
    %s79 = sphi 0, %s78
    %s93 = sphi 0, %s79
    %s97 = sphi 0, %s97
    %s99 = sphi 0, %s97
    %s100 = sphi 0, %s99
    %s114 = sphi 0, %s100
    %s118 = sphi 0, %s118
    %s120 = sphi 0, %s118
    %s121 = sphi 0, %s120
    %s135 = sphi 0, %s121
    %s139 = sphi 0, %s139
    %s141 = sphi 0, %s139
    %s142 = sphi 0, %s141
    %s156 = sphi 0, %s142
    %s160 = sphi 0, %s160
    %s162 = sphi 0, %s160
    %s163 = sphi 0, %s162
    %s177 = sphi 0, %s163
    %s181 = sphi 0, %s181
    %s183 = sphi 0, %s181
    %s184 = sphi 0, %s183
    %s198 = sphi 0, %s184
    %s202 = sphi 0, %s202
    %s204 = sphi 0, %s202
    %s205 = sphi 0, %s204
    %s219 = sphi 0, %s205
    %s223 = sphi 0, %s223
    %s225 = sphi 0, %s223
    %s226 = sphi 0, %s225
    %s240 = sphi 0, %s226
    %s244 = sphi 0, %s244
    %s246 = sphi 0, %s244
    %s247 = sphi 0, %s246
    %s261 = sphi 0, %s247
    %s265 = sphi 0, %s265
    %s267 = sphi 0, %s265
    %s268 = sphi 0, %s267
    %s282 = sphi 0, %s268
    %s286 = sphi 0, %s286
    %s288 = sphi 0, %s286
    %s289 = sphi 0, %s288
    %s303 = sphi 0, %s289
    %s309 = sphi 0, %s311
    %s312 = sphi 0, %s309
    %s313 = sphi 0, %s312
    %s329 = sphi 0, %s313
  $region4: #{unet_up_forward.3} parent=0 // loop_header_branch
    %24 = sbr.rel (%p22) target = $region8
  $region5: #{unet_up_forward.3} parent=0 // loop_body
    %s26 = ssub.s32 %s21, 1
    %s27 = ssub.s32 %s21, 2
    %s28 = sadd.s32 %s21, 1
    %s29 = ssub.s32 %s21, %s28
    %p30 = scmp.eq.s32.totalorder %s29, 0
    %s32 = sadd.s32 %s31, 1
    %s33 = scalar_select %p30, %s31, %s32
    %p36 = pneg %p30
    %p37 = scmp.eq.s32.totalorder %s21, 1
    %p38 = por %p36, %p37
    %p39 = scmp.ne.s32.totalorder %s31, %s34
    %p40 = scmp.eq.s32.totalorder %s21, 0
    %p41 = por %p39, %p40
    %p42 = scmp.ne.s32.totalorder %s31, %s34
    %p43 = scmp.eq.s32.totalorder %s26, 1
    %p44 = por %p42, %p43
    %p45 = scmp.ne.s32.totalorder %s34, %s35
    %p46 = scmp.eq.s32.totalorder %s26, 0
    %p47 = por %p45, %p46
    %p48 = scmp.ne.s32.totalorder %s34, %s35
    %p49 = scmp.eq.s32.totalorder %s27, 1
    %p50 = por %p48, %p49
    %p52 = scmp.ne.s32.totalorder %s35, %s51
    %p53 = scmp.eq.s32.totalorder %s27, 0
    %p54 = por %p52, %p53
    %s56 = sadd.s32 %s55, 1
    %p59 = scmp.eq.s32.totalorder %s21, 1
    %p60 = scmp.ne.s32.totalorder %s55, %s57
    %p61 = scmp.eq.s32.totalorder %s21, 0
    %p62 = por %p60, %p61
    %p63 = scmp.ne.s32.totalorder %s55, %s57
    %p64 = scmp.eq.s32.totalorder %s26, 1
    %p65 = por %p63, %p64
    %p66 = scmp.ne.s32.totalorder %s57, %s58
    %p67 = scmp.eq.s32.totalorder %s26, 0
    %p68 = por %p66, %p67
    %p69 = scmp.ne.s32.totalorder %s57, %s58
    %p70 = scmp.eq.s32.totalorder %s27, 1
    %p71 = por %p69, %p70
    %p73 = scmp.ne.s32.totalorder %s58, %s72
    %p74 = scmp.eq.s32.totalorder %s27, 0
    %p75 = por %p73, %p74
    %s77 = sadd.s32 %s76, 1
    %p80 = scmp.eq.s32.totalorder %s21, 1
    %p81 = scmp.ne.s32.totalorder %s76, %s78
    %p82 = scmp.eq.s32.totalorder %s21, 0
    %p83 = por %p81, %p82
    %p84 = scmp.ne.s32.totalorder %s76, %s78
    %p85 = scmp.eq.s32.totalorder %s26, 1
    %p86 = por %p84, %p85
    %p87 = scmp.ne.s32.totalorder %s78, %s79
    %p88 = scmp.eq.s32.totalorder %s26, 0
    %p89 = por %p87, %p88
    %p90 = scmp.ne.s32.totalorder %s78, %s79
    %p91 = scmp.eq.s32.totalorder %s27, 1
    %p92 = por %p90, %p91
    %p94 = scmp.ne.s32.totalorder %s79, %s93
    %p95 = scmp.eq.s32.totalorder %s27, 0
    %p96 = por %p94, %p95
    %s98 = sadd.s32 %s97, 1
    %p101 = scmp.eq.s32.totalorder %s21, 1
    %p102 = scmp.ne.s32.totalorder %s97, %s99
    %p103 = scmp.eq.s32.totalorder %s21, 0
    %p104 = por %p102, %p103
    %p105 = scmp.ne.s32.totalorder %s97, %s99
    %p106 = scmp.eq.s32.totalorder %s26, 1
    %p107 = por %p105, %p106
    %p108 = scmp.ne.s32.totalorder %s99, %s100
    %p109 = scmp.eq.s32.totalorder %s26, 0
    %p110 = por %p108, %p109
    %p111 = scmp.ne.s32.totalorder %s99, %s100
    %p112 = scmp.eq.s32.totalorder %s27, 1
    %p113 = por %p111, %p112
    %p115 = scmp.ne.s32.totalorder %s100, %s114
    %p116 = scmp.eq.s32.totalorder %s27, 0
    %p117 = por %p115, %p116
    %s119 = sadd.s32 %s118, 1
    %p122 = scmp.eq.s32.totalorder %s21, 1
    %p123 = scmp.ne.s32.totalorder %s118, %s120
    %p124 = scmp.eq.s32.totalorder %s21, 0
    %p125 = por %p123, %p124
    %p126 = scmp.ne.s32.totalorder %s118, %s120
    %p127 = scmp.eq.s32.totalorder %s26, 1
    %p128 = por %p126, %p127
    %p129 = scmp.ne.s32.totalorder %s120, %s121
    %p130 = scmp.eq.s32.totalorder %s26, 0
    %p131 = por %p129, %p130
    %p132 = scmp.ne.s32.totalorder %s120, %s121
    %p133 = scmp.eq.s32.totalorder %s27, 1
    %p134 = por %p132, %p133
    %p136 = scmp.ne.s32.totalorder %s121, %s135
    %p137 = scmp.eq.s32.totalorder %s27, 0
    %p138 = por %p136, %p137
    %s140 = sadd.s32 %s139, 1
    %p143 = scmp.eq.s32.totalorder %s21, 1
    %p144 = scmp.ne.s32.totalorder %s139, %s141
    %p145 = scmp.eq.s32.totalorder %s21, 0
    %p146 = por %p144, %p145
    %p147 = scmp.ne.s32.totalorder %s139, %s141
    %p148 = scmp.eq.s32.totalorder %s26, 1
    %p149 = por %p147, %p148
    %p150 = scmp.ne.s32.totalorder %s141, %s142
    %p151 = scmp.eq.s32.totalorder %s26, 0
    %p152 = por %p150, %p151
    %p153 = scmp.ne.s32.totalorder %s141, %s142
    %p154 = scmp.eq.s32.totalorder %s27, 1
    %p155 = por %p153, %p154
    %p157 = scmp.ne.s32.totalorder %s142, %s156
    %p158 = scmp.eq.s32.totalorder %s27, 0
    %p159 = por %p157, %p158
    %s161 = sadd.s32 %s160, 1
    %p164 = scmp.eq.s32.totalorder %s21, 1
    %p165 = scmp.ne.s32.totalorder %s160, %s162
    %p166 = scmp.eq.s32.totalorder %s21, 0
    %p167 = por %p165, %p166
    %p168 = scmp.ne.s32.totalorder %s160, %s162
    %p169 = scmp.eq.s32.totalorder %s26, 1
    %p170 = por %p168, %p169
    %p171 = scmp.ne.s32.totalorder %s162, %s163
    %p172 = scmp.eq.s32.totalorder %s26, 0
    %p173 = por %p171, %p172
    %p174 = scmp.ne.s32.totalorder %s162, %s163
    %p175 = scmp.eq.s32.totalorder %s27, 1
    %p176 = por %p174, %p175
    %p178 = scmp.ne.s32.totalorder %s163, %s177
    %p179 = scmp.eq.s32.totalorder %s27, 0
    %p180 = por %p178, %p179
    %s182 = sadd.s32 %s181, 1
    %p185 = scmp.eq.s32.totalorder %s21, 1
    %p186 = scmp.ne.s32.totalorder %s181, %s183
    %p187 = scmp.eq.s32.totalorder %s21, 0
    %p188 = por %p186, %p187
    %p189 = scmp.ne.s32.totalorder %s181, %s183
    %p190 = scmp.eq.s32.totalorder %s26, 1
    %p191 = por %p189, %p190
    %p192 = scmp.ne.s32.totalorder %s183, %s184
    %p193 = scmp.eq.s32.totalorder %s26, 0
    %p194 = por %p192, %p193
    %p195 = scmp.ne.s32.totalorder %s183, %s184
    %p196 = scmp.eq.s32.totalorder %s27, 1
    %p197 = por %p195, %p196
    %p199 = scmp.ne.s32.totalorder %s184, %s198
    %p200 = scmp.eq.s32.totalorder %s27, 0
    %p201 = por %p199, %p200
    %s203 = sadd.s32 %s202, 1
    %p206 = scmp.eq.s32.totalorder %s21, 1
    %p207 = scmp.ne.s32.totalorder %s202, %s204
    %p208 = scmp.eq.s32.totalorder %s21, 0
    %p209 = por %p207, %p208
    %p210 = scmp.ne.s32.totalorder %s202, %s204
    %p211 = scmp.eq.s32.totalorder %s26, 1
    %p212 = por %p210, %p211
    %p213 = scmp.ne.s32.totalorder %s204, %s205
    %p214 = scmp.eq.s32.totalorder %s26, 0
    %p215 = por %p213, %p214
    %p216 = scmp.ne.s32.totalorder %s204, %s205
    %p217 = scmp.eq.s32.totalorder %s27, 1
    %p218 = por %p216, %p217
    %p220 = scmp.ne.s32.totalorder %s205, %s219
    %p221 = scmp.eq.s32.totalorder %s27, 0
    %p222 = por %p220, %p221
    %s224 = sadd.s32 %s223, 1
    %p227 = scmp.eq.s32.totalorder %s21, 1
    %p228 = scmp.ne.s32.totalorder %s223, %s225
    %p229 = scmp.eq.s32.totalorder %s21, 0
    %p230 = por %p228, %p229
    %p231 = scmp.ne.s32.totalorder %s223, %s225
    %p232 = scmp.eq.s32.totalorder %s26, 1
    %p233 = por %p231, %p232
    %p234 = scmp.ne.s32.totalorder %s225, %s226
    %p235 = scmp.eq.s32.totalorder %s26, 0
    %p236 = por %p234, %p235
    %p237 = scmp.ne.s32.totalorder %s225, %s226
    %p238 = scmp.eq.s32.totalorder %s27, 1
    %p239 = por %p237, %p238
    %p241 = scmp.ne.s32.totalorder %s226, %s240
    %p242 = scmp.eq.s32.totalorder %s27, 0
    %p243 = por %p241, %p242
    %s245 = sadd.s32 %s244, 1
    %p248 = scmp.eq.s32.totalorder %s21, 1
    %p249 = scmp.ne.s32.totalorder %s244, %s246
    %p250 = scmp.eq.s32.totalorder %s21, 0
    %p251 = por %p249, %p250
    %p252 = scmp.ne.s32.totalorder %s244, %s246
    %p253 = scmp.eq.s32.totalorder %s26, 1
    %p254 = por %p252, %p253
    %p255 = scmp.ne.s32.totalorder %s246, %s247
    %p256 = scmp.eq.s32.totalorder %s26, 0
    %p257 = por %p255, %p256
    %p258 = scmp.ne.s32.totalorder %s246, %s247
    %p259 = scmp.eq.s32.totalorder %s27, 1
    %p260 = por %p258, %p259
    %p262 = scmp.ne.s32.totalorder %s247, %s261
    %p263 = scmp.eq.s32.totalorder %s27, 0
    %p264 = por %p262, %p263
    %s266 = sadd.s32 %s265, 1
    %p269 = scmp.eq.s32.totalorder %s21, 1
    %p270 = scmp.ne.s32.totalorder %s265, %s267
    %p271 = scmp.eq.s32.totalorder %s21, 0
    %p272 = por %p270, %p271
    %p273 = scmp.ne.s32.totalorder %s265, %s267
    %p274 = scmp.eq.s32.totalorder %s26, 1
    %p275 = por %p273, %p274
    %p276 = scmp.ne.s32.totalorder %s267, %s268
    %p277 = scmp.eq.s32.totalorder %s26, 0
    %p278 = por %p276, %p277
    %p279 = scmp.ne.s32.totalorder %s267, %s268
    %p280 = scmp.eq.s32.totalorder %s27, 1
    %p281 = por %p279, %p280
    %p283 = scmp.ne.s32.totalorder %s268, %s282
    %p284 = scmp.eq.s32.totalorder %s27, 0
    %p285 = por %p283, %p284
    %s287 = sadd.s32 %s286, 1
    %p290 = scmp.eq.s32.totalorder %s21, 1
    %p291 = scmp.ne.s32.totalorder %s286, %s288
    %p292 = scmp.eq.s32.totalorder %s21, 0
    %p293 = por %p291, %p292
    %p294 = scmp.ne.s32.totalorder %s286, %s288
    %p295 = scmp.eq.s32.totalorder %s26, 1
    %p296 = por %p294, %p295
    %p297 = scmp.ne.s32.totalorder %s288, %s289
    %p298 = scmp.eq.s32.totalorder %s26, 0
    %p299 = por %p297, %p298
    %p300 = scmp.ne.s32.totalorder %s288, %s289
    %p301 = scmp.eq.s32.totalorder %s27, 1
    %p302 = por %p300, %p301
    %p304 = scmp.ne.s32.totalorder %s289, %s303
    %p305 = scmp.eq.s32.totalorder %s27, 0
    %p306 = por %p304, %p305
    %s307 = ssub.s32 %s21, %s28
    %p308 = scmp.eq.s32.totalorder %s307, 0
    %s310 = sadd.s32 %s309, 1
    %s311 = scalar_select %p308, %s309, %s310
    %p314 = pneg %p308
    %p315 = scmp.eq.s32.totalorder %s21, 1
    %p316 = por %p314, %p315
    %p317 = scmp.ne.s32.totalorder %s309, %s312
    %p318 = scmp.eq.s32.totalorder %s21, 0
    %p319 = por %p317, %p318
    %p320 = scmp.ne.s32.totalorder %s309, %s312
    %p321 = scmp.eq.s32.totalorder %s26, 1
    %p322 = por %p320, %p321
    %p323 = scmp.ne.s32.totalorder %s312, %s313
    %p324 = scmp.eq.s32.totalorder %s26, 0
    %p325 = por %p323, %p324
    %p326 = scmp.ne.s32.totalorder %s312, %s313
    %p327 = scmp.eq.s32.totalorder %s27, 1
    %p328 = por %p326, %p327
    %p330 = scmp.ne.s32.totalorder %s313, %s329
    %p331 = scmp.eq.s32.totalorder %s27, 0
    %p332 = por %p330, %p331
    %p333 = scmp.le.s32.totalorder 1, %s21
    %p334 = scmp.lt.s32.totalorder %s21, 3
    %p335 = pnand %p333, %p334
    %p336 = pneg %p335
    // Predicated region
    $region9: #{unet_up_forward.3} parent=5 // pred_check
      _
    $region10: #{unet_up_forward.3} parent=5 // pred_check_branch
      %338 = sbr.rel (%p335) target = $region12
    $region11: #{unet_up_forward.3} parent=5 // pred_region
      %s339 = ssub.s32 %s21, 1
      // Predicated region
      $region13: #{unet_up_forward.3} parent=11 // pred_check
        %p340 = pneg %p68
      $region14: #{unet_up_forward.3} parent=11 // pred_check_branch
        %342 = sbr.rel (%p340) target = $region16
      $region15: #{unet_up_forward.3} parent=11 // pred_region
        _
      $region16: #{unet_up_forward.3} parent=11 // pred_fallthru
        _
      // Predicated region
      $region17: #{unet_up_forward.3} parent=11 // pred_check
        %p343 = pneg %p89
      $region18: #{unet_up_forward.3} parent=11 // pred_check_branch
        %345 = sbr.rel (%p343) target = $region20
      $region19: #{unet_up_forward.3} parent=11 // pred_region
        _
      $region20: #{unet_up_forward.3} parent=11 // pred_fallthru
        _
      // Predicated region
      $region21: #{unet_up_forward.3} parent=11 // pred_check
        %p346 = pneg %p110
      $region22: #{unet_up_forward.3} parent=11 // pred_check_branch
        %348 = sbr.rel (%p346) target = $region24
      $region23: #{unet_up_forward.3} parent=11 // pred_region
        _
      $region24: #{unet_up_forward.3} parent=11 // pred_fallthru
        _
      // Predicated region
      $region25: #{unet_up_forward.3} parent=11 // pred_check
        %p349 = pneg %p131
      $region26: #{unet_up_forward.3} parent=11 // pred_check_branch
        %351 = sbr.rel (%p349) target = $region28
      $region27: #{unet_up_forward.3} parent=11 // pred_region
        _
      $region28: #{unet_up_forward.3} parent=11 // pred_fallthru
        _
      // Predicated region
      $region29: #{unet_up_forward.3} parent=11 // pred_check
        %p352 = pneg %p152
      $region30: #{unet_up_forward.3} parent=11 // pred_check_branch
        %354 = sbr.rel (%p352) target = $region32
      $region31: #{unet_up_forward.3} parent=11 // pred_region
        _
      $region32: #{unet_up_forward.3} parent=11 // pred_fallthru
        _
      // Predicated region
      $region33: #{unet_up_forward.3} parent=11 // pred_check
        %p355 = pneg %p173
      $region34: #{unet_up_forward.3} parent=11 // pred_check_branch
        %357 = sbr.rel (%p355) target = $region36
      $region35: #{unet_up_forward.3} parent=11 // pred_region
        _
      $region36: #{unet_up_forward.3} parent=11 // pred_fallthru
        _
      // Predicated region
      $region37: #{unet_up_forward.3} parent=11 // pred_check
        %p358 = pneg %p194
      $region38: #{unet_up_forward.3} parent=11 // pred_check_branch
        %360 = sbr.rel (%p358) target = $region40
      $region39: #{unet_up_forward.3} parent=11 // pred_region
        _
      $region40: #{unet_up_forward.3} parent=11 // pred_fallthru
        _
      // Predicated region
      $region41: #{unet_up_forward.3} parent=11 // pred_check
        %p361 = pneg %p215
      $region42: #{unet_up_forward.3} parent=11 // pred_check_branch
        %363 = sbr.rel (%p361) target = $region44
      $region43: #{unet_up_forward.3} parent=11 // pred_region
        _
      $region44: #{unet_up_forward.3} parent=11 // pred_fallthru
        _
      // Predicated region
      $region45: #{unet_up_forward.3} parent=11 // pred_check
        %p364 = pneg %p236
      $region46: #{unet_up_forward.3} parent=11 // pred_check_branch
        %366 = sbr.rel (%p364) target = $region48
      $region47: #{unet_up_forward.3} parent=11 // pred_region
        _
      $region48: #{unet_up_forward.3} parent=11 // pred_fallthru
        _
      // Predicated region
      $region49: #{unet_up_forward.3} parent=11 // pred_check
        %p367 = pneg %p257
      $region50: #{unet_up_forward.3} parent=11 // pred_check_branch
        %369 = sbr.rel (%p367) target = $region52
      $region51: #{unet_up_forward.3} parent=11 // pred_region
        _
      $region52: #{unet_up_forward.3} parent=11 // pred_fallthru
        _
      // Predicated region
      $region53: #{unet_up_forward.3} parent=11 // pred_check
        %p370 = pneg %p278
      $region54: #{unet_up_forward.3} parent=11 // pred_check_branch
        %372 = sbr.rel (%p370) target = $region56
      $region55: #{unet_up_forward.3} parent=11 // pred_region
        _
      $region56: #{unet_up_forward.3} parent=11 // pred_fallthru
        _
      // Predicated region
      $region57: #{unet_up_forward.3} parent=11 // pred_check
        %p373 = pneg %p299
      $region58: #{unet_up_forward.3} parent=11 // pred_check_branch
        %375 = sbr.rel (%p373) target = $region60
      $region59: #{unet_up_forward.3} parent=11 // pred_region
        _
      $region60: #{unet_up_forward.3} parent=11 // pred_fallthru
        _
    $region12: #{unet_up_forward.3} parent=5 // pred_fallthru
      _
    %p376 = scmp.lt.s32.totalorder %s21, 2
    // Predicated region
    $region61: #{unet_up_forward.3} parent=5 // pred_check
      %p377 = pneg %p376
    $region62: #{unet_up_forward.3} parent=5 // pred_check_branch
      %379 = sbr.rel (%p377) target = $region64
    $region63: #{unet_up_forward.3} parent=5 // pred_region
      // Predicated region
      $region65: #{unet_up_forward.3} parent=63 // pred_check
        %p380 = pneg %p41
      $region66: #{unet_up_forward.3} parent=63 // pred_check_branch
        %382 = sbr.rel (%p380) target = $region68
      $region67: #{unet_up_forward.3} parent=63 // pred_region
        %p383 = scmp.lt.s32.totalorder %s21, 1
        %s384 = scalar_select %p383, %s21, 1
        %s385 = smul.addr %s384, 32
        %s386 = smul.addr %s385, 4
        %s387 = scalar_lea.vmem %s0, %s386
      $region68: #{unet_up_forward.3} parent=63 // pred_fallthru
        _
    $region64: #{unet_up_forward.3} parent=5 // pred_fallthru
      _
    %p388 = scmp.le.s32.totalorder 1, %s21
    %p389 = scmp.lt.s32.totalorder %s21, 3
    %p390 = pnand %p388, %p389
    %p391 = pneg %p390
    // Predicated region
    $region69: #{unet_up_forward.3} parent=5 // pred_check
      _
    $region70: #{unet_up_forward.3} parent=5 // pred_check_branch
      %393 = sbr.rel (%p390) target = $region72
    $region71: #{unet_up_forward.3} parent=5 // pred_region
      %s394 = ssub.s32 %s21, 1
      %p395 = scmp.lt.s32.totalorder %s26, 1
      %s396 = scalar_select %p395, %s26, 1
      %s397 = smul.addr %s396, 32
      %s398 = smul.addr %s397, 4
      %s399 = scalar_lea.vmem %s0, %s398
      %p400 = pneg %p47
      %p401 = pneg %p44
      %p402 = pneg %p68
      %p403 = pneg %p65
      %p404 = pneg %p89
      %p405 = pneg %p86
      %p406 = pneg %p110
      %p407 = pneg %p107
      %p408 = pneg %p131
      %p409 = pneg %p128
      %p410 = pneg %p152
      %p411 = pneg %p149
      %p412 = pneg %p173
      %p413 = pneg %p170
      %p414 = pneg %p194
      %p415 = pneg %p191
      %p416 = pneg %p215
      %p417 = pneg %p212
      %p418 = pneg %p236
      %p419 = pneg %p233
      %p420 = pneg %p257
      %p421 = pneg %p254
      %p422 = pneg %p278
      %p423 = pneg %p275
      %p424 = pneg %p299
      %p425 = pneg %p296
      %p426 = pneg %p325
      %p427 = pneg %p322
      %p428 = scmp.lt.s32.totalorder %s26, 1
      %s429 = scalar_select %p428, %s26, 1
      %s430 = smul.addr %s429, 32
      %s431 = smul.addr %s430, 8
      %s432 = scalar_lea.vmem %s13, %s431
      %p433 = scmp.lt.s32.totalorder %s26, 1
      %s434 = scalar_select %p433, %s26, 1
      %s435 = smul.addr %s434, 32
      %s436 = smul.addr %s435, 4
      %s437 = scalar_lea.vmem %s0, %s436
      %p438 = scmp.lt.s32.totalorder %s26, 1
      %s439 = scalar_select %p438, %s26, 1
      %s440 = smul.addr %s439, 32
      %s441 = smul.addr %s440, 8
      %s442 = scalar_lea.vmem %s13, %s441
      %vm446 = vcmask 130048
      %447 = vst.msk [vmem:[#allocation2] sm:$0xff] %vm446, 0
      %448 = vst.msk [vmem:[#allocation2 + $0x8] sm:$0xff] %vm446, 0
      %449 = vst.msk [vmem:[#allocation2 + $0x10] sm:$0xff] %vm446, 0
      %450 = vst.msk [vmem:[#allocation2 + $0x18] sm:$0xff] %vm446, 0
      %451 = vst.msk [vmem:[#allocation2 + $0x20] sm:$0xff] %vm446, 0
      %452 = vst.msk [vmem:[#allocation2 + $0x28] sm:$0xff] %vm446, 0
      %453 = vst.msk [vmem:[#allocation2 + $0x30] sm:$0xff] %vm446, 0
      %454 = vst.msk [vmem:[#allocation2 + $0x38] sm:$0xff] %vm446, 0
      %455 = vst.msk [vmem:[#allocation2 + $0x40] sm:$0xff] %vm446, 0
      %456 = vst.msk [vmem:[#allocation2 + $0x48] sm:$0xff] %vm446, 0
      %457 = vst.msk [vmem:[#allocation2 + $0x50] sm:$0xff] %vm446, 0
      %458 = vst.msk [vmem:[#allocation2 + $0x58] sm:$0xff] %vm446, 0
      %459 = vst.msk [vmem:[#allocation2 + $0x60] sm:$0xff] %vm446, 0
      %460 = vst.msk [vmem:[#allocation2 + $0x68] sm:$0xff] %vm446, 0
      %461 = vst.msk [vmem:[#allocation2 + $0x70] sm:$0xff] %vm446, 0
      %462 = vst.msk [vmem:[#allocation2 + $0x78] sm:$0xff] %vm446, 0
      %463 = vst.msk [vmem:[#allocation2 + $0x80] sm:$0xff] %vm446, 0
      %464 = vst.msk [vmem:[#allocation2 + $0x88] sm:$0xff] %vm446, 0
      %465 = vst.msk [vmem:[#allocation2 + $0x90] sm:$0xff] %vm446, 0
      %v466 = vlaneseq
      %v467 = vshrl.u32 %v466, 7
      %v468 = vadd.s32 %v467, 8
      %v469 = vadd.s32 %v467, 16
      %v470 = vadd.s32 %v467, 24
      %v471 = vadd.s32 %v467, 32
      %v472 = vadd.s32 %v467, 40
      %v473 = vadd.s32 %v467, 48
      %v474 = vadd.s32 %v467, 56
      %v475 = vadd.s32 %v467, 64
      %v476 = vadd.s32 %v467, 72
      %v477 = vadd.s32 %v467, 80
      %v478 = vadd.s32 %v467, 88
      %v479 = vadd.s32 %v467, 96
      %v480 = vadd.s32 %v467, 104
      %v481 = vadd.s32 %v467, 112
      %v482 = vadd.s32 %v467, 120
      %v483 = vadd.s32 %v467, 128
      %v484 = vadd.s32 %v467, 136
      %v485 = vadd.s32 %v467, 144
      %v486 = vadd.s32 %v467, 152
      %v487 = vadd.s32 %v467, 160
      %v488 = vadd.s32 %v467, 168
      %v489 = vadd.s32 %v467, 176
      %v490 = vadd.s32 %v467, 184
      %v491 = vadd.s32 %v467, 192
      %v492 = vadd.s32 %v467, 200
      %v493 = vadd.s32 %v467, 208
      %v494 = vadd.s32 %v467, 216
      %v495 = vadd.s32 %v467, 224
      %v496 = vadd.s32 %v467, 232
      %v497 = vadd.s32 %v467, 240
      %v498 = vadd.s32 %v467, 248
      %vm499 = vcmp.lt.s32.totalorder %v467, 0
      %v500 = vsub.s32 0, %v467
      %v501 = vsel %vm499, %v500, %v467
      %v502 = vshrl.u32 %v501, 4
      %v503 = vand.u32 %v501, 15
      %v504 = vsub.s32 0, %v503
      %v505 = vsel %vm499, %v504, %v503
      %vm506 = vcmp.lt.s32.totalorder %v468, 0
      %v507 = vsub.s32 0, %v468
      %v508 = vsel %vm506, %v507, %v468
      %v509 = vshrl.u32 %v508, 4
      %v510 = vand.u32 %v508, 15
      %v511 = vsub.s32 0, %v510
      %v512 = vsel %vm506, %v511, %v510
      %vm513 = vcmp.lt.s32.totalorder %v469, 0
      %v514 = vsub.s32 0, %v469
      %v515 = vsel %vm513, %v514, %v469
      %v516 = vshrl.u32 %v515, 4
      %v517 = vand.u32 %v515, 15
      %v518 = vsub.s32 0, %v517
      %v519 = vsel %vm513, %v518, %v517
      %vm520 = vcmp.lt.s32.totalorder %v470, 0
      %v521 = vsub.s32 0, %v470
      %v522 = vsel %vm520, %v521, %v470
      %v523 = vshrl.u32 %v522, 4
      %v524 = vand.u32 %v522, 15
      %v525 = vsub.s32 0, %v524
      %v526 = vsel %vm520, %v525, %v524
      %vm527 = vcmp.lt.s32.totalorder %v471, 0
      %v528 = vsub.s32 0, %v471
      %v529 = vsel %vm527, %v528, %v471
      %v530 = vshrl.u32 %v529, 4
      %v531 = vand.u32 %v529, 15
      %v532 = vsub.s32 0, %v531
      %v533 = vsel %vm527, %v532, %v531
      %vm534 = vcmp.lt.s32.totalorder %v472, 0
      %v535 = vsub.s32 0, %v472
      %v536 = vsel %vm534, %v535, %v472
      %v537 = vshrl.u32 %v536, 4
      %v538 = vand.u32 %v536, 15
      %v539 = vsub.s32 0, %v538
      %v540 = vsel %vm534, %v539, %v538
      %vm541 = vcmp.lt.s32.totalorder %v473, 0
      %v542 = vsub.s32 0, %v473
      %v543 = vsel %vm541, %v542, %v473
      %v544 = vshrl.u32 %v543, 4
      %v545 = vand.u32 %v543, 15
      %v546 = vsub.s32 0, %v545
      %v547 = vsel %vm541, %v546, %v545
      %vm548 = vcmp.lt.s32.totalorder %v474, 0
      %v549 = vsub.s32 0, %v474
      %v550 = vsel %vm548, %v549, %v474
      %v551 = vshrl.u32 %v550, 4
      %v552 = vand.u32 %v550, 15
      %v553 = vsub.s32 0, %v552
      %v554 = vsel %vm548, %v553, %v552
      %vm555 = vcmp.lt.s32.totalorder %v475, 0
      %v556 = vsub.s32 0, %v475
      %v557 = vsel %vm555, %v556, %v475
      %v558 = vshrl.u32 %v557, 4
      %v559 = vand.u32 %v557, 15
      %v560 = vsub.s32 0, %v559
      %v561 = vsel %vm555, %v560, %v559
      %vm562 = vcmp.lt.s32.totalorder %v476, 0
      %v563 = vsub.s32 0, %v476
      %v564 = vsel %vm562, %v563, %v476
      %v565 = vshrl.u32 %v564, 4
      %v566 = vand.u32 %v564, 15
      %v567 = vsub.s32 0, %v566
      %v568 = vsel %vm562, %v567, %v566
      %vm569 = vcmp.lt.s32.totalorder %v477, 0
      %v570 = vsub.s32 0, %v477
      %v571 = vsel %vm569, %v570, %v477
      %v572 = vshrl.u32 %v571, 4
      %v573 = vand.u32 %v571, 15
      %v574 = vsub.s32 0, %v573
      %v575 = vsel %vm569, %v574, %v573
      %vm576 = vcmp.lt.s32.totalorder %v478, 0
      %v577 = vsub.s32 0, %v478
      %v578 = vsel %vm576, %v577, %v478
      %v579 = vshrl.u32 %v578, 4
      %v580 = vand.u32 %v578, 15
      %v581 = vsub.s32 0, %v580
      %v582 = vsel %vm576, %v581, %v580
      %vm583 = vcmp.lt.s32.totalorder %v479, 0
      %v584 = vsub.s32 0, %v479
      %v585 = vsel %vm583, %v584, %v479
      %v586 = vshrl.u32 %v585, 4
      %v587 = vand.u32 %v585, 15
      %v588 = vsub.s32 0, %v587
      %v589 = vsel %vm583, %v588, %v587
      %vm590 = vcmp.lt.s32.totalorder %v480, 0
      %v591 = vsub.s32 0, %v480
      %v592 = vsel %vm590, %v591, %v480
      %v593 = vshrl.u32 %v592, 4
      %v594 = vand.u32 %v592, 15
      %v595 = vsub.s32 0, %v594
      %v596 = vsel %vm590, %v595, %v594
      %vm597 = vcmp.lt.s32.totalorder %v481, 0
      %v598 = vsub.s32 0, %v481
      %v599 = vsel %vm597, %v598, %v481
      %v600 = vshrl.u32 %v599, 4
      %v601 = vand.u32 %v599, 15
      %v602 = vsub.s32 0, %v601
      %v603 = vsel %vm597, %v602, %v601
      %vm604 = vcmp.lt.s32.totalorder %v482, 0
      %v605 = vsub.s32 0, %v482
      %v606 = vsel %vm604, %v605, %v482
      %v607 = vshrl.u32 %v606, 4
      %v608 = vand.u32 %v606, 15
      %v609 = vsub.s32 0, %v608
      %v610 = vsel %vm604, %v609, %v608
      %vm611 = vcmp.lt.s32.totalorder %v483, 0
      %v612 = vsub.s32 0, %v483
      %v613 = vsel %vm611, %v612, %v483
      %v614 = vshrl.u32 %v613, 4
      %v615 = vand.u32 %v613, 15
      %v616 = vsub.s32 0, %v615
      %v617 = vsel %vm611, %v616, %v615
      %vm618 = vcmp.lt.s32.totalorder %v484, 0
      %v619 = vsub.s32 0, %v484
      %v620 = vsel %vm618, %v619, %v484
      %v621 = vshrl.u32 %v620, 4
      %v622 = vand.u32 %v620, 15
      %v623 = vsub.s32 0, %v622
      %v624 = vsel %vm618, %v623, %v622
      %vm625 = vcmp.lt.s32.totalorder %v485, 0
      %v626 = vsub.s32 0, %v485
      %v627 = vsel %vm625, %v626, %v485
      %v628 = vshrl.u32 %v627, 4
      %v629 = vand.u32 %v627, 15
      %v630 = vsub.s32 0, %v629
      %v631 = vsel %vm625, %v630, %v629
      %vm632 = vcmp.lt.s32.totalorder %v486, 0
      %v633 = vsub.s32 0, %v486
      %v634 = vsel %vm632, %v633, %v486
      %v635 = vshrl.u32 %v634, 4
      %v636 = vand.u32 %v634, 15
      %v637 = vsub.s32 0, %v636
      %v638 = vsel %vm632, %v637, %v636
      %vm639 = vcmp.lt.s32.totalorder %v487, 0
      %v640 = vsub.s32 0, %v487
      %v641 = vsel %vm639, %v640, %v487
      %v642 = vshrl.u32 %v641, 4
      %v643 = vand.u32 %v641, 15
      %v644 = vsub.s32 0, %v643
      %v645 = vsel %vm639, %v644, %v643
      %vm646 = vcmp.lt.s32.totalorder %v488, 0
      %v647 = vsub.s32 0, %v488
      %v648 = vsel %vm646, %v647, %v488
      %v649 = vshrl.u32 %v648, 4
      %v650 = vand.u32 %v648, 15
      %v651 = vsub.s32 0, %v650
      %v652 = vsel %vm646, %v651, %v650
      %vm653 = vcmp.lt.s32.totalorder %v489, 0
      %v654 = vsub.s32 0, %v489
      %v655 = vsel %vm653, %v654, %v489
      %v656 = vshrl.u32 %v655, 4
      %v657 = vand.u32 %v655, 15
      %v658 = vsub.s32 0, %v657
      %v659 = vsel %vm653, %v658, %v657
      %vm660 = vcmp.lt.s32.totalorder %v490, 0
      %v661 = vsub.s32 0, %v490
      %v662 = vsel %vm660, %v661, %v490
      %v663 = vshrl.u32 %v662, 4
      %v664 = vand.u32 %v662, 15
      %v665 = vsub.s32 0, %v664
      %v666 = vsel %vm660, %v665, %v664
      %vm667 = vcmp.lt.s32.totalorder %v491, 0
      %v668 = vsub.s32 0, %v491
      %v669 = vsel %vm667, %v668, %v491
      %v670 = vshrl.u32 %v669, 4
      %v671 = vand.u32 %v669, 15
      %v672 = vsub.s32 0, %v671
      %v673 = vsel %vm667, %v672, %v671
      %vm674 = vcmp.lt.s32.totalorder %v492, 0
      %v675 = vsub.s32 0, %v492
      %v676 = vsel %vm674, %v675, %v492
      %v677 = vshrl.u32 %v676, 4
      %v678 = vand.u32 %v676, 15
      %v679 = vsub.s32 0, %v678
      %v680 = vsel %vm674, %v679, %v678
      %vm681 = vcmp.lt.s32.totalorder %v493, 0
      %v682 = vsub.s32 0, %v493
      %v683 = vsel %vm681, %v682, %v493
      %v684 = vshrl.u32 %v683, 4
      %v685 = vand.u32 %v683, 15
      %v686 = vsub.s32 0, %v685
      %v687 = vsel %vm681, %v686, %v685
      %vm688 = vcmp.lt.s32.totalorder %v494, 0
      %v689 = vsub.s32 0, %v494
      %v690 = vsel %vm688, %v689, %v494
      %v691 = vshrl.u32 %v690, 4
      %v692 = vand.u32 %v690, 15
      %v693 = vsub.s32 0, %v692
      %v694 = vsel %vm688, %v693, %v692
      %vm695 = vcmp.lt.s32.totalorder %v495, 0
      %v696 = vsub.s32 0, %v495
      %v697 = vsel %vm695, %v696, %v495
      %v698 = vshrl.u32 %v697, 4
      %v699 = vand.u32 %v697, 15
      %v700 = vsub.s32 0, %v699
      %v701 = vsel %vm695, %v700, %v699
      %vm702 = vcmp.lt.s32.totalorder %v496, 0
      %v703 = vsub.s32 0, %v496
      %v704 = vsel %vm702, %v703, %v496
      %v705 = vshrl.u32 %v704, 4
      %v706 = vand.u32 %v704, 15
      %v707 = vsub.s32 0, %v706
      %v708 = vsel %vm702, %v707, %v706
      %vm709 = vcmp.lt.s32.totalorder %v497, 0
      %v710 = vsub.s32 0, %v497
      %v711 = vsel %vm709, %v710, %v497
      %v712 = vshrl.u32 %v711, 4
      %v713 = vand.u32 %v711, 15
      %v714 = vsub.s32 0, %v713
      %v715 = vsel %vm709, %v714, %v713
      %vm716 = vcmp.lt.s32.totalorder %v498, 0
      %v717 = vsub.s32 0, %v498
      %v718 = vsel %vm716, %v717, %v498
      %v719 = vshrl.u32 %v718, 4
      %v720 = vand.u32 %v718, 15
      %v721 = vsub.s32 0, %v720
      %v722 = vsel %vm716, %v721, %v720
      %vm723 = vcmp.ne.s32.totalorder %v505, 0
      %vm724 = vcmp.ne.s32.totalorder %v512, 0
      %vm725 = vcmp.ne.s32.totalorder %v519, 0
      %vm726 = vcmp.ne.s32.totalorder %v526, 0
      %vm727 = vcmp.ne.s32.totalorder %v533, 0
      %vm728 = vcmp.ne.s32.totalorder %v540, 0
      %vm729 = vcmp.ne.s32.totalorder %v547, 0
      %vm730 = vcmp.ne.s32.totalorder %v554, 0
      %vm731 = vcmp.ne.s32.totalorder %v561, 0
      %vm732 = vcmp.ne.s32.totalorder %v568, 0
      %vm733 = vcmp.ne.s32.totalorder %v575, 0
      %vm734 = vcmp.ne.s32.totalorder %v582, 0
      %vm735 = vcmp.ne.s32.totalorder %v589, 0
      %vm736 = vcmp.ne.s32.totalorder %v596, 0
      %vm737 = vcmp.ne.s32.totalorder %v603, 0
      %vm738 = vcmp.ne.s32.totalorder %v610, 0
      %vm739 = vcmp.ne.s32.totalorder %v617, 0
      %vm740 = vcmp.ne.s32.totalorder %v624, 0
      %vm741 = vcmp.ne.s32.totalorder %v631, 0
      %vm742 = vcmp.ne.s32.totalorder %v638, 0
      %vm743 = vcmp.ne.s32.totalorder %v645, 0
      %vm744 = vcmp.ne.s32.totalorder %v652, 0
      %vm745 = vcmp.ne.s32.totalorder %v659, 0
      %vm746 = vcmp.ne.s32.totalorder %v666, 0
      %vm747 = vcmp.ne.s32.totalorder %v673, 0
      %vm748 = vcmp.ne.s32.totalorder %v680, 0
      %vm749 = vcmp.ne.s32.totalorder %v687, 0
      %vm750 = vcmp.ne.s32.totalorder %v694, 0
      %vm751 = vcmp.ne.s32.totalorder %v701, 0
      %vm752 = vcmp.ne.s32.totalorder %v708, 0
      %vm753 = vcmp.ne.s32.totalorder %v715, 0
      %vm754 = vcmp.ne.s32.totalorder %v722, 0
      %vm755 = vcmp.lt.s32.totalorder %v505, 0
      %vm756 = vcmp.lt.s32.totalorder %v512, 0
      %vm757 = vcmp.lt.s32.totalorder %v519, 0
      %vm758 = vcmp.lt.s32.totalorder %v526, 0
      %vm759 = vcmp.lt.s32.totalorder %v533, 0
      %vm760 = vcmp.lt.s32.totalorder %v540, 0
      %vm761 = vcmp.lt.s32.totalorder %v547, 0
      %vm762 = vcmp.lt.s32.totalorder %v554, 0
      %vm763 = vcmp.lt.s32.totalorder %v561, 0
      %vm764 = vcmp.lt.s32.totalorder %v568, 0
      %vm765 = vcmp.lt.s32.totalorder %v575, 0
      %vm766 = vcmp.lt.s32.totalorder %v582, 0
      %vm767 = vcmp.lt.s32.totalorder %v589, 0
      %vm768 = vcmp.lt.s32.totalorder %v596, 0
      %vm769 = vcmp.lt.s32.totalorder %v603, 0
      %vm770 = vcmp.lt.s32.totalorder %v610, 0
      %vm771 = vcmp.lt.s32.totalorder %v617, 0
      %vm772 = vcmp.lt.s32.totalorder %v624, 0
      %vm773 = vcmp.lt.s32.totalorder %v631, 0
      %vm774 = vcmp.lt.s32.totalorder %v638, 0
      %vm775 = vcmp.lt.s32.totalorder %v645, 0
      %vm776 = vcmp.lt.s32.totalorder %v652, 0
      %vm777 = vcmp.lt.s32.totalorder %v659, 0
      %vm778 = vcmp.lt.s32.totalorder %v666, 0
      %vm779 = vcmp.lt.s32.totalorder %v673, 0
      %vm780 = vcmp.lt.s32.totalorder %v680, 0
      %vm781 = vcmp.lt.s32.totalorder %v687, 0
      %vm782 = vcmp.lt.s32.totalorder %v694, 0
      %vm783 = vcmp.lt.s32.totalorder %v701, 0
      %vm784 = vcmp.lt.s32.totalorder %v708, 0
      %vm785 = vcmp.lt.s32.totalorder %v715, 0
      %vm786 = vcmp.lt.s32.totalorder %v722, 0
      %vm787 = vmand %vm755, %vm723
      %vm788 = vmand %vm756, %vm724
      %vm789 = vmand %vm757, %vm725
      %vm790 = vmand %vm758, %vm726
      %vm791 = vmand %vm759, %vm727
      %vm792 = vmand %vm760, %vm728
      %vm793 = vmand %vm761, %vm729
      %vm794 = vmand %vm762, %vm730
      %vm795 = vmand %vm763, %vm731
      %vm796 = vmand %vm764, %vm732
      %vm797 = vmand %vm765, %vm733
      %vm798 = vmand %vm766, %vm734
      %vm799 = vmand %vm767, %vm735
      %vm800 = vmand %vm768, %vm736
      %vm801 = vmand %vm769, %vm737
      %vm802 = vmand %vm770, %vm738
      %vm803 = vmand %vm771, %vm739
      %vm804 = vmand %vm772, %vm740
      %vm805 = vmand %vm773, %vm741
      %vm806 = vmand %vm774, %vm742
      %vm807 = vmand %vm775, %vm743
      %vm808 = vmand %vm776, %vm744
      %vm809 = vmand %vm777, %vm745
      %vm810 = vmand %vm778, %vm746
      %vm811 = vmand %vm779, %vm747
      %vm812 = vmand %vm780, %vm748
      %vm813 = vmand %vm781, %vm749
      %vm814 = vmand %vm782, %vm750
      %vm815 = vmand %vm783, %vm751
      %vm816 = vmand %vm784, %vm752
      %vm817 = vmand %vm785, %vm753
      %vm818 = vmand %vm786, %vm754
      %v819 = vadd.s32 %v505, 16
      %v820 = vadd.s32 %v512, 16
      %v821 = vadd.s32 %v519, 16
      %v822 = vadd.s32 %v526, 16
      %v823 = vadd.s32 %v533, 16
      %v824 = vadd.s32 %v540, 16
      %v825 = vadd.s32 %v547, 16
      %v826 = vadd.s32 %v554, 16
      %v827 = vadd.s32 %v561, 16
      %v828 = vadd.s32 %v568, 16
      %v829 = vadd.s32 %v575, 16
      %v830 = vadd.s32 %v582, 16
      %v831 = vadd.s32 %v589, 16
      %v832 = vadd.s32 %v596, 16
      %v833 = vadd.s32 %v603, 16
      %v834 = vadd.s32 %v610, 16
      %v835 = vadd.s32 %v617, 16
      %v836 = vadd.s32 %v624, 16
      %v837 = vadd.s32 %v631, 16
      %v838 = vadd.s32 %v638, 16
      %v839 = vadd.s32 %v645, 16
      %v840 = vadd.s32 %v652, 16
      %v841 = vadd.s32 %v659, 16
      %v842 = vadd.s32 %v666, 16
      %v843 = vadd.s32 %v673, 16
      %v844 = vadd.s32 %v680, 16
      %v845 = vadd.s32 %v687, 16
      %v846 = vadd.s32 %v694, 16
      %v847 = vadd.s32 %v701, 16
      %v848 = vadd.s32 %v708, 16
      %v849 = vadd.s32 %v715, 16
      %v850 = vadd.s32 %v722, 16
      %v851 = vsel %vm787, %v819, %v505
      %v852 = vsel %vm788, %v820, %v512
      %v853 = vsel %vm789, %v821, %v519
      %v854 = vsel %vm790, %v822, %v526
      %v855 = vsel %vm791, %v823, %v533
      %v856 = vsel %vm792, %v824, %v540
      %v857 = vsel %vm793, %v825, %v547
      %v858 = vsel %vm794, %v826, %v554
      %v859 = vsel %vm795, %v827, %v561
      %v860 = vsel %vm796, %v828, %v568
      %v861 = vsel %vm797, %v829, %v575
      %v862 = vsel %vm798, %v830, %v582
      %v863 = vsel %vm799, %v831, %v589
      %v864 = vsel %vm800, %v832, %v596
      %v865 = vsel %vm801, %v833, %v603
      %v866 = vsel %vm802, %v834, %v610
      %v867 = vsel %vm803, %v835, %v617
      %v868 = vsel %vm804, %v836, %v624
      %v869 = vsel %vm805, %v837, %v631
      %v870 = vsel %vm806, %v838, %v638
      %v871 = vsel %vm807, %v839, %v645
      %v872 = vsel %vm808, %v840, %v652
      %v873 = vsel %vm809, %v841, %v659
      %v874 = vsel %vm810, %v842, %v666
      %v875 = vsel %vm811, %v843, %v673
      %v876 = vsel %vm812, %v844, %v680
      %v877 = vsel %vm813, %v845, %v687
      %v878 = vsel %vm814, %v846, %v694
      %v879 = vsel %vm815, %v847, %v701
      %v880 = vsel %vm816, %v848, %v708
      %v881 = vsel %vm817, %v849, %v715
      %v882 = vsel %vm818, %v850, %v722
      %vm883 = vcmp.ne.s32.totalorder %v851, 0
      %vm884 = vcmp.ne.s32.totalorder %v852, 0
      %vm885 = vcmp.ne.s32.totalorder %v853, 0
      %vm886 = vcmp.ne.s32.totalorder %v854, 0
      %vm887 = vcmp.ne.s32.totalorder %v855, 0
      %vm888 = vcmp.ne.s32.totalorder %v856, 0
      %vm889 = vcmp.ne.s32.totalorder %v857, 0
      %vm890 = vcmp.ne.s32.totalorder %v858, 0
      %vm891 = vcmp.ne.s32.totalorder %v859, 0
      %vm892 = vcmp.ne.s32.totalorder %v860, 0
      %vm893 = vcmp.ne.s32.totalorder %v861, 0
      %vm894 = vcmp.ne.s32.totalorder %v862, 0
      %vm895 = vcmp.ne.s32.totalorder %v863, 0
      %vm896 = vcmp.ne.s32.totalorder %v864, 0
      %vm897 = vcmp.ne.s32.totalorder %v865, 0
      %vm898 = vcmp.ne.s32.totalorder %v866, 0
      %vm899 = vcmp.ne.s32.totalorder %v867, 0
      %vm900 = vcmp.ne.s32.totalorder %v868, 0
      %vm901 = vcmp.ne.s32.totalorder %v869, 0
      %vm902 = vcmp.ne.s32.totalorder %v870, 0
      %vm903 = vcmp.ne.s32.totalorder %v871, 0
      %vm904 = vcmp.ne.s32.totalorder %v872, 0
      %vm905 = vcmp.ne.s32.totalorder %v873, 0
      %vm906 = vcmp.ne.s32.totalorder %v874, 0
      %vm907 = vcmp.ne.s32.totalorder %v875, 0
      %vm908 = vcmp.ne.s32.totalorder %v876, 0
      %vm909 = vcmp.ne.s32.totalorder %v877, 0
      %vm910 = vcmp.ne.s32.totalorder %v878, 0
      %vm911 = vcmp.ne.s32.totalorder %v879, 0
      %vm912 = vcmp.ne.s32.totalorder %v880, 0
      %vm913 = vcmp.ne.s32.totalorder %v881, 0
      %vm914 = vcmp.ne.s32.totalorder %v882, 0
      %vm915 = vcmp.ne.s32.totalorder %v851, 15
      %vm916 = vcmp.ne.s32.totalorder %v852, 15
      %vm917 = vcmp.ne.s32.totalorder %v853, 15
      %vm918 = vcmp.ne.s32.totalorder %v854, 15
      %vm919 = vcmp.ne.s32.totalorder %v855, 15
      %vm920 = vcmp.ne.s32.totalorder %v856, 15
      %vm921 = vcmp.ne.s32.totalorder %v857, 15
      %vm922 = vcmp.ne.s32.totalorder %v858, 15
      %vm923 = vcmp.ne.s32.totalorder %v859, 15
      %vm924 = vcmp.ne.s32.totalorder %v860, 15
      %vm925 = vcmp.ne.s32.totalorder %v861, 15
      %vm926 = vcmp.ne.s32.totalorder %v862, 15
      %vm927 = vcmp.ne.s32.totalorder %v863, 15
      %vm928 = vcmp.ne.s32.totalorder %v864, 15
      %vm929 = vcmp.ne.s32.totalorder %v865, 15
      %vm930 = vcmp.ne.s32.totalorder %v866, 15
      %vm931 = vcmp.ne.s32.totalorder %v867, 15
      %vm932 = vcmp.ne.s32.totalorder %v868, 15
      %vm933 = vcmp.ne.s32.totalorder %v869, 15
      %vm934 = vcmp.ne.s32.totalorder %v870, 15
      %vm935 = vcmp.ne.s32.totalorder %v871, 15
      %vm936 = vcmp.ne.s32.totalorder %v872, 15
      %vm937 = vcmp.ne.s32.totalorder %v873, 15
      %vm938 = vcmp.ne.s32.totalorder %v874, 15
      %vm939 = vcmp.ne.s32.totalorder %v875, 15
      %vm940 = vcmp.ne.s32.totalorder %v876, 15
      %vm941 = vcmp.ne.s32.totalorder %v877, 15
      %vm942 = vcmp.ne.s32.totalorder %v878, 15
      %vm943 = vcmp.ne.s32.totalorder %v879, 15
      %vm944 = vcmp.ne.s32.totalorder %v880, 15
      %vm945 = vcmp.ne.s32.totalorder %v881, 15
      %vm946 = vcmp.ne.s32.totalorder %v882, 15
      %v947 = vld [vmem:[%s437] sm:$0xf]
      %v948 = vld [vmem:[%s437 + $0x4] sm:$0xf]
      %v949 = vld [vmem:[%s437 + $0x8] sm:$0xf]
      %v950 = vld [vmem:[%s437 + $0xc] sm:$0xf]
      %v951 = vld [vmem:[%s437 + $0x10] sm:$0xf]
      %v952 = vld [vmem:[%s437 + $0x14] sm:$0xf]
      %v953 = vld [vmem:[%s437 + $0x18] sm:$0xf]
      %v954 = vld [vmem:[%s437 + $0x1c] sm:$0xf]
      %v955 = vld [vmem:[%s437 + $0x20] sm:$0xf]
      %v956 = vld [vmem:[%s437 + $0x24] sm:$0xf]
      %v957 = vld [vmem:[%s437 + $0x28] sm:$0xf]
      %v958 = vld [vmem:[%s437 + $0x2c] sm:$0xf]
      %v959 = vld [vmem:[%s437 + $0x30] sm:$0xf]
      %v960 = vld [vmem:[%s437 + $0x34] sm:$0xf]
      %v961 = vld [vmem:[%s437 + $0x38] sm:$0xf]
      %v962 = vld [vmem:[%s437 + $0x3c] sm:$0xf]
      %v963 = vld [vmem:[%s437 + $0x40] sm:$0xf]
      %v964 = vld [vmem:[%s437 + $0x44] sm:$0xf]
      %v965 = vld [vmem:[%s437 + $0x48] sm:$0xf]
      %v966 = vld [vmem:[%s437 + $0x4c] sm:$0xf]
      %v967 = vld [vmem:[%s437 + $0x50] sm:$0xf]
      %v968 = vld [vmem:[%s437 + $0x54] sm:$0xf]
      %v969 = vld [vmem:[%s437 + $0x58] sm:$0xf]
      %v970 = vld [vmem:[%s437 + $0x5c] sm:$0xf]
      %v971 = vld [vmem:[%s437 + $0x60] sm:$0xf]
      %v972 = vld [vmem:[%s437 + $0x64] sm:$0xf]
      %v973 = vld [vmem:[%s437 + $0x68] sm:$0xf]
      %v974 = vld [vmem:[%s437 + $0x6c] sm:$0xf]
      %v975 = vld [vmem:[%s437 + $0x70] sm:$0xf]
      %v976 = vld [vmem:[%s437 + $0x74] sm:$0xf]
      %v977 = vld [vmem:[%s437 + $0x78] sm:$0xf]
      %v978 = vld [vmem:[%s437 + $0x7c] sm:$0xf]
      %v1011 = vunpack.c.l.b16 %v947
      %v1012 = vunpack.c.l.b16 %v948
      %v1013 = vunpack.c.l.b16 %v949
      %v1014 = vunpack.c.l.b16 %v950
      %v1015 = vunpack.c.l.b16 %v951
      %v1016 = vunpack.c.l.b16 %v952
      %v1017 = vunpack.c.l.b16 %v953
      %v1018 = vunpack.c.l.b16 %v954
      %v1019 = vunpack.c.l.b16 %v955
      %v1020 = vunpack.c.l.b16 %v956
      %v1021 = vunpack.c.l.b16 %v957
      %v1022 = vunpack.c.l.b16 %v958
      %v1023 = vunpack.c.l.b16 %v959
      %v1024 = vunpack.c.l.b16 %v960
      %v1025 = vunpack.c.l.b16 %v961
      %v1026 = vunpack.c.l.b16 %v962
      %v1027 = vunpack.c.l.b16 %v963
      %v1028 = vunpack.c.l.b16 %v964
      %v1029 = vunpack.c.l.b16 %v965
      %v1030 = vunpack.c.l.b16 %v966
      %v1031 = vunpack.c.l.b16 %v967
      %v1032 = vunpack.c.l.b16 %v968
      %v1033 = vunpack.c.l.b16 %v969
      %v1034 = vunpack.c.l.b16 %v970
      %v1035 = vunpack.c.l.b16 %v971
      %v1036 = vunpack.c.l.b16 %v972
      %v1037 = vunpack.c.l.b16 %v973
      %v1038 = vunpack.c.l.b16 %v974
      %v1039 = vunpack.c.l.b16 %v975
      %v1040 = vunpack.c.l.b16 %v976
      %v1041 = vunpack.c.l.b16 %v977
      %v1042 = vunpack.c.l.b16 %v978
      %v1043 = vpack.c.b16 %v1011, %v1011
      %v1044 = vpack.c.b16 %v1013, %v1012
      %v1045 = vpack.c.b16 %v1015, %v1014
      %v1046 = vpack.c.b16 %v1017, %v1016
      %v1047 = vpack.c.b16 %v1019, %v1018
      %v1048 = vpack.c.b16 %v1021, %v1020
      %v1049 = vpack.c.b16 %v1023, %v1022
      %v1050 = vpack.c.b16 %v1025, %v1024
      %v1051 = vpack.c.b16 %v1027, %v1026
      %v1052 = vpack.c.b16 %v1029, %v1028
      %v1053 = vpack.c.b16 %v1031, %v1030
      %v1054 = vpack.c.b16 %v1033, %v1032
      %v1055 = vpack.c.b16 %v1035, %v1034
      %v1056 = vpack.c.b16 %v1037, %v1036
      %v1057 = vpack.c.b16 %v1039, %v1038
      %v1058 = vpack.c.b16 %v1041, %v1040
      %v1059 = vpack.c.b16 %v1042, %v1042
      %vm1077 = vcmask 64516
      %1078 = vst.msk [vmem:[#allocation2 + $0x8] sm:$0xf0] %vm1077, %v1043
      %vm1079 = vcmask 64512
      %1080 = vst.msk [vmem:[#allocation2 + $0x10] sm:$0xff] %vm1079, %v1044
      %1081 = vst.msk [vmem:[#allocation2 + $0x18] sm:$0xff] %vm1079, %v1045
      %1082 = vst.msk [vmem:[#allocation2 + $0x20] sm:$0xff] %vm1079, %v1046
      %1083 = vst.msk [vmem:[#allocation2 + $0x28] sm:$0xff] %vm1079, %v1047
      %1084 = vst.msk [vmem:[#allocation2 + $0x30] sm:$0xff] %vm1079, %v1048
      %1085 = vst.msk [vmem:[#allocation2 + $0x38] sm:$0xff] %vm1079, %v1049
      %1086 = vst.msk [vmem:[#allocation2 + $0x40] sm:$0xff] %vm1079, %v1050
      %1087 = vst.msk [vmem:[#allocation2 + $0x48] sm:$0xff] %vm1079, %v1051
      %1088 = vst.msk [vmem:[#allocation2 + $0x50] sm:$0xff] %vm1079, %v1052
      %1089 = vst.msk [vmem:[#allocation2 + $0x58] sm:$0xff] %vm1079, %v1053
      %1090 = vst.msk [vmem:[#allocation2 + $0x60] sm:$0xff] %vm1079, %v1054
      %1091 = vst.msk [vmem:[#allocation2 + $0x68] sm:$0xff] %vm1079, %v1055
      %1092 = vst.msk [vmem:[#allocation2 + $0x70] sm:$0xff] %vm1079, %v1056
      %1093 = vst.msk [vmem:[#allocation2 + $0x78] sm:$0xff] %vm1079, %v1057
      %1094 = vst.msk [vmem:[#allocation2 + $0x80] sm:$0xff] %vm1079, %v1058
      %vm1095 = vcmask 60416
      %1096 = vst.msk [vmem:[#allocation2 + $0x88] sm:$0xf] %vm1095, %v1059
      %v1097 = vld [vmem:[#allocation2] sm:$0xf8]
      %v1098 = vld [vmem:[#allocation2 + $0x8] sm:$0xff]
      %v1099 = vld [vmem:[#allocation2 + $0x10] sm:$0xff]
      %v1100 = vld [vmem:[#allocation2 + $0x18] sm:$0xff]
      %v1101 = vld [vmem:[#allocation2 + $0x20] sm:$0xff]
      %v1102 = vld [vmem:[#allocation2 + $0x28] sm:$0xff]
      %v1103 = vld [vmem:[#allocation2 + $0x30] sm:$0xff]
      %v1104 = vld [vmem:[#allocation2 + $0x38] sm:$0xff]
      %v1105 = vld [vmem:[#allocation2 + $0x40] sm:$0xff]
      %v1106 = vld [vmem:[#allocation2 + $0x48] sm:$0xff]
      %v1107 = vld [vmem:[#allocation2 + $0x50] sm:$0xff]
      %v1108 = vld [vmem:[#allocation2 + $0x58] sm:$0xff]
      %v1109 = vld [vmem:[#allocation2 + $0x60] sm:$0xff]
      %v1110 = vld [vmem:[#allocation2 + $0x68] sm:$0xff]
      %v1111 = vld [vmem:[#allocation2 + $0x70] sm:$0xff]
      %v1112 = vld [vmem:[#allocation2 + $0x78] sm:$0xff]
      %v1113 = vld [vmem:[#allocation2 + $0x80] sm:$0xf]
      %v1114 = vsel %vm883, 1, 0
      %v1115 = vsel %vm884, 1, 0
      %v1116 = vsel %vm885, 1, 0
      %v1117 = vsel %vm886, 1, 0
      %v1118 = vsel %vm887, 1, 0
      %v1119 = vsel %vm888, 1, 0
      %v1120 = vsel %vm889, 1, 0
      %v1121 = vsel %vm890, 1, 0
      %v1122 = vsel %vm891, 1, 0
      %v1123 = vsel %vm892, 1, 0
      %v1124 = vsel %vm893, 1, 0
      %v1125 = vsel %vm894, 1, 0
      %v1126 = vsel %vm895, 1, 0
      %v1127 = vsel %vm896, 1, 0
      %v1128 = vsel %vm897, 1, 0
      %v1129 = vsel %vm898, 1, 0
      %v1130 = vsel %vm899, 1, 0
      %v1131 = vsel %vm900, 1, 0
      %v1132 = vsel %vm901, 1, 0
      %v1133 = vsel %vm902, 1, 0
      %v1134 = vsel %vm903, 1, 0
      %v1135 = vsel %vm904, 1, 0
      %v1136 = vsel %vm905, 1, 0
      %v1137 = vsel %vm906, 1, 0
      %v1138 = vsel %vm907, 1, 0
      %v1139 = vsel %vm908, 1, 0
      %v1140 = vsel %vm909, 1, 0
      %v1141 = vsel %vm910, 1, 0
      %v1142 = vsel %vm911, 1, 0
      %v1143 = vsel %vm912, 1, 0
      %v1144 = vsel %vm913, 1, 0
      %v1145 = vsel %vm914, 1, 0
      %vm1146 = vcmp.eq.s32.totalorder %v1114, 1
      %vm1147 = vcmp.eq.s32.totalorder %v1115, 1
      %vm1148 = vcmp.eq.s32.totalorder %v1116, 1
      %vm1149 = vcmp.eq.s32.totalorder %v1117, 1
      %vm1150 = vcmp.eq.s32.totalorder %v1118, 1
      %vm1151 = vcmp.eq.s32.totalorder %v1119, 1
      %vm1152 = vcmp.eq.s32.totalorder %v1120, 1
      %vm1153 = vcmp.eq.s32.totalorder %v1121, 1
      %vm1154 = vcmp.eq.s32.totalorder %v1122, 1
      %vm1155 = vcmp.eq.s32.totalorder %v1123, 1
      %vm1156 = vcmp.eq.s32.totalorder %v1124, 1
      %vm1157 = vcmp.eq.s32.totalorder %v1125, 1
      %vm1158 = vcmp.eq.s32.totalorder %v1126, 1
      %vm1159 = vcmp.eq.s32.totalorder %v1127, 1
      %vm1160 = vcmp.eq.s32.totalorder %v1128, 1
      %vm1161 = vcmp.eq.s32.totalorder %v1129, 1
      %vm1162 = vcmp.eq.s32.totalorder %v1130, 1
      %vm1163 = vcmp.eq.s32.totalorder %v1131, 1
      %vm1164 = vcmp.eq.s32.totalorder %v1132, 1
      %vm1165 = vcmp.eq.s32.totalorder %v1133, 1
      %vm1166 = vcmp.eq.s32.totalorder %v1134, 1
      %vm1167 = vcmp.eq.s32.totalorder %v1135, 1
      %vm1168 = vcmp.eq.s32.totalorder %v1136, 1
      %vm1169 = vcmp.eq.s32.totalorder %v1137, 1
      %vm1170 = vcmp.eq.s32.totalorder %v1138, 1
      %vm1171 = vcmp.eq.s32.totalorder %v1139, 1
      %vm1172 = vcmp.eq.s32.totalorder %v1140, 1
      %vm1173 = vcmp.eq.s32.totalorder %v1141, 1
      %vm1174 = vcmp.eq.s32.totalorder %v1142, 1
      %vm1175 = vcmp.eq.s32.totalorder %v1143, 1
      %vm1176 = vcmp.eq.s32.totalorder %v1144, 1
      %vm1177 = vcmp.eq.s32.totalorder %v1145, 1
      %vm1178 = vmpackc.low %vm1146, %vm1146
      %vm1179 = vmpackc.low %vm1147, %vm1147
      %vm1180 = vmpackc.low %vm1148, %vm1148
      %vm1181 = vmpackc.low %vm1149, %vm1149
      %vm1182 = vmpackc.low %vm1150, %vm1150
      %vm1183 = vmpackc.low %vm1151, %vm1151
      %vm1184 = vmpackc.low %vm1152, %vm1152
      %vm1185 = vmpackc.low %vm1153, %vm1153
      %vm1186 = vmpackc.low %vm1154, %vm1154
      %vm1187 = vmpackc.low %vm1155, %vm1155
      %vm1188 = vmpackc.low %vm1156, %vm1156
      %vm1189 = vmpackc.low %vm1157, %vm1157
      %vm1190 = vmpackc.low %vm1158, %vm1158
      %vm1191 = vmpackc.low %vm1159, %vm1159
      %vm1192 = vmpackc.low %vm1160, %vm1160
      %vm1193 = vmpackc.low %vm1161, %vm1161
      %vm1194 = vmpackc.low %vm1162, %vm1162
      %vm1195 = vmpackc.low %vm1163, %vm1163
      %vm1196 = vmpackc.low %vm1164, %vm1164
      %vm1197 = vmpackc.low %vm1165, %vm1165
      %vm1198 = vmpackc.low %vm1166, %vm1166
      %vm1199 = vmpackc.low %vm1167, %vm1167
      %vm1200 = vmpackc.low %vm1168, %vm1168
      %vm1201 = vmpackc.low %vm1169, %vm1169
      %vm1202 = vmpackc.low %vm1170, %vm1170
      %vm1203 = vmpackc.low %vm1171, %vm1171
      %vm1204 = vmpackc.low %vm1172, %vm1172
      %vm1205 = vmpackc.low %vm1173, %vm1173
      %vm1206 = vmpackc.low %vm1174, %vm1174
      %vm1207 = vmpackc.low %vm1175, %vm1175
      %vm1208 = vmpackc.low %vm1176, %vm1176
      %vm1209 = vmpackc.low %vm1177, %vm1177
      %v1210 = vsel %vm1178, 65537, 0
      %v1211 = vsel %vm1179, 65537, 0
      %v1212 = vsel %vm1180, 65537, 0
      %v1213 = vsel %vm1181, 65537, 0
      %v1214 = vsel %vm1182, 65537, 0
      %v1215 = vsel %vm1183, 65537, 0
      %v1216 = vsel %vm1184, 65537, 0
      %v1217 = vsel %vm1185, 65537, 0
      %v1218 = vsel %vm1186, 65537, 0
      %v1219 = vsel %vm1187, 65537, 0
      %v1220 = vsel %vm1188, 65537, 0
      %v1221 = vsel %vm1189, 65537, 0
      %v1222 = vsel %vm1190, 65537, 0
      %v1223 = vsel %vm1191, 65537, 0
      %v1224 = vsel %vm1192, 65537, 0
      %v1225 = vsel %vm1193, 65537, 0
      %v1226 = vsel %vm1194, 65537, 0
      %v1227 = vsel %vm1195, 65537, 0
      %v1228 = vsel %vm1196, 65537, 0
      %v1229 = vsel %vm1197, 65537, 0
      %v1230 = vsel %vm1198, 65537, 0
      %v1231 = vsel %vm1199, 65537, 0
      %v1232 = vsel %vm1200, 65537, 0
      %v1233 = vsel %vm1201, 65537, 0
      %v1234 = vsel %vm1202, 65537, 0
      %v1235 = vsel %vm1203, 65537, 0
      %v1236 = vsel %vm1204, 65537, 0
      %v1237 = vsel %vm1205, 65537, 0
      %v1238 = vsel %vm1206, 65537, 0
      %v1239 = vsel %vm1207, 65537, 0
      %v1240 = vsel %vm1208, 65537, 0
      %v1241 = vsel %vm1209, 65537, 0
      %v1242 = vunpack.c.l.b16 %v1210
      %v1243 = vunpack.c.l.b16 %v1211
      %v1244 = vunpack.c.l.b16 %v1212
      %v1245 = vunpack.c.l.b16 %v1213
      %v1246 = vunpack.c.l.b16 %v1214
      %v1247 = vunpack.c.l.b16 %v1215
      %v1248 = vunpack.c.l.b16 %v1216
      %v1249 = vunpack.c.l.b16 %v1217
      %v1250 = vunpack.c.l.b16 %v1218
      %v1251 = vunpack.c.l.b16 %v1219
      %v1252 = vunpack.c.l.b16 %v1220
      %v1253 = vunpack.c.l.b16 %v1221
      %v1254 = vunpack.c.l.b16 %v1222
      %v1255 = vunpack.c.l.b16 %v1223
      %v1256 = vunpack.c.l.b16 %v1224
      %v1257 = vunpack.c.l.b16 %v1225
      %v1258 = vunpack.c.l.b16 %v1226
      %v1259 = vunpack.c.l.b16 %v1227
      %v1260 = vunpack.c.l.b16 %v1228
      %v1261 = vunpack.c.l.b16 %v1229
      %v1262 = vunpack.c.l.b16 %v1230
      %v1263 = vunpack.c.l.b16 %v1231
      %v1264 = vunpack.c.l.b16 %v1232
      %v1265 = vunpack.c.l.b16 %v1233
      %v1266 = vunpack.c.l.b16 %v1234
      %v1267 = vunpack.c.l.b16 %v1235
      %v1268 = vunpack.c.l.b16 %v1236
      %v1269 = vunpack.c.l.b16 %v1237
      %v1270 = vunpack.c.l.b16 %v1238
      %v1271 = vunpack.c.l.b16 %v1239
      %v1272 = vunpack.c.l.b16 %v1240
      %v1273 = vunpack.c.l.b16 %v1241
      %v1274 = vpack.c.b16 %v1243, %v1242
      %v1275 = vpack.c.b16 %v1245, %v1244
      %v1276 = vpack.c.b16 %v1247, %v1246
      %v1277 = vpack.c.b16 %v1249, %v1248
      %v1278 = vpack.c.b16 %v1251, %v1250
      %v1279 = vpack.c.b16 %v1253, %v1252
      %v1280 = vpack.c.b16 %v1255, %v1254
      %v1281 = vpack.c.b16 %v1257, %v1256
      %v1282 = vpack.c.b16 %v1259, %v1258
      %v1283 = vpack.c.b16 %v1261, %v1260
      %v1284 = vpack.c.b16 %v1263, %v1262
      %v1285 = vpack.c.b16 %v1265, %v1264
      %v1286 = vpack.c.b16 %v1267, %v1266
      %v1287 = vpack.c.b16 %v1269, %v1268
      %v1288 = vpack.c.b16 %v1271, %v1270
      %v1289 = vpack.c.b16 %v1273, %v1272
      %vm1290 = vsmask.f32 3328
      %v1292 = vshrl.u32 %v1274, 16
      %v1294 = vrot.slane %v1292, 4
      %v1295 = vshll.u32 %v1274, 16
      %v1297 = vrot.slane %v1295, 5
      %v1298 = vor.u32 %v1294, %v1297
      %v1300 = vshrl.u32 %v1275, 16
      %v1302 = vrot.slane %v1300, 4
      %v1303 = vshll.u32 %v1275, 16
      %v1305 = vrot.slane %v1303, 5
      %v1306 = vor.u32 %v1302, %v1305
      %v1307 = vsel %vm1290, %v1298, %v1306
      %v1309 = vshrl.u32 %v1276, 16
      %v1311 = vrot.slane %v1309, 4
      %v1312 = vshll.u32 %v1276, 16
      %v1314 = vrot.slane %v1312, 5
      %v1315 = vor.u32 %v1311, %v1314
      %v1316 = vsel %vm1290, %v1306, %v1315
      %v1318 = vshrl.u32 %v1277, 16
      %v1320 = vrot.slane %v1318, 4
      %v1321 = vshll.u32 %v1277, 16
      %v1323 = vrot.slane %v1321, 5
      %v1324 = vor.u32 %v1320, %v1323
      %v1325 = vsel %vm1290, %v1315, %v1324
      %v1327 = vshrl.u32 %v1278, 16
      %v1329 = vrot.slane %v1327, 4
      %v1330 = vshll.u32 %v1278, 16
      %v1332 = vrot.slane %v1330, 5
      %v1333 = vor.u32 %v1329, %v1332
      %v1334 = vsel %vm1290, %v1324, %v1333
      %v1336 = vshrl.u32 %v1279, 16
      %v1338 = vrot.slane %v1336, 4
      %v1339 = vshll.u32 %v1279, 16
      %v1341 = vrot.slane %v1339, 5
      %v1342 = vor.u32 %v1338, %v1341
      %v1343 = vsel %vm1290, %v1333, %v1342
      %v1345 = vshrl.u32 %v1280, 16
      %v1347 = vrot.slane %v1345, 4
      %v1348 = vshll.u32 %v1280, 16
      %v1350 = vrot.slane %v1348, 5
      %v1351 = vor.u32 %v1347, %v1350
      %v1352 = vsel %vm1290, %v1342, %v1351
      %v1354 = vshrl.u32 %v1281, 16
      %v1356 = vrot.slane %v1354, 4
      %v1357 = vshll.u32 %v1281, 16
      %v1359 = vrot.slane %v1357, 5
      %v1360 = vor.u32 %v1356, %v1359
      %v1361 = vsel %vm1290, %v1351, %v1360
      %v1363 = vshrl.u32 %v1282, 16
      %v1365 = vrot.slane %v1363, 4
      %v1366 = vshll.u32 %v1282, 16
      %v1368 = vrot.slane %v1366, 5
      %v1369 = vor.u32 %v1365, %v1368
      %v1370 = vsel %vm1290, %v1360, %v1369
      %v1372 = vshrl.u32 %v1283, 16
      %v1374 = vrot.slane %v1372, 4
      %v1375 = vshll.u32 %v1283, 16
      %v1377 = vrot.slane %v1375, 5
      %v1378 = vor.u32 %v1374, %v1377
      %v1379 = vsel %vm1290, %v1369, %v1378
      %v1381 = vshrl.u32 %v1284, 16
      %v1383 = vrot.slane %v1381, 4
      %v1384 = vshll.u32 %v1284, 16
      %v1386 = vrot.slane %v1384, 5
      %v1387 = vor.u32 %v1383, %v1386
      %v1388 = vsel %vm1290, %v1378, %v1387
      %v1390 = vshrl.u32 %v1285, 16
      %v1392 = vrot.slane %v1390, 4
      %v1393 = vshll.u32 %v1285, 16
      %v1395 = vrot.slane %v1393, 5
      %v1396 = vor.u32 %v1392, %v1395
      %v1397 = vsel %vm1290, %v1387, %v1396
      %v1399 = vshrl.u32 %v1286, 16
      %v1401 = vrot.slane %v1399, 4
      %v1402 = vshll.u32 %v1286, 16
      %v1404 = vrot.slane %v1402, 5
      %v1405 = vor.u32 %v1401, %v1404
      %v1406 = vsel %vm1290, %v1396, %v1405
      %v1408 = vshrl.u32 %v1287, 16
      %v1410 = vrot.slane %v1408, 4
      %v1411 = vshll.u32 %v1287, 16
      %v1413 = vrot.slane %v1411, 5
      %v1414 = vor.u32 %v1410, %v1413
      %v1415 = vsel %vm1290, %v1405, %v1414
      %v1417 = vshrl.u32 %v1288, 16
      %v1419 = vrot.slane %v1417, 4
      %v1420 = vshll.u32 %v1288, 16
      %v1422 = vrot.slane %v1420, 5
      %v1423 = vor.u32 %v1419, %v1422
      %v1424 = vsel %vm1290, %v1414, %v1423
      %v1426 = vshrl.u32 %v1289, 16
      %v1428 = vrot.slane %v1426, 4
      %v1429 = vshll.u32 %v1289, 16
      %v1431 = vrot.slane %v1429, 5
      %v1432 = vor.u32 %v1428, %v1431
      %v1433 = vsel %vm1290, %v1423, %v1432
      %vm1434 = vcmp.ne.s16.totalorder %v1298, 0
      %vm1435 = vcmp.ne.s16.totalorder %v1307, 0
      %vm1436 = vcmp.ne.s16.totalorder %v1316, 0
      %vm1437 = vcmp.ne.s16.totalorder %v1325, 0
      %vm1438 = vcmp.ne.s16.totalorder %v1334, 0
      %vm1439 = vcmp.ne.s16.totalorder %v1343, 0
      %vm1440 = vcmp.ne.s16.totalorder %v1352, 0
      %vm1441 = vcmp.ne.s16.totalorder %v1361, 0
      %vm1442 = vcmp.ne.s16.totalorder %v1370, 0
      %vm1443 = vcmp.ne.s16.totalorder %v1379, 0
      %vm1444 = vcmp.ne.s16.totalorder %v1388, 0
      %vm1445 = vcmp.ne.s16.totalorder %v1397, 0
      %vm1446 = vcmp.ne.s16.totalorder %v1406, 0
      %vm1447 = vcmp.ne.s16.totalorder %v1415, 0
      %vm1448 = vcmp.ne.s16.totalorder %v1424, 0
      %vm1449 = vcmp.ne.s16.totalorder %v1433, 0
      %vm1450 = vcmp.ne.s16.totalorder %v1432, 0
      %v1451 = vsel %vm1434, %v1097, 0
      %v1452 = vsel %vm1435, %v1098, 0
      %v1453 = vsel %vm1436, %v1099, 0
      %v1454 = vsel %vm1437, %v1100, 0
      %v1455 = vsel %vm1438, %v1101, 0
      %v1456 = vsel %vm1439, %v1102, 0
      %v1457 = vsel %vm1440, %v1103, 0
      %v1458 = vsel %vm1441, %v1104, 0
      %v1459 = vsel %vm1442, %v1105, 0
      %v1460 = vsel %vm1443, %v1106, 0
      %v1461 = vsel %vm1444, %v1107, 0
      %v1462 = vsel %vm1445, %v1108, 0
      %v1463 = vsel %vm1446, %v1109, 0
      %v1464 = vsel %vm1447, %v1110, 0
      %v1465 = vsel %vm1448, %v1111, 0
      %v1466 = vsel %vm1449, %v1112, 0
      %v1467 = vsel %vm1450, %v1113, 0
      %v1468 = vld [vmem:[#allocation2] sm:$0xf0]
      %v1469 = vld [vmem:[#allocation2 + $0x80] sm:$0x1f]
      %v1470 = vsel %vm915, 1, 0
      %v1471 = vsel %vm916, 1, 0
      %v1472 = vsel %vm917, 1, 0
      %v1473 = vsel %vm918, 1, 0
      %v1474 = vsel %vm919, 1, 0
      %v1475 = vsel %vm920, 1, 0
      %v1476 = vsel %vm921, 1, 0
      %v1477 = vsel %vm922, 1, 0
      %v1478 = vsel %vm923, 1, 0
      %v1479 = vsel %vm924, 1, 0
      %v1480 = vsel %vm925, 1, 0
      %v1481 = vsel %vm926, 1, 0
      %v1482 = vsel %vm927, 1, 0
      %v1483 = vsel %vm928, 1, 0
      %v1484 = vsel %vm929, 1, 0
      %v1485 = vsel %vm930, 1, 0
      %v1486 = vsel %vm931, 1, 0
      %v1487 = vsel %vm932, 1, 0
      %v1488 = vsel %vm933, 1, 0
      %v1489 = vsel %vm934, 1, 0
      %v1490 = vsel %vm935, 1, 0
      %v1491 = vsel %vm936, 1, 0
      %v1492 = vsel %vm937, 1, 0
      %v1493 = vsel %vm938, 1, 0
      %v1494 = vsel %vm939, 1, 0
      %v1495 = vsel %vm940, 1, 0
      %v1496 = vsel %vm941, 1, 0
      %v1497 = vsel %vm942, 1, 0
      %v1498 = vsel %vm943, 1, 0
      %v1499 = vsel %vm944, 1, 0
      %v1500 = vsel %vm945, 1, 0
      %v1501 = vsel %vm946, 1, 0
      %vm1502 = vcmp.eq.s32.totalorder %v1470, 1
      %vm1503 = vcmp.eq.s32.totalorder %v1471, 1
      %vm1504 = vcmp.eq.s32.totalorder %v1472, 1
      %vm1505 = vcmp.eq.s32.totalorder %v1473, 1
      %vm1506 = vcmp.eq.s32.totalorder %v1474, 1
      %vm1507 = vcmp.eq.s32.totalorder %v1475, 1
      %vm1508 = vcmp.eq.s32.totalorder %v1476, 1
      %vm1509 = vcmp.eq.s32.totalorder %v1477, 1
      %vm1510 = vcmp.eq.s32.totalorder %v1478, 1
      %vm1511 = vcmp.eq.s32.totalorder %v1479, 1
      %vm1512 = vcmp.eq.s32.totalorder %v1480, 1
      %vm1513 = vcmp.eq.s32.totalorder %v1481, 1
      %vm1514 = vcmp.eq.s32.totalorder %v1482, 1
      %vm1515 = vcmp.eq.s32.totalorder %v1483, 1
      %vm1516 = vcmp.eq.s32.totalorder %v1484, 1
      %vm1517 = vcmp.eq.s32.totalorder %v1485, 1
      %vm1518 = vcmp.eq.s32.totalorder %v1486, 1
      %vm1519 = vcmp.eq.s32.totalorder %v1487, 1
      %vm1520 = vcmp.eq.s32.totalorder %v1488, 1
      %vm1521 = vcmp.eq.s32.totalorder %v1489, 1
      %vm1522 = vcmp.eq.s32.totalorder %v1490, 1
      %vm1523 = vcmp.eq.s32.totalorder %v1491, 1
      %vm1524 = vcmp.eq.s32.totalorder %v1492, 1
      %vm1525 = vcmp.eq.s32.totalorder %v1493, 1
      %vm1526 = vcmp.eq.s32.totalorder %v1494, 1
      %vm1527 = vcmp.eq.s32.totalorder %v1495, 1
      %vm1528 = vcmp.eq.s32.totalorder %v1496, 1
      %vm1529 = vcmp.eq.s32.totalorder %v1497, 1
      %vm1530 = vcmp.eq.s32.totalorder %v1498, 1
      %vm1531 = vcmp.eq.s32.totalorder %v1499, 1
      %vm1532 = vcmp.eq.s32.totalorder %v1500, 1
      %vm1533 = vcmp.eq.s32.totalorder %v1501, 1
      %vm1534 = vmpackc.low %vm1502, %vm1502
      %vm1535 = vmpackc.low %vm1503, %vm1503
      %vm1536 = vmpackc.low %vm1504, %vm1504
      %vm1537 = vmpackc.low %vm1505, %vm1505
      %vm1538 = vmpackc.low %vm1506, %vm1506
      %vm1539 = vmpackc.low %vm1507, %vm1507
      %vm1540 = vmpackc.low %vm1508, %vm1508
      %vm1541 = vmpackc.low %vm1509, %vm1509
      %vm1542 = vmpackc.low %vm1510, %vm1510
      %vm1543 = vmpackc.low %vm1511, %vm1511
      %vm1544 = vmpackc.low %vm1512, %vm1512
      %vm1545 = vmpackc.low %vm1513, %vm1513
      %vm1546 = vmpackc.low %vm1514, %vm1514
      %vm1547 = vmpackc.low %vm1515, %vm1515
      %vm1548 = vmpackc.low %vm1516, %vm1516
      %vm1549 = vmpackc.low %vm1517, %vm1517
      %vm1550 = vmpackc.low %vm1518, %vm1518
      %vm1551 = vmpackc.low %vm1519, %vm1519
      %vm1552 = vmpackc.low %vm1520, %vm1520
      %vm1553 = vmpackc.low %vm1521, %vm1521
      %vm1554 = vmpackc.low %vm1522, %vm1522
      %vm1555 = vmpackc.low %vm1523, %vm1523
      %vm1556 = vmpackc.low %vm1524, %vm1524
      %vm1557 = vmpackc.low %vm1525, %vm1525
      %vm1558 = vmpackc.low %vm1526, %vm1526
      %vm1559 = vmpackc.low %vm1527, %vm1527
      %vm1560 = vmpackc.low %vm1528, %vm1528
      %vm1561 = vmpackc.low %vm1529, %vm1529
      %vm1562 = vmpackc.low %vm1530, %vm1530
      %vm1563 = vmpackc.low %vm1531, %vm1531
      %vm1564 = vmpackc.low %vm1532, %vm1532
      %vm1565 = vmpackc.low %vm1533, %vm1533
      %v1566 = vsel %vm1534, 65537, 0
      %v1567 = vsel %vm1535, 65537, 0
      %v1568 = vsel %vm1536, 65537, 0
      %v1569 = vsel %vm1537, 65537, 0
      %v1570 = vsel %vm1538, 65537, 0
      %v1571 = vsel %vm1539, 65537, 0
      %v1572 = vsel %vm1540, 65537, 0
      %v1573 = vsel %vm1541, 65537, 0
      %v1574 = vsel %vm1542, 65537, 0
      %v1575 = vsel %vm1543, 65537, 0
      %v1576 = vsel %vm1544, 65537, 0
      %v1577 = vsel %vm1545, 65537, 0
      %v1578 = vsel %vm1546, 65537, 0
      %v1579 = vsel %vm1547, 65537, 0
      %v1580 = vsel %vm1548, 65537, 0
      %v1581 = vsel %vm1549, 65537, 0
      %v1582 = vsel %vm1550, 65537, 0
      %v1583 = vsel %vm1551, 65537, 0
      %v1584 = vsel %vm1552, 65537, 0
      %v1585 = vsel %vm1553, 65537, 0
      %v1586 = vsel %vm1554, 65537, 0
      %v1587 = vsel %vm1555, 65537, 0
      %v1588 = vsel %vm1556, 65537, 0
      %v1589 = vsel %vm1557, 65537, 0
      %v1590 = vsel %vm1558, 65537, 0
      %v1591 = vsel %vm1559, 65537, 0
      %v1592 = vsel %vm1560, 65537, 0
      %v1593 = vsel %vm1561, 65537, 0
      %v1594 = vsel %vm1562, 65537, 0
      %v1595 = vsel %vm1563, 65537, 0
      %v1596 = vsel %vm1564, 65537, 0
      %v1597 = vsel %vm1565, 65537, 0
      %v1598 = vunpack.c.l.b16 %v1566
      %v1599 = vunpack.c.l.b16 %v1567
      %v1600 = vunpack.c.l.b16 %v1568
      %v1601 = vunpack.c.l.b16 %v1569
      %v1602 = vunpack.c.l.b16 %v1570
      %v1603 = vunpack.c.l.b16 %v1571
      %v1604 = vunpack.c.l.b16 %v1572
      %v1605 = vunpack.c.l.b16 %v1573
      %v1606 = vunpack.c.l.b16 %v1574
      %v1607 = vunpack.c.l.b16 %v1575
      %v1608 = vunpack.c.l.b16 %v1576
      %v1609 = vunpack.c.l.b16 %v1577
      %v1610 = vunpack.c.l.b16 %v1578
      %v1611 = vunpack.c.l.b16 %v1579
      %v1612 = vunpack.c.l.b16 %v1580
      %v1613 = vunpack.c.l.b16 %v1581
      %v1614 = vunpack.c.l.b16 %v1582
      %v1615 = vunpack.c.l.b16 %v1583
      %v1616 = vunpack.c.l.b16 %v1584
      %v1617 = vunpack.c.l.b16 %v1585
      %v1618 = vunpack.c.l.b16 %v1586
      %v1619 = vunpack.c.l.b16 %v1587
      %v1620 = vunpack.c.l.b16 %v1588
      %v1621 = vunpack.c.l.b16 %v1589
      %v1622 = vunpack.c.l.b16 %v1590
      %v1623 = vunpack.c.l.b16 %v1591
      %v1624 = vunpack.c.l.b16 %v1592
      %v1625 = vunpack.c.l.b16 %v1593
      %v1626 = vunpack.c.l.b16 %v1594
      %v1627 = vunpack.c.l.b16 %v1595
      %v1628 = vunpack.c.l.b16 %v1596
      %v1629 = vunpack.c.l.b16 %v1597
      %v1630 = vpack.c.b16 %v1599, %v1598
      %v1631 = vpack.c.b16 %v1601, %v1600
      %v1632 = vpack.c.b16 %v1603, %v1602
      %v1633 = vpack.c.b16 %v1605, %v1604
      %v1634 = vpack.c.b16 %v1607, %v1606
      %v1635 = vpack.c.b16 %v1609, %v1608
      %v1636 = vpack.c.b16 %v1611, %v1610
      %v1637 = vpack.c.b16 %v1613, %v1612
      %v1638 = vpack.c.b16 %v1615, %v1614
      %v1639 = vpack.c.b16 %v1617, %v1616
      %v1640 = vpack.c.b16 %v1619, %v1618
      %v1641 = vpack.c.b16 %v1621, %v1620
      %v1642 = vpack.c.b16 %v1623, %v1622
      %v1643 = vpack.c.b16 %v1625, %v1624
      %v1644 = vpack.c.b16 %v1627, %v1626
      %v1645 = vpack.c.b16 %v1629, %v1628
      %vm1646 = vsmask.f32 4352
      %v1648 = vshrl.u32 %v1630, 16
      %v1650 = vrot.slane %v1648, 3
      %v1651 = vshll.u32 %v1630, 16
      %v1653 = vrot.slane %v1651, 4
      %v1654 = vor.u32 %v1650, %v1653
      %v1656 = vshrl.u32 %v1631, 16
      %v1658 = vrot.slane %v1656, 3
      %v1659 = vshll.u32 %v1631, 16
      %v1661 = vrot.slane %v1659, 4
      %v1662 = vor.u32 %v1658, %v1661
      %v1663 = vsel %vm1646, %v1654, %v1662
      %v1665 = vshrl.u32 %v1632, 16
      %v1667 = vrot.slane %v1665, 3
      %v1668 = vshll.u32 %v1632, 16
      %v1670 = vrot.slane %v1668, 4
      %v1671 = vor.u32 %v1667, %v1670
      %v1672 = vsel %vm1646, %v1662, %v1671
      %v1674 = vshrl.u32 %v1633, 16
      %v1676 = vrot.slane %v1674, 3
      %v1677 = vshll.u32 %v1633, 16
      %v1679 = vrot.slane %v1677, 4
      %v1680 = vor.u32 %v1676, %v1679
      %v1681 = vsel %vm1646, %v1671, %v1680
      %v1683 = vshrl.u32 %v1634, 16
      %v1685 = vrot.slane %v1683, 3
      %v1686 = vshll.u32 %v1634, 16
      %v1688 = vrot.slane %v1686, 4
      %v1689 = vor.u32 %v1685, %v1688
      %v1690 = vsel %vm1646, %v1680, %v1689
      %v1692 = vshrl.u32 %v1635, 16
      %v1694 = vrot.slane %v1692, 3
      %v1695 = vshll.u32 %v1635, 16
      %v1697 = vrot.slane %v1695, 4
      %v1698 = vor.u32 %v1694, %v1697
      %v1699 = vsel %vm1646, %v1689, %v1698
      %v1701 = vshrl.u32 %v1636, 16
      %v1703 = vrot.slane %v1701, 3
      %v1704 = vshll.u32 %v1636, 16
      %v1706 = vrot.slane %v1704, 4
      %v1707 = vor.u32 %v1703, %v1706
      %v1708 = vsel %vm1646, %v1698, %v1707
      %v1710 = vshrl.u32 %v1637, 16
      %v1712 = vrot.slane %v1710, 3
      %v1713 = vshll.u32 %v1637, 16
      %v1715 = vrot.slane %v1713, 4
      %v1716 = vor.u32 %v1712, %v1715
      %v1717 = vsel %vm1646, %v1707, %v1716
      %v1719 = vshrl.u32 %v1638, 16
      %v1721 = vrot.slane %v1719, 3
      %v1722 = vshll.u32 %v1638, 16
      %v1724 = vrot.slane %v1722, 4
      %v1725 = vor.u32 %v1721, %v1724
      %v1726 = vsel %vm1646, %v1716, %v1725
      %v1728 = vshrl.u32 %v1639, 16
      %v1730 = vrot.slane %v1728, 3
      %v1731 = vshll.u32 %v1639, 16
      %v1733 = vrot.slane %v1731, 4
      %v1734 = vor.u32 %v1730, %v1733
      %v1735 = vsel %vm1646, %v1725, %v1734
      %v1737 = vshrl.u32 %v1640, 16
      %v1739 = vrot.slane %v1737, 3
      %v1740 = vshll.u32 %v1640, 16
      %v1742 = vrot.slane %v1740, 4
      %v1743 = vor.u32 %v1739, %v1742
      %v1744 = vsel %vm1646, %v1734, %v1743
      %v1746 = vshrl.u32 %v1641, 16
      %v1748 = vrot.slane %v1746, 3
      %v1749 = vshll.u32 %v1641, 16
      %v1751 = vrot.slane %v1749, 4
      %v1752 = vor.u32 %v1748, %v1751
      %v1753 = vsel %vm1646, %v1743, %v1752
      %v1755 = vshrl.u32 %v1642, 16
      %v1757 = vrot.slane %v1755, 3
      %v1758 = vshll.u32 %v1642, 16
      %v1760 = vrot.slane %v1758, 4
      %v1761 = vor.u32 %v1757, %v1760
      %v1762 = vsel %vm1646, %v1752, %v1761
      %v1764 = vshrl.u32 %v1643, 16
      %v1766 = vrot.slane %v1764, 3
      %v1767 = vshll.u32 %v1643, 16
      %v1769 = vrot.slane %v1767, 4
      %v1770 = vor.u32 %v1766, %v1769
      %v1771 = vsel %vm1646, %v1761, %v1770
      %v1773 = vshrl.u32 %v1644, 16
      %v1775 = vrot.slane %v1773, 3
      %v1776 = vshll.u32 %v1644, 16
      %v1778 = vrot.slane %v1776, 4
      %v1779 = vor.u32 %v1775, %v1778
      %v1780 = vsel %vm1646, %v1770, %v1779
      %v1782 = vshrl.u32 %v1645, 16
      %v1784 = vrot.slane %v1782, 3
      %v1785 = vshll.u32 %v1645, 16
      %v1787 = vrot.slane %v1785, 4
      %v1788 = vor.u32 %v1784, %v1787
      %v1789 = vsel %vm1646, %v1779, %v1788
      %vm1790 = vcmp.ne.s16.totalorder %v1654, 0
      %vm1791 = vcmp.ne.s16.totalorder %v1663, 0
      %vm1792 = vcmp.ne.s16.totalorder %v1672, 0
      %vm1793 = vcmp.ne.s16.totalorder %v1681, 0
      %vm1794 = vcmp.ne.s16.totalorder %v1690, 0
      %vm1795 = vcmp.ne.s16.totalorder %v1699, 0
      %vm1796 = vcmp.ne.s16.totalorder %v1708, 0
      %vm1797 = vcmp.ne.s16.totalorder %v1717, 0
      %vm1798 = vcmp.ne.s16.totalorder %v1726, 0
      %vm1799 = vcmp.ne.s16.totalorder %v1735, 0
      %vm1800 = vcmp.ne.s16.totalorder %v1744, 0
      %vm1801 = vcmp.ne.s16.totalorder %v1753, 0
      %vm1802 = vcmp.ne.s16.totalorder %v1762, 0
      %vm1803 = vcmp.ne.s16.totalorder %v1771, 0
      %vm1804 = vcmp.ne.s16.totalorder %v1780, 0
      %vm1805 = vcmp.ne.s16.totalorder %v1789, 0
      %vm1806 = vcmp.ne.s16.totalorder %v1788, 0
      %v1807 = vsel %vm1790, %v1468, 0
      %v1808 = vsel %vm1791, %v1098, 0
      %v1809 = vsel %vm1792, %v1099, 0
      %v1810 = vsel %vm1793, %v1100, 0
      %v1811 = vsel %vm1794, %v1101, 0
      %v1812 = vsel %vm1795, %v1102, 0
      %v1813 = vsel %vm1796, %v1103, 0
      %v1814 = vsel %vm1797, %v1104, 0
      %v1815 = vsel %vm1798, %v1105, 0
      %v1816 = vsel %vm1799, %v1106, 0
      %v1817 = vsel %vm1800, %v1107, 0
      %v1818 = vsel %vm1801, %v1108, 0
      %v1819 = vsel %vm1802, %v1109, 0
      %v1820 = vsel %vm1803, %v1110, 0
      %v1821 = vsel %vm1804, %v1111, 0
      %v1822 = vsel %vm1805, %v1112, 0
      %v1823 = vsel %vm1806, %v1469, 0
      %v1824 = vld [vmem:[#allocation2 + $0x8] sm:$0xf8]
      %v1825 = vld [vmem:[#allocation2 + $0x80] sm:$0xff]
      %v1826 = vld [vmem:[#allocation2 + $0x88] sm:$0xf]
      %v1827 = vsel %vm1434, %v1824, 0
      %v1828 = vsel %vm1435, %v1099, 0
      %v1829 = vsel %vm1436, %v1100, 0
      %v1830 = vsel %vm1437, %v1101, 0
      %v1831 = vsel %vm1438, %v1102, 0
      %v1832 = vsel %vm1439, %v1103, 0
      %v1833 = vsel %vm1440, %v1104, 0
      %v1834 = vsel %vm1441, %v1105, 0
      %v1835 = vsel %vm1442, %v1106, 0
      %v1836 = vsel %vm1443, %v1107, 0
      %v1837 = vsel %vm1444, %v1108, 0
      %v1838 = vsel %vm1445, %v1109, 0
      %v1839 = vsel %vm1446, %v1110, 0
      %v1840 = vsel %vm1447, %v1111, 0
      %v1841 = vsel %vm1448, %v1112, 0
      %v1842 = vsel %vm1449, %v1825, 0
      %v1843 = vsel %vm1450, %v1826, 0
      %v1844 = vld [vmem:[#allocation2 + $0x8] sm:$0xf0]
      %v1845 = vld [vmem:[#allocation2 + $0x88] sm:$0x1f]
      %v1846 = vsel %vm1790, %v1844, 0
      %v1847 = vsel %vm1791, %v1099, 0
      %v1848 = vsel %vm1792, %v1100, 0
      %v1849 = vsel %vm1793, %v1101, 0
      %v1850 = vsel %vm1794, %v1102, 0
      %v1851 = vsel %vm1795, %v1103, 0
      %v1852 = vsel %vm1796, %v1104, 0
      %v1853 = vsel %vm1797, %v1105, 0
      %v1854 = vsel %vm1798, %v1106, 0
      %v1855 = vsel %vm1799, %v1107, 0
      %v1856 = vsel %vm1800, %v1108, 0
      %v1857 = vsel %vm1801, %v1109, 0
      %v1858 = vsel %vm1802, %v1110, 0
      %v1859 = vsel %vm1803, %v1111, 0
      %v1860 = vsel %vm1804, %v1112, 0
      %v1861 = vsel %vm1805, %v1825, 0
      %v1862 = vsel %vm1806, %v1845, 0
      %v1863 = vld [vmem:[#allocation2 + $0x10] sm:$0xf8]
      %v1864 = vld [vmem:[#allocation2 + $0x88] sm:$0xff]
      %v1865 = vld [vmem:[#allocation2 + $0x90] sm:$0xf]
      %v1866 = vsel %vm1434, %v1863, 0
      %v1867 = vsel %vm1435, %v1100, 0
      %v1868 = vsel %vm1436, %v1101, 0
      %v1869 = vsel %vm1437, %v1102, 0
      %v1870 = vsel %vm1438, %v1103, 0
      %v1871 = vsel %vm1439, %v1104, 0
      %v1872 = vsel %vm1440, %v1105, 0
      %v1873 = vsel %vm1441, %v1106, 0
      %v1874 = vsel %vm1442, %v1107, 0
      %v1875 = vsel %vm1443, %v1108, 0
      %v1876 = vsel %vm1444, %v1109, 0
      %v1877 = vsel %vm1445, %v1110, 0
      %v1878 = vsel %vm1446, %v1111, 0
      %v1879 = vsel %vm1447, %v1112, 0
      %v1880 = vsel %vm1448, %v1825, 0
      %v1881 = vsel %vm1449, %v1864, 0
      %v1882 = vsel %vm1450, %v1865, 0
      %v1883 = vld [vmem:[#allocation2 + $0x10] sm:$0xf0]
      %v1884 = vld [vmem:[#allocation2 + $0x90] sm:$0x1f]
      %v1885 = vsel %vm1790, %v1883, 0
      %v1886 = vsel %vm1791, %v1100, 0
      %v1887 = vsel %vm1792, %v1101, 0
      %v1888 = vsel %vm1793, %v1102, 0
      %v1889 = vsel %vm1794, %v1103, 0
      %v1890 = vsel %vm1795, %v1104, 0
      %v1891 = vsel %vm1796, %v1105, 0
      %v1892 = vsel %vm1797, %v1106, 0
      %v1893 = vsel %vm1798, %v1107, 0
      %v1894 = vsel %vm1799, %v1108, 0
      %v1895 = vsel %vm1800, %v1109, 0
      %v1896 = vsel %vm1801, %v1110, 0
      %v1897 = vsel %vm1802, %v1111, 0
      %v1898 = vsel %vm1803, %v1112, 0
      %v1899 = vsel %vm1804, %v1825, 0
      %v1900 = vsel %vm1805, %v1864, 0
      %v1901 = vsel %vm1806, %v1884, 0
      %vm1902 = vsmask.f32 7424
      %v1904 = vshrl.u32 %v1468, 16
      %v1906 = vshll.u32 %v1468, 16
      %v1908 = vrot.slane %v1906, 1
      %v1909 = vor.u32 %v1904, %v1908
      %v1911 = vshll.u32 %v1098, 16
      %v1913 = vrot.slane %v1911, 1
      %v1914 = vsel %vm1902, %v1909, %v1913
      %v1915 = vshrl.u32 %v1098, 16
      %v1917 = vor.u32 %v1915, %v1913
      %v1919 = vshll.u32 %v1099, 16
      %v1921 = vrot.slane %v1919, 1
      %v1922 = vsel %vm1902, %v1917, %v1921
      %v1923 = vshrl.u32 %v1099, 16
      %v1925 = vor.u32 %v1923, %v1921
      %v1927 = vshll.u32 %v1100, 16
      %v1929 = vrot.slane %v1927, 1
      %v1930 = vsel %vm1902, %v1925, %v1929
      %v1931 = vshrl.u32 %v1100, 16
      %v1933 = vor.u32 %v1931, %v1929
      %v1935 = vshll.u32 %v1101, 16
      %v1937 = vrot.slane %v1935, 1
      %v1938 = vsel %vm1902, %v1933, %v1937
      %v1939 = vshrl.u32 %v1101, 16
      %v1941 = vor.u32 %v1939, %v1937
      %v1943 = vshll.u32 %v1102, 16
      %v1945 = vrot.slane %v1943, 1
      %v1946 = vsel %vm1902, %v1941, %v1945
      %v1947 = vshrl.u32 %v1102, 16
      %v1949 = vor.u32 %v1947, %v1945
      %v1951 = vshll.u32 %v1103, 16
      %v1953 = vrot.slane %v1951, 1
      %v1954 = vsel %vm1902, %v1949, %v1953
      %v1955 = vshrl.u32 %v1103, 16
      %v1957 = vor.u32 %v1955, %v1953
      %v1959 = vshll.u32 %v1104, 16
      %v1961 = vrot.slane %v1959, 1
      %v1962 = vsel %vm1902, %v1957, %v1961
      %v1963 = vshrl.u32 %v1104, 16
      %v1965 = vor.u32 %v1963, %v1961
      %v1967 = vshll.u32 %v1105, 16
      %v1969 = vrot.slane %v1967, 1
      %v1970 = vsel %vm1902, %v1965, %v1969
      %v1971 = vshrl.u32 %v1105, 16
      %v1973 = vor.u32 %v1971, %v1969
      %v1975 = vshll.u32 %v1106, 16
      %v1977 = vrot.slane %v1975, 1
      %v1978 = vsel %vm1902, %v1973, %v1977
      %v1979 = vshrl.u32 %v1106, 16
      %v1981 = vor.u32 %v1979, %v1977
      %v1983 = vshll.u32 %v1107, 16
      %v1985 = vrot.slane %v1983, 1
      %v1986 = vsel %vm1902, %v1981, %v1985
      %v1987 = vshrl.u32 %v1107, 16
      %v1989 = vor.u32 %v1987, %v1985
      %v1991 = vshll.u32 %v1108, 16
      %v1993 = vrot.slane %v1991, 1
      %v1994 = vsel %vm1902, %v1989, %v1993
      %v1995 = vshrl.u32 %v1108, 16
      %v1997 = vor.u32 %v1995, %v1993
      %v1999 = vshll.u32 %v1109, 16
      %v2001 = vrot.slane %v1999, 1
      %v2002 = vsel %vm1902, %v1997, %v2001
      %v2003 = vshrl.u32 %v1109, 16
      %v2005 = vor.u32 %v2003, %v2001
      %v2007 = vshll.u32 %v1110, 16
      %v2009 = vrot.slane %v2007, 1
      %v2010 = vsel %vm1902, %v2005, %v2009
      %v2011 = vshrl.u32 %v1110, 16
      %v2013 = vor.u32 %v2011, %v2009
      %v2015 = vshll.u32 %v1111, 16
      %v2017 = vrot.slane %v2015, 1
      %v2018 = vsel %vm1902, %v2013, %v2017
      %v2019 = vshrl.u32 %v1111, 16
      %v2021 = vor.u32 %v2019, %v2017
      %v2023 = vshll.u32 %v1112, 16
      %v2025 = vrot.slane %v2023, 1
      %v2026 = vsel %vm1902, %v2021, %v2025
      %v2027 = vshrl.u32 %v1112, 16
      %v2029 = vor.u32 %v2027, %v2025
      %v2031 = vshll.u32 %v1113, 16
      %v2033 = vrot.slane %v2031, 1
      %v2034 = vsel %vm1902, %v2029, %v2033
      %v2035 = vshrl.u32 %v1113, 16
      %v2037 = vor.u32 %v2035, %v2033
      %2038 = vrot.lane.b32.xlu0 %v1914, 8
      %v2039 = vpop.permute.xlu0 %2038
      %2040 = vrot.lane.b32.xlu0 %v1922, 8
      %v2041 = vpop.permute.xlu0 %2040
      %2042 = vrot.lane.b32.xlu0 %v1930, 8
      %v2043 = vpop.permute.xlu0 %2042
      %2044 = vrot.lane.b32.xlu0 %v1938, 8
      %v2045 = vpop.permute.xlu0 %2044
      %2046 = vrot.lane.b32.xlu0 %v1946, 8
      %v2047 = vpop.permute.xlu0 %2046
      %2048 = vrot.lane.b32.xlu0 %v1954, 8
      %v2049 = vpop.permute.xlu0 %2048
      %2050 = vrot.lane.b32.xlu0 %v1962, 8
      %v2051 = vpop.permute.xlu0 %2050
      %2052 = vrot.lane.b32.xlu0 %v1970, 8
      %v2053 = vpop.permute.xlu0 %2052
      %2054 = vrot.lane.b32.xlu0 %v1978, 8
      %v2055 = vpop.permute.xlu0 %2054
      %2056 = vrot.lane.b32.xlu0 %v1986, 8
      %v2057 = vpop.permute.xlu0 %2056
      %2058 = vrot.lane.b32.xlu0 %v1994, 8
      %v2059 = vpop.permute.xlu0 %2058
      %2060 = vrot.lane.b32.xlu0 %v2002, 8
      %v2061 = vpop.permute.xlu0 %2060
      %2062 = vrot.lane.b32.xlu0 %v2010, 8
      %v2063 = vpop.permute.xlu0 %2062
      %2064 = vrot.lane.b32.xlu0 %v2018, 8
      %v2065 = vpop.permute.xlu0 %2064
      %2066 = vrot.lane.b32.xlu0 %v2026, 8
      %v2067 = vpop.permute.xlu0 %2066
      %2068 = vrot.lane.b32.xlu0 %v2034, 8
      %v2069 = vpop.permute.xlu0 %2068
      %2070 = vrot.lane.b32.xlu0 %v2037, 8
      %v2071 = vpop.permute.xlu0 %2070
      %vm2089 = vcmask 1046528
      %v2090 = vrot.slane %v1807, 1
      %v2091 = vrot.slane %v1808, 1
      %v2092 = vsel %vm2089, %v2090, %v2091
      %v2093 = vrot.slane %v1809, 1
      %v2094 = vsel %vm2089, %v2091, %v2093
      %v2095 = vrot.slane %v1810, 1
      %v2096 = vsel %vm2089, %v2093, %v2095
      %v2097 = vrot.slane %v1811, 1
      %v2098 = vsel %vm2089, %v2095, %v2097
      %v2099 = vrot.slane %v1812, 1
      %v2100 = vsel %vm2089, %v2097, %v2099
      %v2101 = vrot.slane %v1813, 1
      %v2102 = vsel %vm2089, %v2099, %v2101
      %v2103 = vrot.slane %v1814, 1
      %v2104 = vsel %vm2089, %v2101, %v2103
      %v2105 = vrot.slane %v1815, 1
      %v2106 = vsel %vm2089, %v2103, %v2105
      %v2107 = vrot.slane %v1816, 1
      %v2108 = vsel %vm2089, %v2105, %v2107
      %v2109 = vrot.slane %v1817, 1
      %v2110 = vsel %vm2089, %v2107, %v2109
      %v2111 = vrot.slane %v1818, 1
      %v2112 = vsel %vm2089, %v2109, %v2111
      %v2113 = vrot.slane %v1819, 1
      %v2114 = vsel %vm2089, %v2111, %v2113
      %v2115 = vrot.slane %v1820, 1
      %v2116 = vsel %vm2089, %v2113, %v2115
      %v2117 = vrot.slane %v1821, 1
      %v2118 = vsel %vm2089, %v2115, %v2117
      %v2119 = vrot.slane %v1822, 1
      %v2120 = vsel %vm2089, %v2117, %v2119
      %v2121 = vrot.slane %v1823, 1
      %v2122 = vsel %vm2089, %v2119, %v2121
      %2123 = vrot.lane.b32.xlu0 %v2092, 16
      %v2124 = vpop.permute.xlu0 %2123
      %2125 = vrot.lane.b32.xlu0 %v2094, 16
      %v2126 = vpop.permute.xlu0 %2125
      %2127 = vrot.lane.b32.xlu0 %v2096, 16
      %v2128 = vpop.permute.xlu0 %2127
      %2129 = vrot.lane.b32.xlu0 %v2098, 16
      %v2130 = vpop.permute.xlu0 %2129
      %2131 = vrot.lane.b32.xlu0 %v2100, 16
      %v2132 = vpop.permute.xlu0 %2131
      %2133 = vrot.lane.b32.xlu0 %v2102, 16
      %v2134 = vpop.permute.xlu0 %2133
      %2135 = vrot.lane.b32.xlu0 %v2104, 16
      %v2136 = vpop.permute.xlu0 %2135
      %2137 = vrot.lane.b32.xlu0 %v2106, 16
      %v2138 = vpop.permute.xlu0 %2137
      %2139 = vrot.lane.b32.xlu0 %v2108, 16
      %v2140 = vpop.permute.xlu0 %2139
      %2141 = vrot.lane.b32.xlu0 %v2110, 16
      %v2142 = vpop.permute.xlu0 %2141
      %2143 = vrot.lane.b32.xlu0 %v2112, 16
      %v2144 = vpop.permute.xlu0 %2143
      %2145 = vrot.lane.b32.xlu0 %v2114, 16
      %v2146 = vpop.permute.xlu0 %2145
      %2147 = vrot.lane.b32.xlu0 %v2116, 16
      %v2148 = vpop.permute.xlu0 %2147
      %2149 = vrot.lane.b32.xlu0 %v2118, 16
      %v2150 = vpop.permute.xlu0 %2149
      %2151 = vrot.lane.b32.xlu0 %v2120, 16
      %v2152 = vpop.permute.xlu0 %2151
      %2153 = vrot.lane.b32.xlu0 %v2122, 16
      %v2154 = vpop.permute.xlu0 %2153
      %2155 = vrot.lane.b32.xlu0 %v2121, 16
      %v2156 = vpop.permute.xlu0 %2155
      %2174 = vrot.lane.b32.xlu0 %v1827, 24
      %v2175 = vpop.permute.xlu0 %2174
      %2176 = vrot.lane.b32.xlu0 %v1828, 24
      %v2177 = vpop.permute.xlu0 %2176
      %2178 = vrot.lane.b32.xlu0 %v1829, 24
      %v2179 = vpop.permute.xlu0 %2178
      %2180 = vrot.lane.b32.xlu0 %v1830, 24
      %v2181 = vpop.permute.xlu0 %2180
      %2182 = vrot.lane.b32.xlu0 %v1831, 24
      %v2183 = vpop.permute.xlu0 %2182
      %2184 = vrot.lane.b32.xlu0 %v1832, 24
      %v2185 = vpop.permute.xlu0 %2184
      %2186 = vrot.lane.b32.xlu0 %v1833, 24
      %v2187 = vpop.permute.xlu0 %2186
      %2188 = vrot.lane.b32.xlu0 %v1834, 24
      %v2189 = vpop.permute.xlu0 %2188
      %2190 = vrot.lane.b32.xlu0 %v1835, 24
      %v2191 = vpop.permute.xlu0 %2190
      %2192 = vrot.lane.b32.xlu0 %v1836, 24
      %v2193 = vpop.permute.xlu0 %2192
      %2194 = vrot.lane.b32.xlu0 %v1837, 24
      %v2195 = vpop.permute.xlu0 %2194
      %2196 = vrot.lane.b32.xlu0 %v1838, 24
      %v2197 = vpop.permute.xlu0 %2196
      %2198 = vrot.lane.b32.xlu0 %v1839, 24
      %v2199 = vpop.permute.xlu0 %2198
      %2200 = vrot.lane.b32.xlu0 %v1840, 24
      %v2201 = vpop.permute.xlu0 %2200
      %2202 = vrot.lane.b32.xlu0 %v1841, 24
      %v2203 = vpop.permute.xlu0 %2202
      %2204 = vrot.lane.b32.xlu0 %v1842, 24
      %v2205 = vpop.permute.xlu0 %2204
      %2206 = vrot.lane.b32.xlu0 %v1843, 24
      %v2207 = vpop.permute.xlu0 %2206
      %v2209 = vshrl.u32 %v1844, 16
      %v2211 = vshll.u32 %v1844, 16
      %v2213 = vrot.slane %v2211, 1
      %v2214 = vor.u32 %v2209, %v2213
      %v2215 = vsel %vm1902, %v2214, %v1921
      %v2217 = vshll.u32 %v1825, 16
      %v2219 = vrot.slane %v2217, 1
      %v2220 = vsel %vm1902, %v2029, %v2219
      %v2221 = vshrl.u32 %v1825, 16
      %v2223 = vor.u32 %v2221, %v2219
      %v2225 = vshll.u32 %v1826, 16
      %v2227 = vrot.slane %v2225, 1
      %v2228 = vsel %vm1902, %v2223, %v2227
      %v2229 = vshrl.u32 %v1826, 16
      %v2231 = vor.u32 %v2229, %v2227
      %2232 = vrot.lane.b32.xlu0 %v2215, 32
      %v2233 = vpop.permute.xlu0 %2232
      %2234 = vrot.lane.b32.xlu0 %v1930, 32
      %v2235 = vpop.permute.xlu0 %2234
      %2236 = vrot.lane.b32.xlu0 %v1938, 32
      %v2237 = vpop.permute.xlu0 %2236
      %2238 = vrot.lane.b32.xlu0 %v1946, 32
      %v2239 = vpop.permute.xlu0 %2238
      %2240 = vrot.lane.b32.xlu0 %v1954, 32
      %v2241 = vpop.permute.xlu0 %2240
      %2242 = vrot.lane.b32.xlu0 %v1962, 32
      %v2243 = vpop.permute.xlu0 %2242
      %2244 = vrot.lane.b32.xlu0 %v1970, 32
      %v2245 = vpop.permute.xlu0 %2244
      %2246 = vrot.lane.b32.xlu0 %v1978, 32
      %v2247 = vpop.permute.xlu0 %2246
      %2248 = vrot.lane.b32.xlu0 %v1986, 32
      %v2249 = vpop.permute.xlu0 %2248
      %2250 = vrot.lane.b32.xlu0 %v1994, 32
      %v2251 = vpop.permute.xlu0 %2250
      %2252 = vrot.lane.b32.xlu0 %v2002, 32
      %v2253 = vpop.permute.xlu0 %2252
      %2254 = vrot.lane.b32.xlu0 %v2010, 32
      %v2255 = vpop.permute.xlu0 %2254
      %2256 = vrot.lane.b32.xlu0 %v2018, 32
      %v2257 = vpop.permute.xlu0 %2256
      %2258 = vrot.lane.b32.xlu0 %v2026, 32
      %v2259 = vpop.permute.xlu0 %2258
      %2260 = vrot.lane.b32.xlu0 %v2220, 32
      %v2261 = vpop.permute.xlu0 %2260
      %2262 = vrot.lane.b32.xlu0 %v2228, 32
      %v2263 = vpop.permute.xlu0 %2262
      %2264 = vrot.lane.b32.xlu0 %v2231, 32
      %v2265 = vpop.permute.xlu0 %2264
      %v2283 = vrot.slane %v1846, 1
      %v2284 = vrot.slane %v1847, 1
      %v2285 = vsel %vm2089, %v2283, %v2284
      %v2286 = vrot.slane %v1848, 1
      %v2287 = vsel %vm2089, %v2284, %v2286
      %v2288 = vrot.slane %v1849, 1
      %v2289 = vsel %vm2089, %v2286, %v2288
      %v2290 = vrot.slane %v1850, 1
      %v2291 = vsel %vm2089, %v2288, %v2290
      %v2292 = vrot.slane %v1851, 1
      %v2293 = vsel %vm2089, %v2290, %v2292
      %v2294 = vrot.slane %v1852, 1
      %v2295 = vsel %vm2089, %v2292, %v2294
      %v2296 = vrot.slane %v1853, 1
      %v2297 = vsel %vm2089, %v2294, %v2296
      %v2298 = vrot.slane %v1854, 1
      %v2299 = vsel %vm2089, %v2296, %v2298
      %v2300 = vrot.slane %v1855, 1
      %v2301 = vsel %vm2089, %v2298, %v2300
      %v2302 = vrot.slane %v1856, 1
      %v2303 = vsel %vm2089, %v2300, %v2302
      %v2304 = vrot.slane %v1857, 1
      %v2305 = vsel %vm2089, %v2302, %v2304
      %v2306 = vrot.slane %v1858, 1
      %v2307 = vsel %vm2089, %v2304, %v2306
      %v2308 = vrot.slane %v1859, 1
      %v2309 = vsel %vm2089, %v2306, %v2308
      %v2310 = vrot.slane %v1860, 1
      %v2311 = vsel %vm2089, %v2308, %v2310
      %v2312 = vrot.slane %v1861, 1
      %v2313 = vsel %vm2089, %v2310, %v2312
      %v2314 = vrot.slane %v1862, 1
      %v2315 = vsel %vm2089, %v2312, %v2314
      %2316 = vrot.lane.b32.xlu0 %v2285, 40
      %v2317 = vpop.permute.xlu0 %2316
      %2318 = vrot.lane.b32.xlu0 %v2287, 40
      %v2319 = vpop.permute.xlu0 %2318
      %2320 = vrot.lane.b32.xlu0 %v2289, 40
      %v2321 = vpop.permute.xlu0 %2320
      %2322 = vrot.lane.b32.xlu0 %v2291, 40
      %v2323 = vpop.permute.xlu0 %2322
      %2324 = vrot.lane.b32.xlu0 %v2293, 40
      %v2325 = vpop.permute.xlu0 %2324
      %2326 = vrot.lane.b32.xlu0 %v2295, 40
      %v2327 = vpop.permute.xlu0 %2326
      %2328 = vrot.lane.b32.xlu0 %v2297, 40
      %v2329 = vpop.permute.xlu0 %2328
      %2330 = vrot.lane.b32.xlu0 %v2299, 40
      %v2331 = vpop.permute.xlu0 %2330
      %2332 = vrot.lane.b32.xlu0 %v2301, 40
      %v2333 = vpop.permute.xlu0 %2332
      %2334 = vrot.lane.b32.xlu0 %v2303, 40
      %v2335 = vpop.permute.xlu0 %2334
      %2336 = vrot.lane.b32.xlu0 %v2305, 40
      %v2337 = vpop.permute.xlu0 %2336
      %2338 = vrot.lane.b32.xlu0 %v2307, 40
      %v2339 = vpop.permute.xlu0 %2338
      %2340 = vrot.lane.b32.xlu0 %v2309, 40
      %v2341 = vpop.permute.xlu0 %2340
      %2342 = vrot.lane.b32.xlu0 %v2311, 40
      %v2343 = vpop.permute.xlu0 %2342
      %2344 = vrot.lane.b32.xlu0 %v2313, 40
      %v2345 = vpop.permute.xlu0 %2344
      %2346 = vrot.lane.b32.xlu0 %v2315, 40
      %v2347 = vpop.permute.xlu0 %2346
      %2348 = vrot.lane.b32.xlu0 %v2314, 40
      %v2349 = vpop.permute.xlu0 %2348
      %2367 = vrot.lane.b32.xlu0 %v1866, 48
      %v2368 = vpop.permute.xlu0 %2367
      %2369 = vrot.lane.b32.xlu0 %v1867, 48
      %v2370 = vpop.permute.xlu0 %2369
      %2371 = vrot.lane.b32.xlu0 %v1868, 48
      %v2372 = vpop.permute.xlu0 %2371
      %2373 = vrot.lane.b32.xlu0 %v1869, 48
      %v2374 = vpop.permute.xlu0 %2373
      %2375 = vrot.lane.b32.xlu0 %v1870, 48
      %v2376 = vpop.permute.xlu0 %2375
      %2377 = vrot.lane.b32.xlu0 %v1871, 48
      %v2378 = vpop.permute.xlu0 %2377
      %2379 = vrot.lane.b32.xlu0 %v1872, 48
      %v2380 = vpop.permute.xlu0 %2379
      %2381 = vrot.lane.b32.xlu0 %v1873, 48
      %v2382 = vpop.permute.xlu0 %2381
      %2383 = vrot.lane.b32.xlu0 %v1874, 48
      %v2384 = vpop.permute.xlu0 %2383
      %2385 = vrot.lane.b32.xlu0 %v1875, 48
      %v2386 = vpop.permute.xlu0 %2385
      %2387 = vrot.lane.b32.xlu0 %v1876, 48
      %v2388 = vpop.permute.xlu0 %2387
      %2389 = vrot.lane.b32.xlu0 %v1877, 48
      %v2390 = vpop.permute.xlu0 %2389
      %2391 = vrot.lane.b32.xlu0 %v1878, 48
      %v2392 = vpop.permute.xlu0 %2391
      %2393 = vrot.lane.b32.xlu0 %v1879, 48
      %v2394 = vpop.permute.xlu0 %2393
      %2395 = vrot.lane.b32.xlu0 %v1880, 48
      %v2396 = vpop.permute.xlu0 %2395
      %2397 = vrot.lane.b32.xlu0 %v1881, 48
      %v2398 = vpop.permute.xlu0 %2397
      %2399 = vrot.lane.b32.xlu0 %v1882, 48
      %v2400 = vpop.permute.xlu0 %2399
      %v2402 = vshrl.u32 %v1883, 16
      %v2404 = vshll.u32 %v1883, 16
      %v2406 = vrot.slane %v2404, 1
      %v2407 = vor.u32 %v2402, %v2406
      %v2408 = vsel %vm1902, %v2407, %v1929
      %v2410 = vshll.u32 %v1864, 16
      %v2412 = vrot.slane %v2410, 1
      %v2413 = vsel %vm1902, %v2223, %v2412
      %v2414 = vshrl.u32 %v1864, 16
      %v2416 = vor.u32 %v2414, %v2412
      %v2418 = vshll.u32 %v1865, 16
      %v2420 = vrot.slane %v2418, 1
      %v2421 = vsel %vm1902, %v2416, %v2420
      %v2422 = vshrl.u32 %v1865, 16
      %v2424 = vor.u32 %v2422, %v2420
      %2425 = vrot.lane.b32.xlu0 %v2408, 56
      %v2426 = vpop.permute.xlu0 %2425
      %2427 = vrot.lane.b32.xlu0 %v1938, 56
      %v2428 = vpop.permute.xlu0 %2427
      %2429 = vrot.lane.b32.xlu0 %v1946, 56
      %v2430 = vpop.permute.xlu0 %2429
      %2431 = vrot.lane.b32.xlu0 %v1954, 56
      %v2432 = vpop.permute.xlu0 %2431
      %2433 = vrot.lane.b32.xlu0 %v1962, 56
      %v2434 = vpop.permute.xlu0 %2433
      %2435 = vrot.lane.b32.xlu0 %v1970, 56
      %v2436 = vpop.permute.xlu0 %2435
      %2437 = vrot.lane.b32.xlu0 %v1978, 56
      %v2438 = vpop.permute.xlu0 %2437
      %2439 = vrot.lane.b32.xlu0 %v1986, 56
      %v2440 = vpop.permute.xlu0 %2439
      %2441 = vrot.lane.b32.xlu0 %v1994, 56
      %v2442 = vpop.permute.xlu0 %2441
      %2443 = vrot.lane.b32.xlu0 %v2002, 56
      %v2444 = vpop.permute.xlu0 %2443
      %2445 = vrot.lane.b32.xlu0 %v2010, 56
      %v2446 = vpop.permute.xlu0 %2445
      %2447 = vrot.lane.b32.xlu0 %v2018, 56
      %v2448 = vpop.permute.xlu0 %2447
      %2449 = vrot.lane.b32.xlu0 %v2026, 56
      %v2450 = vpop.permute.xlu0 %2449
      %2451 = vrot.lane.b32.xlu0 %v2220, 56
      %v2452 = vpop.permute.xlu0 %2451
      %2453 = vrot.lane.b32.xlu0 %v2413, 56
      %v2454 = vpop.permute.xlu0 %2453
      %2455 = vrot.lane.b32.xlu0 %v2421, 56
      %v2456 = vpop.permute.xlu0 %2455
      %2457 = vrot.lane.b32.xlu0 %v2424, 56
      %v2458 = vpop.permute.xlu0 %2457
      %v2476 = vrot.slane %v1885, 1
      %v2477 = vrot.slane %v1886, 1
      %v2478 = vsel %vm2089, %v2476, %v2477
      %v2479 = vrot.slane %v1887, 1
      %v2480 = vsel %vm2089, %v2477, %v2479
      %v2481 = vrot.slane %v1888, 1
      %v2482 = vsel %vm2089, %v2479, %v2481
      %v2483 = vrot.slane %v1889, 1
      %v2484 = vsel %vm2089, %v2481, %v2483
      %v2485 = vrot.slane %v1890, 1
      %v2486 = vsel %vm2089, %v2483, %v2485
      %v2487 = vrot.slane %v1891, 1
      %v2488 = vsel %vm2089, %v2485, %v2487
      %v2489 = vrot.slane %v1892, 1
      %v2490 = vsel %vm2089, %v2487, %v2489
      %v2491 = vrot.slane %v1893, 1
      %v2492 = vsel %vm2089, %v2489, %v2491
      %v2493 = vrot.slane %v1894, 1
      %v2494 = vsel %vm2089, %v2491, %v2493
      %v2495 = vrot.slane %v1895, 1
      %v2496 = vsel %vm2089, %v2493, %v2495
      %v2497 = vrot.slane %v1896, 1
      %v2498 = vsel %vm2089, %v2495, %v2497
      %v2499 = vrot.slane %v1897, 1
      %v2500 = vsel %vm2089, %v2497, %v2499
      %v2501 = vrot.slane %v1898, 1
      %v2502 = vsel %vm2089, %v2499, %v2501
      %v2503 = vrot.slane %v1899, 1
      %v2504 = vsel %vm2089, %v2501, %v2503
      %v2505 = vrot.slane %v1900, 1
      %v2506 = vsel %vm2089, %v2503, %v2505
      %v2507 = vrot.slane %v1901, 1
      %v2508 = vsel %vm2089, %v2505, %v2507
      %2509 = vrot.lane.b32.xlu0 %v2478, 64
      %v2510 = vpop.permute.xlu0 %2509
      %2511 = vrot.lane.b32.xlu0 %v2480, 64
      %v2512 = vpop.permute.xlu0 %2511
      %2513 = vrot.lane.b32.xlu0 %v2482, 64
      %v2514 = vpop.permute.xlu0 %2513
      %2515 = vrot.lane.b32.xlu0 %v2484, 64
      %v2516 = vpop.permute.xlu0 %2515
      %2517 = vrot.lane.b32.xlu0 %v2486, 64
      %v2518 = vpop.permute.xlu0 %2517
      %2519 = vrot.lane.b32.xlu0 %v2488, 64
      %v2520 = vpop.permute.xlu0 %2519
      %2521 = vrot.lane.b32.xlu0 %v2490, 64
      %v2522 = vpop.permute.xlu0 %2521
      %2523 = vrot.lane.b32.xlu0 %v2492, 64
      %v2524 = vpop.permute.xlu0 %2523
      %2525 = vrot.lane.b32.xlu0 %v2494, 64
      %v2526 = vpop.permute.xlu0 %2525
      %2527 = vrot.lane.b32.xlu0 %v2496, 64
      %v2528 = vpop.permute.xlu0 %2527
      %2529 = vrot.lane.b32.xlu0 %v2498, 64
      %v2530 = vpop.permute.xlu0 %2529
      %2531 = vrot.lane.b32.xlu0 %v2500, 64
      %v2532 = vpop.permute.xlu0 %2531
      %2533 = vrot.lane.b32.xlu0 %v2502, 64
      %v2534 = vpop.permute.xlu0 %2533
      %2535 = vrot.lane.b32.xlu0 %v2504, 64
      %v2536 = vpop.permute.xlu0 %2535
      %2537 = vrot.lane.b32.xlu0 %v2506, 64
      %v2538 = vpop.permute.xlu0 %2537
      %2539 = vrot.lane.b32.xlu0 %v2508, 64
      %v2540 = vpop.permute.xlu0 %2539
      %2541 = vrot.lane.b32.xlu0 %v2507, 64
      %v2542 = vpop.permute.xlu0 %2541
      %v2545 = vsel %vm1079, %v1451, %v2039
      %v2548 = vsel %vm1079, %v1452, %v2041
      %v2551 = vsel %vm1079, %v1453, %v2043
      %v2554 = vsel %vm1079, %v1454, %v2045
      %v2557 = vsel %vm1079, %v1455, %v2047
      %v2560 = vsel %vm1079, %v1456, %v2049
      %v2563 = vsel %vm1079, %v1457, %v2051
      %v2566 = vsel %vm1079, %v1458, %v2053
      %v2569 = vsel %vm1079, %v1459, %v2055
      %v2572 = vsel %vm1079, %v1460, %v2057
      %v2575 = vsel %vm1079, %v1461, %v2059
      %v2578 = vsel %vm1079, %v1462, %v2061
      %v2581 = vsel %vm1079, %v1463, %v2063
      %v2584 = vsel %vm1079, %v1464, %v2065
      %v2587 = vsel %vm1079, %v1465, %v2067
      %v2590 = vsel %vm1079, %v1466, %v2069
      %v2593 = vsel %vm1079, %v1467, %v2071
      %v2595 = vsel %vm446, %v2545, %v2124
      %v2597 = vsel %vm446, %v2548, %v2126
      %v2599 = vsel %vm446, %v2551, %v2128
      %v2601 = vsel %vm446, %v2554, %v2130
      %v2603 = vsel %vm446, %v2557, %v2132
      %v2605 = vsel %vm446, %v2560, %v2134
      %v2607 = vsel %vm446, %v2563, %v2136
      %v2609 = vsel %vm446, %v2566, %v2138
      %v2611 = vsel %vm446, %v2569, %v2140
      %v2613 = vsel %vm446, %v2572, %v2142
      %v2615 = vsel %vm446, %v2575, %v2144
      %v2617 = vsel %vm446, %v2578, %v2146
      %v2619 = vsel %vm446, %v2581, %v2148
      %v2621 = vsel %vm446, %v2584, %v2150
      %v2623 = vsel %vm446, %v2587, %v2152
      %v2625 = vsel %vm446, %v2590, %v2154
      %v2627 = vsel %vm446, %v2593, %v2156
      %vm2628 = vcmask 195584
      %v2630 = vsel %vm2628, %v2595, %v2175
      %v2632 = vsel %vm2628, %v2597, %v2177
      %v2634 = vsel %vm2628, %v2599, %v2179
      %v2636 = vsel %vm2628, %v2601, %v2181
      %v2638 = vsel %vm2628, %v2603, %v2183
      %v2640 = vsel %vm2628, %v2605, %v2185
      %v2642 = vsel %vm2628, %v2607, %v2187
      %v2644 = vsel %vm2628, %v2609, %v2189
      %v2646 = vsel %vm2628, %v2611, %v2191
      %v2648 = vsel %vm2628, %v2613, %v2193
      %v2650 = vsel %vm2628, %v2615, %v2195
      %v2652 = vsel %vm2628, %v2617, %v2197
      %v2654 = vsel %vm2628, %v2619, %v2199
      %v2656 = vsel %vm2628, %v2621, %v2201
      %v2658 = vsel %vm2628, %v2623, %v2203
      %v2660 = vsel %vm2628, %v2625, %v2205
      %v2662 = vsel %vm2628, %v2627, %v2207
      %vm2663 = vcmask 261120
      %v2665 = vsel %vm2663, %v2630, %v2233
      %v2667 = vsel %vm2663, %v2632, %v2235
      %v2669 = vsel %vm2663, %v2634, %v2237
      %v2671 = vsel %vm2663, %v2636, %v2239
      %v2673 = vsel %vm2663, %v2638, %v2241
      %v2675 = vsel %vm2663, %v2640, %v2243
      %v2677 = vsel %vm2663, %v2642, %v2245
      %v2679 = vsel %vm2663, %v2644, %v2247
      %v2681 = vsel %vm2663, %v2646, %v2249
      %v2683 = vsel %vm2663, %v2648, %v2251
      %v2685 = vsel %vm2663, %v2650, %v2253
      %v2687 = vsel %vm2663, %v2652, %v2255
      %v2689 = vsel %vm2663, %v2654, %v2257
      %v2691 = vsel %vm2663, %v2656, %v2259
      %v2693 = vsel %vm2663, %v2658, %v2261
      %v2695 = vsel %vm2663, %v2660, %v2263
      %v2697 = vsel %vm2663, %v2662, %v2265
      %vm2698 = vcmask 326656
      %v2700 = vsel %vm2698, %v2665, %v2317
      %v2702 = vsel %vm2698, %v2667, %v2319
      %v2704 = vsel %vm2698, %v2669, %v2321
      %v2706 = vsel %vm2698, %v2671, %v2323
      %v2708 = vsel %vm2698, %v2673, %v2325
      %v2710 = vsel %vm2698, %v2675, %v2327
      %v2712 = vsel %vm2698, %v2677, %v2329
      %v2714 = vsel %vm2698, %v2679, %v2331
      %v2716 = vsel %vm2698, %v2681, %v2333
      %v2718 = vsel %vm2698, %v2683, %v2335
      %v2720 = vsel %vm2698, %v2685, %v2337
      %v2722 = vsel %vm2698, %v2687, %v2339
      %v2724 = vsel %vm2698, %v2689, %v2341
      %v2726 = vsel %vm2698, %v2691, %v2343
      %v2728 = vsel %vm2698, %v2693, %v2345
      %v2730 = vsel %vm2698, %v2695, %v2347
      %v2732 = vsel %vm2698, %v2697, %v2349
      %vm2733 = vcmask 392192
      %v2735 = vsel %vm2733, %v2700, %v2368
      %v2737 = vsel %vm2733, %v2702, %v2370
      %v2739 = vsel %vm2733, %v2704, %v2372
      %v2741 = vsel %vm2733, %v2706, %v2374
      %v2743 = vsel %vm2733, %v2708, %v2376
      %v2745 = vsel %vm2733, %v2710, %v2378
      %v2747 = vsel %vm2733, %v2712, %v2380
      %v2749 = vsel %vm2733, %v2714, %v2382
      %v2751 = vsel %vm2733, %v2716, %v2384
      %v2753 = vsel %vm2733, %v2718, %v2386
      %v2755 = vsel %vm2733, %v2720, %v2388
      %v2757 = vsel %vm2733, %v2722, %v2390
      %v2759 = vsel %vm2733, %v2724, %v2392
      %v2761 = vsel %vm2733, %v2726, %v2394
      %v2763 = vsel %vm2733, %v2728, %v2396
      %v2765 = vsel %vm2733, %v2730, %v2398
      %v2767 = vsel %vm2733, %v2732, %v2400
      %vm2768 = vcmask 457728
      %v2770 = vsel %vm2768, %v2735, %v2426
      %v2772 = vsel %vm2768, %v2737, %v2428
      %v2774 = vsel %vm2768, %v2739, %v2430
      %v2776 = vsel %vm2768, %v2741, %v2432
      %v2778 = vsel %vm2768, %v2743, %v2434
      %v2780 = vsel %vm2768, %v2745, %v2436
      %v2782 = vsel %vm2768, %v2747, %v2438
      %v2784 = vsel %vm2768, %v2749, %v2440
      %v2786 = vsel %vm2768, %v2751, %v2442
      %v2788 = vsel %vm2768, %v2753, %v2444
      %v2790 = vsel %vm2768, %v2755, %v2446
      %v2792 = vsel %vm2768, %v2757, %v2448
      %v2794 = vsel %vm2768, %v2759, %v2450
      %v2796 = vsel %vm2768, %v2761, %v2452
      %v2798 = vsel %vm2768, %v2763, %v2454
      %v2800 = vsel %vm2768, %v2765, %v2456
      %v2802 = vsel %vm2768, %v2767, %v2458
      %vm2803 = vcmask 523264
      %v2805 = vsel %vm2803, %v2770, %v2510
      %v2807 = vsel %vm2803, %v2772, %v2512
      %v2809 = vsel %vm2803, %v2774, %v2514
      %v2811 = vsel %vm2803, %v2776, %v2516
      %v2813 = vsel %vm2803, %v2778, %v2518
      %v2815 = vsel %vm2803, %v2780, %v2520
      %v2817 = vsel %vm2803, %v2782, %v2522
      %v2819 = vsel %vm2803, %v2784, %v2524
      %v2821 = vsel %vm2803, %v2786, %v2526
      %v2823 = vsel %vm2803, %v2788, %v2528
      %v2825 = vsel %vm2803, %v2790, %v2530
      %v2827 = vsel %vm2803, %v2792, %v2532
      %v2829 = vsel %vm2803, %v2794, %v2534
      %v2831 = vsel %vm2803, %v2796, %v2536
      %v2833 = vsel %vm2803, %v2798, %v2538
      %v2835 = vsel %vm2803, %v2800, %v2540
      %v2837 = vsel %vm2803, %v2802, %v2542
      %v2838 = vld [vmem:[%s1] sm:$0xf]
      %v2839 = vld [vmem:[%s1 + $0x4] sm:$0xf]
      %v2840 = vld [vmem:[%s1 + $0x8] sm:$0xf]
      %v2841 = vld [vmem:[%s1 + $0xc] sm:$0xf]
      %v2842 = vld [vmem:[%s1 + $0x10] sm:$0xf]
      %v2843 = vld [vmem:[%s1 + $0x14] sm:$0xf]
      %v2844 = vld [vmem:[%s1 + $0x18] sm:$0xf]
      %v2845 = vld [vmem:[%s1 + $0x1c] sm:$0xf]
      %v2846 = vld [vmem:[%s1 + $0x20] sm:$0xf]
      %v2847 = vld [vmem:[%s2] sm:$0x1]
      %v2849 = vlaneseq
      %v2850 = vshrl.u32 %v2849, 7
      %v2851 = vsub.s32 0, %v2850
      %v2852 = vrot.slane %v2847, %v2851
      %v2854 = vshrl.u32 %v2805, 16
      %v2856 = vrot.slane %v2854, 3
      %v2857 = vshll.u32 %v2805, 16
      %v2859 = vrot.slane %v2857, 4
      %v2860 = vor.u32 %v2856, %v2859
      %v2861 = vshrl.u32 %v2807, 16
      %v2863 = vrot.slane %v2861, 3
      %v2864 = vshll.u32 %v2807, 16
      %v2866 = vrot.slane %v2864, 4
      %v2867 = vor.u32 %v2863, %v2866
      %v2868 = vsel %vm1646, %v2860, %v2867
      %v2869 = vshrl.u32 %v2809, 16
      %v2871 = vrot.slane %v2869, 3
      %v2872 = vshll.u32 %v2809, 16
      %v2874 = vrot.slane %v2872, 4
      %v2875 = vor.u32 %v2871, %v2874
      %v2876 = vsel %vm1646, %v2867, %v2875
      %v2877 = vshrl.u32 %v2811, 16
      %v2879 = vrot.slane %v2877, 3
      %v2880 = vshll.u32 %v2811, 16
      %v2882 = vrot.slane %v2880, 4
      %v2883 = vor.u32 %v2879, %v2882
      %v2884 = vsel %vm1646, %v2875, %v2883
      %v2885 = vshrl.u32 %v2813, 16
      %v2887 = vrot.slane %v2885, 3
      %v2888 = vshll.u32 %v2813, 16
      %v2890 = vrot.slane %v2888, 4
      %v2891 = vor.u32 %v2887, %v2890
      %v2892 = vsel %vm1646, %v2883, %v2891
      %v2893 = vshrl.u32 %v2815, 16
      %v2895 = vrot.slane %v2893, 3
      %v2896 = vshll.u32 %v2815, 16
      %v2898 = vrot.slane %v2896, 4
      %v2899 = vor.u32 %v2895, %v2898
      %v2900 = vsel %vm1646, %v2891, %v2899
      %v2901 = vshrl.u32 %v2817, 16
      %v2903 = vrot.slane %v2901, 3
      %v2904 = vshll.u32 %v2817, 16
      %v2906 = vrot.slane %v2904, 4
      %v2907 = vor.u32 %v2903, %v2906
      %v2908 = vsel %vm1646, %v2899, %v2907
      %v2909 = vshrl.u32 %v2819, 16
      %v2911 = vrot.slane %v2909, 3
      %v2912 = vshll.u32 %v2819, 16
      %v2914 = vrot.slane %v2912, 4
      %v2915 = vor.u32 %v2911, %v2914
      %v2916 = vsel %vm1646, %v2907, %v2915
      %v2917 = vshrl.u32 %v2821, 16
      %v2919 = vrot.slane %v2917, 3
      %v2920 = vshll.u32 %v2821, 16
      %v2922 = vrot.slane %v2920, 4
      %v2923 = vor.u32 %v2919, %v2922
      %v2924 = vsel %vm1646, %v2915, %v2923
      %v2925 = vshrl.u32 %v2823, 16
      %v2927 = vrot.slane %v2925, 3
      %v2928 = vshll.u32 %v2823, 16
      %v2930 = vrot.slane %v2928, 4
      %v2931 = vor.u32 %v2927, %v2930
      %v2932 = vsel %vm1646, %v2923, %v2931
      %v2933 = vshrl.u32 %v2825, 16
      %v2935 = vrot.slane %v2933, 3
      %v2936 = vshll.u32 %v2825, 16
      %v2938 = vrot.slane %v2936, 4
      %v2939 = vor.u32 %v2935, %v2938
      %v2940 = vsel %vm1646, %v2931, %v2939
      %v2941 = vshrl.u32 %v2827, 16
      %v2943 = vrot.slane %v2941, 3
      %v2944 = vshll.u32 %v2827, 16
      %v2946 = vrot.slane %v2944, 4
      %v2947 = vor.u32 %v2943, %v2946
      %v2948 = vsel %vm1646, %v2939, %v2947
      %v2949 = vshrl.u32 %v2829, 16
      %v2951 = vrot.slane %v2949, 3
      %v2952 = vshll.u32 %v2829, 16
      %v2954 = vrot.slane %v2952, 4
      %v2955 = vor.u32 %v2951, %v2954
      %v2956 = vsel %vm1646, %v2947, %v2955
      %v2957 = vshrl.u32 %v2831, 16
      %v2959 = vrot.slane %v2957, 3
      %v2960 = vshll.u32 %v2831, 16
      %v2962 = vrot.slane %v2960, 4
      %v2963 = vor.u32 %v2959, %v2962
      %v2964 = vsel %vm1646, %v2955, %v2963
      %v2965 = vshrl.u32 %v2833, 16
      %v2967 = vrot.slane %v2965, 3
      %v2968 = vshll.u32 %v2833, 16
      %v2970 = vrot.slane %v2968, 4
      %v2971 = vor.u32 %v2967, %v2970
      %v2972 = vsel %vm1646, %v2963, %v2971
      %v2973 = vshrl.u32 %v2835, 16
      %v2975 = vrot.slane %v2973, 3
      %v2976 = vshll.u32 %v2835, 16
      %v2978 = vrot.slane %v2976, 4
      %v2979 = vor.u32 %v2975, %v2978
      %v2980 = vsel %vm1646, %v2971, %v2979
      %v2981 = vshrl.u32 %v2837, 16
      %v2983 = vrot.slane %v2981, 3
      %v2984 = vshll.u32 %v2837, 16
      %v2986 = vrot.slane %v2984, 4
      %v2987 = vor.u32 %v2983, %v2986
      %v2988 = vsel %vm1646, %v2979, %v2987
      %v2998 = vunpack.c.l.b16 %v2838
      %v2999 = vunpack.c.l.b16 %v2839
      %v3000 = vunpack.c.l.b16 %v2840
      %v3001 = vunpack.c.l.b16 %v2841
      %v3002 = vunpack.c.l.b16 %v2842
      %v3003 = vunpack.c.l.b16 %v2843
      %v3004 = vunpack.c.l.b16 %v2844
      %v3005 = vunpack.c.l.b16 %v2845
      %v3006 = vunpack.c.l.b16 %v2846
      %v3007 = vpack.c.b16 %v2999, %v2998
      %v3008 = vpack.c.b16 %v3001, %v3000
      %v3009 = vpack.c.b16 %v3003, %v3002
      %v3010 = vpack.c.b16 %v3005, %v3004
      %v3011 = vpack.c.b16 %v3006, %v3006
      %vm3016 = vcmask 588800
      %v3018 = vsel %vm3016, %v2868, 0
      %v3021 = vsel %vm3016, %v2876, 0
      %v3024 = vsel %vm3016, %v2884, 0
      %v3027 = vsel %vm3016, %v2892, 0
      %v3030 = vsel %vm3016, %v2900, 0
      %v3033 = vsel %vm3016, %v2908, 0
      %v3036 = vsel %vm3016, %v2916, 0
      %v3039 = vsel %vm3016, %v2924, 0
      %v3042 = vsel %vm3016, %v2932, 0
      %v3045 = vsel %vm3016, %v2940, 0
      %v3048 = vsel %vm3016, %v2948, 0
      %v3051 = vsel %vm3016, %v2956, 0
      %v3054 = vsel %vm3016, %v2964, 0
      %v3057 = vsel %vm3016, %v2972, 0
      %v3060 = vsel %vm3016, %v2980, 0
      %v3063 = vsel %vm3016, %v2988, 0
      %vm3065 = vcmask 1043456
      %v3067 = vsel %vm3065, %v3011, 0
      %3069 = vmatprep.subr.bf16.mxu0 0
      %3070 = vmatpush1.bf16.msra.mxu0 %v3007
      %3071 = vmatprep.subr.bf16.mxu0 0
      %3072 = vmatpush1.bf16.msra.mxu0 %v3008
      %3073 = vmatprep.subr.bf16.mxu0 0
      %3074 = vmatpush1.bf16.msra.mxu0 %v3009
      %3075 = vmatprep.subr.bf16.mxu0 0
      %3076 = vmatpush1.bf16.msra.mxu0 %v3010
      %3077 = vmatprep.subr.bf16.mxu0 0
      %3078 = vmatpush1.bf16.msra.mxu0 %v3067
      %3079 = vmatprep.subr.bf16.mxu0 0
      %3080 = vmatpush1.bf16.msra.mxu0 0
      %3081 = vmatprep.subr.bf16.mxu0 0
      %3082 = vmatpush1.bf16.msra.mxu0 0
      %3083 = vmatprep.subr.bf16.mxu0 0
      %3084 = vmatpush1.bf16.msra.mxu0 0
      %3085 = vmatprep.subr.bf16.mxu0 0
      %3086 = vmatpush1.bf16.msra.mxu0 0
      %3087 = vmatprep.subr.bf16.mxu0 0
      %3088 = vmatpush1.bf16.msra.mxu0 0
      %3089 = vmatprep.subr.bf16.mxu0 0
      %3090 = vmatpush1.bf16.msra.mxu0 0
      %3091 = vmatprep.subr.bf16.mxu0 0
      %3092 = vmatpush1.bf16.msra.mxu0 0
      %3093 = vmatprep.subr.bf16.mxu0 0
      %3094 = vmatpush1.bf16.msra.mxu0 0
      %3095 = vmatprep.subr.bf16.mxu0 0
      %3096 = vmatpush1.bf16.msra.mxu0 0
      %3097 = vmatprep.subr.bf16.mxu0 0
      %3098 = vmatpush1.bf16.msra.mxu0 0
      %3099 = vmatprep.subr.bf16.mxu0 0
      %3100 = vmatpush1.bf16.msra.mxu0 0
      %3101 = vmatprep.mubr.bf16.mxu0 0
      %3102 = vmatmul.mubr.bf16.gmra.mrb[0].mxu0 %v3018
      %v3103 = vpop.f32.mrb[0].mxu0
      %v3104 = vadd.f32 %v2852, %v3103
      %v3105 = vpop.f32.mrb[0].mxu0
      %v3106 = vpop.f32.mrb[0].mxu0
      %v3107 = vadd.f32 %v2852, %v3106
      %v3108 = vpop.f32.mrb[0].mxu0
      %3109 = vmatprep.mubr.bf16.mxu0 0
      %3110 = vmatmul.mubr.bf16.gmra.mrb[0].mxu0 %v3021
      %v3111 = vpop.f32.mrb[0].mxu0
      %v3112 = vadd.f32 %v2852, %v3111
      %v3113 = vpop.f32.mrb[0].mxu0
      %v3114 = vpop.f32.mrb[0].mxu0
      %v3115 = vadd.f32 %v2852, %v3114
      %v3116 = vpop.f32.mrb[0].mxu0
      %3117 = vmatprep.mubr.bf16.mxu0 0
      %3118 = vmatmul.mubr.bf16.gmra.mrb[0].mxu0 %v3024
      %v3119 = vpop.f32.mrb[0].mxu0
      %v3120 = vadd.f32 %v2852, %v3119
      %v3121 = vpop.f32.mrb[0].mxu0
      %v3122 = vpop.f32.mrb[0].mxu0
      %v3123 = vadd.f32 %v2852, %v3122
      %v3124 = vpop.f32.mrb[0].mxu0
      %3125 = vmatprep.mubr.bf16.mxu0 0
      %3126 = vmatmul.mubr.bf16.gmra.mrb[0].mxu0 %v3027
      %v3127 = vpop.f32.mrb[0].mxu0
      %v3128 = vadd.f32 %v2852, %v3127
      %v3129 = vpop.f32.mrb[0].mxu0
      %v3130 = vpop.f32.mrb[0].mxu0
      %v3131 = vadd.f32 %v2852, %v3130
      %v3132 = vpop.f32.mrb[0].mxu0
      %3133 = vmatprep.mubr.bf16.mxu0 0
      %3134 = vmatmul.mubr.bf16.gmra.mrb[0].mxu0 %v3030
      %v3135 = vpop.f32.mrb[0].mxu0
      %v3136 = vadd.f32 %v2852, %v3135
      %v3137 = vpop.f32.mrb[0].mxu0
      %v3138 = vpop.f32.mrb[0].mxu0
      %v3139 = vadd.f32 %v2852, %v3138
      %v3140 = vpop.f32.mrb[0].mxu0
      %3141 = vmatprep.mubr.bf16.mxu0 0
      %3142 = vmatmul.mubr.bf16.gmra.mrb[0].mxu0 %v3033
      %v3143 = vpop.f32.mrb[0].mxu0
      %v3144 = vadd.f32 %v2852, %v3143
      %v3145 = vpop.f32.mrb[0].mxu0
      %v3146 = vpop.f32.mrb[0].mxu0
      %v3147 = vadd.f32 %v2852, %v3146
      %v3148 = vpop.f32.mrb[0].mxu0
      %3149 = vmatprep.mubr.bf16.mxu0 0
      %3150 = vmatmul.mubr.bf16.gmra.mrb[0].mxu0 %v3036
      %v3151 = vpop.f32.mrb[0].mxu0
      %v3152 = vadd.f32 %v2852, %v3151
      %v3153 = vpop.f32.mrb[0].mxu0
      %v3154 = vpop.f32.mrb[0].mxu0
      %v3155 = vadd.f32 %v2852, %v3154
      %v3156 = vpop.f32.mrb[0].mxu0
      %3157 = vmatprep.mubr.bf16.mxu0 0
      %3158 = vmatmul.mubr.bf16.gmra.mrb[0].mxu0 %v3039
      %v3159 = vpop.f32.mrb[0].mxu0
      %v3160 = vadd.f32 %v2852, %v3159
      %v3161 = vpop.f32.mrb[0].mxu0
      %v3162 = vpop.f32.mrb[0].mxu0
      %v3163 = vadd.f32 %v2852, %v3162
      %v3164 = vpop.f32.mrb[0].mxu0
      %3165 = vmatprep.mubr.bf16.mxu0 0
      %3166 = vmatmul.mubr.bf16.gmra.mrb[0].mxu0 %v3042
      %v3167 = vpop.f32.mrb[0].mxu0
      %v3168 = vadd.f32 %v2852, %v3167
      %v3169 = vpop.f32.mrb[0].mxu0
      %v3170 = vpop.f32.mrb[0].mxu0
      %v3171 = vadd.f32 %v2852, %v3170
      %v3172 = vpop.f32.mrb[0].mxu0
      %3173 = vmatprep.mubr.bf16.mxu0 0
      %3174 = vmatmul.mubr.bf16.gmra.mrb[0].mxu0 %v3045
      %v3175 = vpop.f32.mrb[0].mxu0
      %v3176 = vadd.f32 %v2852, %v3175
      %v3177 = vpop.f32.mrb[0].mxu0
      %v3178 = vpop.f32.mrb[0].mxu0
      %v3179 = vadd.f32 %v2852, %v3178
      %v3180 = vpop.f32.mrb[0].mxu0
      %3181 = vmatprep.mubr.bf16.mxu0 0
      %3182 = vmatmul.mubr.bf16.gmra.mrb[0].mxu0 %v3048
      %v3183 = vpop.f32.mrb[0].mxu0
      %v3184 = vadd.f32 %v2852, %v3183
      %v3185 = vpop.f32.mrb[0].mxu0
      %v3186 = vpop.f32.mrb[0].mxu0
      %v3187 = vadd.f32 %v2852, %v3186
      %v3188 = vpop.f32.mrb[0].mxu0
      %3189 = vmatprep.mubr.bf16.mxu0 0
      %3190 = vmatmul.mubr.bf16.gmra.mrb[0].mxu0 %v3051
      %v3191 = vpop.f32.mrb[0].mxu0
      %v3192 = vadd.f32 %v2852, %v3191
      %v3193 = vpop.f32.mrb[0].mxu0
      %v3194 = vpop.f32.mrb[0].mxu0
      %v3195 = vadd.f32 %v2852, %v3194
      %v3196 = vpop.f32.mrb[0].mxu0
      %3197 = vmatprep.mubr.bf16.mxu0 0
      %3198 = vmatmul.mubr.bf16.gmra.mrb[0].mxu0 %v3054
      %v3199 = vpop.f32.mrb[0].mxu0
      %v3200 = vadd.f32 %v2852, %v3199
      %v3201 = vpop.f32.mrb[0].mxu0
      %v3202 = vpop.f32.mrb[0].mxu0
      %v3203 = vadd.f32 %v2852, %v3202
      %v3204 = vpop.f32.mrb[0].mxu0
      %3205 = vmatprep.mubr.bf16.mxu0 0
      %3206 = vmatmul.mubr.bf16.gmra.mrb[0].mxu0 %v3057
      %v3207 = vpop.f32.mrb[0].mxu0
      %v3208 = vadd.f32 %v2852, %v3207
      %v3209 = vpop.f32.mrb[0].mxu0
      %v3210 = vpop.f32.mrb[0].mxu0
      %v3211 = vadd.f32 %v2852, %v3210
      %v3212 = vpop.f32.mrb[0].mxu0
      %3213 = vmatprep.mubr.bf16.mxu0 0
      %3214 = vmatmul.mubr.bf16.gmra.mrb[0].mxu0 %v3060
      %v3215 = vpop.f32.mrb[0].mxu0
      %v3216 = vadd.f32 %v2852, %v3215
      %v3217 = vpop.f32.mrb[0].mxu0
      %v3218 = vpop.f32.mrb[0].mxu0
      %v3219 = vadd.f32 %v2852, %v3218
      %v3220 = vpop.f32.mrb[0].mxu0
      %3221 = vmatprep.mubr.bf16.mxu0 0
      %3222 = vmatmul.mubr.bf16.gmra.mrb[0].mxu0 %v3063
      %v3223 = vpop.f32.mrb[0].mxu0
      %v3224 = vadd.f32 %v2852, %v3223
      %v3225 = vpop.f32.mrb[0].mxu0
      %v3226 = vpop.f32.mrb[0].mxu0
      %v3227 = vadd.f32 %v2852, %v3226
      %v3228 = vpop.f32.mrb[0].mxu0
      %3229 = vdwg.mxu0
      %v3230 = vmax.f32 %v3104, 0.0
      %v3231 = vmax.f32 %v3107, 0.0
      %v3232 = vmax.f32 %v3112, 0.0
      %v3233 = vmax.f32 %v3115, 0.0
      %v3234 = vmax.f32 %v3120, 0.0
      %v3235 = vmax.f32 %v3123, 0.0
      %v3236 = vmax.f32 %v3128, 0.0
      %v3237 = vmax.f32 %v3131, 0.0
      %v3238 = vmax.f32 %v3136, 0.0
      %v3239 = vmax.f32 %v3139, 0.0
      %v3240 = vmax.f32 %v3144, 0.0
      %v3241 = vmax.f32 %v3147, 0.0
      %v3242 = vmax.f32 %v3152, 0.0
      %v3243 = vmax.f32 %v3155, 0.0
      %v3244 = vmax.f32 %v3160, 0.0
      %v3245 = vmax.f32 %v3163, 0.0
      %v3246 = vmax.f32 %v3168, 0.0
      %v3247 = vmax.f32 %v3171, 0.0
      %v3248 = vmax.f32 %v3176, 0.0
      %v3249 = vmax.f32 %v3179, 0.0
      %v3250 = vmax.f32 %v3184, 0.0
      %v3251 = vmax.f32 %v3187, 0.0
      %v3252 = vmax.f32 %v3192, 0.0
      %v3253 = vmax.f32 %v3195, 0.0
      %v3254 = vmax.f32 %v3200, 0.0
      %v3255 = vmax.f32 %v3203, 0.0
      %v3256 = vmax.f32 %v3208, 0.0
      %v3257 = vmax.f32 %v3211, 0.0
      %v3258 = vmax.f32 %v3216, 0.0
      %v3259 = vmax.f32 %v3219, 0.0
      %v3260 = vmax.f32 %v3224, 0.0
      %v3261 = vmax.f32 %v3227, 0.0
      %v3262 = vpack.c.bf16 %v3231, %v3230
      %v3263 = vpack.c.bf16 %v3233, %v3232
      %v3264 = vpack.c.bf16 %v3235, %v3234
      %v3265 = vpack.c.bf16 %v3237, %v3236
      %v3266 = vpack.c.bf16 %v3239, %v3238
      %v3267 = vpack.c.bf16 %v3241, %v3240
      %v3268 = vpack.c.bf16 %v3243, %v3242
      %v3269 = vpack.c.bf16 %v3245, %v3244
      %v3270 = vpack.c.bf16 %v3247, %v3246
      %v3271 = vpack.c.bf16 %v3249, %v3248
      %v3272 = vpack.c.bf16 %v3251, %v3250
      %v3273 = vpack.c.bf16 %v3253, %v3252
      %v3274 = vpack.c.bf16 %v3255, %v3254
      %v3275 = vpack.c.bf16 %v3257, %v3256
      %v3276 = vpack.c.bf16 %v3259, %v3258
      %v3277 = vpack.c.bf16 %v3261, %v3260
      %vm3294 = vcmask 1043456
      %v3295 = vrot.slane %v3262, 4
      %v3296 = vrot.slane %v3263, 4
      %v3297 = vsel %vm3294, %v3295, %v3296
      %v3298 = vrot.slane %v3264, 4
      %v3299 = vsel %vm3294, %v3296, %v3298
      %v3300 = vrot.slane %v3265, 4
      %v3301 = vsel %vm3294, %v3298, %v3300
      %v3302 = vrot.slane %v3266, 4
      %v3303 = vsel %vm3294, %v3300, %v3302
      %v3304 = vrot.slane %v3267, 4
      %v3305 = vsel %vm3294, %v3302, %v3304
      %v3306 = vrot.slane %v3268, 4
      %v3307 = vsel %vm3294, %v3304, %v3306
      %v3308 = vrot.slane %v3269, 4
      %v3309 = vsel %vm3294, %v3306, %v3308
      %v3310 = vrot.slane %v3270, 4
      %v3311 = vsel %vm3294, %v3308, %v3310
      %v3312 = vrot.slane %v3271, 4
      %v3313 = vsel %vm3294, %v3310, %v3312
      %v3314 = vrot.slane %v3272, 4
      %v3315 = vsel %vm3294, %v3312, %v3314
      %v3316 = vrot.slane %v3273, 4
      %v3317 = vsel %vm3294, %v3314, %v3316
      %v3318 = vrot.slane %v3274, 4
      %v3319 = vsel %vm3294, %v3316, %v3318
      %v3320 = vrot.slane %v3275, 4
      %v3321 = vsel %vm3294, %v3318, %v3320
      %v3322 = vrot.slane %v3276, 4
      %v3323 = vsel %vm3294, %v3320, %v3322
      %v3324 = vrot.slane %v3277, 4
      %v3325 = vsel %vm3294, %v3322, %v3324
      %3343 = vst.msk [vmem:[#allocation2 + $0x8] sm:$0xf0] %vm1077, %v3295
      %3344 = vst.msk [vmem:[#allocation2 + $0x10] sm:$0xff] %vm1079, %v3297
      %3345 = vst.msk [vmem:[#allocation2 + $0x18] sm:$0xff] %vm1079, %v3299
      %3346 = vst.msk [vmem:[#allocation2 + $0x20] sm:$0xff] %vm1079, %v3301
      %3347 = vst.msk [vmem:[#allocation2 + $0x28] sm:$0xff] %vm1079, %v3303
      %3348 = vst.msk [vmem:[#allocation2 + $0x30] sm:$0xff] %vm1079, %v3305
      %3349 = vst.msk [vmem:[#allocation2 + $0x38] sm:$0xff] %vm1079, %v3307
      %3350 = vst.msk [vmem:[#allocation2 + $0x40] sm:$0xff] %vm1079, %v3309
      %3351 = vst.msk [vmem:[#allocation2 + $0x48] sm:$0xff] %vm1079, %v3311
      %3352 = vst.msk [vmem:[#allocation2 + $0x50] sm:$0xff] %vm1079, %v3313
      %3353 = vst.msk [vmem:[#allocation2 + $0x58] sm:$0xff] %vm1079, %v3315
      %3354 = vst.msk [vmem:[#allocation2 + $0x60] sm:$0xff] %vm1079, %v3317
      %3355 = vst.msk [vmem:[#allocation2 + $0x68] sm:$0xff] %vm1079, %v3319
      %3356 = vst.msk [vmem:[#allocation2 + $0x70] sm:$0xff] %vm1079, %v3321
      %3357 = vst.msk [vmem:[#allocation2 + $0x78] sm:$0xff] %vm1079, %v3323
      %3358 = vst.msk [vmem:[#allocation2 + $0x80] sm:$0xff] %vm1079, %v3325
      %3359 = vst.msk [vmem:[#allocation2 + $0x88] sm:$0xf] %vm1095, %v3324
      %v3360 = vld [vmem:[#allocation2] sm:$0xf8]
      %v3361 = vld [vmem:[#allocation2 + $0x8] sm:$0xff]
      %v3362 = vld [vmem:[#allocation2 + $0x10] sm:$0xff]
      %v3363 = vld [vmem:[#allocation2 + $0x18] sm:$0xff]
      %v3364 = vld [vmem:[#allocation2 + $0x20] sm:$0xff]
      %v3365 = vld [vmem:[#allocation2 + $0x28] sm:$0xff]
      %v3366 = vld [vmem:[#allocation2 + $0x30] sm:$0xff]
      %v3367 = vld [vmem:[#allocation2 + $0x38] sm:$0xff]
      %v3368 = vld [vmem:[#allocation2 + $0x40] sm:$0xff]
      %v3369 = vld [vmem:[#allocation2 + $0x48] sm:$0xff]
      %v3370 = vld [vmem:[#allocation2 + $0x50] sm:$0xff]
      %v3371 = vld [vmem:[#allocation2 + $0x58] sm:$0xff]
      %v3372 = vld [vmem:[#allocation2 + $0x60] sm:$0xff]
      %v3373 = vld [vmem:[#allocation2 + $0x68] sm:$0xff]
      %v3374 = vld [vmem:[#allocation2 + $0x70] sm:$0xff]
      %v3375 = vld [vmem:[#allocation2 + $0x78] sm:$0xff]
      %v3376 = vld [vmem:[#allocation2 + $0x80] sm:$0xf]
      %v3377 = vsel %vm1434, %v3360, 0
      %v3378 = vsel %vm1435, %v3361, 0
      %v3379 = vsel %vm1436, %v3362, 0
      %v3380 = vsel %vm1437, %v3363, 0
      %v3381 = vsel %vm1438, %v3364, 0
      %v3382 = vsel %vm1439, %v3365, 0
      %v3383 = vsel %vm1440, %v3366, 0
      %v3384 = vsel %vm1441, %v3367, 0
      %v3385 = vsel %vm1442, %v3368, 0
      %v3386 = vsel %vm1443, %v3369, 0
      %v3387 = vsel %vm1444, %v3370, 0
      %v3388 = vsel %vm1445, %v3371, 0
      %v3389 = vsel %vm1446, %v3372, 0
      %v3390 = vsel %vm1447, %v3373, 0
      %v3391 = vsel %vm1448, %v3374, 0
      %v3392 = vsel %vm1449, %v3375, 0
      %v3393 = vsel %vm1450, %v3376, 0
      %v3394 = vld [vmem:[#allocation2] sm:$0xf0]
      %v3395 = vld [vmem:[#allocation2 + $0x80] sm:$0x1f]
      %v3396 = vsel %vm1790, %v3394, 0
      %v3397 = vsel %vm1791, %v3361, 0
      %v3398 = vsel %vm1792, %v3362, 0
      %v3399 = vsel %vm1793, %v3363, 0
      %v3400 = vsel %vm1794, %v3364, 0
      %v3401 = vsel %vm1795, %v3365, 0
      %v3402 = vsel %vm1796, %v3366, 0
      %v3403 = vsel %vm1797, %v3367, 0
      %v3404 = vsel %vm1798, %v3368, 0
      %v3405 = vsel %vm1799, %v3369, 0
      %v3406 = vsel %vm1800, %v3370, 0
      %v3407 = vsel %vm1801, %v3371, 0
      %v3408 = vsel %vm1802, %v3372, 0
      %v3409 = vsel %vm1803, %v3373, 0
      %v3410 = vsel %vm1804, %v3374, 0
      %v3411 = vsel %vm1805, %v3375, 0
      %v3412 = vsel %vm1806, %v3395, 0
      %v3413 = vld [vmem:[#allocation2 + $0x8] sm:$0xf8]
      %v3414 = vld [vmem:[#allocation2 + $0x80] sm:$0xff]
      %v3415 = vld [vmem:[#allocation2 + $0x88] sm:$0xf]
      %v3416 = vsel %vm1434, %v3413, 0
      %v3417 = vsel %vm1435, %v3362, 0
      %v3418 = vsel %vm1436, %v3363, 0
      %v3419 = vsel %vm1437, %v3364, 0
      %v3420 = vsel %vm1438, %v3365, 0
      %v3421 = vsel %vm1439, %v3366, 0
      %v3422 = vsel %vm1440, %v3367, 0
      %v3423 = vsel %vm1441, %v3368, 0
      %v3424 = vsel %vm1442, %v3369, 0
      %v3425 = vsel %vm1443, %v3370, 0
      %v3426 = vsel %vm1444, %v3371, 0
      %v3427 = vsel %vm1445, %v3372, 0
      %v3428 = vsel %vm1446, %v3373, 0
      %v3429 = vsel %vm1447, %v3374, 0
      %v3430 = vsel %vm1448, %v3375, 0
      %v3431 = vsel %vm1449, %v3414, 0
      %v3432 = vsel %vm1450, %v3415, 0
      %v3433 = vld [vmem:[#allocation2 + $0x8] sm:$0xf0]
      %v3434 = vld [vmem:[#allocation2 + $0x88] sm:$0x1f]
      %v3435 = vsel %vm1790, %v3433, 0
      %v3436 = vsel %vm1791, %v3362, 0
      %v3437 = vsel %vm1792, %v3363, 0
      %v3438 = vsel %vm1793, %v3364, 0
      %v3439 = vsel %vm1794, %v3365, 0
      %v3440 = vsel %vm1795, %v3366, 0
      %v3441 = vsel %vm1796, %v3367, 0
      %v3442 = vsel %vm1797, %v3368, 0
      %v3443 = vsel %vm1798, %v3369, 0
      %v3444 = vsel %vm1799, %v3370, 0
      %v3445 = vsel %vm1800, %v3371, 0
      %v3446 = vsel %vm1801, %v3372, 0
      %v3447 = vsel %vm1802, %v3373, 0
      %v3448 = vsel %vm1803, %v3374, 0
      %v3449 = vsel %vm1804, %v3375, 0
      %v3450 = vsel %vm1805, %v3414, 0
      %v3451 = vsel %vm1806, %v3434, 0
      %v3452 = vld [vmem:[#allocation2 + $0x10] sm:$0xf8]
      %v3453 = vld [vmem:[#allocation2 + $0x88] sm:$0xff]
      %v3454 = vld [vmem:[#allocation2 + $0x90] sm:$0xf]
      %v3455 = vsel %vm1434, %v3452, 0
      %v3456 = vsel %vm1435, %v3363, 0
      %v3457 = vsel %vm1436, %v3364, 0
      %v3458 = vsel %vm1437, %v3365, 0
      %v3459 = vsel %vm1438, %v3366, 0
      %v3460 = vsel %vm1439, %v3367, 0
      %v3461 = vsel %vm1440, %v3368, 0
      %v3462 = vsel %vm1441, %v3369, 0
      %v3463 = vsel %vm1442, %v3370, 0
      %v3464 = vsel %vm1443, %v3371, 0
      %v3465 = vsel %vm1444, %v3372, 0
      %v3466 = vsel %vm1445, %v3373, 0
      %v3467 = vsel %vm1446, %v3374, 0
      %v3468 = vsel %vm1447, %v3375, 0
      %v3469 = vsel %vm1448, %v3414, 0
      %v3470 = vsel %vm1449, %v3453, 0
      %v3471 = vsel %vm1450, %v3454, 0
      %v3472 = vld [vmem:[#allocation2 + $0x10] sm:$0xf0]
      %v3473 = vld [vmem:[#allocation2 + $0x90] sm:$0x1f]
      %v3474 = vsel %vm1790, %v3472, 0
      %v3475 = vsel %vm1791, %v3363, 0
      %v3476 = vsel %vm1792, %v3364, 0
      %v3477 = vsel %vm1793, %v3365, 0
      %v3478 = vsel %vm1794, %v3366, 0
      %v3479 = vsel %vm1795, %v3367, 0
      %v3480 = vsel %vm1796, %v3368, 0
      %v3481 = vsel %vm1797, %v3369, 0
      %v3482 = vsel %vm1798, %v3370, 0
      %v3483 = vsel %vm1799, %v3371, 0
      %v3484 = vsel %vm1800, %v3372, 0
      %v3485 = vsel %vm1801, %v3373, 0
      %v3486 = vsel %vm1802, %v3374, 0
      %v3487 = vsel %vm1803, %v3375, 0
      %v3488 = vsel %vm1804, %v3414, 0
      %v3489 = vsel %vm1805, %v3453, 0
      %v3490 = vsel %vm1806, %v3473, 0
      %v3492 = vshrl.u32 %v3394, 16
      %v3494 = vshll.u32 %v3394, 16
      %v3496 = vrot.slane %v3494, 1
      %v3497 = vor.u32 %v3492, %v3496
      %v3499 = vshll.u32 %v3361, 16
      %v3501 = vrot.slane %v3499, 1
      %v3502 = vsel %vm1902, %v3497, %v3501
      %v3503 = vshrl.u32 %v3361, 16
      %v3505 = vor.u32 %v3503, %v3501
      %v3507 = vshll.u32 %v3362, 16
      %v3509 = vrot.slane %v3507, 1
      %v3510 = vsel %vm1902, %v3505, %v3509
      %v3511 = vshrl.u32 %v3362, 16
      %v3513 = vor.u32 %v3511, %v3509
      %v3515 = vshll.u32 %v3363, 16
      %v3517 = vrot.slane %v3515, 1
      %v3518 = vsel %vm1902, %v3513, %v3517
      %v3519 = vshrl.u32 %v3363, 16
      %v3521 = vor.u32 %v3519, %v3517
      %v3523 = vshll.u32 %v3364, 16
      %v3525 = vrot.slane %v3523, 1
      %v3526 = vsel %vm1902, %v3521, %v3525
      %v3527 = vshrl.u32 %v3364, 16
      %v3529 = vor.u32 %v3527, %v3525
      %v3531 = vshll.u32 %v3365, 16
      %v3533 = vrot.slane %v3531, 1
      %v3534 = vsel %vm1902, %v3529, %v3533
      %v3535 = vshrl.u32 %v3365, 16
      %v3537 = vor.u32 %v3535, %v3533
      %v3539 = vshll.u32 %v3366, 16
      %v3541 = vrot.slane %v3539, 1
      %v3542 = vsel %vm1902, %v3537, %v3541
      %v3543 = vshrl.u32 %v3366, 16
      %v3545 = vor.u32 %v3543, %v3541
      %v3547 = vshll.u32 %v3367, 16
      %v3549 = vrot.slane %v3547, 1
      %v3550 = vsel %vm1902, %v3545, %v3549
      %v3551 = vshrl.u32 %v3367, 16
      %v3553 = vor.u32 %v3551, %v3549
      %v3555 = vshll.u32 %v3368, 16
      %v3557 = vrot.slane %v3555, 1
      %v3558 = vsel %vm1902, %v3553, %v3557
      %v3559 = vshrl.u32 %v3368, 16
      %v3561 = vor.u32 %v3559, %v3557
      %v3563 = vshll.u32 %v3369, 16
      %v3565 = vrot.slane %v3563, 1
      %v3566 = vsel %vm1902, %v3561, %v3565
      %v3567 = vshrl.u32 %v3369, 16
      %v3569 = vor.u32 %v3567, %v3565
      %v3571 = vshll.u32 %v3370, 16
      %v3573 = vrot.slane %v3571, 1
      %v3574 = vsel %vm1902, %v3569, %v3573
      %v3575 = vshrl.u32 %v3370, 16
      %v3577 = vor.u32 %v3575, %v3573
      %v3579 = vshll.u32 %v3371, 16
      %v3581 = vrot.slane %v3579, 1
      %v3582 = vsel %vm1902, %v3577, %v3581
      %v3583 = vshrl.u32 %v3371, 16
      %v3585 = vor.u32 %v3583, %v3581
      %v3587 = vshll.u32 %v3372, 16
      %v3589 = vrot.slane %v3587, 1
      %v3590 = vsel %vm1902, %v3585, %v3589
      %v3591 = vshrl.u32 %v3372, 16
      %v3593 = vor.u32 %v3591, %v3589
      %v3595 = vshll.u32 %v3373, 16
      %v3597 = vrot.slane %v3595, 1
      %v3598 = vsel %vm1902, %v3593, %v3597
      %v3599 = vshrl.u32 %v3373, 16
      %v3601 = vor.u32 %v3599, %v3597
      %v3603 = vshll.u32 %v3374, 16
      %v3605 = vrot.slane %v3603, 1
      %v3606 = vsel %vm1902, %v3601, %v3605
      %v3607 = vshrl.u32 %v3374, 16
      %v3609 = vor.u32 %v3607, %v3605
      %v3611 = vshll.u32 %v3375, 16
      %v3613 = vrot.slane %v3611, 1
      %v3614 = vsel %vm1902, %v3609, %v3613
      %v3615 = vshrl.u32 %v3375, 16
      %v3617 = vor.u32 %v3615, %v3613
      %v3619 = vshll.u32 %v3376, 16
      %v3621 = vrot.slane %v3619, 1
      %v3622 = vsel %vm1902, %v3617, %v3621
      %v3623 = vshrl.u32 %v3376, 16
      %v3625 = vor.u32 %v3623, %v3621
      %3626 = vrot.lane.b32.xlu0 %v3502, 8
      %v3627 = vpop.permute.xlu0 %3626
      %3628 = vrot.lane.b32.xlu0 %v3510, 8
      %v3629 = vpop.permute.xlu0 %3628
      %3630 = vrot.lane.b32.xlu0 %v3518, 8
      %v3631 = vpop.permute.xlu0 %3630
      %3632 = vrot.lane.b32.xlu0 %v3526, 8
      %v3633 = vpop.permute.xlu0 %3632
      %3634 = vrot.lane.b32.xlu0 %v3534, 8
      %v3635 = vpop.permute.xlu0 %3634
      %3636 = vrot.lane.b32.xlu0 %v3542, 8
      %v3637 = vpop.permute.xlu0 %3636
      %3638 = vrot.lane.b32.xlu0 %v3550, 8
      %v3639 = vpop.permute.xlu0 %3638
      %3640 = vrot.lane.b32.xlu0 %v3558, 8
      %v3641 = vpop.permute.xlu0 %3640
      %3642 = vrot.lane.b32.xlu0 %v3566, 8
      %v3643 = vpop.permute.xlu0 %3642
      %3644 = vrot.lane.b32.xlu0 %v3574, 8
      %v3645 = vpop.permute.xlu0 %3644
      %3646 = vrot.lane.b32.xlu0 %v3582, 8
      %v3647 = vpop.permute.xlu0 %3646
      %3648 = vrot.lane.b32.xlu0 %v3590, 8
      %v3649 = vpop.permute.xlu0 %3648
      %3650 = vrot.lane.b32.xlu0 %v3598, 8
      %v3651 = vpop.permute.xlu0 %3650
      %3652 = vrot.lane.b32.xlu0 %v3606, 8
      %v3653 = vpop.permute.xlu0 %3652
      %3654 = vrot.lane.b32.xlu0 %v3614, 8
      %v3655 = vpop.permute.xlu0 %3654
      %3656 = vrot.lane.b32.xlu0 %v3622, 8
      %v3657 = vpop.permute.xlu0 %3656
      %3658 = vrot.lane.b32.xlu0 %v3625, 8
      %v3659 = vpop.permute.xlu0 %3658
      %v3677 = vrot.slane %v3396, 1
      %v3678 = vrot.slane %v3397, 1
      %v3679 = vsel %vm2089, %v3677, %v3678
      %v3680 = vrot.slane %v3398, 1
      %v3681 = vsel %vm2089, %v3678, %v3680
      %v3682 = vrot.slane %v3399, 1
      %v3683 = vsel %vm2089, %v3680, %v3682
      %v3684 = vrot.slane %v3400, 1
      %v3685 = vsel %vm2089, %v3682, %v3684
      %v3686 = vrot.slane %v3401, 1
      %v3687 = vsel %vm2089, %v3684, %v3686
      %v3688 = vrot.slane %v3402, 1
      %v3689 = vsel %vm2089, %v3686, %v3688
      %v3690 = vrot.slane %v3403, 1
      %v3691 = vsel %vm2089, %v3688, %v3690
      %v3692 = vrot.slane %v3404, 1
      %v3693 = vsel %vm2089, %v3690, %v3692
      %v3694 = vrot.slane %v3405, 1
      %v3695 = vsel %vm2089, %v3692, %v3694
      %v3696 = vrot.slane %v3406, 1
      %v3697 = vsel %vm2089, %v3694, %v3696
      %v3698 = vrot.slane %v3407, 1
      %v3699 = vsel %vm2089, %v3696, %v3698
      %v3700 = vrot.slane %v3408, 1
      %v3701 = vsel %vm2089, %v3698, %v3700
      %v3702 = vrot.slane %v3409, 1
      %v3703 = vsel %vm2089, %v3700, %v3702
      %v3704 = vrot.slane %v3410, 1
      %v3705 = vsel %vm2089, %v3702, %v3704
      %v3706 = vrot.slane %v3411, 1
      %v3707 = vsel %vm2089, %v3704, %v3706
      %v3708 = vrot.slane %v3412, 1
      %v3709 = vsel %vm2089, %v3706, %v3708
      %3710 = vrot.lane.b32.xlu0 %v3679, 16
      %v3711 = vpop.permute.xlu0 %3710
      %3712 = vrot.lane.b32.xlu0 %v3681, 16
      %v3713 = vpop.permute.xlu0 %3712
      %3714 = vrot.lane.b32.xlu0 %v3683, 16
      %v3715 = vpop.permute.xlu0 %3714
      %3716 = vrot.lane.b32.xlu0 %v3685, 16
      %v3717 = vpop.permute.xlu0 %3716
      %3718 = vrot.lane.b32.xlu0 %v3687, 16
      %v3719 = vpop.permute.xlu0 %3718
      %3720 = vrot.lane.b32.xlu0 %v3689, 16
      %v3721 = vpop.permute.xlu0 %3720
      %3722 = vrot.lane.b32.xlu0 %v3691, 16
      %v3723 = vpop.permute.xlu0 %3722
      %3724 = vrot.lane.b32.xlu0 %v3693, 16
      %v3725 = vpop.permute.xlu0 %3724
      %3726 = vrot.lane.b32.xlu0 %v3695, 16
      %v3727 = vpop.permute.xlu0 %3726
      %3728 = vrot.lane.b32.xlu0 %v3697, 16
      %v3729 = vpop.permute.xlu0 %3728
      %3730 = vrot.lane.b32.xlu0 %v3699, 16
      %v3731 = vpop.permute.xlu0 %3730
      %3732 = vrot.lane.b32.xlu0 %v3701, 16
      %v3733 = vpop.permute.xlu0 %3732
      %3734 = vrot.lane.b32.xlu0 %v3703, 16
      %v3735 = vpop.permute.xlu0 %3734
      %3736 = vrot.lane.b32.xlu0 %v3705, 16
      %v3737 = vpop.permute.xlu0 %3736
      %3738 = vrot.lane.b32.xlu0 %v3707, 16
      %v3739 = vpop.permute.xlu0 %3738
      %3740 = vrot.lane.b32.xlu0 %v3709, 16
      %v3741 = vpop.permute.xlu0 %3740
      %3742 = vrot.lane.b32.xlu0 %v3708, 16
      %v3743 = vpop.permute.xlu0 %3742
      %3761 = vrot.lane.b32.xlu0 %v3416, 24
      %v3762 = vpop.permute.xlu0 %3761
      %3763 = vrot.lane.b32.xlu0 %v3417, 24
      %v3764 = vpop.permute.xlu0 %3763
      %3765 = vrot.lane.b32.xlu0 %v3418, 24
      %v3766 = vpop.permute.xlu0 %3765
      %3767 = vrot.lane.b32.xlu0 %v3419, 24
      %v3768 = vpop.permute.xlu0 %3767
      %3769 = vrot.lane.b32.xlu0 %v3420, 24
      %v3770 = vpop.permute.xlu0 %3769
      %3771 = vrot.lane.b32.xlu0 %v3421, 24
      %v3772 = vpop.permute.xlu0 %3771
      %3773 = vrot.lane.b32.xlu0 %v3422, 24
      %v3774 = vpop.permute.xlu0 %3773
      %3775 = vrot.lane.b32.xlu0 %v3423, 24
      %v3776 = vpop.permute.xlu0 %3775
      %3777 = vrot.lane.b32.xlu0 %v3424, 24
      %v3778 = vpop.permute.xlu0 %3777
      %3779 = vrot.lane.b32.xlu0 %v3425, 24
      %v3780 = vpop.permute.xlu0 %3779
      %3781 = vrot.lane.b32.xlu0 %v3426, 24
      %v3782 = vpop.permute.xlu0 %3781
      %3783 = vrot.lane.b32.xlu0 %v3427, 24
      %v3784 = vpop.permute.xlu0 %3783
      %3785 = vrot.lane.b32.xlu0 %v3428, 24
      %v3786 = vpop.permute.xlu0 %3785
      %3787 = vrot.lane.b32.xlu0 %v3429, 24
      %v3788 = vpop.permute.xlu0 %3787
      %3789 = vrot.lane.b32.xlu0 %v3430, 24
      %v3790 = vpop.permute.xlu0 %3789
      %3791 = vrot.lane.b32.xlu0 %v3431, 24
      %v3792 = vpop.permute.xlu0 %3791
      %3793 = vrot.lane.b32.xlu0 %v3432, 24
      %v3794 = vpop.permute.xlu0 %3793
      %v3796 = vshrl.u32 %v3433, 16
      %v3798 = vshll.u32 %v3433, 16
      %v3800 = vrot.slane %v3798, 1
      %v3801 = vor.u32 %v3796, %v3800
      %v3802 = vsel %vm1902, %v3801, %v3509
      %v3804 = vshll.u32 %v3414, 16
      %v3806 = vrot.slane %v3804, 1
      %v3807 = vsel %vm1902, %v3617, %v3806
      %v3808 = vshrl.u32 %v3414, 16
      %v3810 = vor.u32 %v3808, %v3806
      %v3812 = vshll.u32 %v3415, 16
      %v3814 = vrot.slane %v3812, 1
      %v3815 = vsel %vm1902, %v3810, %v3814
      %v3816 = vshrl.u32 %v3415, 16
      %v3818 = vor.u32 %v3816, %v3814
      %3819 = vrot.lane.b32.xlu0 %v3802, 32
      %v3820 = vpop.permute.xlu0 %3819
      %3821 = vrot.lane.b32.xlu0 %v3518, 32
      %v3822 = vpop.permute.xlu0 %3821
      %3823 = vrot.lane.b32.xlu0 %v3526, 32
      %v3824 = vpop.permute.xlu0 %3823
      %3825 = vrot.lane.b32.xlu0 %v3534, 32
      %v3826 = vpop.permute.xlu0 %3825
      %3827 = vrot.lane.b32.xlu0 %v3542, 32
      %v3828 = vpop.permute.xlu0 %3827
      %3829 = vrot.lane.b32.xlu0 %v3550, 32
      %v3830 = vpop.permute.xlu0 %3829
      %3831 = vrot.lane.b32.xlu0 %v3558, 32
      %v3832 = vpop.permute.xlu0 %3831
      %3833 = vrot.lane.b32.xlu0 %v3566, 32
      %v3834 = vpop.permute.xlu0 %3833
      %3835 = vrot.lane.b32.xlu0 %v3574, 32
      %v3836 = vpop.permute.xlu0 %3835
      %3837 = vrot.lane.b32.xlu0 %v3582, 32
      %v3838 = vpop.permute.xlu0 %3837
      %3839 = vrot.lane.b32.xlu0 %v3590, 32
      %v3840 = vpop.permute.xlu0 %3839
      %3841 = vrot.lane.b32.xlu0 %v3598, 32
      %v3842 = vpop.permute.xlu0 %3841
      %3843 = vrot.lane.b32.xlu0 %v3606, 32
      %v3844 = vpop.permute.xlu0 %3843
      %3845 = vrot.lane.b32.xlu0 %v3614, 32
      %v3846 = vpop.permute.xlu0 %3845
      %3847 = vrot.lane.b32.xlu0 %v3807, 32
      %v3848 = vpop.permute.xlu0 %3847
      %3849 = vrot.lane.b32.xlu0 %v3815, 32
      %v3850 = vpop.permute.xlu0 %3849
      %3851 = vrot.lane.b32.xlu0 %v3818, 32
      %v3852 = vpop.permute.xlu0 %3851
      %v3870 = vrot.slane %v3435, 1
      %v3871 = vrot.slane %v3436, 1
      %v3872 = vsel %vm2089, %v3870, %v3871
      %v3873 = vrot.slane %v3437, 1
      %v3874 = vsel %vm2089, %v3871, %v3873
      %v3875 = vrot.slane %v3438, 1
      %v3876 = vsel %vm2089, %v3873, %v3875
      %v3877 = vrot.slane %v3439, 1
      %v3878 = vsel %vm2089, %v3875, %v3877
      %v3879 = vrot.slane %v3440, 1
      %v3880 = vsel %vm2089, %v3877, %v3879
      %v3881 = vrot.slane %v3441, 1
      %v3882 = vsel %vm2089, %v3879, %v3881
      %v3883 = vrot.slane %v3442, 1
      %v3884 = vsel %vm2089, %v3881, %v3883
      %v3885 = vrot.slane %v3443, 1
      %v3886 = vsel %vm2089, %v3883, %v3885
      %v3887 = vrot.slane %v3444, 1
      %v3888 = vsel %vm2089, %v3885, %v3887
      %v3889 = vrot.slane %v3445, 1
      %v3890 = vsel %vm2089, %v3887, %v3889
      %v3891 = vrot.slane %v3446, 1
      %v3892 = vsel %vm2089, %v3889, %v3891
      %v3893 = vrot.slane %v3447, 1
      %v3894 = vsel %vm2089, %v3891, %v3893
      %v3895 = vrot.slane %v3448, 1
      %v3896 = vsel %vm2089, %v3893, %v3895
      %v3897 = vrot.slane %v3449, 1
      %v3898 = vsel %vm2089, %v3895, %v3897
      %v3899 = vrot.slane %v3450, 1
      %v3900 = vsel %vm2089, %v3897, %v3899
      %v3901 = vrot.slane %v3451, 1
      %v3902 = vsel %vm2089, %v3899, %v3901
      %3903 = vrot.lane.b32.xlu0 %v3872, 40
      %v3904 = vpop.permute.xlu0 %3903
      %3905 = vrot.lane.b32.xlu0 %v3874, 40
      %v3906 = vpop.permute.xlu0 %3905
      %3907 = vrot.lane.b32.xlu0 %v3876, 40
      %v3908 = vpop.permute.xlu0 %3907
      %3909 = vrot.lane.b32.xlu0 %v3878, 40
      %v3910 = vpop.permute.xlu0 %3909
      %3911 = vrot.lane.b32.xlu0 %v3880, 40
      %v3912 = vpop.permute.xlu0 %3911
      %3913 = vrot.lane.b32.xlu0 %v3882, 40
      %v3914 = vpop.permute.xlu0 %3913
      %3915 = vrot.lane.b32.xlu0 %v3884, 40
      %v3916 = vpop.permute.xlu0 %3915
      %3917 = vrot.lane.b32.xlu0 %v3886, 40
      %v3918 = vpop.permute.xlu0 %3917
      %3919 = vrot.lane.b32.xlu0 %v3888, 40
      %v3920 = vpop.permute.xlu0 %3919
      %3921 = vrot.lane.b32.xlu0 %v3890, 40
      %v3922 = vpop.permute.xlu0 %3921
      %3923 = vrot.lane.b32.xlu0 %v3892, 40
      %v3924 = vpop.permute.xlu0 %3923
      %3925 = vrot.lane.b32.xlu0 %v3894, 40
      %v3926 = vpop.permute.xlu0 %3925
      %3927 = vrot.lane.b32.xlu0 %v3896, 40
      %v3928 = vpop.permute.xlu0 %3927
      %3929 = vrot.lane.b32.xlu0 %v3898, 40
      %v3930 = vpop.permute.xlu0 %3929
      %3931 = vrot.lane.b32.xlu0 %v3900, 40
      %v3932 = vpop.permute.xlu0 %3931
      %3933 = vrot.lane.b32.xlu0 %v3902, 40
      %v3934 = vpop.permute.xlu0 %3933
      %3935 = vrot.lane.b32.xlu0 %v3901, 40
      %v3936 = vpop.permute.xlu0 %3935
      %3954 = vrot.lane.b32.xlu0 %v3455, 48
      %v3955 = vpop.permute.xlu0 %3954
      %3956 = vrot.lane.b32.xlu0 %v3456, 48
      %v3957 = vpop.permute.xlu0 %3956
      %3958 = vrot.lane.b32.xlu0 %v3457, 48
      %v3959 = vpop.permute.xlu0 %3958
      %3960 = vrot.lane.b32.xlu0 %v3458, 48
      %v3961 = vpop.permute.xlu0 %3960
      %3962 = vrot.lane.b32.xlu0 %v3459, 48
      %v3963 = vpop.permute.xlu0 %3962
      %3964 = vrot.lane.b32.xlu0 %v3460, 48
      %v3965 = vpop.permute.xlu0 %3964
      %3966 = vrot.lane.b32.xlu0 %v3461, 48
      %v3967 = vpop.permute.xlu0 %3966
      %3968 = vrot.lane.b32.xlu0 %v3462, 48
      %v3969 = vpop.permute.xlu0 %3968
      %3970 = vrot.lane.b32.xlu0 %v3463, 48
      %v3971 = vpop.permute.xlu0 %3970
      %3972 = vrot.lane.b32.xlu0 %v3464, 48
      %v3973 = vpop.permute.xlu0 %3972
      %3974 = vrot.lane.b32.xlu0 %v3465, 48
      %v3975 = vpop.permute.xlu0 %3974
      %3976 = vrot.lane.b32.xlu0 %v3466, 48
      %v3977 = vpop.permute.xlu0 %3976
      %3978 = vrot.lane.b32.xlu0 %v3467, 48
      %v3979 = vpop.permute.xlu0 %3978
      %3980 = vrot.lane.b32.xlu0 %v3468, 48
      %v3981 = vpop.permute.xlu0 %3980
      %3982 = vrot.lane.b32.xlu0 %v3469, 48
      %v3983 = vpop.permute.xlu0 %3982
      %3984 = vrot.lane.b32.xlu0 %v3470, 48
      %v3985 = vpop.permute.xlu0 %3984
      %3986 = vrot.lane.b32.xlu0 %v3471, 48
      %v3987 = vpop.permute.xlu0 %3986
      %v3989 = vshrl.u32 %v3472, 16
      %v3991 = vshll.u32 %v3472, 16
      %v3993 = vrot.slane %v3991, 1
      %v3994 = vor.u32 %v3989, %v3993
      %v3995 = vsel %vm1902, %v3994, %v3517
      %v3997 = vshll.u32 %v3453, 16
      %v3999 = vrot.slane %v3997, 1
      %v4000 = vsel %vm1902, %v3810, %v3999
      %v4001 = vshrl.u32 %v3453, 16
      %v4003 = vor.u32 %v4001, %v3999
      %v4005 = vshll.u32 %v3454, 16
      %v4007 = vrot.slane %v4005, 1
      %v4008 = vsel %vm1902, %v4003, %v4007
      %v4009 = vshrl.u32 %v3454, 16
      %v4011 = vor.u32 %v4009, %v4007
      %4012 = vrot.lane.b32.xlu0 %v3995, 56
      %v4013 = vpop.permute.xlu0 %4012
      %4014 = vrot.lane.b32.xlu0 %v3526, 56
      %v4015 = vpop.permute.xlu0 %4014
      %4016 = vrot.lane.b32.xlu0 %v3534, 56
      %v4017 = vpop.permute.xlu0 %4016
      %4018 = vrot.lane.b32.xlu0 %v3542, 56
      %v4019 = vpop.permute.xlu0 %4018
      %4020 = vrot.lane.b32.xlu0 %v3550, 56
      %v4021 = vpop.permute.xlu0 %4020
      %4022 = vrot.lane.b32.xlu0 %v3558, 56
      %v4023 = vpop.permute.xlu0 %4022
      %4024 = vrot.lane.b32.xlu0 %v3566, 56
      %v4025 = vpop.permute.xlu0 %4024
      %4026 = vrot.lane.b32.xlu0 %v3574, 56
      %v4027 = vpop.permute.xlu0 %4026
      %4028 = vrot.lane.b32.xlu0 %v3582, 56
      %v4029 = vpop.permute.xlu0 %4028
      %4030 = vrot.lane.b32.xlu0 %v3590, 56
      %v4031 = vpop.permute.xlu0 %4030
      %4032 = vrot.lane.b32.xlu0 %v3598, 56
      %v4033 = vpop.permute.xlu0 %4032
      %4034 = vrot.lane.b32.xlu0 %v3606, 56
      %v4035 = vpop.permute.xlu0 %4034
      %4036 = vrot.lane.b32.xlu0 %v3614, 56
      %v4037 = vpop.permute.xlu0 %4036
      %4038 = vrot.lane.b32.xlu0 %v3807, 56
      %v4039 = vpop.permute.xlu0 %4038
      %4040 = vrot.lane.b32.xlu0 %v4000, 56
      %v4041 = vpop.permute.xlu0 %4040
      %4042 = vrot.lane.b32.xlu0 %v4008, 56
      %v4043 = vpop.permute.xlu0 %4042
      %4044 = vrot.lane.b32.xlu0 %v4011, 56
      %v4045 = vpop.permute.xlu0 %4044
      %v4063 = vrot.slane %v3474, 1
      %v4064 = vrot.slane %v3475, 1
      %v4065 = vsel %vm2089, %v4063, %v4064
      %v4066 = vrot.slane %v3476, 1
      %v4067 = vsel %vm2089, %v4064, %v4066
      %v4068 = vrot.slane %v3477, 1
      %v4069 = vsel %vm2089, %v4066, %v4068
      %v4070 = vrot.slane %v3478, 1
      %v4071 = vsel %vm2089, %v4068, %v4070
      %v4072 = vrot.slane %v3479, 1
      %v4073 = vsel %vm2089, %v4070, %v4072
      %v4074 = vrot.slane %v3480, 1
      %v4075 = vsel %vm2089, %v4072, %v4074
      %v4076 = vrot.slane %v3481, 1
      %v4077 = vsel %vm2089, %v4074, %v4076
      %v4078 = vrot.slane %v3482, 1
      %v4079 = vsel %vm2089, %v4076, %v4078
      %v4080 = vrot.slane %v3483, 1
      %v4081 = vsel %vm2089, %v4078, %v4080
      %v4082 = vrot.slane %v3484, 1
      %v4083 = vsel %vm2089, %v4080, %v4082
      %v4084 = vrot.slane %v3485, 1
      %v4085 = vsel %vm2089, %v4082, %v4084
      %v4086 = vrot.slane %v3486, 1
      %v4087 = vsel %vm2089, %v4084, %v4086
      %v4088 = vrot.slane %v3487, 1
      %v4089 = vsel %vm2089, %v4086, %v4088
      %v4090 = vrot.slane %v3488, 1
      %v4091 = vsel %vm2089, %v4088, %v4090
      %v4092 = vrot.slane %v3489, 1
      %v4093 = vsel %vm2089, %v4090, %v4092
      %v4094 = vrot.slane %v3490, 1
      %v4095 = vsel %vm2089, %v4092, %v4094
      %4096 = vrot.lane.b32.xlu0 %v4065, 64
      %v4097 = vpop.permute.xlu0 %4096
      %4098 = vrot.lane.b32.xlu0 %v4067, 64
      %v4099 = vpop.permute.xlu0 %4098
      %4100 = vrot.lane.b32.xlu0 %v4069, 64
      %v4101 = vpop.permute.xlu0 %4100
      %4102 = vrot.lane.b32.xlu0 %v4071, 64
      %v4103 = vpop.permute.xlu0 %4102
      %4104 = vrot.lane.b32.xlu0 %v4073, 64
      %v4105 = vpop.permute.xlu0 %4104
      %4106 = vrot.lane.b32.xlu0 %v4075, 64
      %v4107 = vpop.permute.xlu0 %4106
      %4108 = vrot.lane.b32.xlu0 %v4077, 64
      %v4109 = vpop.permute.xlu0 %4108
      %4110 = vrot.lane.b32.xlu0 %v4079, 64
      %v4111 = vpop.permute.xlu0 %4110
      %4112 = vrot.lane.b32.xlu0 %v4081, 64
      %v4113 = vpop.permute.xlu0 %4112
      %4114 = vrot.lane.b32.xlu0 %v4083, 64
      %v4115 = vpop.permute.xlu0 %4114
      %4116 = vrot.lane.b32.xlu0 %v4085, 64
      %v4117 = vpop.permute.xlu0 %4116
      %4118 = vrot.lane.b32.xlu0 %v4087, 64
      %v4119 = vpop.permute.xlu0 %4118
      %4120 = vrot.lane.b32.xlu0 %v4089, 64
      %v4121 = vpop.permute.xlu0 %4120
      %4122 = vrot.lane.b32.xlu0 %v4091, 64
      %v4123 = vpop.permute.xlu0 %4122
      %4124 = vrot.lane.b32.xlu0 %v4093, 64
      %v4125 = vpop.permute.xlu0 %4124
      %4126 = vrot.lane.b32.xlu0 %v4095, 64
      %v4127 = vpop.permute.xlu0 %4126
      %4128 = vrot.lane.b32.xlu0 %v4094, 64
      %v4129 = vpop.permute.xlu0 %4128
      %v4132 = vsel %vm1079, %v3377, %v3627
      %v4135 = vsel %vm1079, %v3378, %v3629
      %v4138 = vsel %vm1079, %v3379, %v3631
      %v4141 = vsel %vm1079, %v3380, %v3633
      %v4144 = vsel %vm1079, %v3381, %v3635
      %v4147 = vsel %vm1079, %v3382, %v3637
      %v4150 = vsel %vm1079, %v3383, %v3639
      %v4153 = vsel %vm1079, %v3384, %v3641
      %v4156 = vsel %vm1079, %v3385, %v3643
      %v4159 = vsel %vm1079, %v3386, %v3645
      %v4162 = vsel %vm1079, %v3387, %v3647
      %v4165 = vsel %vm1079, %v3388, %v3649
      %v4168 = vsel %vm1079, %v3389, %v3651
      %v4171 = vsel %vm1079, %v3390, %v3653
      %v4174 = vsel %vm1079, %v3391, %v3655
      %v4177 = vsel %vm1079, %v3392, %v3657
      %v4180 = vsel %vm1079, %v3393, %v3659
      %v4182 = vsel %vm446, %v4132, %v3711
      %v4184 = vsel %vm446, %v4135, %v3713
      %v4186 = vsel %vm446, %v4138, %v3715
      %v4188 = vsel %vm446, %v4141, %v3717
      %v4190 = vsel %vm446, %v4144, %v3719
      %v4192 = vsel %vm446, %v4147, %v3721
      %v4194 = vsel %vm446, %v4150, %v3723
      %v4196 = vsel %vm446, %v4153, %v3725
      %v4198 = vsel %vm446, %v4156, %v3727
      %v4200 = vsel %vm446, %v4159, %v3729
      %v4202 = vsel %vm446, %v4162, %v3731
      %v4204 = vsel %vm446, %v4165, %v3733
      %v4206 = vsel %vm446, %v4168, %v3735
      %v4208 = vsel %vm446, %v4171, %v3737
      %v4210 = vsel %vm446, %v4174, %v3739
      %v4212 = vsel %vm446, %v4177, %v3741
      %v4214 = vsel %vm446, %v4180, %v3743
      %v4216 = vsel %vm2628, %v4182, %v3762
      %v4218 = vsel %vm2628, %v4184, %v3764
      %v4220 = vsel %vm2628, %v4186, %v3766
      %v4222 = vsel %vm2628, %v4188, %v3768
      %v4224 = vsel %vm2628, %v4190, %v3770
      %v4226 = vsel %vm2628, %v4192, %v3772
      %v4228 = vsel %vm2628, %v4194, %v3774
      %v4230 = vsel %vm2628, %v4196, %v3776
      %v4232 = vsel %vm2628, %v4198, %v3778
      %v4234 = vsel %vm2628, %v4200, %v3780
      %v4236 = vsel %vm2628, %v4202, %v3782
      %v4238 = vsel %vm2628, %v4204, %v3784
      %v4240 = vsel %vm2628, %v4206, %v3786
      %v4242 = vsel %vm2628, %v4208, %v3788
      %v4244 = vsel %vm2628, %v4210, %v3790
      %v4246 = vsel %vm2628, %v4212, %v3792
      %v4248 = vsel %vm2628, %v4214, %v3794
      %v4250 = vsel %vm2663, %v4216, %v3820
      %v4252 = vsel %vm2663, %v4218, %v3822
      %v4254 = vsel %vm2663, %v4220, %v3824
      %v4256 = vsel %vm2663, %v4222, %v3826
      %v4258 = vsel %vm2663, %v4224, %v3828
      %v4260 = vsel %vm2663, %v4226, %v3830
      %v4262 = vsel %vm2663, %v4228, %v3832
      %v4264 = vsel %vm2663, %v4230, %v3834
      %v4266 = vsel %vm2663, %v4232, %v3836
      %v4268 = vsel %vm2663, %v4234, %v3838
      %v4270 = vsel %vm2663, %v4236, %v3840
      %v4272 = vsel %vm2663, %v4238, %v3842
      %v4274 = vsel %vm2663, %v4240, %v3844
      %v4276 = vsel %vm2663, %v4242, %v3846
      %v4278 = vsel %vm2663, %v4244, %v3848
      %v4280 = vsel %vm2663, %v4246, %v3850
      %v4282 = vsel %vm2663, %v4248, %v3852
      %v4284 = vsel %vm2698, %v4250, %v3904
      %v4286 = vsel %vm2698, %v4252, %v3906
      %v4288 = vsel %vm2698, %v4254, %v3908
      %v4290 = vsel %vm2698, %v4256, %v3910
      %v4292 = vsel %vm2698, %v4258, %v3912
      %v4294 = vsel %vm2698, %v4260, %v3914
      %v4296 = vsel %vm2698, %v4262, %v3916
      %v4298 = vsel %vm2698, %v4264, %v3918
      %v4300 = vsel %vm2698, %v4266, %v3920
      %v4302 = vsel %vm2698, %v4268, %v3922
      %v4304 = vsel %vm2698, %v4270, %v3924
      %v4306 = vsel %vm2698, %v4272, %v3926
      %v4308 = vsel %vm2698, %v4274, %v3928
      %v4310 = vsel %vm2698, %v4276, %v3930
      %v4312 = vsel %vm2698, %v4278, %v3932
      %v4314 = vsel %vm2698, %v4280, %v3934
      %v4316 = vsel %vm2698, %v4282, %v3936
      %v4318 = vsel %vm2733, %v4284, %v3955
      %v4320 = vsel %vm2733, %v4286, %v3957
      %v4322 = vsel %vm2733, %v4288, %v3959
      %v4324 = vsel %vm2733, %v4290, %v3961
      %v4326 = vsel %vm2733, %v4292, %v3963
      %v4328 = vsel %vm2733, %v4294, %v3965
      %v4330 = vsel %vm2733, %v4296, %v3967
      %v4332 = vsel %vm2733, %v4298, %v3969
      %v4334 = vsel %vm2733, %v4300, %v3971
      %v4336 = vsel %vm2733, %v4302, %v3973
      %v4338 = vsel %vm2733, %v4304, %v3975
      %v4340 = vsel %vm2733, %v4306, %v3977
      %v4342 = vsel %vm2733, %v4308, %v3979
      %v4344 = vsel %vm2733, %v4310, %v3981
      %v4346 = vsel %vm2733, %v4312, %v3983
      %v4348 = vsel %vm2733, %v4314, %v3985
      %v4350 = vsel %vm2733, %v4316, %v3987
      %v4352 = vsel %vm2768, %v4318, %v4013
      %v4354 = vsel %vm2768, %v4320, %v4015
      %v4356 = vsel %vm2768, %v4322, %v4017
      %v4358 = vsel %vm2768, %v4324, %v4019
      %v4360 = vsel %vm2768, %v4326, %v4021
      %v4362 = vsel %vm2768, %v4328, %v4023
      %v4364 = vsel %vm2768, %v4330, %v4025
      %v4366 = vsel %vm2768, %v4332, %v4027
      %v4368 = vsel %vm2768, %v4334, %v4029
      %v4370 = vsel %vm2768, %v4336, %v4031
      %v4372 = vsel %vm2768, %v4338, %v4033
      %v4374 = vsel %vm2768, %v4340, %v4035
      %v4376 = vsel %vm2768, %v4342, %v4037
      %v4378 = vsel %vm2768, %v4344, %v4039
      %v4380 = vsel %vm2768, %v4346, %v4041
      %v4382 = vsel %vm2768, %v4348, %v4043
      %v4384 = vsel %vm2768, %v4350, %v4045
      %v4386 = vsel %vm2803, %v4352, %v4097
      %v4388 = vsel %vm2803, %v4354, %v4099
      %v4390 = vsel %vm2803, %v4356, %v4101
      %v4392 = vsel %vm2803, %v4358, %v4103
      %v4394 = vsel %vm2803, %v4360, %v4105
      %v4396 = vsel %vm2803, %v4362, %v4107
      %v4398 = vsel %vm2803, %v4364, %v4109
      %v4400 = vsel %vm2803, %v4366, %v4111
      %v4402 = vsel %vm2803, %v4368, %v4113
      %v4404 = vsel %vm2803, %v4370, %v4115
      %v4406 = vsel %vm2803, %v4372, %v4117
      %v4408 = vsel %vm2803, %v4374, %v4119
      %v4410 = vsel %vm2803, %v4376, %v4121
      %v4412 = vsel %vm2803, %v4378, %v4123
      %v4414 = vsel %vm2803, %v4380, %v4125
      %v4416 = vsel %vm2803, %v4382, %v4127
      %v4418 = vsel %vm2803, %v4384, %v4129
      %v4419 = vld [vmem:[%s3] sm:$0xf]
      %v4420 = vld [vmem:[%s3 + $0x4] sm:$0xf]
      %v4421 = vld [vmem:[%s3 + $0x8] sm:$0xf]
      %v4422 = vld [vmem:[%s3 + $0xc] sm:$0xf]
      %v4423 = vld [vmem:[%s3 + $0x10] sm:$0xf]
      %v4424 = vld [vmem:[%s3 + $0x14] sm:$0xf]
      %v4425 = vld [vmem:[%s3 + $0x18] sm:$0xf]
      %v4426 = vld [vmem:[%s3 + $0x1c] sm:$0xf]
      %v4427 = vld [vmem:[%s3 + $0x20] sm:$0xf]
      %v4428 = vld [vmem:[%s4] sm:$0x1]
      %v4430 = vlaneseq
      %v4431 = vshrl.u32 %v4430, 7
      %v4432 = vsub.s32 0, %v4431
      %v4433 = vrot.slane %v4428, %v4432
      %v4435 = vshrl.u32 %v4386, 16
      %v4437 = vrot.slane %v4435, 3
      %v4438 = vshll.u32 %v4386, 16
      %v4440 = vrot.slane %v4438, 4
      %v4441 = vor.u32 %v4437, %v4440
      %v4442 = vshrl.u32 %v4388, 16
      %v4444 = vrot.slane %v4442, 3
      %v4445 = vshll.u32 %v4388, 16
      %v4447 = vrot.slane %v4445, 4
      %v4448 = vor.u32 %v4444, %v4447
      %v4449 = vsel %vm1646, %v4441, %v4448
      %v4450 = vshrl.u32 %v4390, 16
      %v4452 = vrot.slane %v4450, 3
      %v4453 = vshll.u32 %v4390, 16
      %v4455 = vrot.slane %v4453, 4
      %v4456 = vor.u32 %v4452, %v4455
      %v4457 = vsel %vm1646, %v4448, %v4456
      %v4458 = vshrl.u32 %v4392, 16
      %v4460 = vrot.slane %v4458, 3
      %v4461 = vshll.u32 %v4392, 16
      %v4463 = vrot.slane %v4461, 4
      %v4464 = vor.u32 %v4460, %v4463
      %v4465 = vsel %vm1646, %v4456, %v4464
      %v4466 = vshrl.u32 %v4394, 16
      %v4468 = vrot.slane %v4466, 3
      %v4469 = vshll.u32 %v4394, 16
      %v4471 = vrot.slane %v4469, 4
      %v4472 = vor.u32 %v4468, %v4471
      %v4473 = vsel %vm1646, %v4464, %v4472
      %v4474 = vshrl.u32 %v4396, 16
      %v4476 = vrot.slane %v4474, 3
      %v4477 = vshll.u32 %v4396, 16
      %v4479 = vrot.slane %v4477, 4
      %v4480 = vor.u32 %v4476, %v4479
      %v4481 = vsel %vm1646, %v4472, %v4480
      %v4482 = vshrl.u32 %v4398, 16
      %v4484 = vrot.slane %v4482, 3
      %v4485 = vshll.u32 %v4398, 16
      %v4487 = vrot.slane %v4485, 4
      %v4488 = vor.u32 %v4484, %v4487
      %v4489 = vsel %vm1646, %v4480, %v4488
      %v4490 = vshrl.u32 %v4400, 16
      %v4492 = vrot.slane %v4490, 3
      %v4493 = vshll.u32 %v4400, 16
      %v4495 = vrot.slane %v4493, 4
      %v4496 = vor.u32 %v4492, %v4495
      %v4497 = vsel %vm1646, %v4488, %v4496
      %v4498 = vshrl.u32 %v4402, 16
      %v4500 = vrot.slane %v4498, 3
      %v4501 = vshll.u32 %v4402, 16
      %v4503 = vrot.slane %v4501, 4
      %v4504 = vor.u32 %v4500, %v4503
      %v4505 = vsel %vm1646, %v4496, %v4504
      %v4506 = vshrl.u32 %v4404, 16
      %v4508 = vrot.slane %v4506, 3
      %v4509 = vshll.u32 %v4404, 16
      %v4511 = vrot.slane %v4509, 4
      %v4512 = vor.u32 %v4508, %v4511
      %v4513 = vsel %vm1646, %v4504, %v4512
      %v4514 = vshrl.u32 %v4406, 16
      %v4516 = vrot.slane %v4514, 3
      %v4517 = vshll.u32 %v4406, 16
      %v4519 = vrot.slane %v4517, 4
      %v4520 = vor.u32 %v4516, %v4519
      %v4521 = vsel %vm1646, %v4512, %v4520
      %v4522 = vshrl.u32 %v4408, 16
      %v4524 = vrot.slane %v4522, 3
      %v4525 = vshll.u32 %v4408, 16
      %v4527 = vrot.slane %v4525, 4
      %v4528 = vor.u32 %v4524, %v4527
      %v4529 = vsel %vm1646, %v4520, %v4528
      %v4530 = vshrl.u32 %v4410, 16
      %v4532 = vrot.slane %v4530, 3
      %v4533 = vshll.u32 %v4410, 16
      %v4535 = vrot.slane %v4533, 4
      %v4536 = vor.u32 %v4532, %v4535
      %v4537 = vsel %vm1646, %v4528, %v4536
      %v4538 = vshrl.u32 %v4412, 16
      %v4540 = vrot.slane %v4538, 3
      %v4541 = vshll.u32 %v4412, 16
      %v4543 = vrot.slane %v4541, 4
      %v4544 = vor.u32 %v4540, %v4543
      %v4545 = vsel %vm1646, %v4536, %v4544
      %v4546 = vshrl.u32 %v4414, 16
      %v4548 = vrot.slane %v4546, 3
      %v4549 = vshll.u32 %v4414, 16
      %v4551 = vrot.slane %v4549, 4
      %v4552 = vor.u32 %v4548, %v4551
      %v4553 = vsel %vm1646, %v4544, %v4552
      %v4554 = vshrl.u32 %v4416, 16
      %v4556 = vrot.slane %v4554, 3
      %v4557 = vshll.u32 %v4416, 16
      %v4559 = vrot.slane %v4557, 4
      %v4560 = vor.u32 %v4556, %v4559
      %v4561 = vsel %vm1646, %v4552, %v4560
      %v4562 = vshrl.u32 %v4418, 16
      %v4564 = vrot.slane %v4562, 3
      %v4565 = vshll.u32 %v4418, 16
      %v4567 = vrot.slane %v4565, 4
      %v4568 = vor.u32 %v4564, %v4567
      %v4569 = vsel %vm1646, %v4560, %v4568
      %v4579 = vunpack.c.l.b16 %v4419
      %v4580 = vunpack.c.l.b16 %v4420
      %v4581 = vunpack.c.l.b16 %v4421
      %v4582 = vunpack.c.l.b16 %v4422
      %v4583 = vunpack.c.l.b16 %v4423
      %v4584 = vunpack.c.l.b16 %v4424
      %v4585 = vunpack.c.l.b16 %v4425
      %v4586 = vunpack.c.l.b16 %v4426
      %v4587 = vunpack.c.l.b16 %v4427
      %v4588 = vpack.c.b16 %v4580, %v4579
      %v4589 = vpack.c.b16 %v4582, %v4581
      %v4590 = vpack.c.b16 %v4584, %v4583
      %v4591 = vpack.c.b16 %v4586, %v4585
      %v4592 = vpack.c.b16 %v4587, %v4587
      %v4598 = vsel %vm3016, %v4449, 0
      %v4601 = vsel %vm3016, %v4457, 0
      %v4604 = vsel %vm3016, %v4465, 0
      %v4607 = vsel %vm3016, %v4473, 0
      %v4610 = vsel %vm3016, %v4481, 0
      %v4613 = vsel %vm3016, %v4489, 0
      %v4616 = vsel %vm3016, %v4497, 0
      %v4619 = vsel %vm3016, %v4505, 0
      %v4622 = vsel %vm3016, %v4513, 0
      %v4625 = vsel %vm3016, %v4521, 0
      %v4628 = vsel %vm3016, %v4529, 0
      %v4631 = vsel %vm3016, %v4537, 0
      %v4634 = vsel %vm3016, %v4545, 0
      %v4637 = vsel %vm3016, %v4553, 0
      %v4640 = vsel %vm3016, %v4561, 0
      %v4643 = vsel %vm3016, %v4569, 0
      %v4646 = vsel %vm3065, %v4592, 0
      %4648 = vmatprep.subr.bf16.mxu0 0
      %4649 = vmatpush1.bf16.msra.mxu0 %v4588
      %4650 = vmatprep.subr.bf16.mxu0 0
      %4651 = vmatpush1.bf16.msra.mxu0 %v4589
      %4652 = vmatprep.subr.bf16.mxu0 0
      %4653 = vmatpush1.bf16.msra.mxu0 %v4590
      %4654 = vmatprep.subr.bf16.mxu0 0
      %4655 = vmatpush1.bf16.msra.mxu0 %v4591
      %4656 = vmatprep.subr.bf16.mxu0 0
      %4657 = vmatpush1.bf16.msra.mxu0 %v4646
      %4658 = vmatprep.subr.bf16.mxu0 0
      %4659 = vmatpush1.bf16.msra.mxu0 0
      %4660 = vmatprep.subr.bf16.mxu0 0
      %4661 = vmatpush1.bf16.msra.mxu0 0
      %4662 = vmatprep.subr.bf16.mxu0 0
      %4663 = vmatpush1.bf16.msra.mxu0 0
      %4664 = vmatprep.subr.bf16.mxu0 0
      %4665 = vmatpush1.bf16.msra.mxu0 0
      %4666 = vmatprep.subr.bf16.mxu0 0
      %4667 = vmatpush1.bf16.msra.mxu0 0
      %4668 = vmatprep.subr.bf16.mxu0 0
      %4669 = vmatpush1.bf16.msra.mxu0 0
      %4670 = vmatprep.subr.bf16.mxu0 0
      %4671 = vmatpush1.bf16.msra.mxu0 0
      %4672 = vmatprep.subr.bf16.mxu0 0
      %4673 = vmatpush1.bf16.msra.mxu0 0
      %4674 = vmatprep.subr.bf16.mxu0 0
      %4675 = vmatpush1.bf16.msra.mxu0 0
      %4676 = vmatprep.subr.bf16.mxu0 0
      %4677 = vmatpush1.bf16.msra.mxu0 0
      %4678 = vmatprep.subr.bf16.mxu0 0
      %4679 = vmatpush1.bf16.msra.mxu0 0
      %4680 = vmatprep.mubr.bf16.mxu0 0
      %4681 = vmatmul.mubr.bf16.gmra.mrb[0].mxu0 %v4598
      %v4682 = vpop.f32.mrb[0].mxu0
      %v4683 = vadd.f32 %v4433, %v4682
      %v4684 = vpop.f32.mrb[0].mxu0
      %v4685 = vpop.f32.mrb[0].mxu0
      %v4686 = vadd.f32 %v4433, %v4685
      %v4687 = vpop.f32.mrb[0].mxu0
      %4688 = vmatprep.mubr.bf16.mxu0 0
      %4689 = vmatmul.mubr.bf16.gmra.mrb[0].mxu0 %v4601
      %v4690 = vpop.f32.mrb[0].mxu0
      %v4691 = vadd.f32 %v4433, %v4690
      %v4692 = vpop.f32.mrb[0].mxu0
      %v4693 = vpop.f32.mrb[0].mxu0
      %v4694 = vadd.f32 %v4433, %v4693
      %v4695 = vpop.f32.mrb[0].mxu0
      %4696 = vmatprep.mubr.bf16.mxu0 0
      %4697 = vmatmul.mubr.bf16.gmra.mrb[0].mxu0 %v4604
      %v4698 = vpop.f32.mrb[0].mxu0
      %v4699 = vadd.f32 %v4433, %v4698
      %v4700 = vpop.f32.mrb[0].mxu0
      %v4701 = vpop.f32.mrb[0].mxu0
      %v4702 = vadd.f32 %v4433, %v4701
      %v4703 = vpop.f32.mrb[0].mxu0
      %4704 = vmatprep.mubr.bf16.mxu0 0
      %4705 = vmatmul.mubr.bf16.gmra.mrb[0].mxu0 %v4607
      %v4706 = vpop.f32.mrb[0].mxu0
      %v4707 = vadd.f32 %v4433, %v4706
      %v4708 = vpop.f32.mrb[0].mxu0
      %v4709 = vpop.f32.mrb[0].mxu0
      %v4710 = vadd.f32 %v4433, %v4709
      %v4711 = vpop.f32.mrb[0].mxu0
      %4712 = vmatprep.mubr.bf16.mxu0 0
      %4713 = vmatmul.mubr.bf16.gmra.mrb[0].mxu0 %v4610
      %v4714 = vpop.f32.mrb[0].mxu0
      %v4715 = vadd.f32 %v4433, %v4714
      %v4716 = vpop.f32.mrb[0].mxu0
      %v4717 = vpop.f32.mrb[0].mxu0
      %v4718 = vadd.f32 %v4433, %v4717
      %v4719 = vpop.f32.mrb[0].mxu0
      %4720 = vmatprep.mubr.bf16.mxu0 0
      %4721 = vmatmul.mubr.bf16.gmra.mrb[0].mxu0 %v4613
      %v4722 = vpop.f32.mrb[0].mxu0
      %v4723 = vadd.f32 %v4433, %v4722
      %v4724 = vpop.f32.mrb[0].mxu0
      %v4725 = vpop.f32.mrb[0].mxu0
      %v4726 = vadd.f32 %v4433, %v4725
      %v4727 = vpop.f32.mrb[0].mxu0
      %4728 = vmatprep.mubr.bf16.mxu0 0
      %4729 = vmatmul.mubr.bf16.gmra.mrb[0].mxu0 %v4616
      %v4730 = vpop.f32.mrb[0].mxu0
      %v4731 = vadd.f32 %v4433, %v4730
      %v4732 = vpop.f32.mrb[0].mxu0
      %v4733 = vpop.f32.mrb[0].mxu0
      %v4734 = vadd.f32 %v4433, %v4733
      %v4735 = vpop.f32.mrb[0].mxu0
      %4736 = vmatprep.mubr.bf16.mxu0 0
      %4737 = vmatmul.mubr.bf16.gmra.mrb[0].mxu0 %v4619
      %v4738 = vpop.f32.mrb[0].mxu0
      %v4739 = vadd.f32 %v4433, %v4738
      %v4740 = vpop.f32.mrb[0].mxu0
      %v4741 = vpop.f32.mrb[0].mxu0
      %v4742 = vadd.f32 %v4433, %v4741
      %v4743 = vpop.f32.mrb[0].mxu0
      %4744 = vmatprep.mubr.bf16.mxu0 0
      %4745 = vmatmul.mubr.bf16.gmra.mrb[0].mxu0 %v4622
      %v4746 = vpop.f32.mrb[0].mxu0
      %v4747 = vadd.f32 %v4433, %v4746
      %v4748 = vpop.f32.mrb[0].mxu0
      %v4749 = vpop.f32.mrb[0].mxu0
      %v4750 = vadd.f32 %v4433, %v4749
      %v4751 = vpop.f32.mrb[0].mxu0
      %4752 = vmatprep.mubr.bf16.mxu0 0
      %4753 = vmatmul.mubr.bf16.gmra.mrb[0].mxu0 %v4625
      %v4754 = vpop.f32.mrb[0].mxu0
      %v4755 = vadd.f32 %v4433, %v4754
      %v4756 = vpop.f32.mrb[0].mxu0
      %v4757 = vpop.f32.mrb[0].mxu0
      %v4758 = vadd.f32 %v4433, %v4757
      %v4759 = vpop.f32.mrb[0].mxu0
      %4760 = vmatprep.mubr.bf16.mxu0 0
      %4761 = vmatmul.mubr.bf16.gmra.mrb[0].mxu0 %v4628
      %v4762 = vpop.f32.mrb[0].mxu0
      %v4763 = vadd.f32 %v4433, %v4762
      %v4764 = vpop.f32.mrb[0].mxu0
      %v4765 = vpop.f32.mrb[0].mxu0
      %v4766 = vadd.f32 %v4433, %v4765
      %v4767 = vpop.f32.mrb[0].mxu0
      %4768 = vmatprep.mubr.bf16.mxu0 0
      %4769 = vmatmul.mubr.bf16.gmra.mrb[0].mxu0 %v4631
      %v4770 = vpop.f32.mrb[0].mxu0
      %v4771 = vadd.f32 %v4433, %v4770
      %v4772 = vpop.f32.mrb[0].mxu0
      %v4773 = vpop.f32.mrb[0].mxu0
      %v4774 = vadd.f32 %v4433, %v4773
      %v4775 = vpop.f32.mrb[0].mxu0
      %4776 = vmatprep.mubr.bf16.mxu0 0
      %4777 = vmatmul.mubr.bf16.gmra.mrb[0].mxu0 %v4634
      %v4778 = vpop.f32.mrb[0].mxu0
      %v4779 = vadd.f32 %v4433, %v4778
      %v4780 = vpop.f32.mrb[0].mxu0
      %v4781 = vpop.f32.mrb[0].mxu0
      %v4782 = vadd.f32 %v4433, %v4781
      %v4783 = vpop.f32.mrb[0].mxu0
      %4784 = vmatprep.mubr.bf16.mxu0 0
      %4785 = vmatmul.mubr.bf16.gmra.mrb[0].mxu0 %v4637
      %v4786 = vpop.f32.mrb[0].mxu0
      %v4787 = vadd.f32 %v4433, %v4786
      %v4788 = vpop.f32.mrb[0].mxu0
      %v4789 = vpop.f32.mrb[0].mxu0
      %v4790 = vadd.f32 %v4433, %v4789
      %v4791 = vpop.f32.mrb[0].mxu0
      %4792 = vmatprep.mubr.bf16.mxu0 0
      %4793 = vmatmul.mubr.bf16.gmra.mrb[0].mxu0 %v4640
      %v4794 = vpop.f32.mrb[0].mxu0
      %v4795 = vadd.f32 %v4433, %v4794
      %v4796 = vpop.f32.mrb[0].mxu0
      %v4797 = vpop.f32.mrb[0].mxu0
      %v4798 = vadd.f32 %v4433, %v4797
      %v4799 = vpop.f32.mrb[0].mxu0
      %4800 = vmatprep.mubr.bf16.mxu0 0
      %4801 = vmatmul.mubr.bf16.gmra.mrb[0].mxu0 %v4643
      %v4802 = vpop.f32.mrb[0].mxu0
      %v4803 = vadd.f32 %v4433, %v4802
      %v4804 = vpop.f32.mrb[0].mxu0
      %v4805 = vpop.f32.mrb[0].mxu0
      %v4806 = vadd.f32 %v4433, %v4805
      %v4807 = vpop.f32.mrb[0].mxu0
      %4808 = vdwg.mxu0
      %v4809 = vmax.f32 %v4683, 0.0
      %v4810 = vmax.f32 %v4686, 0.0
      %v4811 = vmax.f32 %v4691, 0.0
      %v4812 = vmax.f32 %v4694, 0.0
      %v4813 = vmax.f32 %v4699, 0.0
      %v4814 = vmax.f32 %v4702, 0.0
      %v4815 = vmax.f32 %v4707, 0.0
      %v4816 = vmax.f32 %v4710, 0.0
      %v4817 = vmax.f32 %v4715, 0.0
      %v4818 = vmax.f32 %v4718, 0.0
      %v4819 = vmax.f32 %v4723, 0.0
      %v4820 = vmax.f32 %v4726, 0.0
      %v4821 = vmax.f32 %v4731, 0.0
      %v4822 = vmax.f32 %v4734, 0.0
      %v4823 = vmax.f32 %v4739, 0.0
      %v4824 = vmax.f32 %v4742, 0.0
      %v4825 = vmax.f32 %v4747, 0.0
      %v4826 = vmax.f32 %v4750, 0.0
      %v4827 = vmax.f32 %v4755, 0.0
      %v4828 = vmax.f32 %v4758, 0.0
      %v4829 = vmax.f32 %v4763, 0.0
      %v4830 = vmax.f32 %v4766, 0.0
      %v4831 = vmax.f32 %v4771, 0.0
      %v4832 = vmax.f32 %v4774, 0.0
      %v4833 = vmax.f32 %v4779, 0.0
      %v4834 = vmax.f32 %v4782, 0.0
      %v4835 = vmax.f32 %v4787, 0.0
      %v4836 = vmax.f32 %v4790, 0.0
      %v4837 = vmax.f32 %v4795, 0.0
      %v4838 = vmax.f32 %v4798, 0.0
      %v4839 = vmax.f32 %v4803, 0.0
      %v4840 = vmax.f32 %v4806, 0.0
      %v4841 = vpack.c.bf16 %v4810, %v4809
      %v4842 = vpack.c.bf16 %v4812, %v4811
      %v4843 = vpack.c.bf16 %v4814, %v4813
      %v4844 = vpack.c.bf16 %v4816, %v4815
      %v4845 = vpack.c.bf16 %v4818, %v4817
      %v4846 = vpack.c.bf16 %v4820, %v4819
      %v4847 = vpack.c.bf16 %v4822, %v4821
      %v4848 = vpack.c.bf16 %v4824, %v4823
      %v4849 = vpack.c.bf16 %v4826, %v4825
      %v4850 = vpack.c.bf16 %v4828, %v4827
      %v4851 = vpack.c.bf16 %v4830, %v4829
      %v4852 = vpack.c.bf16 %v4832, %v4831
      %v4853 = vpack.c.bf16 %v4834, %v4833
      %v4854 = vpack.c.bf16 %v4836, %v4835
      %v4855 = vpack.c.bf16 %v4838, %v4837
      %v4856 = vpack.c.bf16 %v4840, %v4839
      %v4873 = vrot.slane %v4841, 4
      %v4874 = vrot.slane %v4842, 4
      %v4875 = vsel %vm3294, %v4873, %v4874
      %v4876 = vrot.slane %v4843, 4
      %v4877 = vsel %vm3294, %v4874, %v4876
      %v4878 = vrot.slane %v4844, 4
      %v4879 = vsel %vm3294, %v4876, %v4878
      %v4880 = vrot.slane %v4845, 4
      %v4881 = vsel %vm3294, %v4878, %v4880
      %v4882 = vrot.slane %v4846, 4
      %v4883 = vsel %vm3294, %v4880, %v4882
      %v4884 = vrot.slane %v4847, 4
      %v4885 = vsel %vm3294, %v4882, %v4884
      %v4886 = vrot.slane %v4848, 4
      %v4887 = vsel %vm3294, %v4884, %v4886
      %v4888 = vrot.slane %v4849, 4
      %v4889 = vsel %vm3294, %v4886, %v4888
      %v4890 = vrot.slane %v4850, 4
      %v4891 = vsel %vm3294, %v4888, %v4890
      %v4892 = vrot.slane %v4851, 4
      %v4893 = vsel %vm3294, %v4890, %v4892
      %v4894 = vrot.slane %v4852, 4
      %v4895 = vsel %vm3294, %v4892, %v4894
      %v4896 = vrot.slane %v4853, 4
      %v4897 = vsel %vm3294, %v4894, %v4896
      %v4898 = vrot.slane %v4854, 4
      %v4899 = vsel %vm3294, %v4896, %v4898
      %v4900 = vrot.slane %v4855, 4
      %v4901 = vsel %vm3294, %v4898, %v4900
      %v4902 = vrot.slane %v4856, 4
      %v4903 = vsel %vm3294, %v4900, %v4902
      %4921 = vst.msk [vmem:[#allocation2 + $0x8] sm:$0xf0] %vm1077, %v4873
      %4922 = vst.msk [vmem:[#allocation2 + $0x10] sm:$0xff] %vm1079, %v4875
      %4923 = vst.msk [vmem:[#allocation2 + $0x18] sm:$0xff] %vm1079, %v4877
      %4924 = vst.msk [vmem:[#allocation2 + $0x20] sm:$0xff] %vm1079, %v4879
      %4925 = vst.msk [vmem:[#allocation2 + $0x28] sm:$0xff] %vm1079, %v4881
      %4926 = vst.msk [vmem:[#allocation2 + $0x30] sm:$0xff] %vm1079, %v4883
      %4927 = vst.msk [vmem:[#allocation2 + $0x38] sm:$0xff] %vm1079, %v4885
      %4928 = vst.msk [vmem:[#allocation2 + $0x40] sm:$0xff] %vm1079, %v4887
      %4929 = vst.msk [vmem:[#allocation2 + $0x48] sm:$0xff] %vm1079, %v4889
      %4930 = vst.msk [vmem:[#allocation2 + $0x50] sm:$0xff] %vm1079, %v4891
      %4931 = vst.msk [vmem:[#allocation2 + $0x58] sm:$0xff] %vm1079, %v4893
      %4932 = vst.msk [vmem:[#allocation2 + $0x60] sm:$0xff] %vm1079, %v4895
      %4933 = vst.msk [vmem:[#allocation2 + $0x68] sm:$0xff] %vm1079, %v4897
      %4934 = vst.msk [vmem:[#allocation2 + $0x70] sm:$0xff] %vm1079, %v4899
      %4935 = vst.msk [vmem:[#allocation2 + $0x78] sm:$0xff] %vm1079, %v4901
      %4936 = vst.msk [vmem:[#allocation2 + $0x80] sm:$0xff] %vm1079, %v4903
      %4937 = vst.msk [vmem:[#allocation2 + $0x88] sm:$0xf] %vm1095, %v4902
      %v4938 = vld [vmem:[#allocation2] sm:$0xf8]
      %v4939 = vld [vmem:[#allocation2 + $0x8] sm:$0xff]
      %v4940 = vld [vmem:[#allocation2 + $0x10] sm:$0xff]
      %v4941 = vld [vmem:[#allocation2 + $0x18] sm:$0xff]
      %v4942 = vld [vmem:[#allocation2 + $0x20] sm:$0xff]
      %v4943 = vld [vmem:[#allocation2 + $0x28] sm:$0xff]
      %v4944 = vld [vmem:[#allocation2 + $0x30] sm:$0xff]
      %v4945 = vld [vmem:[#allocation2 + $0x38] sm:$0xff]
      %v4946 = vld [vmem:[#allocation2 + $0x40] sm:$0xff]
      %v4947 = vld [vmem:[#allocation2 + $0x48] sm:$0xff]
      %v4948 = vld [vmem:[#allocation2 + $0x50] sm:$0xff]
      %v4949 = vld [vmem:[#allocation2 + $0x58] sm:$0xff]
      %v4950 = vld [vmem:[#allocation2 + $0x60] sm:$0xff]
      %v4951 = vld [vmem:[#allocation2 + $0x68] sm:$0xff]
      %v4952 = vld [vmem:[#allocation2 + $0x70] sm:$0xff]
      %v4953 = vld [vmem:[#allocation2 + $0x78] sm:$0xff]
      %v4954 = vld [vmem:[#allocation2 + $0x80] sm:$0xf]
      %v4955 = vsel %vm1434, %v4938, 0
      %v4956 = vsel %vm1435, %v4939, 0
      %v4957 = vsel %vm1436, %v4940, 0
      %v4958 = vsel %vm1437, %v4941, 0
      %v4959 = vsel %vm1438, %v4942, 0
      %v4960 = vsel %vm1439, %v4943, 0
      %v4961 = vsel %vm1440, %v4944, 0
      %v4962 = vsel %vm1441, %v4945, 0
      %v4963 = vsel %vm1442, %v4946, 0
      %v4964 = vsel %vm1443, %v4947, 0
      %v4965 = vsel %vm1444, %v4948, 0
      %v4966 = vsel %vm1445, %v4949, 0
      %v4967 = vsel %vm1446, %v4950, 0
      %v4968 = vsel %vm1447, %v4951, 0
      %v4969 = vsel %vm1448, %v4952, 0
      %v4970 = vsel %vm1449, %v4953, 0
      %v4971 = vsel %vm1450, %v4954, 0
      %v4972 = vld [vmem:[#allocation2] sm:$0xf0]
      %v4973 = vld [vmem:[#allocation2 + $0x80] sm:$0x1f]
      %v4974 = vsel %vm1790, %v4972, 0
      %v4975 = vsel %vm1791, %v4939, 0
      %v4976 = vsel %vm1792, %v4940, 0
      %v4977 = vsel %vm1793, %v4941, 0
      %v4978 = vsel %vm1794, %v4942, 0
      %v4979 = vsel %vm1795, %v4943, 0
      %v4980 = vsel %vm1796, %v4944, 0
      %v4981 = vsel %vm1797, %v4945, 0
      %v4982 = vsel %vm1798, %v4946, 0
      %v4983 = vsel %vm1799, %v4947, 0
      %v4984 = vsel %vm1800, %v4948, 0
      %v4985 = vsel %vm1801, %v4949, 0
      %v4986 = vsel %vm1802, %v4950, 0
      %v4987 = vsel %vm1803, %v4951, 0
      %v4988 = vsel %vm1804, %v4952, 0
      %v4989 = vsel %vm1805, %v4953, 0
      %v4990 = vsel %vm1806, %v4973, 0
      %v4991 = vld [vmem:[#allocation2 + $0x8] sm:$0xf8]
      %v4992 = vld [vmem:[#allocation2 + $0x80] sm:$0xff]
      %v4993 = vld [vmem:[#allocation2 + $0x88] sm:$0xf]
      %v4994 = vsel %vm1434, %v4991, 0
      %v4995 = vsel %vm1435, %v4940, 0
      %v4996 = vsel %vm1436, %v4941, 0
      %v4997 = vsel %vm1437, %v4942, 0
      %v4998 = vsel %vm1438, %v4943, 0
      %v4999 = vsel %vm1439, %v4944, 0
      %v5000 = vsel %vm1440, %v4945, 0
      %v5001 = vsel %vm1441, %v4946, 0
      %v5002 = vsel %vm1442, %v4947, 0
      %v5003 = vsel %vm1443, %v4948, 0
      %v5004 = vsel %vm1444, %v4949, 0
      %v5005 = vsel %vm1445, %v4950, 0
      %v5006 = vsel %vm1446, %v4951, 0
      %v5007 = vsel %vm1447, %v4952, 0
      %v5008 = vsel %vm1448, %v4953, 0
      %v5009 = vsel %vm1449, %v4992, 0
      %v5010 = vsel %vm1450, %v4993, 0
      %v5011 = vld [vmem:[#allocation2 + $0x8] sm:$0xf0]
      %v5012 = vld [vmem:[#allocation2 + $0x88] sm:$0x1f]
      %v5013 = vsel %vm1790, %v5011, 0
      %v5014 = vsel %vm1791, %v4940, 0
      %v5015 = vsel %vm1792, %v4941, 0
      %v5016 = vsel %vm1793, %v4942, 0
      %v5017 = vsel %vm1794, %v4943, 0
      %v5018 = vsel %vm1795, %v4944, 0
      %v5019 = vsel %vm1796, %v4945, 0
      %v5020 = vsel %vm1797, %v4946, 0
      %v5021 = vsel %vm1798, %v4947, 0
      %v5022 = vsel %vm1799, %v4948, 0
      %v5023 = vsel %vm1800, %v4949, 0
      %v5024 = vsel %vm1801, %v4950, 0
      %v5025 = vsel %vm1802, %v4951, 0
      %v5026 = vsel %vm1803, %v4952, 0
      %v5027 = vsel %vm1804, %v4953, 0
      %v5028 = vsel %vm1805, %v4992, 0
      %v5029 = vsel %vm1806, %v5012, 0
      %v5030 = vld [vmem:[#allocation2 + $0x10] sm:$0xf8]
      %v5031 = vld [vmem:[#allocation2 + $0x88] sm:$0xff]
      %v5032 = vld [vmem:[#allocation2 + $0x90] sm:$0xf]
      %v5033 = vsel %vm1434, %v5030, 0
      %v5034 = vsel %vm1435, %v4941, 0
      %v5035 = vsel %vm1436, %v4942, 0
      %v5036 = vsel %vm1437, %v4943, 0
      %v5037 = vsel %vm1438, %v4944, 0
      %v5038 = vsel %vm1439, %v4945, 0
      %v5039 = vsel %vm1440, %v4946, 0
      %v5040 = vsel %vm1441, %v4947, 0
      %v5041 = vsel %vm1442, %v4948, 0
      %v5042 = vsel %vm1443, %v4949, 0
      %v5043 = vsel %vm1444, %v4950, 0
      %v5044 = vsel %vm1445, %v4951, 0
      %v5045 = vsel %vm1446, %v4952, 0
      %v5046 = vsel %vm1447, %v4953, 0
      %v5047 = vsel %vm1448, %v4992, 0
      %v5048 = vsel %vm1449, %v5031, 0
      %v5049 = vsel %vm1450, %v5032, 0
      %v5050 = vld [vmem:[#allocation2 + $0x10] sm:$0xf0]
      %v5051 = vld [vmem:[#allocation2 + $0x90] sm:$0x1f]
      %v5052 = vsel %vm1790, %v5050, 0
      %v5053 = vsel %vm1791, %v4941, 0
      %v5054 = vsel %vm1792, %v4942, 0
      %v5055 = vsel %vm1793, %v4943, 0
      %v5056 = vsel %vm1794, %v4944, 0
      %v5057 = vsel %vm1795, %v4945, 0
      %v5058 = vsel %vm1796, %v4946, 0
      %v5059 = vsel %vm1797, %v4947, 0
      %v5060 = vsel %vm1798, %v4948, 0
      %v5061 = vsel %vm1799, %v4949, 0
      %v5062 = vsel %vm1800, %v4950, 0
      %v5063 = vsel %vm1801, %v4951, 0
      %v5064 = vsel %vm1802, %v4952, 0
      %v5065 = vsel %vm1803, %v4953, 0
      %v5066 = vsel %vm1804, %v4992, 0
      %v5067 = vsel %vm1805, %v5031, 0
      %v5068 = vsel %vm1806, %v5051, 0
      %v5070 = vshrl.u32 %v4972, 16
      %v5072 = vshll.u32 %v4972, 16
      %v5074 = vrot.slane %v5072, 1
      %v5075 = vor.u32 %v5070, %v5074
      %v5077 = vshll.u32 %v4939, 16
      %v5079 = vrot.slane %v5077, 1
      %v5080 = vsel %vm1902, %v5075, %v5079
      %v5081 = vshrl.u32 %v4939, 16
      %v5083 = vor.u32 %v5081, %v5079
      %v5085 = vshll.u32 %v4940, 16
      %v5087 = vrot.slane %v5085, 1
      %v5088 = vsel %vm1902, %v5083, %v5087
      %v5089 = vshrl.u32 %v4940, 16
      %v5091 = vor.u32 %v5089, %v5087
      %v5093 = vshll.u32 %v4941, 16
      %v5095 = vrot.slane %v5093, 1
      %v5096 = vsel %vm1902, %v5091, %v5095
      %v5097 = vshrl.u32 %v4941, 16
      %v5099 = vor.u32 %v5097, %v5095
      %v5101 = vshll.u32 %v4942, 16
      %v5103 = vrot.slane %v5101, 1
      %v5104 = vsel %vm1902, %v5099, %v5103
      %v5105 = vshrl.u32 %v4942, 16
      %v5107 = vor.u32 %v5105, %v5103
      %v5109 = vshll.u32 %v4943, 16
      %v5111 = vrot.slane %v5109, 1
      %v5112 = vsel %vm1902, %v5107, %v5111
      %v5113 = vshrl.u32 %v4943, 16
      %v5115 = vor.u32 %v5113, %v5111
      %v5117 = vshll.u32 %v4944, 16
      %v5119 = vrot.slane %v5117, 1
      %v5120 = vsel %vm1902, %v5115, %v5119
      %v5121 = vshrl.u32 %v4944, 16
      %v5123 = vor.u32 %v5121, %v5119
      %v5125 = vshll.u32 %v4945, 16
      %v5127 = vrot.slane %v5125, 1
      %v5128 = vsel %vm1902, %v5123, %v5127
      %v5129 = vshrl.u32 %v4945, 16
      %v5131 = vor.u32 %v5129, %v5127
      %v5133 = vshll.u32 %v4946, 16
      %v5135 = vrot.slane %v5133, 1
      %v5136 = vsel %vm1902, %v5131, %v5135
      %v5137 = vshrl.u32 %v4946, 16
      %v5139 = vor.u32 %v5137, %v5135
      %v5141 = vshll.u32 %v4947, 16
      %v5143 = vrot.slane %v5141, 1
      %v5144 = vsel %vm1902, %v5139, %v5143
      %v5145 = vshrl.u32 %v4947, 16
      %v5147 = vor.u32 %v5145, %v5143
      %v5149 = vshll.u32 %v4948, 16
      %v5151 = vrot.slane %v5149, 1
      %v5152 = vsel %vm1902, %v5147, %v5151
      %v5153 = vshrl.u32 %v4948, 16
      %v5155 = vor.u32 %v5153, %v5151
      %v5157 = vshll.u32 %v4949, 16
      %v5159 = vrot.slane %v5157, 1
      %v5160 = vsel %vm1902, %v5155, %v5159
      %v5161 = vshrl.u32 %v4949, 16
      %v5163 = vor.u32 %v5161, %v5159
      %v5165 = vshll.u32 %v4950, 16
      %v5167 = vrot.slane %v5165, 1
      %v5168 = vsel %vm1902, %v5163, %v5167
      %v5169 = vshrl.u32 %v4950, 16
      %v5171 = vor.u32 %v5169, %v5167
      %v5173 = vshll.u32 %v4951, 16
      %v5175 = vrot.slane %v5173, 1
      %v5176 = vsel %vm1902, %v5171, %v5175
      %v5177 = vshrl.u32 %v4951, 16
      %v5179 = vor.u32 %v5177, %v5175
      %v5181 = vshll.u32 %v4952, 16
      %v5183 = vrot.slane %v5181, 1
      %v5184 = vsel %vm1902, %v5179, %v5183
      %v5185 = vshrl.u32 %v4952, 16
      %v5187 = vor.u32 %v5185, %v5183
      %v5189 = vshll.u32 %v4953, 16
      %v5191 = vrot.slane %v5189, 1
      %v5192 = vsel %vm1902, %v5187, %v5191
      %v5193 = vshrl.u32 %v4953, 16
      %v5195 = vor.u32 %v5193, %v5191
      %v5197 = vshll.u32 %v4954, 16
      %v5199 = vrot.slane %v5197, 1
      %v5200 = vsel %vm1902, %v5195, %v5199
      %v5201 = vshrl.u32 %v4954, 16
      %v5203 = vor.u32 %v5201, %v5199
      %5204 = vrot.lane.b32.xlu0 %v5080, 8
      %v5205 = vpop.permute.xlu0 %5204
      %5206 = vrot.lane.b32.xlu0 %v5088, 8
      %v5207 = vpop.permute.xlu0 %5206
      %5208 = vrot.lane.b32.xlu0 %v5096, 8
      %v5209 = vpop.permute.xlu0 %5208
      %5210 = vrot.lane.b32.xlu0 %v5104, 8
      %v5211 = vpop.permute.xlu0 %5210
      %5212 = vrot.lane.b32.xlu0 %v5112, 8
      %v5213 = vpop.permute.xlu0 %5212
      %5214 = vrot.lane.b32.xlu0 %v5120, 8
      %v5215 = vpop.permute.xlu0 %5214
      %5216 = vrot.lane.b32.xlu0 %v5128, 8
      %v5217 = vpop.permute.xlu0 %5216
      %5218 = vrot.lane.b32.xlu0 %v5136, 8
      %v5219 = vpop.permute.xlu0 %5218
      %5220 = vrot.lane.b32.xlu0 %v5144, 8
      %v5221 = vpop.permute.xlu0 %5220
      %5222 = vrot.lane.b32.xlu0 %v5152, 8
      %v5223 = vpop.permute.xlu0 %5222
      %5224 = vrot.lane.b32.xlu0 %v5160, 8
      %v5225 = vpop.permute.xlu0 %5224
      %5226 = vrot.lane.b32.xlu0 %v5168, 8
      %v5227 = vpop.permute.xlu0 %5226
      %5228 = vrot.lane.b32.xlu0 %v5176, 8
      %v5229 = vpop.permute.xlu0 %5228
      %5230 = vrot.lane.b32.xlu0 %v5184, 8
      %v5231 = vpop.permute.xlu0 %5230
      %5232 = vrot.lane.b32.xlu0 %v5192, 8
      %v5233 = vpop.permute.xlu0 %5232
      %5234 = vrot.lane.b32.xlu0 %v5200, 8
      %v5235 = vpop.permute.xlu0 %5234
      %5236 = vrot.lane.b32.xlu0 %v5203, 8
      %v5237 = vpop.permute.xlu0 %5236
      %v5255 = vrot.slane %v4974, 1
      %v5256 = vrot.slane %v4975, 1
      %v5257 = vsel %vm2089, %v5255, %v5256
      %v5258 = vrot.slane %v4976, 1
      %v5259 = vsel %vm2089, %v5256, %v5258
      %v5260 = vrot.slane %v4977, 1
      %v5261 = vsel %vm2089, %v5258, %v5260
      %v5262 = vrot.slane %v4978, 1
      %v5263 = vsel %vm2089, %v5260, %v5262
      %v5264 = vrot.slane %v4979, 1
      %v5265 = vsel %vm2089, %v5262, %v5264
      %v5266 = vrot.slane %v4980, 1
      %v5267 = vsel %vm2089, %v5264, %v5266
      %v5268 = vrot.slane %v4981, 1
      %v5269 = vsel %vm2089, %v5266, %v5268
      %v5270 = vrot.slane %v4982, 1
      %v5271 = vsel %vm2089, %v5268, %v5270
      %v5272 = vrot.slane %v4983, 1
      %v5273 = vsel %vm2089, %v5270, %v5272
      %v5274 = vrot.slane %v4984, 1
      %v5275 = vsel %vm2089, %v5272, %v5274
      %v5276 = vrot.slane %v4985, 1
      %v5277 = vsel %vm2089, %v5274, %v5276
      %v5278 = vrot.slane %v4986, 1
      %v5279 = vsel %vm2089, %v5276, %v5278
      %v5280 = vrot.slane %v4987, 1
      %v5281 = vsel %vm2089, %v5278, %v5280
      %v5282 = vrot.slane %v4988, 1
      %v5283 = vsel %vm2089, %v5280, %v5282
      %v5284 = vrot.slane %v4989, 1
      %v5285 = vsel %vm2089, %v5282, %v5284
      %v5286 = vrot.slane %v4990, 1
      %v5287 = vsel %vm2089, %v5284, %v5286
      %5288 = vrot.lane.b32.xlu0 %v5257, 16
      %v5289 = vpop.permute.xlu0 %5288
      %5290 = vrot.lane.b32.xlu0 %v5259, 16
      %v5291 = vpop.permute.xlu0 %5290
      %5292 = vrot.lane.b32.xlu0 %v5261, 16
      %v5293 = vpop.permute.xlu0 %5292
      %5294 = vrot.lane.b32.xlu0 %v5263, 16
      %v5295 = vpop.permute.xlu0 %5294
      %5296 = vrot.lane.b32.xlu0 %v5265, 16
      %v5297 = vpop.permute.xlu0 %5296
      %5298 = vrot.lane.b32.xlu0 %v5267, 16
      %v5299 = vpop.permute.xlu0 %5298
      %5300 = vrot.lane.b32.xlu0 %v5269, 16
      %v5301 = vpop.permute.xlu0 %5300
      %5302 = vrot.lane.b32.xlu0 %v5271, 16
      %v5303 = vpop.permute.xlu0 %5302
      %5304 = vrot.lane.b32.xlu0 %v5273, 16
      %v5305 = vpop.permute.xlu0 %5304
      %5306 = vrot.lane.b32.xlu0 %v5275, 16
      %v5307 = vpop.permute.xlu0 %5306
      %5308 = vrot.lane.b32.xlu0 %v5277, 16
      %v5309 = vpop.permute.xlu0 %5308
      %5310 = vrot.lane.b32.xlu0 %v5279, 16
      %v5311 = vpop.permute.xlu0 %5310
      %5312 = vrot.lane.b32.xlu0 %v5281, 16
      %v5313 = vpop.permute.xlu0 %5312
      %5314 = vrot.lane.b32.xlu0 %v5283, 16
      %v5315 = vpop.permute.xlu0 %5314
      %5316 = vrot.lane.b32.xlu0 %v5285, 16
      %v5317 = vpop.permute.xlu0 %5316
      %5318 = vrot.lane.b32.xlu0 %v5287, 16
      %v5319 = vpop.permute.xlu0 %5318
      %5320 = vrot.lane.b32.xlu0 %v5286, 16
      %v5321 = vpop.permute.xlu0 %5320
      %5339 = vrot.lane.b32.xlu0 %v4994, 24
      %v5340 = vpop.permute.xlu0 %5339
      %5341 = vrot.lane.b32.xlu0 %v4995, 24
      %v5342 = vpop.permute.xlu0 %5341
      %5343 = vrot.lane.b32.xlu0 %v4996, 24
      %v5344 = vpop.permute.xlu0 %5343
      %5345 = vrot.lane.b32.xlu0 %v4997, 24
      %v5346 = vpop.permute.xlu0 %5345
      %5347 = vrot.lane.b32.xlu0 %v4998, 24
      %v5348 = vpop.permute.xlu0 %5347
      %5349 = vrot.lane.b32.xlu0 %v4999, 24
      %v5350 = vpop.permute.xlu0 %5349
      %5351 = vrot.lane.b32.xlu0 %v5000, 24
      %v5352 = vpop.permute.xlu0 %5351
      %5353 = vrot.lane.b32.xlu0 %v5001, 24
      %v5354 = vpop.permute.xlu0 %5353
      %5355 = vrot.lane.b32.xlu0 %v5002, 24
      %v5356 = vpop.permute.xlu0 %5355
      %5357 = vrot.lane.b32.xlu0 %v5003, 24
      %v5358 = vpop.permute.xlu0 %5357
      %5359 = vrot.lane.b32.xlu0 %v5004, 24
      %v5360 = vpop.permute.xlu0 %5359
      %5361 = vrot.lane.b32.xlu0 %v5005, 24
      %v5362 = vpop.permute.xlu0 %5361
      %5363 = vrot.lane.b32.xlu0 %v5006, 24
      %v5364 = vpop.permute.xlu0 %5363
      %5365 = vrot.lane.b32.xlu0 %v5007, 24
      %v5366 = vpop.permute.xlu0 %5365
      %5367 = vrot.lane.b32.xlu0 %v5008, 24
      %v5368 = vpop.permute.xlu0 %5367
      %5369 = vrot.lane.b32.xlu0 %v5009, 24
      %v5370 = vpop.permute.xlu0 %5369
      %5371 = vrot.lane.b32.xlu0 %v5010, 24
      %v5372 = vpop.permute.xlu0 %5371
      %v5374 = vshrl.u32 %v5011, 16
      %v5376 = vshll.u32 %v5011, 16
      %v5378 = vrot.slane %v5376, 1
      %v5379 = vor.u32 %v5374, %v5378
      %v5380 = vsel %vm1902, %v5379, %v5087
      %v5382 = vshll.u32 %v4992, 16
      %v5384 = vrot.slane %v5382, 1
      %v5385 = vsel %vm1902, %v5195, %v5384
      %v5386 = vshrl.u32 %v4992, 16
      %v5388 = vor.u32 %v5386, %v5384
      %v5390 = vshll.u32 %v4993, 16
      %v5392 = vrot.slane %v5390, 1
      %v5393 = vsel %vm1902, %v5388, %v5392
      %v5394 = vshrl.u32 %v4993, 16
      %v5396 = vor.u32 %v5394, %v5392
      %5397 = vrot.lane.b32.xlu0 %v5380, 32
      %v5398 = vpop.permute.xlu0 %5397
      %5399 = vrot.lane.b32.xlu0 %v5096, 32
      %v5400 = vpop.permute.xlu0 %5399
      %5401 = vrot.lane.b32.xlu0 %v5104, 32
      %v5402 = vpop.permute.xlu0 %5401
      %5403 = vrot.lane.b32.xlu0 %v5112, 32
      %v5404 = vpop.permute.xlu0 %5403
      %5405 = vrot.lane.b32.xlu0 %v5120, 32
      %v5406 = vpop.permute.xlu0 %5405
      %5407 = vrot.lane.b32.xlu0 %v5128, 32
      %v5408 = vpop.permute.xlu0 %5407
      %5409 = vrot.lane.b32.xlu0 %v5136, 32
      %v5410 = vpop.permute.xlu0 %5409
      %5411 = vrot.lane.b32.xlu0 %v5144, 32
      %v5412 = vpop.permute.xlu0 %5411
      %5413 = vrot.lane.b32.xlu0 %v5152, 32
      %v5414 = vpop.permute.xlu0 %5413
      %5415 = vrot.lane.b32.xlu0 %v5160, 32
      %v5416 = vpop.permute.xlu0 %5415
      %5417 = vrot.lane.b32.xlu0 %v5168, 32
      %v5418 = vpop.permute.xlu0 %5417
      %5419 = vrot.lane.b32.xlu0 %v5176, 32
      %v5420 = vpop.permute.xlu0 %5419
      %5421 = vrot.lane.b32.xlu0 %v5184, 32
      %v5422 = vpop.permute.xlu0 %5421
      %5423 = vrot.lane.b32.xlu0 %v5192, 32
      %v5424 = vpop.permute.xlu0 %5423
      %5425 = vrot.lane.b32.xlu0 %v5385, 32
      %v5426 = vpop.permute.xlu0 %5425
      %5427 = vrot.lane.b32.xlu0 %v5393, 32
      %v5428 = vpop.permute.xlu0 %5427
      %5429 = vrot.lane.b32.xlu0 %v5396, 32
      %v5430 = vpop.permute.xlu0 %5429
      %v5448 = vrot.slane %v5013, 1
      %v5449 = vrot.slane %v5014, 1
      %v5450 = vsel %vm2089, %v5448, %v5449
      %v5451 = vrot.slane %v5015, 1
      %v5452 = vsel %vm2089, %v5449, %v5451
      %v5453 = vrot.slane %v5016, 1
      %v5454 = vsel %vm2089, %v5451, %v5453
      %v5455 = vrot.slane %v5017, 1
      %v5456 = vsel %vm2089, %v5453, %v5455
      %v5457 = vrot.slane %v5018, 1
      %v5458 = vsel %vm2089, %v5455, %v5457
      %v5459 = vrot.slane %v5019, 1
      %v5460 = vsel %vm2089, %v5457, %v5459
      %v5461 = vrot.slane %v5020, 1
      %v5462 = vsel %vm2089, %v5459, %v5461
      %v5463 = vrot.slane %v5021, 1
      %v5464 = vsel %vm2089, %v5461, %v5463
      %v5465 = vrot.slane %v5022, 1
      %v5466 = vsel %vm2089, %v5463, %v5465
      %v5467 = vrot.slane %v5023, 1
      %v5468 = vsel %vm2089, %v5465, %v5467
      %v5469 = vrot.slane %v5024, 1
      %v5470 = vsel %vm2089, %v5467, %v5469
      %v5471 = vrot.slane %v5025, 1
      %v5472 = vsel %vm2089, %v5469, %v5471
      %v5473 = vrot.slane %v5026, 1
      %v5474 = vsel %vm2089, %v5471, %v5473
      %v5475 = vrot.slane %v5027, 1
      %v5476 = vsel %vm2089, %v5473, %v5475
      %v5477 = vrot.slane %v5028, 1
      %v5478 = vsel %vm2089, %v5475, %v5477
      %v5479 = vrot.slane %v5029, 1
      %v5480 = vsel %vm2089, %v5477, %v5479
      %5481 = vrot.lane.b32.xlu0 %v5450, 40
      %v5482 = vpop.permute.xlu0 %5481
      %5483 = vrot.lane.b32.xlu0 %v5452, 40
      %v5484 = vpop.permute.xlu0 %5483
      %5485 = vrot.lane.b32.xlu0 %v5454, 40
      %v5486 = vpop.permute.xlu0 %5485
      %5487 = vrot.lane.b32.xlu0 %v5456, 40
      %v5488 = vpop.permute.xlu0 %5487
      %5489 = vrot.lane.b32.xlu0 %v5458, 40
      %v5490 = vpop.permute.xlu0 %5489
      %5491 = vrot.lane.b32.xlu0 %v5460, 40
      %v5492 = vpop.permute.xlu0 %5491
      %5493 = vrot.lane.b32.xlu0 %v5462, 40
      %v5494 = vpop.permute.xlu0 %5493
      %5495 = vrot.lane.b32.xlu0 %v5464, 40
      %v5496 = vpop.permute.xlu0 %5495
      %5497 = vrot.lane.b32.xlu0 %v5466, 40
      %v5498 = vpop.permute.xlu0 %5497
      %5499 = vrot.lane.b32.xlu0 %v5468, 40
      %v5500 = vpop.permute.xlu0 %5499
      %5501 = vrot.lane.b32.xlu0 %v5470, 40
      %v5502 = vpop.permute.xlu0 %5501
      %5503 = vrot.lane.b32.xlu0 %v5472, 40
      %v5504 = vpop.permute.xlu0 %5503
      %5505 = vrot.lane.b32.xlu0 %v5474, 40
      %v5506 = vpop.permute.xlu0 %5505
      %5507 = vrot.lane.b32.xlu0 %v5476, 40
      %v5508 = vpop.permute.xlu0 %5507
      %5509 = vrot.lane.b32.xlu0 %v5478, 40
      %v5510 = vpop.permute.xlu0 %5509
      %5511 = vrot.lane.b32.xlu0 %v5480, 40
      %v5512 = vpop.permute.xlu0 %5511
      %5513 = vrot.lane.b32.xlu0 %v5479, 40
      %v5514 = vpop.permute.xlu0 %5513
      %5532 = vrot.lane.b32.xlu0 %v5033, 48
      %v5533 = vpop.permute.xlu0 %5532
      %5534 = vrot.lane.b32.xlu0 %v5034, 48
      %v5535 = vpop.permute.xlu0 %5534
      %5536 = vrot.lane.b32.xlu0 %v5035, 48
      %v5537 = vpop.permute.xlu0 %5536
      %5538 = vrot.lane.b32.xlu0 %v5036, 48
      %v5539 = vpop.permute.xlu0 %5538
      %5540 = vrot.lane.b32.xlu0 %v5037, 48
      %v5541 = vpop.permute.xlu0 %5540
      %5542 = vrot.lane.b32.xlu0 %v5038, 48
      %v5543 = vpop.permute.xlu0 %5542
      %5544 = vrot.lane.b32.xlu0 %v5039, 48
      %v5545 = vpop.permute.xlu0 %5544
      %5546 = vrot.lane.b32.xlu0 %v5040, 48
      %v5547 = vpop.permute.xlu0 %5546
      %5548 = vrot.lane.b32.xlu0 %v5041, 48
      %v5549 = vpop.permute.xlu0 %5548
      %5550 = vrot.lane.b32.xlu0 %v5042, 48
      %v5551 = vpop.permute.xlu0 %5550
      %5552 = vrot.lane.b32.xlu0 %v5043, 48
      %v5553 = vpop.permute.xlu0 %5552
      %5554 = vrot.lane.b32.xlu0 %v5044, 48
      %v5555 = vpop.permute.xlu0 %5554
      %5556 = vrot.lane.b32.xlu0 %v5045, 48
      %v5557 = vpop.permute.xlu0 %5556
      %5558 = vrot.lane.b32.xlu0 %v5046, 48
      %v5559 = vpop.permute.xlu0 %5558
      %5560 = vrot.lane.b32.xlu0 %v5047, 48
      %v5561 = vpop.permute.xlu0 %5560
      %5562 = vrot.lane.b32.xlu0 %v5048, 48
      %v5563 = vpop.permute.xlu0 %5562
      %5564 = vrot.lane.b32.xlu0 %v5049, 48
      %v5565 = vpop.permute.xlu0 %5564
      %v5567 = vshrl.u32 %v5050, 16
      %v5569 = vshll.u32 %v5050, 16
      %v5571 = vrot.slane %v5569, 1
      %v5572 = vor.u32 %v5567, %v5571
      %v5573 = vsel %vm1902, %v5572, %v5095
      %v5575 = vshll.u32 %v5031, 16
      %v5577 = vrot.slane %v5575, 1
      %v5578 = vsel %vm1902, %v5388, %v5577
      %v5579 = vshrl.u32 %v5031, 16
      %v5581 = vor.u32 %v5579, %v5577
      %v5583 = vshll.u32 %v5032, 16
      %v5585 = vrot.slane %v5583, 1
      %v5586 = vsel %vm1902, %v5581, %v5585
      %v5587 = vshrl.u32 %v5032, 16
      %v5589 = vor.u32 %v5587, %v5585
      %5590 = vrot.lane.b32.xlu0 %v5573, 56
      %v5591 = vpop.permute.xlu0 %5590
      %5592 = vrot.lane.b32.xlu0 %v5104, 56
      %v5593 = vpop.permute.xlu0 %5592
      %5594 = vrot.lane.b32.xlu0 %v5112, 56
      %v5595 = vpop.permute.xlu0 %5594
      %5596 = vrot.lane.b32.xlu0 %v5120, 56
      %v5597 = vpop.permute.xlu0 %5596
      %5598 = vrot.lane.b32.xlu0 %v5128, 56
      %v5599 = vpop.permute.xlu0 %5598
      %5600 = vrot.lane.b32.xlu0 %v5136, 56
      %v5601 = vpop.permute.xlu0 %5600
      %5602 = vrot.lane.b32.xlu0 %v5144, 56
      %v5603 = vpop.permute.xlu0 %5602
      %5604 = vrot.lane.b32.xlu0 %v5152, 56
      %v5605 = vpop.permute.xlu0 %5604
      %5606 = vrot.lane.b32.xlu0 %v5160, 56
      %v5607 = vpop.permute.xlu0 %5606
      %5608 = vrot.lane.b32.xlu0 %v5168, 56
      %v5609 = vpop.permute.xlu0 %5608
      %5610 = vrot.lane.b32.xlu0 %v5176, 56
      %v5611 = vpop.permute.xlu0 %5610
      %5612 = vrot.lane.b32.xlu0 %v5184, 56
      %v5613 = vpop.permute.xlu0 %5612
      %5614 = vrot.lane.b32.xlu0 %v5192, 56
      %v5615 = vpop.permute.xlu0 %5614
      %5616 = vrot.lane.b32.xlu0 %v5385, 56
      %v5617 = vpop.permute.xlu0 %5616
      %5618 = vrot.lane.b32.xlu0 %v5578, 56
      %v5619 = vpop.permute.xlu0 %5618
      %5620 = vrot.lane.b32.xlu0 %v5586, 56
      %v5621 = vpop.permute.xlu0 %5620
      %5622 = vrot.lane.b32.xlu0 %v5589, 56
      %v5623 = vpop.permute.xlu0 %5622
      %v5641 = vrot.slane %v5052, 1
      %v5642 = vrot.slane %v5053, 1
      %v5643 = vsel %vm2089, %v5641, %v5642
      %v5644 = vrot.slane %v5054, 1
      %v5645 = vsel %vm2089, %v5642, %v5644
      %v5646 = vrot.slane %v5055, 1
      %v5647 = vsel %vm2089, %v5644, %v5646
      %v5648 = vrot.slane %v5056, 1
      %v5649 = vsel %vm2089, %v5646, %v5648
      %v5650 = vrot.slane %v5057, 1
      %v5651 = vsel %vm2089, %v5648, %v5650
      %v5652 = vrot.slane %v5058, 1
      %v5653 = vsel %vm2089, %v5650, %v5652
      %v5654 = vrot.slane %v5059, 1
      %v5655 = vsel %vm2089, %v5652, %v5654
      %v5656 = vrot.slane %v5060, 1
      %v5657 = vsel %vm2089, %v5654, %v5656
      %v5658 = vrot.slane %v5061, 1
      %v5659 = vsel %vm2089, %v5656, %v5658
      %v5660 = vrot.slane %v5062, 1
      %v5661 = vsel %vm2089, %v5658, %v5660
      %v5662 = vrot.slane %v5063, 1
      %v5663 = vsel %vm2089, %v5660, %v5662
      %v5664 = vrot.slane %v5064, 1
      %v5665 = vsel %vm2089, %v5662, %v5664
      %v5666 = vrot.slane %v5065, 1
      %v5667 = vsel %vm2089, %v5664, %v5666
      %v5668 = vrot.slane %v5066, 1
      %v5669 = vsel %vm2089, %v5666, %v5668
      %v5670 = vrot.slane %v5067, 1
      %v5671 = vsel %vm2089, %v5668, %v5670
      %v5672 = vrot.slane %v5068, 1
      %v5673 = vsel %vm2089, %v5670, %v5672
      %5674 = vrot.lane.b32.xlu0 %v5643, 64
      %v5675 = vpop.permute.xlu0 %5674
      %5676 = vrot.lane.b32.xlu0 %v5645, 64
      %v5677 = vpop.permute.xlu0 %5676
      %5678 = vrot.lane.b32.xlu0 %v5647, 64
      %v5679 = vpop.permute.xlu0 %5678
      %5680 = vrot.lane.b32.xlu0 %v5649, 64
      %v5681 = vpop.permute.xlu0 %5680
      %5682 = vrot.lane.b32.xlu0 %v5651, 64
      %v5683 = vpop.permute.xlu0 %5682
      %5684 = vrot.lane.b32.xlu0 %v5653, 64
      %v5685 = vpop.permute.xlu0 %5684
      %5686 = vrot.lane.b32.xlu0 %v5655, 64
      %v5687 = vpop.permute.xlu0 %5686
      %5688 = vrot.lane.b32.xlu0 %v5657, 64
      %v5689 = vpop.permute.xlu0 %5688
      %5690 = vrot.lane.b32.xlu0 %v5659, 64
      %v5691 = vpop.permute.xlu0 %5690
      %5692 = vrot.lane.b32.xlu0 %v5661, 64
      %v5693 = vpop.permute.xlu0 %5692
      %5694 = vrot.lane.b32.xlu0 %v5663, 64
      %v5695 = vpop.permute.xlu0 %5694
      %5696 = vrot.lane.b32.xlu0 %v5665, 64
      %v5697 = vpop.permute.xlu0 %5696
      %5698 = vrot.lane.b32.xlu0 %v5667, 64
      %v5699 = vpop.permute.xlu0 %5698
      %5700 = vrot.lane.b32.xlu0 %v5669, 64
      %v5701 = vpop.permute.xlu0 %5700
      %5702 = vrot.lane.b32.xlu0 %v5671, 64
      %v5703 = vpop.permute.xlu0 %5702
      %5704 = vrot.lane.b32.xlu0 %v5673, 64
      %v5705 = vpop.permute.xlu0 %5704
      %5706 = vrot.lane.b32.xlu0 %v5672, 64
      %v5707 = vpop.permute.xlu0 %5706
      %v5710 = vsel %vm1079, %v4955, %v5205
      %v5713 = vsel %vm1079, %v4956, %v5207
      %v5716 = vsel %vm1079, %v4957, %v5209
      %v5719 = vsel %vm1079, %v4958, %v5211
      %v5722 = vsel %vm1079, %v4959, %v5213
      %v5725 = vsel %vm1079, %v4960, %v5215
      %v5728 = vsel %vm1079, %v4961, %v5217
      %v5731 = vsel %vm1079, %v4962, %v5219
      %v5734 = vsel %vm1079, %v4963, %v5221
      %v5737 = vsel %vm1079, %v4964, %v5223
      %v5740 = vsel %vm1079, %v4965, %v5225
      %v5743 = vsel %vm1079, %v4966, %v5227
      %v5746 = vsel %vm1079, %v4967, %v5229
      %v5749 = vsel %vm1079, %v4968, %v5231
      %v5752 = vsel %vm1079, %v4969, %v5233
      %v5755 = vsel %vm1079, %v4970, %v5235
      %v5758 = vsel %vm1079, %v4971, %v5237
      %v5760 = vsel %vm446, %v5710, %v5289
      %v5762 = vsel %vm446, %v5713, %v5291
      %v5764 = vsel %vm446, %v5716, %v5293
      %v5766 = vsel %vm446, %v5719, %v5295
      %v5768 = vsel %vm446, %v5722, %v5297
      %v5770 = vsel %vm446, %v5725, %v5299
      %v5772 = vsel %vm446, %v5728, %v5301
      %v5774 = vsel %vm446, %v5731, %v5303
      %v5776 = vsel %vm446, %v5734, %v5305
      %v5778 = vsel %vm446, %v5737, %v5307
      %v5780 = vsel %vm446, %v5740, %v5309
      %v5782 = vsel %vm446, %v5743, %v5311
      %v5784 = vsel %vm446, %v5746, %v5313
      %v5786 = vsel %vm446, %v5749, %v5315
      %v5788 = vsel %vm446, %v5752, %v5317
      %v5790 = vsel %vm446, %v5755, %v5319
      %v5792 = vsel %vm446, %v5758, %v5321
      %v5794 = vsel %vm2628, %v5760, %v5340
      %v5796 = vsel %vm2628, %v5762, %v5342
      %v5798 = vsel %vm2628, %v5764, %v5344
      %v5800 = vsel %vm2628, %v5766, %v5346
      %v5802 = vsel %vm2628, %v5768, %v5348
      %v5804 = vsel %vm2628, %v5770, %v5350
      %v5806 = vsel %vm2628, %v5772, %v5352
      %v5808 = vsel %vm2628, %v5774, %v5354
      %v5810 = vsel %vm2628, %v5776, %v5356
      %v5812 = vsel %vm2628, %v5778, %v5358
      %v5814 = vsel %vm2628, %v5780, %v5360
      %v5816 = vsel %vm2628, %v5782, %v5362
      %v5818 = vsel %vm2628, %v5784, %v5364
      %v5820 = vsel %vm2628, %v5786, %v5366
      %v5822 = vsel %vm2628, %v5788, %v5368
      %v5824 = vsel %vm2628, %v5790, %v5370
      %v5826 = vsel %vm2628, %v5792, %v5372
      %v5828 = vsel %vm2663, %v5794, %v5398
      %v5830 = vsel %vm2663, %v5796, %v5400
      %v5832 = vsel %vm2663, %v5798, %v5402
      %v5834 = vsel %vm2663, %v5800, %v5404
      %v5836 = vsel %vm2663, %v5802, %v5406
      %v5838 = vsel %vm2663, %v5804, %v5408
      %v5840 = vsel %vm2663, %v5806, %v5410
      %v5842 = vsel %vm2663, %v5808, %v5412
      %v5844 = vsel %vm2663, %v5810, %v5414
      %v5846 = vsel %vm2663, %v5812, %v5416
      %v5848 = vsel %vm2663, %v5814, %v5418
      %v5850 = vsel %vm2663, %v5816, %v5420
      %v5852 = vsel %vm2663, %v5818, %v5422
      %v5854 = vsel %vm2663, %v5820, %v5424
      %v5856 = vsel %vm2663, %v5822, %v5426
      %v5858 = vsel %vm2663, %v5824, %v5428
      %v5860 = vsel %vm2663, %v5826, %v5430
      %v5862 = vsel %vm2698, %v5828, %v5482
      %v5864 = vsel %vm2698, %v5830, %v5484
      %v5866 = vsel %vm2698, %v5832, %v5486
      %v5868 = vsel %vm2698, %v5834, %v5488
      %v5870 = vsel %vm2698, %v5836, %v5490
      %v5872 = vsel %vm2698, %v5838, %v5492
      %v5874 = vsel %vm2698, %v5840, %v5494
      %v5876 = vsel %vm2698, %v5842, %v5496
      %v5878 = vsel %vm2698, %v5844, %v5498
      %v5880 = vsel %vm2698, %v5846, %v5500
      %v5882 = vsel %vm2698, %v5848, %v5502
      %v5884 = vsel %vm2698, %v5850, %v5504
      %v5886 = vsel %vm2698, %v5852, %v5506
      %v5888 = vsel %vm2698, %v5854, %v5508
      %v5890 = vsel %vm2698, %v5856, %v5510
      %v5892 = vsel %vm2698, %v5858, %v5512
      %v5894 = vsel %vm2698, %v5860, %v5514
      %v5896 = vsel %vm2733, %v5862, %v5533
      %v5898 = vsel %vm2733, %v5864, %v5535
      %v5900 = vsel %vm2733, %v5866, %v5537
      %v5902 = vsel %vm2733, %v5868, %v5539
      %v5904 = vsel %vm2733, %v5870, %v5541
      %v5906 = vsel %vm2733, %v5872, %v5543
      %v5908 = vsel %vm2733, %v5874, %v5545
      %v5910 = vsel %vm2733, %v5876, %v5547
      %v5912 = vsel %vm2733, %v5878, %v5549
      %v5914 = vsel %vm2733, %v5880, %v5551
      %v5916 = vsel %vm2733, %v5882, %v5553
      %v5918 = vsel %vm2733, %v5884, %v5555
      %v5920 = vsel %vm2733, %v5886, %v5557
      %v5922 = vsel %vm2733, %v5888, %v5559
      %v5924 = vsel %vm2733, %v5890, %v5561
      %v5926 = vsel %vm2733, %v5892, %v5563
      %v5928 = vsel %vm2733, %v5894, %v5565
      %v5930 = vsel %vm2768, %v5896, %v5591
      %v5932 = vsel %vm2768, %v5898, %v5593
      %v5934 = vsel %vm2768, %v5900, %v5595
      %v5936 = vsel %vm2768, %v5902, %v5597
      %v5938 = vsel %vm2768, %v5904, %v5599
      %v5940 = vsel %vm2768, %v5906, %v5601
      %v5942 = vsel %vm2768, %v5908, %v5603
      %v5944 = vsel %vm2768, %v5910, %v5605
      %v5946 = vsel %vm2768, %v5912, %v5607
      %v5948 = vsel %vm2768, %v5914, %v5609
      %v5950 = vsel %vm2768, %v5916, %v5611
      %v5952 = vsel %vm2768, %v5918, %v5613
      %v5954 = vsel %vm2768, %v5920, %v5615
      %v5956 = vsel %vm2768, %v5922, %v5617
      %v5958 = vsel %vm2768, %v5924, %v5619
      %v5960 = vsel %vm2768, %v5926, %v5621
      %v5962 = vsel %vm2768, %v5928, %v5623
      %v5964 = vsel %vm2803, %v5930, %v5675
      %v5966 = vsel %vm2803, %v5932, %v5677
      %v5968 = vsel %vm2803, %v5934, %v5679
      %v5970 = vsel %vm2803, %v5936, %v5681
      %v5972 = vsel %vm2803, %v5938, %v5683
      %v5974 = vsel %vm2803, %v5940, %v5685
      %v5976 = vsel %vm2803, %v5942, %v5687
      %v5978 = vsel %vm2803, %v5944, %v5689
      %v5980 = vsel %vm2803, %v5946, %v5691
      %v5982 = vsel %vm2803, %v5948, %v5693
      %v5984 = vsel %vm2803, %v5950, %v5695
      %v5986 = vsel %vm2803, %v5952, %v5697
      %v5988 = vsel %vm2803, %v5954, %v5699
      %v5990 = vsel %vm2803, %v5956, %v5701
      %v5992 = vsel %vm2803, %v5958, %v5703
      %v5994 = vsel %vm2803, %v5960, %v5705
      %v5996 = vsel %vm2803, %v5962, %v5707
      %v5997 = vld [vmem:[%s5] sm:$0xf]
      %v5998 = vld [vmem:[%s5 + $0x4] sm:$0xf]
      %v5999 = vld [vmem:[%s5 + $0x8] sm:$0xf]
      %v6000 = vld [vmem:[%s5 + $0xc] sm:$0xf]
      %v6001 = vld [vmem:[%s5 + $0x10] sm:$0xf]
      %v6002 = vld [vmem:[%s5 + $0x14] sm:$0xf]
      %v6003 = vld [vmem:[%s5 + $0x18] sm:$0xf]
      %v6004 = vld [vmem:[%s5 + $0x1c] sm:$0xf]
      %v6005 = vld [vmem:[%s5 + $0x20] sm:$0xf]
      %v6006 = vld [vmem:[%s6] sm:$0x1]
      %v6008 = vlaneseq
      %v6009 = vshrl.u32 %v6008, 7
      %v6010 = vsub.s32 0, %v6009
      %v6011 = vrot.slane %v6006, %v6010
      %v6013 = vshrl.u32 %v5964, 16
      %v6015 = vrot.slane %v6013, 3
      %v6016 = vshll.u32 %v5964, 16
      %v6018 = vrot.slane %v6016, 4
      %v6019 = vor.u32 %v6015, %v6018
      %v6020 = vshrl.u32 %v5966, 16
      %v6022 = vrot.slane %v6020, 3
      %v6023 = vshll.u32 %v5966, 16
      %v6025 = vrot.slane %v6023, 4
      %v6026 = vor.u32 %v6022, %v6025
      %v6027 = vsel %vm1646, %v6019, %v6026
      %v6028 = vshrl.u32 %v5968, 16
      %v6030 = vrot.slane %v6028, 3
      %v6031 = vshll.u32 %v5968, 16
      %v6033 = vrot.slane %v6031, 4
      %v6034 = vor.u32 %v6030, %v6033
      %v6035 = vsel %vm1646, %v6026, %v6034
      %v6036 = vshrl.u32 %v5970, 16
      %v6038 = vrot.slane %v6036, 3
      %v6039 = vshll.u32 %v5970, 16
      %v6041 = vrot.slane %v6039, 4
      %v6042 = vor.u32 %v6038, %v6041
      %v6043 = vsel %vm1646, %v6034, %v6042
      %v6044 = vshrl.u32 %v5972, 16
      %v6046 = vrot.slane %v6044, 3
      %v6047 = vshll.u32 %v5972, 16
      %v6049 = vrot.slane %v6047, 4
      %v6050 = vor.u32 %v6046, %v6049
      %v6051 = vsel %vm1646, %v6042, %v6050
      %v6052 = vshrl.u32 %v5974, 16
      %v6054 = vrot.slane %v6052, 3
      %v6055 = vshll.u32 %v5974, 16
      %v6057 = vrot.slane %v6055, 4
      %v6058 = vor.u32 %v6054, %v6057
      %v6059 = vsel %vm1646, %v6050, %v6058
      %v6060 = vshrl.u32 %v5976, 16
      %v6062 = vrot.slane %v6060, 3
      %v6063 = vshll.u32 %v5976, 16
      %v6065 = vrot.slane %v6063, 4
      %v6066 = vor.u32 %v6062, %v6065
      %v6067 = vsel %vm1646, %v6058, %v6066
      %v6068 = vshrl.u32 %v5978, 16
      %v6070 = vrot.slane %v6068, 3
      %v6071 = vshll.u32 %v5978, 16
      %v6073 = vrot.slane %v6071, 4
      %v6074 = vor.u32 %v6070, %v6073
      %v6075 = vsel %vm1646, %v6066, %v6074
      %v6076 = vshrl.u32 %v5980, 16
      %v6078 = vrot.slane %v6076, 3
      %v6079 = vshll.u32 %v5980, 16
      %v6081 = vrot.slane %v6079, 4
      %v6082 = vor.u32 %v6078, %v6081
      %v6083 = vsel %vm1646, %v6074, %v6082
      %v6084 = vshrl.u32 %v5982, 16
      %v6086 = vrot.slane %v6084, 3
      %v6087 = vshll.u32 %v5982, 16
      %v6089 = vrot.slane %v6087, 4
      %v6090 = vor.u32 %v6086, %v6089
      %v6091 = vsel %vm1646, %v6082, %v6090
      %v6092 = vshrl.u32 %v5984, 16
      %v6094 = vrot.slane %v6092, 3
      %v6095 = vshll.u32 %v5984, 16
      %v6097 = vrot.slane %v6095, 4
      %v6098 = vor.u32 %v6094, %v6097
      %v6099 = vsel %vm1646, %v6090, %v6098
      %v6100 = vshrl.u32 %v5986, 16
      %v6102 = vrot.slane %v6100, 3
      %v6103 = vshll.u32 %v5986, 16
      %v6105 = vrot.slane %v6103, 4
      %v6106 = vor.u32 %v6102, %v6105
      %v6107 = vsel %vm1646, %v6098, %v6106
      %v6108 = vshrl.u32 %v5988, 16
      %v6110 = vrot.slane %v6108, 3
      %v6111 = vshll.u32 %v5988, 16
      %v6113 = vrot.slane %v6111, 4
      %v6114 = vor.u32 %v6110, %v6113
      %v6115 = vsel %vm1646, %v6106, %v6114
      %v6116 = vshrl.u32 %v5990, 16
      %v6118 = vrot.slane %v6116, 3
      %v6119 = vshll.u32 %v5990, 16
      %v6121 = vrot.slane %v6119, 4
      %v6122 = vor.u32 %v6118, %v6121
      %v6123 = vsel %vm1646, %v6114, %v6122
      %v6124 = vshrl.u32 %v5992, 16
      %v6126 = vrot.slane %v6124, 3
      %v6127 = vshll.u32 %v5992, 16
      %v6129 = vrot.slane %v6127, 4
      %v6130 = vor.u32 %v6126, %v6129
      %v6131 = vsel %vm1646, %v6122, %v6130
      %v6132 = vshrl.u32 %v5994, 16
      %v6134 = vrot.slane %v6132, 3
      %v6135 = vshll.u32 %v5994, 16
      %v6137 = vrot.slane %v6135, 4
      %v6138 = vor.u32 %v6134, %v6137
      %v6139 = vsel %vm1646, %v6130, %v6138
      %v6140 = vshrl.u32 %v5996, 16
      %v6142 = vrot.slane %v6140, 3
      %v6143 = vshll.u32 %v5996, 16
      %v6145 = vrot.slane %v6143, 4
      %v6146 = vor.u32 %v6142, %v6145
      %v6147 = vsel %vm1646, %v6138, %v6146
      %v6157 = vunpack.c.l.b16 %v5997
      %v6158 = vunpack.c.l.b16 %v5998
      %v6159 = vunpack.c.l.b16 %v5999
      %v6160 = vunpack.c.l.b16 %v6000
      %v6161 = vunpack.c.l.b16 %v6001
      %v6162 = vunpack.c.l.b16 %v6002
      %v6163 = vunpack.c.l.b16 %v6003
      %v6164 = vunpack.c.l.b16 %v6004
      %v6165 = vunpack.c.l.b16 %v6005
      %v6166 = vpack.c.b16 %v6158, %v6157
      %v6167 = vpack.c.b16 %v6160, %v6159
      %v6168 = vpack.c.b16 %v6162, %v6161
      %v6169 = vpack.c.b16 %v6164, %v6163
      %v6170 = vpack.c.b16 %v6165, %v6165
      %v6176 = vsel %vm3016, %v6027, 0
      %v6179 = vsel %vm3016, %v6035, 0
      %v6182 = vsel %vm3016, %v6043, 0
      %v6185 = vsel %vm3016, %v6051, 0
      %v6188 = vsel %vm3016, %v6059, 0
      %v6191 = vsel %vm3016, %v6067, 0
      %v6194 = vsel %vm3016, %v6075, 0
      %v6197 = vsel %vm3016, %v6083, 0
      %v6200 = vsel %vm3016, %v6091, 0
      %v6203 = vsel %vm3016, %v6099, 0
      %v6206 = vsel %vm3016, %v6107, 0
      %v6209 = vsel %vm3016, %v6115, 0
      %v6212 = vsel %vm3016, %v6123, 0
      %v6215 = vsel %vm3016, %v6131, 0
      %v6218 = vsel %vm3016, %v6139, 0
      %v6221 = vsel %vm3016, %v6147, 0
      %v6224 = vsel %vm3065, %v6170, 0
      %6226 = vmatprep.subr.bf16.mxu0 0
      %6227 = vmatpush1.bf16.msra.mxu0 %v6166
      %6228 = vmatprep.subr.bf16.mxu0 0
      %6229 = vmatpush1.bf16.msra.mxu0 %v6167
      %6230 = vmatprep.subr.bf16.mxu0 0
      %6231 = vmatpush1.bf16.msra.mxu0 %v6168
      %6232 = vmatprep.subr.bf16.mxu0 0
      %6233 = vmatpush1.bf16.msra.mxu0 %v6169
      %6234 = vmatprep.subr.bf16.mxu0 0
      %6235 = vmatpush1.bf16.msra.mxu0 %v6224
      %6236 = vmatprep.subr.bf16.mxu0 0
      %6237 = vmatpush1.bf16.msra.mxu0 0
      %6238 = vmatprep.subr.bf16.mxu0 0
      %6239 = vmatpush1.bf16.msra.mxu0 0
      %6240 = vmatprep.subr.bf16.mxu0 0
      %6241 = vmatpush1.bf16.msra.mxu0 0
      %6242 = vmatprep.subr.bf16.mxu0 0
      %6243 = vmatpush1.bf16.msra.mxu0 0
      %6244 = vmatprep.subr.bf16.mxu0 0
      %6245 = vmatpush1.bf16.msra.mxu0 0
      %6246 = vmatprep.subr.bf16.mxu0 0
      %6247 = vmatpush1.bf16.msra.mxu0 0
      %6248 = vmatprep.subr.bf16.mxu0 0
      %6249 = vmatpush1.bf16.msra.mxu0 0
      %6250 = vmatprep.subr.bf16.mxu0 0
      %6251 = vmatpush1.bf16.msra.mxu0 0
      %6252 = vmatprep.subr.bf16.mxu0 0
      %6253 = vmatpush1.bf16.msra.mxu0 0
      %6254 = vmatprep.subr.bf16.mxu0 0
      %6255 = vmatpush1.bf16.msra.mxu0 0
      %6256 = vmatprep.subr.bf16.mxu0 0
      %6257 = vmatpush1.bf16.msra.mxu0 0
      %6258 = vmatprep.mubr.bf16.mxu0 0
      %6259 = vmatmul.mubr.bf16.gmra.mrb[0].mxu0 %v6176
      %v6260 = vpop.f32.mrb[0].mxu0
      %v6261 = vadd.f32 %v6011, %v6260
      %v6262 = vpop.f32.mrb[0].mxu0
      %v6263 = vpop.f32.mrb[0].mxu0
      %v6264 = vadd.f32 %v6011, %v6263
      %v6265 = vpop.f32.mrb[0].mxu0
      %6266 = vmatprep.mubr.bf16.mxu0 0
      %6267 = vmatmul.mubr.bf16.gmra.mrb[0].mxu0 %v6179
      %v6268 = vpop.f32.mrb[0].mxu0
      %v6269 = vadd.f32 %v6011, %v6268
      %v6270 = vpop.f32.mrb[0].mxu0
      %v6271 = vpop.f32.mrb[0].mxu0
      %v6272 = vadd.f32 %v6011, %v6271
      %v6273 = vpop.f32.mrb[0].mxu0
      %6274 = vmatprep.mubr.bf16.mxu0 0
      %6275 = vmatmul.mubr.bf16.gmra.mrb[0].mxu0 %v6182
      %v6276 = vpop.f32.mrb[0].mxu0
      %v6277 = vadd.f32 %v6011, %v6276
      %v6278 = vpop.f32.mrb[0].mxu0
      %v6279 = vpop.f32.mrb[0].mxu0
      %v6280 = vadd.f32 %v6011, %v6279
      %v6281 = vpop.f32.mrb[0].mxu0
      %6282 = vmatprep.mubr.bf16.mxu0 0
      %6283 = vmatmul.mubr.bf16.gmra.mrb[0].mxu0 %v6185
      %v6284 = vpop.f32.mrb[0].mxu0
      %v6285 = vadd.f32 %v6011, %v6284
      %v6286 = vpop.f32.mrb[0].mxu0
      %v6287 = vpop.f32.mrb[0].mxu0
      %v6288 = vadd.f32 %v6011, %v6287
      %v6289 = vpop.f32.mrb[0].mxu0
      %6290 = vmatprep.mubr.bf16.mxu0 0
      %6291 = vmatmul.mubr.bf16.gmra.mrb[0].mxu0 %v6188
      %v6292 = vpop.f32.mrb[0].mxu0
      %v6293 = vadd.f32 %v6011, %v6292
      %v6294 = vpop.f32.mrb[0].mxu0
      %v6295 = vpop.f32.mrb[0].mxu0
      %v6296 = vadd.f32 %v6011, %v6295
      %v6297 = vpop.f32.mrb[0].mxu0
      %6298 = vmatprep.mubr.bf16.mxu0 0
      %6299 = vmatmul.mubr.bf16.gmra.mrb[0].mxu0 %v6191
      %v6300 = vpop.f32.mrb[0].mxu0
      %v6301 = vadd.f32 %v6011, %v6300
      %v6302 = vpop.f32.mrb[0].mxu0
      %v6303 = vpop.f32.mrb[0].mxu0
      %v6304 = vadd.f32 %v6011, %v6303
      %v6305 = vpop.f32.mrb[0].mxu0
      %6306 = vmatprep.mubr.bf16.mxu0 0
      %6307 = vmatmul.mubr.bf16.gmra.mrb[0].mxu0 %v6194
      %v6308 = vpop.f32.mrb[0].mxu0
      %v6309 = vadd.f32 %v6011, %v6308
      %v6310 = vpop.f32.mrb[0].mxu0
      %v6311 = vpop.f32.mrb[0].mxu0
      %v6312 = vadd.f32 %v6011, %v6311
      %v6313 = vpop.f32.mrb[0].mxu0
      %6314 = vmatprep.mubr.bf16.mxu0 0
      %6315 = vmatmul.mubr.bf16.gmra.mrb[0].mxu0 %v6197
      %v6316 = vpop.f32.mrb[0].mxu0
      %v6317 = vadd.f32 %v6011, %v6316
      %v6318 = vpop.f32.mrb[0].mxu0
      %v6319 = vpop.f32.mrb[0].mxu0
      %v6320 = vadd.f32 %v6011, %v6319
      %v6321 = vpop.f32.mrb[0].mxu0
      %6322 = vmatprep.mubr.bf16.mxu0 0
      %6323 = vmatmul.mubr.bf16.gmra.mrb[0].mxu0 %v6200
      %v6324 = vpop.f32.mrb[0].mxu0
      %v6325 = vadd.f32 %v6011, %v6324
      %v6326 = vpop.f32.mrb[0].mxu0
      %v6327 = vpop.f32.mrb[0].mxu0
      %v6328 = vadd.f32 %v6011, %v6327
      %v6329 = vpop.f32.mrb[0].mxu0
      %6330 = vmatprep.mubr.bf16.mxu0 0
      %6331 = vmatmul.mubr.bf16.gmra.mrb[0].mxu0 %v6203
      %v6332 = vpop.f32.mrb[0].mxu0
      %v6333 = vadd.f32 %v6011, %v6332
      %v6334 = vpop.f32.mrb[0].mxu0
      %v6335 = vpop.f32.mrb[0].mxu0
      %v6336 = vadd.f32 %v6011, %v6335
      %v6337 = vpop.f32.mrb[0].mxu0
      %6338 = vmatprep.mubr.bf16.mxu0 0
      %6339 = vmatmul.mubr.bf16.gmra.mrb[0].mxu0 %v6206
      %v6340 = vpop.f32.mrb[0].mxu0
      %v6341 = vadd.f32 %v6011, %v6340
      %v6342 = vpop.f32.mrb[0].mxu0
      %v6343 = vpop.f32.mrb[0].mxu0
      %v6344 = vadd.f32 %v6011, %v6343
      %v6345 = vpop.f32.mrb[0].mxu0
      %6346 = vmatprep.mubr.bf16.mxu0 0
      %6347 = vmatmul.mubr.bf16.gmra.mrb[0].mxu0 %v6209
      %v6348 = vpop.f32.mrb[0].mxu0
      %v6349 = vadd.f32 %v6011, %v6348
      %v6350 = vpop.f32.mrb[0].mxu0
      %v6351 = vpop.f32.mrb[0].mxu0
      %v6352 = vadd.f32 %v6011, %v6351
      %v6353 = vpop.f32.mrb[0].mxu0
      %6354 = vmatprep.mubr.bf16.mxu0 0
      %6355 = vmatmul.mubr.bf16.gmra.mrb[0].mxu0 %v6212
      %v6356 = vpop.f32.mrb[0].mxu0
      %v6357 = vadd.f32 %v6011, %v6356
      %v6358 = vpop.f32.mrb[0].mxu0
      %v6359 = vpop.f32.mrb[0].mxu0
      %v6360 = vadd.f32 %v6011, %v6359
      %v6361 = vpop.f32.mrb[0].mxu0
      %6362 = vmatprep.mubr.bf16.mxu0 0
      %6363 = vmatmul.mubr.bf16.gmra.mrb[0].mxu0 %v6215
      %v6364 = vpop.f32.mrb[0].mxu0
      %v6365 = vadd.f32 %v6011, %v6364
      %v6366 = vpop.f32.mrb[0].mxu0
      %v6367 = vpop.f32.mrb[0].mxu0
      %v6368 = vadd.f32 %v6011, %v6367
      %v6369 = vpop.f32.mrb[0].mxu0
      %6370 = vmatprep.mubr.bf16.mxu0 0
      %6371 = vmatmul.mubr.bf16.gmra.mrb[0].mxu0 %v6218
      %v6372 = vpop.f32.mrb[0].mxu0
      %v6373 = vadd.f32 %v6011, %v6372
      %v6374 = vpop.f32.mrb[0].mxu0
      %v6375 = vpop.f32.mrb[0].mxu0
      %v6376 = vadd.f32 %v6011, %v6375
      %v6377 = vpop.f32.mrb[0].mxu0
      %6378 = vmatprep.mubr.bf16.mxu0 0
      %6379 = vmatmul.mubr.bf16.gmra.mrb[0].mxu0 %v6221
      %v6380 = vpop.f32.mrb[0].mxu0
      %v6381 = vadd.f32 %v6011, %v6380
      %v6382 = vpop.f32.mrb[0].mxu0
      %v6383 = vpop.f32.mrb[0].mxu0
      %v6384 = vadd.f32 %v6011, %v6383
      %v6385 = vpop.f32.mrb[0].mxu0
      %6386 = vdwg.mxu0
      %v6387 = vmax.f32 %v6261, 0.0
      %v6388 = vmax.f32 %v6264, 0.0
      %v6389 = vmax.f32 %v6269, 0.0
      %v6390 = vmax.f32 %v6272, 0.0
      %v6391 = vmax.f32 %v6277, 0.0
      %v6392 = vmax.f32 %v6280, 0.0
      %v6393 = vmax.f32 %v6285, 0.0
      %v6394 = vmax.f32 %v6288, 0.0
      %v6395 = vmax.f32 %v6293, 0.0
      %v6396 = vmax.f32 %v6296, 0.0
      %v6397 = vmax.f32 %v6301, 0.0
      %v6398 = vmax.f32 %v6304, 0.0
      %v6399 = vmax.f32 %v6309, 0.0
      %v6400 = vmax.f32 %v6312, 0.0
      %v6401 = vmax.f32 %v6317, 0.0
      %v6402 = vmax.f32 %v6320, 0.0
      %v6403 = vmax.f32 %v6325, 0.0
      %v6404 = vmax.f32 %v6328, 0.0
      %v6405 = vmax.f32 %v6333, 0.0
      %v6406 = vmax.f32 %v6336, 0.0
      %v6407 = vmax.f32 %v6341, 0.0
      %v6408 = vmax.f32 %v6344, 0.0
      %v6409 = vmax.f32 %v6349, 0.0
      %v6410 = vmax.f32 %v6352, 0.0
      %v6411 = vmax.f32 %v6357, 0.0
      %v6412 = vmax.f32 %v6360, 0.0
      %v6413 = vmax.f32 %v6365, 0.0
      %v6414 = vmax.f32 %v6368, 0.0
      %v6415 = vmax.f32 %v6373, 0.0
      %v6416 = vmax.f32 %v6376, 0.0
      %v6417 = vmax.f32 %v6381, 0.0
      %v6418 = vmax.f32 %v6384, 0.0
      %v6419 = vpack.c.bf16 %v6388, %v6387
      %v6420 = vpack.c.bf16 %v6390, %v6389
      %v6421 = vpack.c.bf16 %v6392, %v6391
      %v6422 = vpack.c.bf16 %v6394, %v6393
      %v6423 = vpack.c.bf16 %v6396, %v6395
      %v6424 = vpack.c.bf16 %v6398, %v6397
      %v6425 = vpack.c.bf16 %v6400, %v6399
      %v6426 = vpack.c.bf16 %v6402, %v6401
      %v6427 = vpack.c.bf16 %v6404, %v6403
      %v6428 = vpack.c.bf16 %v6406, %v6405
      %v6429 = vpack.c.bf16 %v6408, %v6407
      %v6430 = vpack.c.bf16 %v6410, %v6409
      %v6431 = vpack.c.bf16 %v6412, %v6411
      %v6432 = vpack.c.bf16 %v6414, %v6413
      %v6433 = vpack.c.bf16 %v6416, %v6415
      %v6434 = vpack.c.bf16 %v6418, %v6417
      %v6451 = vrot.slane %v6419, 4
      %v6452 = vrot.slane %v6420, 4
      %v6453 = vsel %vm3294, %v6451, %v6452
      %v6454 = vrot.slane %v6421, 4
      %v6455 = vsel %vm3294, %v6452, %v6454
      %v6456 = vrot.slane %v6422, 4
      %v6457 = vsel %vm3294, %v6454, %v6456
      %v6458 = vrot.slane %v6423, 4
      %v6459 = vsel %vm3294, %v6456, %v6458
      %v6460 = vrot.slane %v6424, 4
      %v6461 = vsel %vm3294, %v6458, %v6460
      %v6462 = vrot.slane %v6425, 4
      %v6463 = vsel %vm3294, %v6460, %v6462
      %v6464 = vrot.slane %v6426, 4
      %v6465 = vsel %vm3294, %v6462, %v6464
      %v6466 = vrot.slane %v6427, 4
      %v6467 = vsel %vm3294, %v6464, %v6466
      %v6468 = vrot.slane %v6428, 4
      %v6469 = vsel %vm3294, %v6466, %v6468
      %v6470 = vrot.slane %v6429, 4
      %v6471 = vsel %vm3294, %v6468, %v6470
      %v6472 = vrot.slane %v6430, 4
      %v6473 = vsel %vm3294, %v6470, %v6472
      %v6474 = vrot.slane %v6431, 4
      %v6475 = vsel %vm3294, %v6472, %v6474
      %v6476 = vrot.slane %v6432, 4
      %v6477 = vsel %vm3294, %v6474, %v6476
      %v6478 = vrot.slane %v6433, 4
      %v6479 = vsel %vm3294, %v6476, %v6478
      %v6480 = vrot.slane %v6434, 4
      %v6481 = vsel %vm3294, %v6478, %v6480
      %vm6499 = vcmask 130052
      %6500 = vst.msk [vmem:[#allocation2 + $0x8] sm:$0xf0] %vm6499, %v6451
      %6501 = vst.msk [vmem:[#allocation2 + $0x10] sm:$0xff] %vm446, %v6453
      %6502 = vst.msk [vmem:[#allocation2 + $0x18] sm:$0xff] %vm446, %v6455
      %6503 = vst.msk [vmem:[#allocation2 + $0x20] sm:$0xff] %vm446, %v6457
      %6504 = vst.msk [vmem:[#allocation2 + $0x28] sm:$0xff] %vm446, %v6459
      %6505 = vst.msk [vmem:[#allocation2 + $0x30] sm:$0xff] %vm446, %v6461
      %6506 = vst.msk [vmem:[#allocation2 + $0x38] sm:$0xff] %vm446, %v6463
      %6507 = vst.msk [vmem:[#allocation2 + $0x40] sm:$0xff] %vm446, %v6465
      %6508 = vst.msk [vmem:[#allocation2 + $0x48] sm:$0xff] %vm446, %v6467
      %6509 = vst.msk [vmem:[#allocation2 + $0x50] sm:$0xff] %vm446, %v6469
      %6510 = vst.msk [vmem:[#allocation2 + $0x58] sm:$0xff] %vm446, %v6471
      %6511 = vst.msk [vmem:[#allocation2 + $0x60] sm:$0xff] %vm446, %v6473
      %6512 = vst.msk [vmem:[#allocation2 + $0x68] sm:$0xff] %vm446, %v6475
      %6513 = vst.msk [vmem:[#allocation2 + $0x70] sm:$0xff] %vm446, %v6477
      %6514 = vst.msk [vmem:[#allocation2 + $0x78] sm:$0xff] %vm446, %v6479
      %6515 = vst.msk [vmem:[#allocation2 + $0x80] sm:$0xff] %vm446, %v6481
      %vm6516 = vcmask 125952
      %6517 = vst.msk [vmem:[#allocation2 + $0x88] sm:$0xf] %vm6516, %v6480
      %v6518 = vld [vmem:[#allocation2] sm:$0xf8]
      %v6519 = vld [vmem:[#allocation2 + $0x8] sm:$0xff]
      %v6520 = vld [vmem:[#allocation2 + $0x10] sm:$0xff]
      %v6521 = vld [vmem:[#allocation2 + $0x18] sm:$0xff]
      %v6522 = vld [vmem:[#allocation2 + $0x20] sm:$0xff]
      %v6523 = vld [vmem:[#allocation2 + $0x28] sm:$0xff]
      %v6524 = vld [vmem:[#allocation2 + $0x30] sm:$0xff]
      %v6525 = vld [vmem:[#allocation2 + $0x38] sm:$0xff]
      %v6526 = vld [vmem:[#allocation2 + $0x40] sm:$0xff]
      %v6527 = vld [vmem:[#allocation2 + $0x48] sm:$0xff]
      %v6528 = vld [vmem:[#allocation2 + $0x50] sm:$0xff]
      %v6529 = vld [vmem:[#allocation2 + $0x58] sm:$0xff]
      %v6530 = vld [vmem:[#allocation2 + $0x60] sm:$0xff]
      %v6531 = vld [vmem:[#allocation2 + $0x68] sm:$0xff]
      %v6532 = vld [vmem:[#allocation2 + $0x70] sm:$0xff]
      %v6533 = vld [vmem:[#allocation2 + $0x78] sm:$0xff]
      %v6534 = vld [vmem:[#allocation2 + $0x80] sm:$0xf]
      %v6535 = vsel %vm1434, %v6518, 0
      %v6536 = vsel %vm1435, %v6519, 0
      %v6537 = vsel %vm1436, %v6520, 0
      %v6538 = vsel %vm1437, %v6521, 0
      %v6539 = vsel %vm1438, %v6522, 0
      %v6540 = vsel %vm1439, %v6523, 0
      %v6541 = vsel %vm1440, %v6524, 0
      %v6542 = vsel %vm1441, %v6525, 0
      %v6543 = vsel %vm1442, %v6526, 0
      %v6544 = vsel %vm1443, %v6527, 0
      %v6545 = vsel %vm1444, %v6528, 0
      %v6546 = vsel %vm1445, %v6529, 0
      %v6547 = vsel %vm1446, %v6530, 0
      %v6548 = vsel %vm1447, %v6531, 0
      %v6549 = vsel %vm1448, %v6532, 0
      %v6550 = vsel %vm1449, %v6533, 0
      %v6551 = vsel %vm1450, %v6534, 0
      %v6552 = vld [vmem:[#allocation2] sm:$0xf0]
      %v6553 = vld [vmem:[#allocation2 + $0x80] sm:$0x1f]
      %v6554 = vsel %vm1790, %v6552, 0
      %v6555 = vsel %vm1791, %v6519, 0
      %v6556 = vsel %vm1792, %v6520, 0
      %v6557 = vsel %vm1793, %v6521, 0
      %v6558 = vsel %vm1794, %v6522, 0
      %v6559 = vsel %vm1795, %v6523, 0
      %v6560 = vsel %vm1796, %v6524, 0
      %v6561 = vsel %vm1797, %v6525, 0
      %v6562 = vsel %vm1798, %v6526, 0
      %v6563 = vsel %vm1799, %v6527, 0
      %v6564 = vsel %vm1800, %v6528, 0
      %v6565 = vsel %vm1801, %v6529, 0
      %v6566 = vsel %vm1802, %v6530, 0
      %v6567 = vsel %vm1803, %v6531, 0
      %v6568 = vsel %vm1804, %v6532, 0
      %v6569 = vsel %vm1805, %v6533, 0
      %v6570 = vsel %vm1806, %v6553, 0
      %v6571 = vld [vmem:[#allocation2 + $0x8] sm:$0xf8]
      %v6572 = vld [vmem:[#allocation2 + $0x80] sm:$0xff]
      %v6573 = vld [vmem:[#allocation2 + $0x88] sm:$0xf]
      %v6574 = vsel %vm1434, %v6571, 0
      %v6575 = vsel %vm1435, %v6520, 0
      %v6576 = vsel %vm1436, %v6521, 0
      %v6577 = vsel %vm1437, %v6522, 0
      %v6578 = vsel %vm1438, %v6523, 0
      %v6579 = vsel %vm1439, %v6524, 0
      %v6580 = vsel %vm1440, %v6525, 0
      %v6581 = vsel %vm1441, %v6526, 0
      %v6582 = vsel %vm1442, %v6527, 0
      %v6583 = vsel %vm1443, %v6528, 0
      %v6584 = vsel %vm1444, %v6529, 0
      %v6585 = vsel %vm1445, %v6530, 0
      %v6586 = vsel %vm1446, %v6531, 0
      %v6587 = vsel %vm1447, %v6532, 0
      %v6588 = vsel %vm1448, %v6533, 0
      %v6589 = vsel %vm1449, %v6572, 0
      %v6590 = vsel %vm1450, %v6573, 0
      %v6591 = vld [vmem:[#allocation2 + $0x8] sm:$0xf0]
      %v6592 = vld [vmem:[#allocation2 + $0x88] sm:$0x1f]
      %v6593 = vsel %vm1790, %v6591, 0
      %v6594 = vsel %vm1791, %v6520, 0
      %v6595 = vsel %vm1792, %v6521, 0
      %v6596 = vsel %vm1793, %v6522, 0
      %v6597 = vsel %vm1794, %v6523, 0
      %v6598 = vsel %vm1795, %v6524, 0
      %v6599 = vsel %vm1796, %v6525, 0
      %v6600 = vsel %vm1797, %v6526, 0
      %v6601 = vsel %vm1798, %v6527, 0
      %v6602 = vsel %vm1799, %v6528, 0
      %v6603 = vsel %vm1800, %v6529, 0
      %v6604 = vsel %vm1801, %v6530, 0
      %v6605 = vsel %vm1802, %v6531, 0
      %v6606 = vsel %vm1803, %v6532, 0
      %v6607 = vsel %vm1804, %v6533, 0
      %v6608 = vsel %vm1805, %v6572, 0
      %v6609 = vsel %vm1806, %v6592, 0
      %v6610 = vld [vmem:[#allocation2 + $0x10] sm:$0xf8]
      %v6611 = vld [vmem:[#allocation2 + $0x88] sm:$0xff]
      %v6612 = vld [vmem:[#allocation2 + $0x90] sm:$0xf]
      %v6613 = vsel %vm1434, %v6610, 0
      %v6614 = vsel %vm1435, %v6521, 0
      %v6615 = vsel %vm1436, %v6522, 0
      %v6616 = vsel %vm1437, %v6523, 0
      %v6617 = vsel %vm1438, %v6524, 0
      %v6618 = vsel %vm1439, %v6525, 0
      %v6619 = vsel %vm1440, %v6526, 0
      %v6620 = vsel %vm1441, %v6527, 0
      %v6621 = vsel %vm1442, %v6528, 0
      %v6622 = vsel %vm1443, %v6529, 0
      %v6623 = vsel %vm1444, %v6530, 0
      %v6624 = vsel %vm1445, %v6531, 0
      %v6625 = vsel %vm1446, %v6532, 0
      %v6626 = vsel %vm1447, %v6533, 0
      %v6627 = vsel %vm1448, %v6572, 0
      %v6628 = vsel %vm1449, %v6611, 0
      %v6629 = vsel %vm1450, %v6612, 0
      %v6630 = vld [vmem:[#allocation2 + $0x10] sm:$0xf0]
      %v6631 = vld [vmem:[#allocation2 + $0x90] sm:$0x1f]
      %v6632 = vsel %vm1790, %v6630, 0
      %v6633 = vsel %vm1791, %v6521, 0
      %v6634 = vsel %vm1792, %v6522, 0
      %v6635 = vsel %vm1793, %v6523, 0
      %v6636 = vsel %vm1794, %v6524, 0
      %v6637 = vsel %vm1795, %v6525, 0
      %v6638 = vsel %vm1796, %v6526, 0
      %v6639 = vsel %vm1797, %v6527, 0
      %v6640 = vsel %vm1798, %v6528, 0
      %v6641 = vsel %vm1799, %v6529, 0
      %v6642 = vsel %vm1800, %v6530, 0
      %v6643 = vsel %vm1801, %v6531, 0
      %v6644 = vsel %vm1802, %v6532, 0
      %v6645 = vsel %vm1803, %v6533, 0
      %v6646 = vsel %vm1804, %v6572, 0
      %v6647 = vsel %vm1805, %v6611, 0
      %v6648 = vsel %vm1806, %v6631, 0
      %v6650 = vshrl.u32 %v6552, 16
      %v6652 = vshll.u32 %v6552, 16
      %v6654 = vrot.slane %v6652, 1
      %v6655 = vor.u32 %v6650, %v6654
      %v6657 = vshll.u32 %v6519, 16
      %v6659 = vrot.slane %v6657, 1
      %v6660 = vsel %vm1902, %v6655, %v6659
      %v6661 = vshrl.u32 %v6519, 16
      %v6663 = vor.u32 %v6661, %v6659
      %v6665 = vshll.u32 %v6520, 16
      %v6667 = vrot.slane %v6665, 1
      %v6668 = vsel %vm1902, %v6663, %v6667
      %v6669 = vshrl.u32 %v6520, 16
      %v6671 = vor.u32 %v6669, %v6667
      %v6673 = vshll.u32 %v6521, 16
      %v6675 = vrot.slane %v6673, 1
      %v6676 = vsel %vm1902, %v6671, %v6675
      %v6677 = vshrl.u32 %v6521, 16
      %v6679 = vor.u32 %v6677, %v6675
      %v6681 = vshll.u32 %v6522, 16
      %v6683 = vrot.slane %v6681, 1
      %v6684 = vsel %vm1902, %v6679, %v6683
      %v6685 = vshrl.u32 %v6522, 16
      %v6687 = vor.u32 %v6685, %v6683
      %v6689 = vshll.u32 %v6523, 16
      %v6691 = vrot.slane %v6689, 1
      %v6692 = vsel %vm1902, %v6687, %v6691
      %v6693 = vshrl.u32 %v6523, 16
      %v6695 = vor.u32 %v6693, %v6691
      %v6697 = vshll.u32 %v6524, 16
      %v6699 = vrot.slane %v6697, 1
      %v6700 = vsel %vm1902, %v6695, %v6699
      %v6701 = vshrl.u32 %v6524, 16
      %v6703 = vor.u32 %v6701, %v6699
      %v6705 = vshll.u32 %v6525, 16
      %v6707 = vrot.slane %v6705, 1
      %v6708 = vsel %vm1902, %v6703, %v6707
      %v6709 = vshrl.u32 %v6525, 16
      %v6711 = vor.u32 %v6709, %v6707
      %v6713 = vshll.u32 %v6526, 16
      %v6715 = vrot.slane %v6713, 1
      %v6716 = vsel %vm1902, %v6711, %v6715
      %v6717 = vshrl.u32 %v6526, 16
      %v6719 = vor.u32 %v6717, %v6715
      %v6721 = vshll.u32 %v6527, 16
      %v6723 = vrot.slane %v6721, 1
      %v6724 = vsel %vm1902, %v6719, %v6723
      %v6725 = vshrl.u32 %v6527, 16
      %v6727 = vor.u32 %v6725, %v6723
      %v6729 = vshll.u32 %v6528, 16
      %v6731 = vrot.slane %v6729, 1
      %v6732 = vsel %vm1902, %v6727, %v6731
      %v6733 = vshrl.u32 %v6528, 16
      %v6735 = vor.u32 %v6733, %v6731
      %v6737 = vshll.u32 %v6529, 16
      %v6739 = vrot.slane %v6737, 1
      %v6740 = vsel %vm1902, %v6735, %v6739
      %v6741 = vshrl.u32 %v6529, 16
      %v6743 = vor.u32 %v6741, %v6739
      %v6745 = vshll.u32 %v6530, 16
      %v6747 = vrot.slane %v6745, 1
      %v6748 = vsel %vm1902, %v6743, %v6747
      %v6749 = vshrl.u32 %v6530, 16
      %v6751 = vor.u32 %v6749, %v6747
      %v6753 = vshll.u32 %v6531, 16
      %v6755 = vrot.slane %v6753, 1
      %v6756 = vsel %vm1902, %v6751, %v6755
      %v6757 = vshrl.u32 %v6531, 16
      %v6759 = vor.u32 %v6757, %v6755
      %v6761 = vshll.u32 %v6532, 16
      %v6763 = vrot.slane %v6761, 1
      %v6764 = vsel %vm1902, %v6759, %v6763
      %v6765 = vshrl.u32 %v6532, 16
      %v6767 = vor.u32 %v6765, %v6763
      %v6769 = vshll.u32 %v6533, 16
      %v6771 = vrot.slane %v6769, 1
      %v6772 = vsel %vm1902, %v6767, %v6771
      %v6773 = vshrl.u32 %v6533, 16
      %v6775 = vor.u32 %v6773, %v6771
      %v6777 = vshll.u32 %v6534, 16
      %v6779 = vrot.slane %v6777, 1
      %v6780 = vsel %vm1902, %v6775, %v6779
      %v6781 = vshrl.u32 %v6534, 16
      %v6783 = vor.u32 %v6781, %v6779
      %6784 = vrot.lane.b32.xlu0 %v6660, 16
      %v6785 = vpop.permute.xlu0 %6784
      %6786 = vrot.lane.b32.xlu0 %v6668, 16
      %v6787 = vpop.permute.xlu0 %6786
      %6788 = vrot.lane.b32.xlu0 %v6676, 16
      %v6789 = vpop.permute.xlu0 %6788
      %6790 = vrot.lane.b32.xlu0 %v6684, 16
      %v6791 = vpop.permute.xlu0 %6790
      %6792 = vrot.lane.b32.xlu0 %v6692, 16
      %v6793 = vpop.permute.xlu0 %6792
      %6794 = vrot.lane.b32.xlu0 %v6700, 16
      %v6795 = vpop.permute.xlu0 %6794
      %6796 = vrot.lane.b32.xlu0 %v6708, 16
      %v6797 = vpop.permute.xlu0 %6796
      %6798 = vrot.lane.b32.xlu0 %v6716, 16
      %v6799 = vpop.permute.xlu0 %6798
      %6800 = vrot.lane.b32.xlu0 %v6724, 16
      %v6801 = vpop.permute.xlu0 %6800
      %6802 = vrot.lane.b32.xlu0 %v6732, 16
      %v6803 = vpop.permute.xlu0 %6802
      %6804 = vrot.lane.b32.xlu0 %v6740, 16
      %v6805 = vpop.permute.xlu0 %6804
      %6806 = vrot.lane.b32.xlu0 %v6748, 16
      %v6807 = vpop.permute.xlu0 %6806
      %6808 = vrot.lane.b32.xlu0 %v6756, 16
      %v6809 = vpop.permute.xlu0 %6808
      %6810 = vrot.lane.b32.xlu0 %v6764, 16
      %v6811 = vpop.permute.xlu0 %6810
      %6812 = vrot.lane.b32.xlu0 %v6772, 16
      %v6813 = vpop.permute.xlu0 %6812
      %6814 = vrot.lane.b32.xlu0 %v6780, 16
      %v6815 = vpop.permute.xlu0 %6814
      %6816 = vrot.lane.b32.xlu0 %v6783, 16
      %v6817 = vpop.permute.xlu0 %6816
      %v6835 = vrot.slane %v6554, 1
      %v6836 = vrot.slane %v6555, 1
      %v6837 = vsel %vm2089, %v6835, %v6836
      %v6838 = vrot.slane %v6556, 1
      %v6839 = vsel %vm2089, %v6836, %v6838
      %v6840 = vrot.slane %v6557, 1
      %v6841 = vsel %vm2089, %v6838, %v6840
      %v6842 = vrot.slane %v6558, 1
      %v6843 = vsel %vm2089, %v6840, %v6842
      %v6844 = vrot.slane %v6559, 1
      %v6845 = vsel %vm2089, %v6842, %v6844
      %v6846 = vrot.slane %v6560, 1
      %v6847 = vsel %vm2089, %v6844, %v6846
      %v6848 = vrot.slane %v6561, 1
      %v6849 = vsel %vm2089, %v6846, %v6848
      %v6850 = vrot.slane %v6562, 1
      %v6851 = vsel %vm2089, %v6848, %v6850
      %v6852 = vrot.slane %v6563, 1
      %v6853 = vsel %vm2089, %v6850, %v6852
      %v6854 = vrot.slane %v6564, 1
      %v6855 = vsel %vm2089, %v6852, %v6854
      %v6856 = vrot.slane %v6565, 1
      %v6857 = vsel %vm2089, %v6854, %v6856
      %v6858 = vrot.slane %v6566, 1
      %v6859 = vsel %vm2089, %v6856, %v6858
      %v6860 = vrot.slane %v6567, 1
      %v6861 = vsel %vm2089, %v6858, %v6860
      %v6862 = vrot.slane %v6568, 1
      %v6863 = vsel %vm2089, %v6860, %v6862
      %v6864 = vrot.slane %v6569, 1
      %v6865 = vsel %vm2089, %v6862, %v6864
      %v6866 = vrot.slane %v6570, 1
      %v6867 = vsel %vm2089, %v6864, %v6866
      %6868 = vrot.lane.b32.xlu0 %v6837, 32
      %v6869 = vpop.permute.xlu0 %6868
      %6870 = vrot.lane.b32.xlu0 %v6839, 32
      %v6871 = vpop.permute.xlu0 %6870
      %6872 = vrot.lane.b32.xlu0 %v6841, 32
      %v6873 = vpop.permute.xlu0 %6872
      %6874 = vrot.lane.b32.xlu0 %v6843, 32
      %v6875 = vpop.permute.xlu0 %6874
      %6876 = vrot.lane.b32.xlu0 %v6845, 32
      %v6877 = vpop.permute.xlu0 %6876
      %6878 = vrot.lane.b32.xlu0 %v6847, 32
      %v6879 = vpop.permute.xlu0 %6878
      %6880 = vrot.lane.b32.xlu0 %v6849, 32
      %v6881 = vpop.permute.xlu0 %6880
      %6882 = vrot.lane.b32.xlu0 %v6851, 32
      %v6883 = vpop.permute.xlu0 %6882
      %6884 = vrot.lane.b32.xlu0 %v6853, 32
      %v6885 = vpop.permute.xlu0 %6884
      %6886 = vrot.lane.b32.xlu0 %v6855, 32
      %v6887 = vpop.permute.xlu0 %6886
      %6888 = vrot.lane.b32.xlu0 %v6857, 32
      %v6889 = vpop.permute.xlu0 %6888
      %6890 = vrot.lane.b32.xlu0 %v6859, 32
      %v6891 = vpop.permute.xlu0 %6890
      %6892 = vrot.lane.b32.xlu0 %v6861, 32
      %v6893 = vpop.permute.xlu0 %6892
      %6894 = vrot.lane.b32.xlu0 %v6863, 32
      %v6895 = vpop.permute.xlu0 %6894
      %6896 = vrot.lane.b32.xlu0 %v6865, 32
      %v6897 = vpop.permute.xlu0 %6896
      %6898 = vrot.lane.b32.xlu0 %v6867, 32
      %v6899 = vpop.permute.xlu0 %6898
      %6900 = vrot.lane.b32.xlu0 %v6866, 32
      %v6901 = vpop.permute.xlu0 %6900
      %6919 = vrot.lane.b32.xlu0 %v6574, 48
      %v6920 = vpop.permute.xlu0 %6919
      %6921 = vrot.lane.b32.xlu0 %v6575, 48
      %v6922 = vpop.permute.xlu0 %6921
      %6923 = vrot.lane.b32.xlu0 %v6576, 48
      %v6924 = vpop.permute.xlu0 %6923
      %6925 = vrot.lane.b32.xlu0 %v6577, 48
      %v6926 = vpop.permute.xlu0 %6925
      %6927 = vrot.lane.b32.xlu0 %v6578, 48
      %v6928 = vpop.permute.xlu0 %6927
      %6929 = vrot.lane.b32.xlu0 %v6579, 48
      %v6930 = vpop.permute.xlu0 %6929
      %6931 = vrot.lane.b32.xlu0 %v6580, 48
      %v6932 = vpop.permute.xlu0 %6931
      %6933 = vrot.lane.b32.xlu0 %v6581, 48
      %v6934 = vpop.permute.xlu0 %6933
      %6935 = vrot.lane.b32.xlu0 %v6582, 48
      %v6936 = vpop.permute.xlu0 %6935
      %6937 = vrot.lane.b32.xlu0 %v6583, 48
      %v6938 = vpop.permute.xlu0 %6937
      %6939 = vrot.lane.b32.xlu0 %v6584, 48
      %v6940 = vpop.permute.xlu0 %6939
      %6941 = vrot.lane.b32.xlu0 %v6585, 48
      %v6942 = vpop.permute.xlu0 %6941
      %6943 = vrot.lane.b32.xlu0 %v6586, 48
      %v6944 = vpop.permute.xlu0 %6943
      %6945 = vrot.lane.b32.xlu0 %v6587, 48
      %v6946 = vpop.permute.xlu0 %6945
      %6947 = vrot.lane.b32.xlu0 %v6588, 48
      %v6948 = vpop.permute.xlu0 %6947
      %6949 = vrot.lane.b32.xlu0 %v6589, 48
      %v6950 = vpop.permute.xlu0 %6949
      %6951 = vrot.lane.b32.xlu0 %v6590, 48
      %v6952 = vpop.permute.xlu0 %6951
      %v6954 = vshrl.u32 %v6591, 16
      %v6956 = vshll.u32 %v6591, 16
      %v6958 = vrot.slane %v6956, 1
      %v6959 = vor.u32 %v6954, %v6958
      %v6960 = vsel %vm1902, %v6959, %v6667
      %v6962 = vshll.u32 %v6572, 16
      %v6964 = vrot.slane %v6962, 1
      %v6965 = vsel %vm1902, %v6775, %v6964
      %v6966 = vshrl.u32 %v6572, 16
      %v6968 = vor.u32 %v6966, %v6964
      %v6970 = vshll.u32 %v6573, 16
      %v6972 = vrot.slane %v6970, 1
      %v6973 = vsel %vm1902, %v6968, %v6972
      %v6974 = vshrl.u32 %v6573, 16
      %v6976 = vor.u32 %v6974, %v6972
      %6977 = vrot.lane.b32.xlu0 %v6960, 64
      %v6978 = vpop.permute.xlu0 %6977
      %6979 = vrot.lane.b32.xlu0 %v6676, 64
      %v6980 = vpop.permute.xlu0 %6979
      %6981 = vrot.lane.b32.xlu0 %v6684, 64
      %v6982 = vpop.permute.xlu0 %6981
      %6983 = vrot.lane.b32.xlu0 %v6692, 64
      %v6984 = vpop.permute.xlu0 %6983
      %6985 = vrot.lane.b32.xlu0 %v6700, 64
      %v6986 = vpop.permute.xlu0 %6985
      %6987 = vrot.lane.b32.xlu0 %v6708, 64
      %v6988 = vpop.permute.xlu0 %6987
      %6989 = vrot.lane.b32.xlu0 %v6716, 64
      %v6990 = vpop.permute.xlu0 %6989
      %6991 = vrot.lane.b32.xlu0 %v6724, 64
      %v6992 = vpop.permute.xlu0 %6991
      %6993 = vrot.lane.b32.xlu0 %v6732, 64
      %v6994 = vpop.permute.xlu0 %6993
      %6995 = vrot.lane.b32.xlu0 %v6740, 64
      %v6996 = vpop.permute.xlu0 %6995
      %6997 = vrot.lane.b32.xlu0 %v6748, 64
      %v6998 = vpop.permute.xlu0 %6997
      %6999 = vrot.lane.b32.xlu0 %v6756, 64
      %v7000 = vpop.permute.xlu0 %6999
      %7001 = vrot.lane.b32.xlu0 %v6764, 64
      %v7002 = vpop.permute.xlu0 %7001
      %7003 = vrot.lane.b32.xlu0 %v6772, 64
      %v7004 = vpop.permute.xlu0 %7003
      %7005 = vrot.lane.b32.xlu0 %v6965, 64
      %v7006 = vpop.permute.xlu0 %7005
      %7007 = vrot.lane.b32.xlu0 %v6973, 64
      %v7008 = vpop.permute.xlu0 %7007
      %7009 = vrot.lane.b32.xlu0 %v6976, 64
      %v7010 = vpop.permute.xlu0 %7009
      %v7028 = vrot.slane %v6593, 1
      %v7029 = vrot.slane %v6594, 1
      %v7030 = vsel %vm2089, %v7028, %v7029
      %v7031 = vrot.slane %v6595, 1
      %v7032 = vsel %vm2089, %v7029, %v7031
      %v7033 = vrot.slane %v6596, 1
      %v7034 = vsel %vm2089, %v7031, %v7033
      %v7035 = vrot.slane %v6597, 1
      %v7036 = vsel %vm2089, %v7033, %v7035
      %v7037 = vrot.slane %v6598, 1
      %v7038 = vsel %vm2089, %v7035, %v7037
      %v7039 = vrot.slane %v6599, 1
      %v7040 = vsel %vm2089, %v7037, %v7039
      %v7041 = vrot.slane %v6600, 1
      %v7042 = vsel %vm2089, %v7039, %v7041
      %v7043 = vrot.slane %v6601, 1
      %v7044 = vsel %vm2089, %v7041, %v7043
      %v7045 = vrot.slane %v6602, 1
      %v7046 = vsel %vm2089, %v7043, %v7045
      %v7047 = vrot.slane %v6603, 1
      %v7048 = vsel %vm2089, %v7045, %v7047
      %v7049 = vrot.slane %v6604, 1
      %v7050 = vsel %vm2089, %v7047, %v7049
      %v7051 = vrot.slane %v6605, 1
      %v7052 = vsel %vm2089, %v7049, %v7051
      %v7053 = vrot.slane %v6606, 1
      %v7054 = vsel %vm2089, %v7051, %v7053
      %v7055 = vrot.slane %v6607, 1
      %v7056 = vsel %vm2089, %v7053, %v7055
      %v7057 = vrot.slane %v6608, 1
      %v7058 = vsel %vm2089, %v7055, %v7057
      %v7059 = vrot.slane %v6609, 1
      %v7060 = vsel %vm2089, %v7057, %v7059
      %7061 = vrot.lane.b32.xlu0 %v7030, 80
      %v7062 = vpop.permute.xlu0 %7061
      %7063 = vrot.lane.b32.xlu0 %v7032, 80
      %v7064 = vpop.permute.xlu0 %7063
      %7065 = vrot.lane.b32.xlu0 %v7034, 80
      %v7066 = vpop.permute.xlu0 %7065
      %7067 = vrot.lane.b32.xlu0 %v7036, 80
      %v7068 = vpop.permute.xlu0 %7067
      %7069 = vrot.lane.b32.xlu0 %v7038, 80
      %v7070 = vpop.permute.xlu0 %7069
      %7071 = vrot.lane.b32.xlu0 %v7040, 80
      %v7072 = vpop.permute.xlu0 %7071
      %7073 = vrot.lane.b32.xlu0 %v7042, 80
      %v7074 = vpop.permute.xlu0 %7073
      %7075 = vrot.lane.b32.xlu0 %v7044, 80
      %v7076 = vpop.permute.xlu0 %7075
      %7077 = vrot.lane.b32.xlu0 %v7046, 80
      %v7078 = vpop.permute.xlu0 %7077
      %7079 = vrot.lane.b32.xlu0 %v7048, 80
      %v7080 = vpop.permute.xlu0 %7079
      %7081 = vrot.lane.b32.xlu0 %v7050, 80
      %v7082 = vpop.permute.xlu0 %7081
      %7083 = vrot.lane.b32.xlu0 %v7052, 80
      %v7084 = vpop.permute.xlu0 %7083
      %7085 = vrot.lane.b32.xlu0 %v7054, 80
      %v7086 = vpop.permute.xlu0 %7085
      %7087 = vrot.lane.b32.xlu0 %v7056, 80
      %v7088 = vpop.permute.xlu0 %7087
      %7089 = vrot.lane.b32.xlu0 %v7058, 80
      %v7090 = vpop.permute.xlu0 %7089
      %7091 = vrot.lane.b32.xlu0 %v7060, 80
      %v7092 = vpop.permute.xlu0 %7091
      %7093 = vrot.lane.b32.xlu0 %v7059, 80
      %v7094 = vpop.permute.xlu0 %7093
      %7112 = vrot.lane.b32.xlu0 %v6613, 96
      %v7113 = vpop.permute.xlu0 %7112
      %7114 = vrot.lane.b32.xlu0 %v6614, 96
      %v7115 = vpop.permute.xlu0 %7114
      %7116 = vrot.lane.b32.xlu0 %v6615, 96
      %v7117 = vpop.permute.xlu0 %7116
      %7118 = vrot.lane.b32.xlu0 %v6616, 96
      %v7119 = vpop.permute.xlu0 %7118
      %7120 = vrot.lane.b32.xlu0 %v6617, 96
      %v7121 = vpop.permute.xlu0 %7120
      %7122 = vrot.lane.b32.xlu0 %v6618, 96
      %v7123 = vpop.permute.xlu0 %7122
      %7124 = vrot.lane.b32.xlu0 %v6619, 96
      %v7125 = vpop.permute.xlu0 %7124
      %7126 = vrot.lane.b32.xlu0 %v6620, 96
      %v7127 = vpop.permute.xlu0 %7126
      %7128 = vrot.lane.b32.xlu0 %v6621, 96
      %v7129 = vpop.permute.xlu0 %7128
      %7130 = vrot.lane.b32.xlu0 %v6622, 96
      %v7131 = vpop.permute.xlu0 %7130
      %7132 = vrot.lane.b32.xlu0 %v6623, 96
      %v7133 = vpop.permute.xlu0 %7132
      %7134 = vrot.lane.b32.xlu0 %v6624, 96
      %v7135 = vpop.permute.xlu0 %7134
      %7136 = vrot.lane.b32.xlu0 %v6625, 96
      %v7137 = vpop.permute.xlu0 %7136
      %7138 = vrot.lane.b32.xlu0 %v6626, 96
      %v7139 = vpop.permute.xlu0 %7138
      %7140 = vrot.lane.b32.xlu0 %v6627, 96
      %v7141 = vpop.permute.xlu0 %7140
      %7142 = vrot.lane.b32.xlu0 %v6628, 96
      %v7143 = vpop.permute.xlu0 %7142
      %7144 = vrot.lane.b32.xlu0 %v6629, 96
      %v7145 = vpop.permute.xlu0 %7144
      %v7147 = vshrl.u32 %v6630, 16
      %v7149 = vshll.u32 %v6630, 16
      %v7151 = vrot.slane %v7149, 1
      %v7152 = vor.u32 %v7147, %v7151
      %v7153 = vsel %vm1902, %v7152, %v6675
      %v7155 = vshll.u32 %v6611, 16
      %v7157 = vrot.slane %v7155, 1
      %v7158 = vsel %vm1902, %v6968, %v7157
      %v7159 = vshrl.u32 %v6611, 16
      %v7161 = vor.u32 %v7159, %v7157
      %v7163 = vshll.u32 %v6612, 16
      %v7165 = vrot.slane %v7163, 1
      %v7166 = vsel %vm1902, %v7161, %v7165
      %v7167 = vshrl.u32 %v6612, 16
      %v7169 = vor.u32 %v7167, %v7165
      %7170 = vrot.lane.b32.xlu0 %v7153, 112
      %v7171 = vpop.permute.xlu0 %7170
      %7172 = vrot.lane.b32.xlu0 %v6684, 112
      %v7173 = vpop.permute.xlu0 %7172
      %7174 = vrot.lane.b32.xlu0 %v6692, 112
      %v7175 = vpop.permute.xlu0 %7174
      %7176 = vrot.lane.b32.xlu0 %v6700, 112
      %v7177 = vpop.permute.xlu0 %7176
      %7178 = vrot.lane.b32.xlu0 %v6708, 112
      %v7179 = vpop.permute.xlu0 %7178
      %7180 = vrot.lane.b32.xlu0 %v6716, 112
      %v7181 = vpop.permute.xlu0 %7180
      %7182 = vrot.lane.b32.xlu0 %v6724, 112
      %v7183 = vpop.permute.xlu0 %7182
      %7184 = vrot.lane.b32.xlu0 %v6732, 112
      %v7185 = vpop.permute.xlu0 %7184
      %7186 = vrot.lane.b32.xlu0 %v6740, 112
      %v7187 = vpop.permute.xlu0 %7186
      %7188 = vrot.lane.b32.xlu0 %v6748, 112
      %v7189 = vpop.permute.xlu0 %7188
      %7190 = vrot.lane.b32.xlu0 %v6756, 112
      %v7191 = vpop.permute.xlu0 %7190
      %7192 = vrot.lane.b32.xlu0 %v6764, 112
      %v7193 = vpop.permute.xlu0 %7192
      %7194 = vrot.lane.b32.xlu0 %v6772, 112
      %v7195 = vpop.permute.xlu0 %7194
      %7196 = vrot.lane.b32.xlu0 %v6965, 112
      %v7197 = vpop.permute.xlu0 %7196
      %7198 = vrot.lane.b32.xlu0 %v7158, 112
      %v7199 = vpop.permute.xlu0 %7198
      %7200 = vrot.lane.b32.xlu0 %v7166, 112
      %v7201 = vpop.permute.xlu0 %7200
      %7202 = vrot.lane.b32.xlu0 %v7169, 112
      %v7203 = vpop.permute.xlu0 %7202
      %v7221 = vrot.slane %v6632, 1
      %v7222 = vrot.slane %v6633, 1
      %v7223 = vsel %vm2089, %v7221, %v7222
      %v7224 = vrot.slane %v6634, 1
      %v7225 = vsel %vm2089, %v7222, %v7224
      %v7226 = vrot.slane %v6635, 1
      %v7227 = vsel %vm2089, %v7224, %v7226
      %v7228 = vrot.slane %v6636, 1
      %v7229 = vsel %vm2089, %v7226, %v7228
      %v7230 = vrot.slane %v6637, 1
      %v7231 = vsel %vm2089, %v7228, %v7230
      %v7232 = vrot.slane %v6638, 1
      %v7233 = vsel %vm2089, %v7230, %v7232
      %v7234 = vrot.slane %v6639, 1
      %v7235 = vsel %vm2089, %v7232, %v7234
      %v7236 = vrot.slane %v6640, 1
      %v7237 = vsel %vm2089, %v7234, %v7236
      %v7238 = vrot.slane %v6641, 1
      %v7239 = vsel %vm2089, %v7236, %v7238
      %v7240 = vrot.slane %v6642, 1
      %v7241 = vsel %vm2089, %v7238, %v7240
      %v7242 = vrot.slane %v6643, 1
      %v7243 = vsel %vm2089, %v7240, %v7242
      %v7244 = vrot.slane %v6644, 1
      %v7245 = vsel %vm2089, %v7242, %v7244
      %v7246 = vrot.slane %v6645, 1
      %v7247 = vsel %vm2089, %v7244, %v7246
      %v7248 = vrot.slane %v6646, 1
      %v7249 = vsel %vm2089, %v7246, %v7248
      %v7250 = vrot.slane %v6647, 1
      %v7251 = vsel %vm2089, %v7248, %v7250
      %v7252 = vrot.slane %v6648, 1
      %v7253 = vsel %vm2089, %v7250, %v7252
      %v7256 = vsel %vm446, %v6535, %v6785
      %v7259 = vsel %vm446, %v6536, %v6787
      %v7262 = vsel %vm446, %v6537, %v6789
      %v7265 = vsel %vm446, %v6538, %v6791
      %v7268 = vsel %vm446, %v6539, %v6793
      %v7271 = vsel %vm446, %v6540, %v6795
      %v7274 = vsel %vm446, %v6541, %v6797
      %v7277 = vsel %vm446, %v6542, %v6799
      %v7280 = vsel %vm446, %v6543, %v6801
      %v7283 = vsel %vm446, %v6544, %v6803
      %v7286 = vsel %vm446, %v6545, %v6805
      %v7289 = vsel %vm446, %v6546, %v6807
      %v7292 = vsel %vm446, %v6547, %v6809
      %v7295 = vsel %vm446, %v6548, %v6811
      %v7298 = vsel %vm446, %v6549, %v6813
      %v7301 = vsel %vm446, %v6550, %v6815
      %v7304 = vsel %vm446, %v6551, %v6817
      %v7306 = vsel %vm2663, %v7256, %v6869
      %v7308 = vsel %vm2663, %v7259, %v6871
      %v7310 = vsel %vm2663, %v7262, %v6873
      %v7312 = vsel %vm2663, %v7265, %v6875
      %v7314 = vsel %vm2663, %v7268, %v6877
      %v7316 = vsel %vm2663, %v7271, %v6879
      %v7318 = vsel %vm2663, %v7274, %v6881
      %v7320 = vsel %vm2663, %v7277, %v6883
      %v7322 = vsel %vm2663, %v7280, %v6885
      %v7324 = vsel %vm2663, %v7283, %v6887
      %v7326 = vsel %vm2663, %v7286, %v6889
      %v7328 = vsel %vm2663, %v7289, %v6891
      %v7330 = vsel %vm2663, %v7292, %v6893
      %v7332 = vsel %vm2663, %v7295, %v6895
      %v7334 = vsel %vm2663, %v7298, %v6897
      %v7336 = vsel %vm2663, %v7301, %v6899
      %v7338 = vsel %vm2663, %v7304, %v6901
      %v7340 = vsel %vm2733, %v7306, %v6920
      %v7342 = vsel %vm2733, %v7308, %v6922
      %v7344 = vsel %vm2733, %v7310, %v6924
      %v7346 = vsel %vm2733, %v7312, %v6926
      %v7348 = vsel %vm2733, %v7314, %v6928
      %v7350 = vsel %vm2733, %v7316, %v6930
      %v7352 = vsel %vm2733, %v7318, %v6932
      %v7354 = vsel %vm2733, %v7320, %v6934
      %v7356 = vsel %vm2733, %v7322, %v6936
      %v7358 = vsel %vm2733, %v7324, %v6938
      %v7360 = vsel %vm2733, %v7326, %v6940
      %v7362 = vsel %vm2733, %v7328, %v6942
      %v7364 = vsel %vm2733, %v7330, %v6944
      %v7366 = vsel %vm2733, %v7332, %v6946
      %v7368 = vsel %vm2733, %v7334, %v6948
      %v7370 = vsel %vm2733, %v7336, %v6950
      %v7372 = vsel %vm2733, %v7338, %v6952
      %v7374 = vsel %vm2803, %v7340, %v6978
      %v7376 = vsel %vm2803, %v7342, %v6980
      %v7378 = vsel %vm2803, %v7344, %v6982
      %v7380 = vsel %vm2803, %v7346, %v6984
      %v7382 = vsel %vm2803, %v7348, %v6986
      %v7384 = vsel %vm2803, %v7350, %v6988
      %v7386 = vsel %vm2803, %v7352, %v6990
      %v7388 = vsel %vm2803, %v7354, %v6992
      %v7390 = vsel %vm2803, %v7356, %v6994
      %v7392 = vsel %vm2803, %v7358, %v6996
      %v7394 = vsel %vm2803, %v7360, %v6998
      %v7396 = vsel %vm2803, %v7362, %v7000
      %v7398 = vsel %vm2803, %v7364, %v7002
      %v7400 = vsel %vm2803, %v7366, %v7004
      %v7402 = vsel %vm2803, %v7368, %v7006
      %v7404 = vsel %vm2803, %v7370, %v7008
      %v7406 = vsel %vm2803, %v7372, %v7010
      %vm7407 = vcmask 654336
      %v7409 = vsel %vm7407, %v7374, %v7062
      %v7411 = vsel %vm7407, %v7376, %v7064
      %v7413 = vsel %vm7407, %v7378, %v7066
      %v7415 = vsel %vm7407, %v7380, %v7068
      %v7417 = vsel %vm7407, %v7382, %v7070
      %v7419 = vsel %vm7407, %v7384, %v7072
      %v7421 = vsel %vm7407, %v7386, %v7074
      %v7423 = vsel %vm7407, %v7388, %v7076
      %v7425 = vsel %vm7407, %v7390, %v7078
      %v7427 = vsel %vm7407, %v7392, %v7080
      %v7429 = vsel %vm7407, %v7394, %v7082
      %v7431 = vsel %vm7407, %v7396, %v7084
      %v7433 = vsel %vm7407, %v7398, %v7086
      %v7435 = vsel %vm7407, %v7400, %v7088
      %v7437 = vsel %vm7407, %v7402, %v7090
      %v7439 = vsel %vm7407, %v7404, %v7092
      %v7441 = vsel %vm7407, %v7406, %v7094
      %vm7442 = vcmask 785408
      %v7444 = vsel %vm7442, %v7409, %v7113
      %v7446 = vsel %vm7442, %v7411, %v7115
      %v7448 = vsel %vm7442, %v7413, %v7117
      %v7450 = vsel %vm7442, %v7415, %v7119
      %v7452 = vsel %vm7442, %v7417, %v7121
      %v7454 = vsel %vm7442, %v7419, %v7123
      %v7456 = vsel %vm7442, %v7421, %v7125
      %v7458 = vsel %vm7442, %v7423, %v7127
      %v7460 = vsel %vm7442, %v7425, %v7129
      %v7462 = vsel %vm7442, %v7427, %v7131
      %v7464 = vsel %vm7442, %v7429, %v7133
      %v7466 = vsel %vm7442, %v7431, %v7135
      %v7468 = vsel %vm7442, %v7433, %v7137
      %v7470 = vsel %vm7442, %v7435, %v7139
      %v7472 = vsel %vm7442, %v7437, %v7141
      %v7474 = vsel %vm7442, %v7439, %v7143
      %v7476 = vsel %vm7442, %v7441, %v7145
      %vm7477 = vcmask 916480
      %v7479 = vsel %vm7477, %v7444, %v7171
      %v7481 = vsel %vm7477, %v7446, %v7173
      %v7483 = vsel %vm7477, %v7448, %v7175
      %v7485 = vsel %vm7477, %v7450, %v7177
      %v7487 = vsel %vm7477, %v7452, %v7179
      %v7489 = vsel %vm7477, %v7454, %v7181
      %v7491 = vsel %vm7477, %v7456, %v7183
      %v7493 = vsel %vm7477, %v7458, %v7185
      %v7495 = vsel %vm7477, %v7460, %v7187
      %v7497 = vsel %vm7477, %v7462, %v7189
      %v7499 = vsel %vm7477, %v7464, %v7191
      %v7501 = vsel %vm7477, %v7466, %v7193
      %v7503 = vsel %vm7477, %v7468, %v7195
      %v7505 = vsel %vm7477, %v7470, %v7197
      %v7507 = vsel %vm7477, %v7472, %v7199
      %v7509 = vsel %vm7477, %v7474, %v7201
      %v7511 = vsel %vm7477, %v7476, %v7203
      %v7512 = vld [vmem:[%s7] sm:$0xf]
      %v7513 = vld [vmem:[%s7 + $0x4] sm:$0xf]
      %v7514 = vld [vmem:[%s7 + $0x8] sm:$0xf]
      %v7515 = vld [vmem:[%s7 + $0xc] sm:$0xf]
      %v7516 = vld [vmem:[%s7 + $0x10] sm:$0xf]
      %v7517 = vld [vmem:[%s7 + $0x14] sm:$0xf]
      %v7518 = vld [vmem:[%s7 + $0x18] sm:$0xf]
      %v7519 = vld [vmem:[%s7 + $0x1c] sm:$0xf]
      %v7520 = vld [vmem:[%s7 + $0x20] sm:$0xf]
      %v7521 = vld [vmem:[%s7 + $0x24] sm:$0xf]
      %v7522 = vld [vmem:[%s7 + $0x28] sm:$0xf]
      %v7523 = vld [vmem:[%s7 + $0x2c] sm:$0xf]
      %v7524 = vld [vmem:[%s7 + $0x30] sm:$0xf]
      %v7525 = vld [vmem:[%s7 + $0x34] sm:$0xf]
      %v7526 = vld [vmem:[%s7 + $0x38] sm:$0xf]
      %v7527 = vld [vmem:[%s7 + $0x3c] sm:$0xf]
      %v7528 = vld [vmem:[%s7 + $0x40] sm:$0xf]
      %v7529 = vld [vmem:[%s7 + $0x44] sm:$0xf]
      %v7530 = vld [vmem:[%s8] sm:$0x1]
      %v7532 = vlaneseq
      %v7533 = vshrl.u32 %v7532, 7
      %v7534 = vsub.s32 0, %v7533
      %v7535 = vrot.slane %v7530, %v7534
      %v7537 = vshrl.u32 %v7479, 16
      %v7539 = vrot.slane %v7537, 3
      %v7540 = vshll.u32 %v7479, 16
      %v7542 = vrot.slane %v7540, 4
      %v7543 = vor.u32 %v7539, %v7542
      %v7544 = vshrl.u32 %v7481, 16
      %v7546 = vrot.slane %v7544, 3
      %v7547 = vshll.u32 %v7481, 16
      %v7549 = vrot.slane %v7547, 4
      %v7550 = vor.u32 %v7546, %v7549
      %v7551 = vsel %vm1646, %v7543, %v7550
      %v7553 = vshrl.u32 %v7223, 16
      %v7555 = vrot.slane %v7553, 3
      %v7556 = vshll.u32 %v7223, 16
      %v7558 = vrot.slane %v7556, 4
      %v7559 = vor.u32 %v7555, %v7558
      %v7561 = vshrl.u32 %v7225, 16
      %v7563 = vrot.slane %v7561, 3
      %v7564 = vshll.u32 %v7225, 16
      %v7566 = vrot.slane %v7564, 4
      %v7567 = vor.u32 %v7563, %v7566
      %v7568 = vsel %vm1646, %v7559, %v7567
      %v7569 = vshrl.u32 %v7483, 16
      %v7571 = vrot.slane %v7569, 3
      %v7572 = vshll.u32 %v7483, 16
      %v7574 = vrot.slane %v7572, 4
      %v7575 = vor.u32 %v7571, %v7574
      %v7576 = vsel %vm1646, %v7550, %v7575
      %v7578 = vshrl.u32 %v7227, 16
      %v7580 = vrot.slane %v7578, 3
      %v7581 = vshll.u32 %v7227, 16
      %v7583 = vrot.slane %v7581, 4
      %v7584 = vor.u32 %v7580, %v7583
      %v7585 = vsel %vm1646, %v7567, %v7584
      %v7586 = vshrl.u32 %v7485, 16
      %v7588 = vrot.slane %v7586, 3
      %v7589 = vshll.u32 %v7485, 16
      %v7591 = vrot.slane %v7589, 4
      %v7592 = vor.u32 %v7588, %v7591
      %v7593 = vsel %vm1646, %v7575, %v7592
      %v7595 = vshrl.u32 %v7229, 16
      %v7597 = vrot.slane %v7595, 3
      %v7598 = vshll.u32 %v7229, 16
      %v7600 = vrot.slane %v7598, 4
      %v7601 = vor.u32 %v7597, %v7600
      %v7602 = vsel %vm1646, %v7584, %v7601
      %v7603 = vshrl.u32 %v7487, 16
      %v7605 = vrot.slane %v7603, 3
      %v7606 = vshll.u32 %v7487, 16
      %v7608 = vrot.slane %v7606, 4
      %v7609 = vor.u32 %v7605, %v7608
      %v7610 = vsel %vm1646, %v7592, %v7609
      %v7612 = vshrl.u32 %v7231, 16
      %v7614 = vrot.slane %v7612, 3
      %v7615 = vshll.u32 %v7231, 16
      %v7617 = vrot.slane %v7615, 4
      %v7618 = vor.u32 %v7614, %v7617
      %v7619 = vsel %vm1646, %v7601, %v7618
      %v7620 = vshrl.u32 %v7489, 16
      %v7622 = vrot.slane %v7620, 3
      %v7623 = vshll.u32 %v7489, 16
      %v7625 = vrot.slane %v7623, 4
      %v7626 = vor.u32 %v7622, %v7625
      %v7627 = vsel %vm1646, %v7609, %v7626
      %v7629 = vshrl.u32 %v7233, 16
      %v7631 = vrot.slane %v7629, 3
      %v7632 = vshll.u32 %v7233, 16
      %v7634 = vrot.slane %v7632, 4
      %v7635 = vor.u32 %v7631, %v7634
      %v7636 = vsel %vm1646, %v7618, %v7635
      %v7637 = vshrl.u32 %v7491, 16
      %v7639 = vrot.slane %v7637, 3
      %v7640 = vshll.u32 %v7491, 16
      %v7642 = vrot.slane %v7640, 4
      %v7643 = vor.u32 %v7639, %v7642
      %v7644 = vsel %vm1646, %v7626, %v7643
      %v7646 = vshrl.u32 %v7235, 16
      %v7648 = vrot.slane %v7646, 3
      %v7649 = vshll.u32 %v7235, 16
      %v7651 = vrot.slane %v7649, 4
      %v7652 = vor.u32 %v7648, %v7651
      %v7653 = vsel %vm1646, %v7635, %v7652
      %v7654 = vshrl.u32 %v7493, 16
      %v7656 = vrot.slane %v7654, 3
      %v7657 = vshll.u32 %v7493, 16
      %v7659 = vrot.slane %v7657, 4
      %v7660 = vor.u32 %v7656, %v7659
      %v7661 = vsel %vm1646, %v7643, %v7660
      %v7663 = vshrl.u32 %v7237, 16
      %v7665 = vrot.slane %v7663, 3
      %v7666 = vshll.u32 %v7237, 16
      %v7668 = vrot.slane %v7666, 4
      %v7669 = vor.u32 %v7665, %v7668
      %v7670 = vsel %vm1646, %v7652, %v7669
      %v7671 = vshrl.u32 %v7495, 16
      %v7673 = vrot.slane %v7671, 3
      %v7674 = vshll.u32 %v7495, 16
      %v7676 = vrot.slane %v7674, 4
      %v7677 = vor.u32 %v7673, %v7676
      %v7678 = vsel %vm1646, %v7660, %v7677
      %v7680 = vshrl.u32 %v7239, 16
      %v7682 = vrot.slane %v7680, 3
      %v7683 = vshll.u32 %v7239, 16
      %v7685 = vrot.slane %v7683, 4
      %v7686 = vor.u32 %v7682, %v7685
      %v7687 = vsel %vm1646, %v7669, %v7686
      %v7688 = vshrl.u32 %v7497, 16
      %v7690 = vrot.slane %v7688, 3
      %v7691 = vshll.u32 %v7497, 16
      %v7693 = vrot.slane %v7691, 4
      %v7694 = vor.u32 %v7690, %v7693
      %v7695 = vsel %vm1646, %v7677, %v7694
      %v7697 = vshrl.u32 %v7241, 16
      %v7699 = vrot.slane %v7697, 3
      %v7700 = vshll.u32 %v7241, 16
      %v7702 = vrot.slane %v7700, 4
      %v7703 = vor.u32 %v7699, %v7702
      %v7704 = vsel %vm1646, %v7686, %v7703
      %v7705 = vshrl.u32 %v7499, 16
      %v7707 = vrot.slane %v7705, 3
      %v7708 = vshll.u32 %v7499, 16
      %v7710 = vrot.slane %v7708, 4
      %v7711 = vor.u32 %v7707, %v7710
      %v7712 = vsel %vm1646, %v7694, %v7711
      %v7714 = vshrl.u32 %v7243, 16
      %v7716 = vrot.slane %v7714, 3
      %v7717 = vshll.u32 %v7243, 16
      %v7719 = vrot.slane %v7717, 4
      %v7720 = vor.u32 %v7716, %v7719
      %v7721 = vsel %vm1646, %v7703, %v7720
      %v7722 = vshrl.u32 %v7501, 16
      %v7724 = vrot.slane %v7722, 3
      %v7725 = vshll.u32 %v7501, 16
      %v7727 = vrot.slane %v7725, 4
      %v7728 = vor.u32 %v7724, %v7727
      %v7729 = vsel %vm1646, %v7711, %v7728
      %v7731 = vshrl.u32 %v7245, 16
      %v7733 = vrot.slane %v7731, 3
      %v7734 = vshll.u32 %v7245, 16
      %v7736 = vrot.slane %v7734, 4
      %v7737 = vor.u32 %v7733, %v7736
      %v7738 = vsel %vm1646, %v7720, %v7737
      %v7739 = vshrl.u32 %v7503, 16
      %v7741 = vrot.slane %v7739, 3
      %v7742 = vshll.u32 %v7503, 16
      %v7744 = vrot.slane %v7742, 4
      %v7745 = vor.u32 %v7741, %v7744
      %v7746 = vsel %vm1646, %v7728, %v7745
      %v7748 = vshrl.u32 %v7247, 16
      %v7750 = vrot.slane %v7748, 3
      %v7751 = vshll.u32 %v7247, 16
      %v7753 = vrot.slane %v7751, 4
      %v7754 = vor.u32 %v7750, %v7753
      %v7755 = vsel %vm1646, %v7737, %v7754
      %v7756 = vshrl.u32 %v7505, 16
      %v7758 = vrot.slane %v7756, 3
      %v7759 = vshll.u32 %v7505, 16
      %v7761 = vrot.slane %v7759, 4
      %v7762 = vor.u32 %v7758, %v7761
      %v7763 = vsel %vm1646, %v7745, %v7762
      %v7765 = vshrl.u32 %v7249, 16
      %v7767 = vrot.slane %v7765, 3
      %v7768 = vshll.u32 %v7249, 16
      %v7770 = vrot.slane %v7768, 4
      %v7771 = vor.u32 %v7767, %v7770
      %v7772 = vsel %vm1646, %v7754, %v7771
      %v7773 = vshrl.u32 %v7507, 16
      %v7775 = vrot.slane %v7773, 3
      %v7776 = vshll.u32 %v7507, 16
      %v7778 = vrot.slane %v7776, 4
      %v7779 = vor.u32 %v7775, %v7778
      %v7780 = vsel %vm1646, %v7762, %v7779
      %v7782 = vshrl.u32 %v7251, 16
      %v7784 = vrot.slane %v7782, 3
      %v7785 = vshll.u32 %v7251, 16
      %v7787 = vrot.slane %v7785, 4
      %v7788 = vor.u32 %v7784, %v7787
      %v7789 = vsel %vm1646, %v7771, %v7788
      %v7790 = vshrl.u32 %v7509, 16
      %v7792 = vrot.slane %v7790, 3
      %v7793 = vshll.u32 %v7509, 16
      %v7795 = vrot.slane %v7793, 4
      %v7796 = vor.u32 %v7792, %v7795
      %v7797 = vsel %vm1646, %v7779, %v7796
      %v7799 = vshrl.u32 %v7253, 16
      %v7801 = vrot.slane %v7799, 3
      %v7802 = vshll.u32 %v7253, 16
      %v7804 = vrot.slane %v7802, 4
      %v7805 = vor.u32 %v7801, %v7804
      %v7806 = vsel %vm1646, %v7788, %v7805
      %v7807 = vshrl.u32 %v7511, 16
      %v7809 = vrot.slane %v7807, 3
      %v7810 = vshll.u32 %v7511, 16
      %v7812 = vrot.slane %v7810, 4
      %v7813 = vor.u32 %v7809, %v7812
      %v7814 = vsel %vm1646, %v7796, %v7813
      %v7816 = vshrl.u32 %v7252, 16
      %v7818 = vrot.slane %v7816, 3
      %v7819 = vshll.u32 %v7252, 16
      %v7821 = vrot.slane %v7819, 4
      %v7822 = vor.u32 %v7818, %v7821
      %v7823 = vsel %vm1646, %v7805, %v7822
      %v7858 = vunpack.c.l.b16 %v7512
      %v7859 = vunpack.c.l.b16 %v7513
      %v7860 = vunpack.c.l.b16 %v7514
      %v7861 = vunpack.c.l.b16 %v7515
      %v7862 = vunpack.c.l.b16 %v7516
      %v7863 = vunpack.c.l.b16 %v7517
      %v7864 = vunpack.c.l.b16 %v7518
      %v7865 = vunpack.c.l.b16 %v7519
      %v7866 = vunpack.c.l.b16 %v7520
      %v7867 = vunpack.c.l.b16 %v7521
      %v7868 = vunpack.c.l.b16 %v7522
      %v7869 = vunpack.c.l.b16 %v7523
      %v7870 = vunpack.c.l.b16 %v7524
      %v7871 = vunpack.c.l.b16 %v7525
      %v7872 = vunpack.c.l.b16 %v7526
      %v7873 = vunpack.c.l.b16 %v7527
      %v7874 = vunpack.c.l.b16 %v7528
      %v7875 = vunpack.c.l.b16 %v7529
      %v7876 = vpack.c.b16 %v7859, %v7858
      %v7877 = vpack.c.b16 %v7861, %v7860
      %v7878 = vpack.c.b16 %v7863, %v7862
      %v7879 = vpack.c.b16 %v7865, %v7864
      %v7880 = vpack.c.b16 %v7867, %v7866
      %v7881 = vpack.c.b16 %v7869, %v7868
      %v7882 = vpack.c.b16 %v7871, %v7870
      %v7883 = vpack.c.b16 %v7873, %v7872
      %v7884 = vpack.c.b16 %v7875, %v7874
      %v7895 = vsel %vm446, %v7568, 0
      %v7898 = vsel %vm446, %v7585, 0
      %v7901 = vsel %vm446, %v7602, 0
      %v7904 = vsel %vm446, %v7619, 0
      %v7907 = vsel %vm446, %v7636, 0
      %v7910 = vsel %vm446, %v7653, 0
      %v7913 = vsel %vm446, %v7670, 0
      %v7916 = vsel %vm446, %v7687, 0
      %v7919 = vsel %vm446, %v7704, 0
      %v7922 = vsel %vm446, %v7721, 0
      %v7925 = vsel %vm446, %v7738, 0
      %v7928 = vsel %vm446, %v7755, 0
      %v7931 = vsel %vm446, %v7772, 0
      %v7934 = vsel %vm446, %v7789, 0
      %v7937 = vsel %vm446, %v7806, 0
      %v7940 = vsel %vm446, %v7823, 0
      %7942 = vmatprep.subr.bf16.mxu0 0
      %7943 = vmatpush1.bf16.msra.mxu0 %v7876
      %7944 = vmatprep.subr.bf16.mxu0 0
      %7945 = vmatpush1.bf16.msra.mxu0 %v7877
      %7946 = vmatprep.subr.bf16.mxu0 0
      %7947 = vmatpush1.bf16.msra.mxu0 %v7878
      %7948 = vmatprep.subr.bf16.mxu0 0
      %7949 = vmatpush1.bf16.msra.mxu0 %v7879
      %7950 = vmatprep.subr.bf16.mxu0 0
      %7951 = vmatpush1.bf16.msra.mxu0 %v7880
      %7952 = vmatprep.subr.bf16.mxu0 0
      %7953 = vmatpush1.bf16.msra.mxu0 %v7881
      %7954 = vmatprep.subr.bf16.mxu0 0
      %7955 = vmatpush1.bf16.msra.mxu0 %v7882
      %7956 = vmatprep.subr.bf16.mxu0 0
      %7957 = vmatpush1.bf16.msra.mxu0 %v7883
      %7958 = vmatprep.subr.bf16.mxu0 0
      %7959 = vmatpush1.bf16.msra.mxu0 %v7884
      %7960 = vmatprep.subr.bf16.mxu0 0
      %7961 = vmatpush1.bf16.msra.mxu0 0
      %7962 = vmatprep.subr.bf16.mxu0 0
      %7963 = vmatpush1.bf16.msra.mxu0 0
      %7964 = vmatprep.subr.bf16.mxu0 0
      %7965 = vmatpush1.bf16.msra.mxu0 0
      %7966 = vmatprep.subr.bf16.mxu0 0
      %7967 = vmatpush1.bf16.msra.mxu0 0
      %7968 = vmatprep.subr.bf16.mxu0 0
      %7969 = vmatpush1.bf16.msra.mxu0 0
      %7970 = vmatprep.subr.bf16.mxu0 0
      %7971 = vmatpush1.bf16.msra.mxu0 0
      %7972 = vmatprep.subr.bf16.mxu0 0
      %7973 = vmatpush1.bf16.msra.mxu0 0
      %7974 = vmatprep.mubr.bf16.mxu0 %v7895
      %7975 = vmatmul.mubr.bf16.gmra.mrb[0].mxu0 %v7551
      %v7976 = vpop.f32.mrb[0].mxu0
      %v7977 = vadd.f32 %v7535, %v7976
      %v7978 = vpop.f32.mrb[0].mxu0
      %v7979 = vpop.f32.mrb[0].mxu0
      %v7980 = vadd.f32 %v7535, %v7979
      %v7981 = vpop.f32.mrb[0].mxu0
      %7982 = vmatprep.mubr.bf16.mxu0 %v7898
      %7983 = vmatmul.mubr.bf16.gmra.mrb[0].mxu0 %v7576
      %v7984 = vpop.f32.mrb[0].mxu0
      %v7985 = vadd.f32 %v7535, %v7984
      %v7986 = vpop.f32.mrb[0].mxu0
      %v7987 = vpop.f32.mrb[0].mxu0
      %v7988 = vadd.f32 %v7535, %v7987
      %v7989 = vpop.f32.mrb[0].mxu0
      %7990 = vmatprep.mubr.bf16.mxu0 %v7901
      %7991 = vmatmul.mubr.bf16.gmra.mrb[0].mxu0 %v7593
      %v7992 = vpop.f32.mrb[0].mxu0
      %v7993 = vadd.f32 %v7535, %v7992
      %v7994 = vpop.f32.mrb[0].mxu0
      %v7995 = vpop.f32.mrb[0].mxu0
      %v7996 = vadd.f32 %v7535, %v7995
      %v7997 = vpop.f32.mrb[0].mxu0
      %7998 = vmatprep.mubr.bf16.mxu0 %v7904
      %7999 = vmatmul.mubr.bf16.gmra.mrb[0].mxu0 %v7610
      %v8000 = vpop.f32.mrb[0].mxu0
      %v8001 = vadd.f32 %v7535, %v8000
      %v8002 = vpop.f32.mrb[0].mxu0
      %v8003 = vpop.f32.mrb[0].mxu0
      %v8004 = vadd.f32 %v7535, %v8003
      %v8005 = vpop.f32.mrb[0].mxu0
      %8006 = vmatprep.mubr.bf16.mxu0 %v7907
      %8007 = vmatmul.mubr.bf16.gmra.mrb[0].mxu0 %v7627
      %v8008 = vpop.f32.mrb[0].mxu0
      %v8009 = vadd.f32 %v7535, %v8008
      %v8010 = vpop.f32.mrb[0].mxu0
      %v8011 = vpop.f32.mrb[0].mxu0
      %v8012 = vadd.f32 %v7535, %v8011
      %v8013 = vpop.f32.mrb[0].mxu0
      %8014 = vmatprep.mubr.bf16.mxu0 %v7910
      %8015 = vmatmul.mubr.bf16.gmra.mrb[0].mxu0 %v7644
      %v8016 = vpop.f32.mrb[0].mxu0
      %v8017 = vadd.f32 %v7535, %v8016
      %v8018 = vpop.f32.mrb[0].mxu0
      %v8019 = vpop.f32.mrb[0].mxu0
      %v8020 = vadd.f32 %v7535, %v8019
      %v8021 = vpop.f32.mrb[0].mxu0
      %8022 = vmatprep.mubr.bf16.mxu0 %v7913
      %8023 = vmatmul.mubr.bf16.gmra.mrb[0].mxu0 %v7661
      %v8024 = vpop.f32.mrb[0].mxu0
      %v8025 = vadd.f32 %v7535, %v8024
      %v8026 = vpop.f32.mrb[0].mxu0
      %v8027 = vpop.f32.mrb[0].mxu0
      %v8028 = vadd.f32 %v7535, %v8027
      %v8029 = vpop.f32.mrb[0].mxu0
      %8030 = vmatprep.mubr.bf16.mxu0 %v7916
      %8031 = vmatmul.mubr.bf16.gmra.mrb[0].mxu0 %v7678
      %v8032 = vpop.f32.mrb[0].mxu0
      %v8033 = vadd.f32 %v7535, %v8032
      %v8034 = vpop.f32.mrb[0].mxu0
      %v8035 = vpop.f32.mrb[0].mxu0
      %v8036 = vadd.f32 %v7535, %v8035
      %v8037 = vpop.f32.mrb[0].mxu0
      %8038 = vmatprep.mubr.bf16.mxu0 %v7919
      %8039 = vmatmul.mubr.bf16.gmra.mrb[0].mxu0 %v7695
      %v8040 = vpop.f32.mrb[0].mxu0
      %v8041 = vadd.f32 %v7535, %v8040
      %v8042 = vpop.f32.mrb[0].mxu0
      %v8043 = vpop.f32.mrb[0].mxu0
      %v8044 = vadd.f32 %v7535, %v8043
      %v8045 = vpop.f32.mrb[0].mxu0
      %8046 = vmatprep.mubr.bf16.mxu0 %v7922
      %8047 = vmatmul.mubr.bf16.gmra.mrb[0].mxu0 %v7712
      %v8048 = vpop.f32.mrb[0].mxu0
      %v8049 = vadd.f32 %v7535, %v8048
      %v8050 = vpop.f32.mrb[0].mxu0
      %v8051 = vpop.f32.mrb[0].mxu0
      %v8052 = vadd.f32 %v7535, %v8051
      %v8053 = vpop.f32.mrb[0].mxu0
      %8054 = vmatprep.mubr.bf16.mxu0 %v7925
      %8055 = vmatmul.mubr.bf16.gmra.mrb[0].mxu0 %v7729
      %v8056 = vpop.f32.mrb[0].mxu0
      %v8057 = vadd.f32 %v7535, %v8056
      %v8058 = vpop.f32.mrb[0].mxu0
      %v8059 = vpop.f32.mrb[0].mxu0
      %v8060 = vadd.f32 %v7535, %v8059
      %v8061 = vpop.f32.mrb[0].mxu0
      %8062 = vmatprep.mubr.bf16.mxu0 %v7928
      %8063 = vmatmul.mubr.bf16.gmra.mrb[0].mxu0 %v7746
      %v8064 = vpop.f32.mrb[0].mxu0
      %v8065 = vadd.f32 %v7535, %v8064
      %v8066 = vpop.f32.mrb[0].mxu0
      %v8067 = vpop.f32.mrb[0].mxu0
      %v8068 = vadd.f32 %v7535, %v8067
      %v8069 = vpop.f32.mrb[0].mxu0
      %8070 = vmatprep.mubr.bf16.mxu0 %v7931
      %8071 = vmatmul.mubr.bf16.gmra.mrb[0].mxu0 %v7763
      %v8072 = vpop.f32.mrb[0].mxu0
      %v8073 = vadd.f32 %v7535, %v8072
      %v8074 = vpop.f32.mrb[0].mxu0
      %v8075 = vpop.f32.mrb[0].mxu0
      %v8076 = vadd.f32 %v7535, %v8075
      %v8077 = vpop.f32.mrb[0].mxu0
      %8078 = vmatprep.mubr.bf16.mxu0 %v7934
      %8079 = vmatmul.mubr.bf16.gmra.mrb[0].mxu0 %v7780
      %v8080 = vpop.f32.mrb[0].mxu0
      %v8081 = vadd.f32 %v7535, %v8080
      %v8082 = vpop.f32.mrb[0].mxu0
      %v8083 = vpop.f32.mrb[0].mxu0
      %v8084 = vadd.f32 %v7535, %v8083
      %v8085 = vpop.f32.mrb[0].mxu0
      %8086 = vmatprep.mubr.bf16.mxu0 %v7937
      %8087 = vmatmul.mubr.bf16.gmra.mrb[0].mxu0 %v7797
      %v8088 = vpop.f32.mrb[0].mxu0
      %v8089 = vadd.f32 %v7535, %v8088
      %v8090 = vpop.f32.mrb[0].mxu0
      %v8091 = vpop.f32.mrb[0].mxu0
      %v8092 = vadd.f32 %v7535, %v8091
      %v8093 = vpop.f32.mrb[0].mxu0
      %8094 = vmatprep.mubr.bf16.mxu0 %v7940
      %8095 = vmatmul.mubr.bf16.gmra.mrb[0].mxu0 %v7814
      %v8096 = vpop.f32.mrb[0].mxu0
      %v8097 = vadd.f32 %v7535, %v8096
      %v8098 = vpop.f32.mrb[0].mxu0
      %v8099 = vpop.f32.mrb[0].mxu0
      %v8100 = vadd.f32 %v7535, %v8099
      %v8101 = vpop.f32.mrb[0].mxu0
      %8102 = vdwg.mxu0
      %v8103 = vmax.f32 %v7977, 0.0
      %v8104 = vmax.f32 %v7980, 0.0
      %v8105 = vmax.f32 %v7985, 0.0
      %v8106 = vmax.f32 %v7988, 0.0
      %v8107 = vmax.f32 %v7993, 0.0
      %v8108 = vmax.f32 %v7996, 0.0
      %v8109 = vmax.f32 %v8001, 0.0
      %v8110 = vmax.f32 %v8004, 0.0
      %v8111 = vmax.f32 %v8009, 0.0
      %v8112 = vmax.f32 %v8012, 0.0
      %v8113 = vmax.f32 %v8017, 0.0
      %v8114 = vmax.f32 %v8020, 0.0
      %v8115 = vmax.f32 %v8025, 0.0
      %v8116 = vmax.f32 %v8028, 0.0
      %v8117 = vmax.f32 %v8033, 0.0
      %v8118 = vmax.f32 %v8036, 0.0
      %v8119 = vmax.f32 %v8041, 0.0
      %v8120 = vmax.f32 %v8044, 0.0
      %v8121 = vmax.f32 %v8049, 0.0
      %v8122 = vmax.f32 %v8052, 0.0
      %v8123 = vmax.f32 %v8057, 0.0
      %v8124 = vmax.f32 %v8060, 0.0
      %v8125 = vmax.f32 %v8065, 0.0
      %v8126 = vmax.f32 %v8068, 0.0
      %v8127 = vmax.f32 %v8073, 0.0
      %v8128 = vmax.f32 %v8076, 0.0
      %v8129 = vmax.f32 %v8081, 0.0
      %v8130 = vmax.f32 %v8084, 0.0
      %v8131 = vmax.f32 %v8089, 0.0
      %v8132 = vmax.f32 %v8092, 0.0
      %v8133 = vmax.f32 %v8097, 0.0
      %v8134 = vmax.f32 %v8100, 0.0
      %v8135 = vsel %vm446, %v8103, 0.0
      %v8136 = vsel %vm446, %v8104, 0.0
      %v8137 = vadd.f32 %v8135, %v8136
      %v8138 = vsel %vm446, %v8105, 0.0
      %v8139 = vadd.f32 %v8137, %v8138
      %v8140 = vsel %vm446, %v8106, 0.0
      %v8141 = vadd.f32 %v8139, %v8140
      %v8142 = vsel %vm446, %v8107, 0.0
      %v8143 = vadd.f32 %v8141, %v8142
      %v8144 = vsel %vm446, %v8108, 0.0
      %v8145 = vadd.f32 %v8143, %v8144
      %v8146 = vsel %vm446, %v8109, 0.0
      %v8147 = vadd.f32 %v8145, %v8146
      %v8148 = vsel %vm446, %v8110, 0.0
      %v8149 = vadd.f32 %v8147, %v8148
      %v8150 = vsel %vm446, %v8111, 0.0
      %v8151 = vadd.f32 %v8149, %v8150
      %v8152 = vsel %vm446, %v8112, 0.0
      %v8153 = vadd.f32 %v8151, %v8152
      %v8154 = vsel %vm446, %v8113, 0.0
      %v8155 = vadd.f32 %v8153, %v8154
      %v8156 = vsel %vm446, %v8114, 0.0
      %v8157 = vadd.f32 %v8155, %v8156
      %v8158 = vsel %vm446, %v8115, 0.0
      %v8159 = vadd.f32 %v8157, %v8158
      %v8160 = vsel %vm446, %v8116, 0.0
      %v8161 = vadd.f32 %v8159, %v8160
      %v8162 = vsel %vm446, %v8117, 0.0
      %v8163 = vadd.f32 %v8161, %v8162
      %v8164 = vsel %vm446, %v8118, 0.0
      %v8165 = vadd.f32 %v8163, %v8164
      %v8166 = vsel %vm446, %v8119, 0.0
      %v8167 = vadd.f32 %v8165, %v8166
      %v8168 = vsel %vm446, %v8120, 0.0
      %v8169 = vadd.f32 %v8167, %v8168
      %v8170 = vsel %vm446, %v8121, 0.0
      %v8171 = vadd.f32 %v8169, %v8170
      %v8172 = vsel %vm446, %v8122, 0.0
      %v8173 = vadd.f32 %v8171, %v8172
      %v8174 = vsel %vm446, %v8123, 0.0
      %v8175 = vadd.f32 %v8173, %v8174
      %v8176 = vsel %vm446, %v8124, 0.0
      %v8177 = vadd.f32 %v8175, %v8176
      %v8178 = vsel %vm446, %v8125, 0.0
      %v8179 = vadd.f32 %v8177, %v8178
      %v8180 = vsel %vm446, %v8126, 0.0
      %v8181 = vadd.f32 %v8179, %v8180
      %v8182 = vsel %vm446, %v8127, 0.0
      %v8183 = vadd.f32 %v8181, %v8182
      %v8184 = vsel %vm446, %v8128, 0.0
      %v8185 = vadd.f32 %v8183, %v8184
      %v8186 = vsel %vm446, %v8129, 0.0
      %v8187 = vadd.f32 %v8185, %v8186
      %v8188 = vsel %vm446, %v8130, 0.0
      %v8189 = vadd.f32 %v8187, %v8188
      %v8190 = vsel %vm446, %v8131, 0.0
      %v8191 = vadd.f32 %v8189, %v8190
      %v8192 = vsel %vm446, %v8132, 0.0
      %v8193 = vadd.f32 %v8191, %v8192
      %v8194 = vsel %vm446, %v8133, 0.0
      %v8195 = vadd.f32 %v8193, %v8194
      %v8196 = vsel %vm446, %v8134, 0.0
      %v8197 = vadd.f32 %v8195, %v8196
      %v8198 = vrot.slane %v8197, 4
      %v8199 = vadd.f32 %v8197, %v8198
      %v8200 = vrot.slane %v8199, 2
      %v8201 = vadd.f32 %v8199, %v8200
      %v8202 = vrot.slane %v8201, 1
      %v8203 = vadd.f32 %v8201, %v8202
      %v8204 = vmul.f32 %v8203, 0.00390625
      %v8205 = vld [vmem:[%s9] sm:$0xff]
      %v8206 = vld [vmem:[%s9 + $0x8] sm:$0xff]
      %v8207 = vld [vmem:[#allocation3] sm:$0x1]
      %v8209 = vsel %vm446, %v8204, 0
      %8211 = vmatprep.subr.mxu0 0.0
      %8212 = vmatpush1.msra.mxu0 %v8205
      %8213 = vmatprep.subr.mxu0 0.0
      %8214 = vmatpush1.msra.mxu0 %v8206
      %8215 = vmatprep.subr.mxu0 0.0
      %8216 = vmatpush1.msra.mxu0 0.0
      %8217 = vmatprep.subr.mxu0 0.0
      %8218 = vmatpush1.msra.mxu0 0.0
      %8219 = vmatprep.subr.mxu0 0.0
      %8220 = vmatpush1.msra.mxu0 0.0
      %8221 = vmatprep.subr.mxu0 0.0
      %8222 = vmatpush1.msra.mxu0 0.0
      %8223 = vmatprep.subr.mxu0 0.0
      %8224 = vmatpush1.msra.mxu0 0.0
      %8225 = vmatprep.subr.mxu0 0.0
      %8226 = vmatpush1.msra.mxu0 0.0
      %8227 = vmatprep.subr.mxu0 0.0
      %8228 = vmatpush1.msra.mxu0 0.0
      %8229 = vmatprep.subr.mxu0 0.0
      %8230 = vmatpush1.msra.mxu0 0.0
      %8231 = vmatprep.subr.mxu0 0.0
      %8232 = vmatpush1.msra.mxu0 0.0
      %8233 = vmatprep.subr.mxu0 0.0
      %8234 = vmatpush1.msra.mxu0 0.0
      %8235 = vmatprep.subr.mxu0 0.0
      %8236 = vmatpush1.msra.mxu0 0.0
      %8237 = vmatprep.subr.mxu0 0.0
      %8238 = vmatpush1.msra.mxu0 0.0
      %8239 = vmatprep.subr.mxu0 0.0
      %8240 = vmatpush1.msra.mxu0 0.0
      %8241 = vmatprep.subr.mxu0 0.0
      %8242 = vmatpush1.msra.mxu0 0.0
      %8243 = vmatprep.subr.mxu0 0.0
      %8244 = vmatpush1.msra.mxu0 0.0
      %8245 = vmatprep.subr.mxu0 0.0
      %8246 = vmatpush1.msra.mxu0 0.0
      %8247 = vmatprep.subr.mxu0 0.0
      %8248 = vmatpush1.msra.mxu0 0.0
      %8249 = vmatprep.subr.mxu0 0.0
      %8250 = vmatpush1.msra.mxu0 0.0
      %8251 = vmatprep.subr.mxu0 0.0
      %8252 = vmatpush1.msra.mxu0 0.0
      %8253 = vmatprep.subr.mxu0 0.0
      %8254 = vmatpush1.msra.mxu0 0.0
      %8255 = vmatprep.subr.mxu0 0.0
      %8256 = vmatpush1.msra.mxu0 0.0
      %8257 = vmatprep.subr.mxu0 0.0
      %8258 = vmatpush1.msra.mxu0 0.0
      %8259 = vmatprep.subr.mxu0 0.0
      %8260 = vmatpush1.msra.mxu0 0.0
      %8261 = vmatprep.subr.mxu0 0.0
      %8262 = vmatpush1.msra.mxu0 0.0
      %8263 = vmatprep.subr.mxu0 0.0
      %8264 = vmatpush1.msra.mxu0 0.0
      %8265 = vmatprep.subr.mxu0 0.0
      %8266 = vmatpush1.msra.mxu0 0.0
      %8267 = vmatprep.subr.mxu0 0.0
      %8268 = vmatpush1.msra.mxu0 0.0
      %8269 = vmatprep.subr.mxu0 0.0
      %8270 = vmatpush1.msra.mxu0 0.0
      %8271 = vmatprep.subr.mxu0 0.0
      %8272 = vmatpush1.msra.mxu0 0.0
      %8273 = vmatprep.subr.mxu0 0.0
      %8274 = vmatpush1.msra.mxu0 0.0
      %8275 = vmatprep.mubr.f32.mxu0 0.0
      %8276 = vmatmul.mubr.f32.gmra.mrb[0].mxu0 %v8209
      %v8277 = vpop.f32.mrb[0].mxu0
      %v8278 = vadd.f32 %v8207, %v8277
      %v8279 = vpop.f32.mrb[0].mxu0
      %8280 = vdwg.mxu0
      %v8281 = vmax.f32 %v8278, 0.0
      %v8282 = vld [vmem:[%s11] sm:$0x1]
      %v8283 = vld [vmem:[%s12] sm:$0x1]
      %vm8284 = vcmask 7168
      %v8286 = vsel %vm8284, %v8281, 0
      %vm8288 = vcmask 1040384
      %v8290 = vsel %vm8288, %v8282, 0
      %8292 = vmatprep.subr.mxu0 0.0
      %8293 = vmatpush1.msra.mxu0 %v8290
      %8294 = vmatprep.subr.mxu0 0.0
      %8295 = vmatpush1.msra.mxu0 0.0
      %8296 = vmatprep.subr.mxu0 0.0
      %8297 = vmatpush1.msra.mxu0 0.0
      %8298 = vmatprep.subr.mxu0 0.0
      %8299 = vmatpush1.msra.mxu0 0.0
      %8300 = vmatprep.subr.mxu0 0.0
      %8301 = vmatpush1.msra.mxu0 0.0
      %8302 = vmatprep.subr.mxu0 0.0
      %8303 = vmatpush1.msra.mxu0 0.0
      %8304 = vmatprep.subr.mxu0 0.0
      %8305 = vmatpush1.msra.mxu0 0.0
      %8306 = vmatprep.subr.mxu0 0.0
      %8307 = vmatpush1.msra.mxu0 0.0
      %8308 = vmatprep.subr.mxu0 0.0
      %8309 = vmatpush1.msra.mxu0 0.0
      %8310 = vmatprep.subr.mxu0 0.0
      %8311 = vmatpush1.msra.mxu0 0.0
      %8312 = vmatprep.subr.mxu0 0.0
      %8313 = vmatpush1.msra.mxu0 0.0
      %8314 = vmatprep.subr.mxu0 0.0
      %8315 = vmatpush1.msra.mxu0 0.0
      %8316 = vmatprep.subr.mxu0 0.0
      %8317 = vmatpush1.msra.mxu0 0.0
      %8318 = vmatprep.subr.mxu0 0.0
      %8319 = vmatpush1.msra.mxu0 0.0
      %8320 = vmatprep.subr.mxu0 0.0
      %8321 = vmatpush1.msra.mxu0 0.0
      %8322 = vmatprep.subr.mxu0 0.0
      %8323 = vmatpush1.msra.mxu0 0.0
      %8324 = vmatprep.subr.mxu0 0.0
      %8325 = vmatpush1.msra.mxu0 0.0
      %8326 = vmatprep.subr.mxu0 0.0
      %8327 = vmatpush1.msra.mxu0 0.0
      %8328 = vmatprep.subr.mxu0 0.0
      %8329 = vmatpush1.msra.mxu0 0.0
      %8330 = vmatprep.subr.mxu0 0.0
      %8331 = vmatpush1.msra.mxu0 0.0
      %8332 = vmatprep.subr.mxu0 0.0
      %8333 = vmatpush1.msra.mxu0 0.0
      %8334 = vmatprep.subr.mxu0 0.0
      %8335 = vmatpush1.msra.mxu0 0.0
      %8336 = vmatprep.subr.mxu0 0.0
      %8337 = vmatpush1.msra.mxu0 0.0
      %8338 = vmatprep.subr.mxu0 0.0
      %8339 = vmatpush1.msra.mxu0 0.0
      %8340 = vmatprep.subr.mxu0 0.0
      %8341 = vmatpush1.msra.mxu0 0.0
      %8342 = vmatprep.subr.mxu0 0.0
      %8343 = vmatpush1.msra.mxu0 0.0
      %8344 = vmatprep.subr.mxu0 0.0
      %8345 = vmatpush1.msra.mxu0 0.0
      %8346 = vmatprep.subr.mxu0 0.0
      %8347 = vmatpush1.msra.mxu0 0.0
      %8348 = vmatprep.subr.mxu0 0.0
      %8349 = vmatpush1.msra.mxu0 0.0
      %8350 = vmatprep.subr.mxu0 0.0
      %8351 = vmatpush1.msra.mxu0 0.0
      %8352 = vmatprep.subr.mxu0 0.0
      %8353 = vmatpush1.msra.mxu0 0.0
      %8354 = vmatprep.subr.mxu0 0.0
      %8355 = vmatpush1.msra.mxu0 0.0
      %8356 = vmatprep.mubr.f32.mxu0 0.0
      %8357 = vmatmul.mubr.f32.gmra.mrb[0].mxu0 %v8286
      %v8358 = vpop.f32.mrb[0].mxu0
      %v8359 = vadd.f32 %v8283, %v8358
      %v8360 = vpop.f32.mrb[0].mxu0
      %8361 = vdwg.mxu0
      %v8362 = vsub.f32 0.0, %v8359
      %v8363 = vmul.f32 %v8362, 1.442695
      %v8364 = vpow.pop %v8363
      %v8365 = vadd.f32 %v8364, 1.0
      %v8366 = vrcp.pop %v8365
      %v8367 = vmul.f32 1.0, %v8366
      %v8368 = vlaneseq
      %v8369 = vshrl.u32 %v8368, 7
      %v8370 = vsub.s32 0, %v8369
      %v8371 = vrot.slane %v8367, %v8370
      %v8372 = vmul.f32 %v8103, %v8371
      %v8373 = vmul.f32 %v8104, %v8371
      %v8374 = vmul.f32 %v8105, %v8371
      %v8375 = vmul.f32 %v8106, %v8371
      %v8376 = vmul.f32 %v8107, %v8371
      %v8377 = vmul.f32 %v8108, %v8371
      %v8378 = vmul.f32 %v8109, %v8371
      %v8379 = vmul.f32 %v8110, %v8371
      %v8380 = vmul.f32 %v8111, %v8371
      %v8381 = vmul.f32 %v8112, %v8371
      %v8382 = vmul.f32 %v8113, %v8371
      %v8383 = vmul.f32 %v8114, %v8371
      %v8384 = vmul.f32 %v8115, %v8371
      %v8385 = vmul.f32 %v8116, %v8371
      %v8386 = vmul.f32 %v8117, %v8371
      %v8387 = vmul.f32 %v8118, %v8371
      %v8388 = vmul.f32 %v8119, %v8371
      %v8389 = vmul.f32 %v8120, %v8371
      %v8390 = vmul.f32 %v8121, %v8371
      %v8391 = vmul.f32 %v8122, %v8371
      %v8392 = vmul.f32 %v8123, %v8371
      %v8393 = vmul.f32 %v8124, %v8371
      %v8394 = vmul.f32 %v8125, %v8371
      %v8395 = vmul.f32 %v8126, %v8371
      %v8396 = vmul.f32 %v8127, %v8371
      %v8397 = vmul.f32 %v8128, %v8371
      %v8398 = vmul.f32 %v8129, %v8371
      %v8399 = vmul.f32 %v8130, %v8371
      %v8400 = vmul.f32 %v8131, %v8371
      %v8401 = vmul.f32 %v8132, %v8371
      %v8402 = vmul.f32 %v8133, %v8371
      %v8403 = vmul.f32 %v8134, %v8371
      %8404 = vst.msk [vmem:[%s442] sm:$0xff] %vm446, %v8372
      %8405 = vst.msk [vmem:[%s442 + $0x8] sm:$0xff] %vm446, %v8373
      %8406 = vst.msk [vmem:[%s442 + $0x10] sm:$0xff] %vm446, %v8374
      %8407 = vst.msk [vmem:[%s442 + $0x18] sm:$0xff] %vm446, %v8375
      %8408 = vst.msk [vmem:[%s442 + $0x20] sm:$0xff] %vm446, %v8376
      %8409 = vst.msk [vmem:[%s442 + $0x28] sm:$0xff] %vm446, %v8377
      %8410 = vst.msk [vmem:[%s442 + $0x30] sm:$0xff] %vm446, %v8378
      %8411 = vst.msk [vmem:[%s442 + $0x38] sm:$0xff] %vm446, %v8379
      %8412 = vst.msk [vmem:[%s442 + $0x40] sm:$0xff] %vm446, %v8380
      %8413 = vst.msk [vmem:[%s442 + $0x48] sm:$0xff] %vm446, %v8381
      %8414 = vst.msk [vmem:[%s442 + $0x50] sm:$0xff] %vm446, %v8382
      %8415 = vst.msk [vmem:[%s442 + $0x58] sm:$0xff] %vm446, %v8383
      %8416 = vst.msk [vmem:[%s442 + $0x60] sm:$0xff] %vm446, %v8384
      %8417 = vst.msk [vmem:[%s442 + $0x68] sm:$0xff] %vm446, %v8385
      %8418 = vst.msk [vmem:[%s442 + $0x70] sm:$0xff] %vm446, %v8386
      %8419 = vst.msk [vmem:[%s442 + $0x78] sm:$0xff] %vm446, %v8387
      %8420 = vst.msk [vmem:[%s442 + $0x80] sm:$0xff] %vm446, %v8388
      %8421 = vst.msk [vmem:[%s442 + $0x88] sm:$0xff] %vm446, %v8389
      %8422 = vst.msk [vmem:[%s442 + $0x90] sm:$0xff] %vm446, %v8390
      %8423 = vst.msk [vmem:[%s442 + $0x98] sm:$0xff] %vm446, %v8391
      %8424 = vst.msk [vmem:[%s442 + $0xa0] sm:$0xff] %vm446, %v8392
      %8425 = vst.msk [vmem:[%s442 + $0xa8] sm:$0xff] %vm446, %v8393
      %8426 = vst.msk [vmem:[%s442 + $0xb0] sm:$0xff] %vm446, %v8394
      %8427 = vst.msk [vmem:[%s442 + $0xb8] sm:$0xff] %vm446, %v8395
      %8428 = vst.msk [vmem:[%s442 + $0xc0] sm:$0xff] %vm446, %v8396
      %8429 = vst.msk [vmem:[%s442 + $0xc8] sm:$0xff] %vm446, %v8397
      %8430 = vst.msk [vmem:[%s442 + $0xd0] sm:$0xff] %vm446, %v8398
      %8431 = vst.msk [vmem:[%s442 + $0xd8] sm:$0xff] %vm446, %v8399
      %8432 = vst.msk [vmem:[%s442 + $0xe0] sm:$0xff] %vm446, %v8400
      %8433 = vst.msk [vmem:[%s442 + $0xe8] sm:$0xff] %vm446, %v8401
      %8434 = vst.msk [vmem:[%s442 + $0xf0] sm:$0xff] %vm446, %v8402
      %8435 = vst.msk [vmem:[%s442 + $0xf8] sm:$0xff] %vm446, %v8403
      %p8436 = scmp.lt.s32.totalorder %s26, 1
      %s8437 = scalar_select %p8436, %s26, 1
      %s8438 = smul.addr %s8437, 32
      %s8439 = smul.addr %s8438, 8
      %s8440 = scalar_lea.vmem %s13, %s8439
      // Predicated region
      $region73: #{unet_up_forward.3} parent=71 // pred_check
        %p8441 = pneg %p322
      $region74: #{unet_up_forward.3} parent=71 // pred_check_branch
        %8443 = sbr.rel (%p8441) target = $region76
      $region75: #{unet_up_forward.3} parent=71 // pred_region
        _
      $region76: #{unet_up_forward.3} parent=71 // pred_fallthru
        _
    $region72: #{unet_up_forward.3} parent=5 // pred_fallthru
      _
    %p8444 = scmp.le.s32.totalorder 2, %s21
    // Predicated region
    $region77: #{unet_up_forward.3} parent=5 // pred_check
      %p8445 = pneg %p8444
    $region78: #{unet_up_forward.3} parent=5 // pred_check_branch
      %8447 = sbr.rel (%p8445) target = $region80
    $region79: #{unet_up_forward.3} parent=5 // pred_region
      %s8448 = ssub.s32 %s21, 2
      // Predicated region
      $region81: #{unet_up_forward.3} parent=79 // pred_check
        %p8449 = pneg %p328
      $region82: #{unet_up_forward.3} parent=79 // pred_check_branch
        %8451 = sbr.rel (%p8449) target = $region84
      $region83: #{unet_up_forward.3} parent=79 // pred_region
        %p8452 = scmp.lt.s32.totalorder %s27, 1
        %s8453 = scalar_select %p8452, %s27, 1
        %s8454 = smul.addr %s8453, 32
        %s8455 = smul.addr %s8454, 8
        %s8456 = scalar_lea.vmem %s13, %s8455
      $region84: #{unet_up_forward.3} parent=79 // pred_fallthru
        _
    $region80: #{unet_up_forward.3} parent=5 // pred_fallthru
      _
  $region6: #{unet_up_forward.3} parent=0 // loop_footer
    %s25 = sadd.s32 1, %s21
  $region7: #{unet_up_forward.3} parent=0 // loop_footer_branch
    %20 = sbr.rel target = $region3
  $region8: #{unet_up_forward.3} parent=0 // loop_exit
    _

</llo_original>
